<compile_context>
chip_gen: v5e
topology: v5e:2x2
jax: 0.10.0
libtpu: 0.0.40
codegen_flags: <defaults>
</compile_context>

<pallas_src>
import functools

import jax
import jax.numpy as jnp
from jax.experimental import pallas as pl
from jax.experimental.pallas import tpu as pltpu


# ----------------------------------------------------------------------------- kernel
def _dta_kernel(x_ref, wqkv_ref, wq2_ref, wkv2_ref, wproj_ref, bproj_ref,
                out_ref, attn_ref,
                attn1_scr, ukv_scr,
                *, H, S, F, D, scale):
    hd = D // H
    TS = S * F

    x = x_ref[0]                                                         # (TS, D)
    qkv = jnp.dot(x, wqkv_ref[...], preferred_element_type=jnp.float32)  # (TS, 3D)
    wkv2 = wkv2_ref[...]                                                 # (D, 2D)

    # diag mask: M[n, m] = 1 iff n % S == m % S  -> x_diag[n] = x_defo[n, n % S]
    row_mod = jax.lax.broadcasted_iota(jnp.int32, (TS, TS), 0) % S
    col_mod = jax.lax.broadcasted_iota(jnp.int32, (TS, TS), 1) % S
    diag_mask = (row_mod == col_mod).astype(jnp.float32)                 # (TS, TS)

    # -------- stage 1 (per head): trajectory softmax over f, folded kv2, diagonal ----
    xdiag_blocks = []
    for h in range(H):
        hs, he = h * hd, (h + 1) * hd
        q_h = qkv[:, hs:he]                                              # (TS, hd)
        k_h = qkv[:, D + hs:D + he]
        v_h = qkv[:, 2 * D + hs:2 * D + he]

        # logits[n, m] = q_h[n] . k_h[m]   (m = f*S + s)
        logits = jax.lax.dot_general(q_h, k_h, (((1,), (1,)), ((), ())),
                                     preferred_element_type=jnp.float32) * scale
        # softmax over f (columns grouped per s at stride S); keep attn1 as ONE
        # lane-dense (TS, TS) tile.
        blocks = [logits[:, f * S:(f + 1) * S] for f in range(F)]        # F x (TS, S)
        m = blocks[0]
        for f in range(1, F):
            m = jnp.maximum(m, blocks[f])
        exps = [jnp.exp(b - m) for b in blocks]
        den = exps[0]
        for f in range(1, F):
            den = den + exps[f]
        inv = 1.0 / den
        attn1_h = jnp.concatenate([e * inv for e in exps], axis=-1)      # (TS, TS)
        attn1_scr[h] = attn1_h

        # kv2 projection folded onto v for this input-head block (linearity):
        # ukv_h[m, :] = v_h[m, :] @ W_kv2[h*hd:(h+1)*hd, :]   -> (TS, 2D)
        ukv_scr[h] = jnp.dot(v_h, wkv2[hs:he, :], preferred_element_type=jnp.float32)

        # x_diag[:, h-block] = (attn1_h * diag_mask) @ v_h   (one MXU matmul)
        xdiag_blocks.append(jnp.dot(attn1_h * diag_mask, v_h,
                                    preferred_element_type=jnp.float32))  # (TS, hd)

    x_diag = jnp.concatenate(xdiag_blocks, axis=-1)                      # (TS, D)
    q2 = jnp.dot(x_diag, wq2_ref[...], preferred_element_type=jnp.float32) * scale

    # -------- stage 2: fused space-attention scores ----------------------------------
    # scores_h[n, s] = q2_h[n] . k2[n, s, h-block]
    #               = sum_hp sum_f attn1_hp[n, f*S+s] * (q2_h[n] . uK_hp[f*S+s, h-block])
    G = [None] * H                                                       # H x (TS, TS)
    for hp in range(H):
        a1 = attn1_scr[hp]                                               # (TS, TS)
        ukv_hp = ukv_scr[hp]                                             # (TS, 2D)
        for h in range(H):
            hs, he = h * hd, (h + 1) * hd
            P = jax.lax.dot_general(q2[:, hs:he], ukv_hp[:, hs:he],
                                    (((1,), (1,)), ((), ())),
                                    preferred_element_type=jnp.float32)  # (TS, TS)
            t = a1 * P
            G[h] = t if G[h] is None else G[h] + t

    attn2 = []
    attn2_exp = []
    for h in range(H):
        scores = G[h][:, :S]
        for f in range(1, F):
            scores = scores + G[h][:, f * S:(f + 1) * S]                 # reduce over f
        m2 = jnp.max(scores, axis=-1, keepdims=True)
        e2 = jnp.exp(scores - m2)
        a2 = e2 / jnp.sum(e2, axis=-1, keepdims=True)                    # (TS, S)
        attn2.append(a2)
        attn2_exp.append(jnp.concatenate([a2] * F, axis=-1))             # (TS, TS)

    # -------- stage 3: fused space-attention output -----------------------------------
    # x_out[:, h-block] = sum_hp (attn2_exp_h * attn1_hp) @ uV_hp[:, h-block]
    xout_blocks = [None] * H
    for hp in range(H):
        a1 = attn1_scr[hp]
        ukv_hp = ukv_scr[hp]
        for h in range(H):
            hs, he = h * hd, (h + 1) * hd
            t = jnp.dot(attn2_exp[h] * a1, ukv_hp[:, D + hs:D + he],
                        preferred_element_type=jnp.float32)              # (TS, hd)
            xout_blocks[h] = t if xout_blocks[h] is None else xout_blocks[h] + t

    x_out = jnp.concatenate(xout_blocks, axis=-1)                        # (TS, D)
    out = jnp.dot(x_out, wproj_ref[...], preferred_element_type=jnp.float32) + bproj_ref[...]
    out_ref[0] = out                                                     # single dense store
    attn_ref[0] = jnp.concatenate(attn2, axis=-1)                        # (TS, H*S), lane-dense
    # TODO(synk): attn_drop / proj_drop are nn.Dropout(p=0.0) -> identity at inference.


# ----------------------------------------------------------------------------- wrapper
def deformation_trajectory_attention(x, w_qkv, w_q2, w_kv2, w_proj, b_proj,
                                     *, num_heads, x_size, frame_size):
    B, TS, D = x.shape
    S = x_size * x_size
    F = frame_size
    assert S * F == TS
    H = num_heads
    hd = D // H
    scale = hd ** (-0.5)

    kernel = functools.partial(_dta_kernel, H=H, S=S, F=F, D=D, scale=scale)

    grid_spec = pltpu.PrefetchScalarGridSpec(
        num_scalar_prefetch=0,
        grid=(B,),
        in_specs=[
            pl.BlockSpec((1, TS, D), lambda b: (b, 0, 0)),               # x
            pl.BlockSpec((D, 3 * D), lambda b: (0, 0)),                  # W_qkv
            pl.BlockSpec((D, D), lambda b: (0, 0)),                      # W_q_defo
            pl.BlockSpec((D, 2 * D), lambda b: (0, 0)),                  # W_kv_defo
            pl.BlockSpec((D, D), lambda b: (0, 0)),                      # W_proj
            pl.BlockSpec((1, D), lambda b: (0, 0)),                      # b_proj
        ],
        out_specs=[
            pl.BlockSpec((1, TS, D), lambda b: (b, 0, 0)),               # output
            pl.BlockSpec((1, TS, H * S), lambda b: (b, 0, 0)),           # attn (lane-dense)
        ],
        scratch_shapes=[
            pltpu.VMEM((H, TS, TS), jnp.float32),                        # attn1 per head
            pltpu.VMEM((H, TS, 2 * D), jnp.float32),                     # v @ W_kv2[h-block]
        ],
    )

    out, attn_flat = pl.pallas_call(
        kernel,
        grid_spec=grid_spec,
        out_shape=(jax.ShapeDtypeStruct((B, TS, D), jnp.float32),
                   jax.ShapeDtypeStruct((B, TS, H * S), jnp.float32)),
        compiler_params=pltpu.CompilerParams(dimension_semantics=("parallel",)),
    )(x, w_qkv, w_q2, w_kv2, w_proj, b_proj)

    # layout plumbing only: (B, TS, H*S) -> (B, H, TS, S)
    attn = attn_flat.reshape(B, TS, H, S).transpose(0, 2, 1, 3)
    return out, attn


# ----------------------------------------------------------------------------- reference
def _reference(x, w_qkv, w_q2, w_kv2, w_proj, b_proj, *, num_heads, x_size, frame_size):
    B, TS, D = x.shape
    S, F, H = x_size * x_size, frame_size, num_heads
    hd = D // H
    scale = hd ** (-0.5)

    qkv = x @ w_qkv
    q, k, v = qkv[..., :D], qkv[..., D:2 * D], qkv[..., 2 * D:]

    def split_heads(t):  # (B, TS, D) -> (B*H, TS, hd)
        return t.reshape(B, TS, H, hd).transpose(0, 2, 1, 3).reshape(B * H, TS, hd)

    q_, k_, v_ = map(split_heads, (q, k, v))
    qdk = jnp.einsum('bnd,bmd->bnm', q_, k_)                       # (BH, TS, TS)
    qdk = qdk.reshape(B * H, TS, F, S).transpose(0, 1, 3, 2)       # b n s f
    attn1 = jax.nn.softmax(scale * qdk, axis=-1)
    v_defo = v_.reshape(B * H, F, S, hd).transpose(0, 2, 1, 3)     # b s f d
    x_defo = jnp.einsum('bnsf,bsfd->bnsd', attn1, v_defo)          # (BH, TS, S, hd)
    x_defo = x_defo.reshape(B, H, TS, S, hd).transpose(0, 2, 3, 1, 4).reshape(B, TS, S, D)

    xr = x_defo.reshape(B, F, S, S, D)                             # (b, f, g, s, d)
    idx = jnp.arange(S)
    x_diag = xr[:, :, idx, idx, :].reshape(B, TS, D)               # n = f*S + s -> x_defo[n, n%S]

    q2 = (x_diag @ w_q2).reshape(B, TS, H, hd).transpose(0, 2, 1, 3) * scale   # (B,H,TS,hd)
    kv2 = x_defo @ w_kv2
    k2, v2 = kv2[..., :D], kv2[..., D:]

    def split_heads2(t):  # (B, TS, S, D) -> (B, H, TS, S, hd)
        return t.reshape(B, TS, S, H, hd).transpose(0, 3, 1, 2, 4)

    k2, v2 = split_heads2(k2), split_heads2(v2)
    sattn = jax.nn.softmax(jnp.einsum('bhnd,bhnsd->bhns', q2, k2), axis=-1)
    xo = jnp.einsum('bhns,bhnsd->bhnd', sattn, v2)
    xo = xo.transpose(0, 2, 1, 3).reshape(B, TS, D)
    out = xo @ w_proj + b_proj
    return out, sattn


# ----------------------------------------------------------------------------- main
if __name__ == "__main__":
    B = 2
    dim = 32
    num_heads = 4
    x_size = 4          # S = 16 spatial tokens per frame
    y_size = 4          # unused by forward (kept for parity with the module signature)
    frame_size = 4      # F = 4 frames
    S = x_size * x_size
    F = frame_size
    TS = S * F

    key = jax.random.PRNGKey(0)
    k0, k1, k2, k3, k4 = jax.random.split(key, 5)

    def xavier(k, fan_in, fan_out):
        bound = (6.0 / (fan_in + fan_out)) ** 0.5
        return jax.random.uniform(k, (fan_in, fan_out), jnp.float32, -bound, bound)

    # Linear weights stored as (in, out); qkv/proj_q_defo/proj_kv_defo have no bias
    # (qkv_bias=False), proj bias is zero-initialised.
    w_qkv = xavier(k0, dim, 3 * dim)
    w_q2 = xavier(k1, dim, dim)
    w_kv2 = xavier(k2, dim, 2 * dim)
    w_proj = xavier(k3, dim, dim)
    b_proj = jnp.zeros((1, dim), jnp.float32)

    x = jax.random.normal(k4, (B, TS, dim), jnp.float32)

    out, attn = deformation_trajectory_attention(
        x, w_qkv, w_q2, w_kv2, w_proj, b_proj,
        num_heads=num_heads, x_size=x_size, frame_size=frame_size)
    jax.block_until_ready((out, attn))

    ref_out, ref_attn = _reference(
        x, w_qkv, w_q2, w_kv2, w_proj, b_proj[0],
        num_heads=num_heads, x_size=x_size, frame_size=frame_size)

    assert out.shape == (B, TS, dim)
    assert attn.shape == (B, num_heads, TS, S)
    err_out = float(jnp.max(jnp.abs(out - ref_out)))
    err_attn = float(jnp.max(jnp.abs(attn - ref_attn)))
    assert err_out < 2e-4, f"output mismatch: {err_out}"
    assert err_attn < 2e-4, f"attention mismatch: {err_attn}"
    print("KERNEL_OK")
</pallas_src>

<mosaic_0001>
module attributes {stable_mosaic.version = 11 : i64} {
  func.func @_dta_kernel(%arg0: i32, %arg1: memref<1x64x32xf32, #tpu.memory_space<vmem>>, %arg2: memref<32x96xf32, #tpu.memory_space<vmem>>, %arg3: memref<32x32xf32, #tpu.memory_space<vmem>>, %arg4: memref<32x64xf32, #tpu.memory_space<vmem>>, %arg5: memref<32x32xf32, #tpu.memory_space<vmem>>, %arg6: memref<1x32xf32, #tpu.memory_space<vmem>>, %arg7: memref<1x64x32xf32, #tpu.memory_space<vmem>>, %arg8: memref<1x64x64xf32, #tpu.memory_space<vmem>>, %arg9: memref<4x64x64xf32, #tpu.memory_space<vmem>>, %arg10: memref<4x64x64xf32, #tpu.memory_space<vmem>>) attributes {dimension_semantics = [#tpu.dimension_semantics<parallel>], iteration_bounds = array<i64: 2>, scalar_prefetch = 0 : i64, scratch_operands = 2 : i64, tpu.core_type = #tpu.core_type<tc>, window_params = [{transform_indices = @transform_0, window_bounds = array<i64: 1, 64, 32>}, {pipeline_mode = #tpu.pipeline_mode<synchronous>, transform_indices = @transform_1, window_bounds = array<i64: 32, 96>}, {pipeline_mode = #tpu.pipeline_mode<synchronous>, transform_indices = @transform_2, window_bounds = array<i64: 32, 32>}, {pipeline_mode = #tpu.pipeline_mode<synchronous>, transform_indices = @transform_3, window_bounds = array<i64: 32, 64>}, {pipeline_mode = #tpu.pipeline_mode<synchronous>, transform_indices = @transform_4, window_bounds = array<i64: 32, 32>}, {pipeline_mode = #tpu.pipeline_mode<synchronous>, transform_indices = @transform_5, window_bounds = array<i64: 1, 32>}, {transform_indices = @transform_6, window_bounds = array<i64: 1, 64, 32>}, {transform_indices = @transform_7, window_bounds = array<i64: 1, 64, 64>}]} {
    %c0 = arith.constant 0 : index
    %c0_0 = arith.constant 0 : index
    %c0_1 = arith.constant 0 : index
    %0 = vector.load %arg1[%c0, %c0_0, %c0_1] : memref<1x64x32xf32, #tpu.memory_space<vmem>>, vector<1x64x32xf32>
    %1 = vector.shape_cast %0 : vector<1x64x32xf32> to vector<64x32xf32>
    %c0_2 = arith.constant 0 : index
    %c0_3 = arith.constant 0 : index
    %2 = vector.load %arg2[%c0_2, %c0_3] : memref<32x96xf32, #tpu.memory_space<vmem>>, vector<32x96xf32>
    %cst = arith.constant dense<0.000000e+00> : vector<64x96xf32>
    %3 = tpu.matmul %1, %2, %cst {dimension_numbers = #tpu.dot_dimension_numbers<[1], [0], [0], [1], [0, 0, 1, 1], [], []>} : vector<64x32xf32>, vector<32x96xf32>, vector<64x96xf32> -> vector<64x96xf32>
    %c0_4 = arith.constant 0 : index
    %c0_5 = arith.constant 0 : index
    %4 = vector.load %arg4[%c0_4, %c0_5] : memref<32x64xf32, #tpu.memory_space<vmem>>, vector<32x64xf32>
    %5 = tpu.iota {dimensions = array<i32: 0>} : vector<64x64xi32>
    %c16_i32 = arith.constant 16 : i32
    %c0_i32 = arith.constant 0 : i32
    %6 = arith.cmpi eq, %c16_i32, %c0_i32 : i32
    %c1_i32 = arith.constant 1 : i32
    %7 = arith.select %6, %c1_i32, %c16_i32 : i32
    %8 = vector.broadcast %7 : i32 to vector<64x64xi32>
    %9 = arith.remsi %5, %8 : vector<64x64xi32>
    %c0_i32_6 = arith.constant 0 : i32
    %10 = vector.broadcast %c0_i32_6 : i32 to vector<64x64xi32>
    %11 = arith.cmpi ne, %9, %10 : vector<64x64xi32>
    %c0_i32_7 = arith.constant 0 : i32
    %12 = vector.broadcast %c0_i32_7 : i32 to vector<64x64xi32>
    %13 = arith.cmpi slt, %9, %12 : vector<64x64xi32>
    %c0_i32_8 = arith.constant 0 : i32
    %14 = arith.cmpi slt, %7, %c0_i32_8 : i32
    %15 = vector.broadcast %14 : i1 to vector<64x64xi1>
    %16 = vector.broadcast %15 : vector<64x64xi1> to vector<64x64xi1>
    %17 = arith.xori %13, %16 : vector<64x64xi1>
    %18 = arith.andi %17, %11 : vector<64x64xi1>
    %19 = vector.broadcast %7 : i32 to vector<64x64xi32>
    %20 = arith.addi %9, %19 : vector<64x64xi32>
    %21 = arith.select %18, %20, %9 : vector<64x64xi1>, vector<64x64xi32>
    %22 = tpu.iota {dimensions = array<i32: 1>} : vector<64x64xi32>
    %c16_i32_9 = arith.constant 16 : i32
    %c0_i32_10 = arith.constant 0 : i32
    %23 = arith.cmpi eq, %c16_i32_9, %c0_i32_10 : i32
    %c1_i32_11 = arith.constant 1 : i32
    %24 = arith.select %23, %c1_i32_11, %c16_i32_9 : i32
    %25 = vector.broadcast %24 : i32 to vector<64x64xi32>
    %26 = arith.remsi %22, %25 : vector<64x64xi32>
    %c0_i32_12 = arith.constant 0 : i32
    %27 = vector.broadcast %c0_i32_12 : i32 to vector<64x64xi32>
    %28 = arith.cmpi ne, %26, %27 : vector<64x64xi32>
    %c0_i32_13 = arith.constant 0 : i32
    %29 = vector.broadcast %c0_i32_13 : i32 to vector<64x64xi32>
    %30 = arith.cmpi slt, %26, %29 : vector<64x64xi32>
    %c0_i32_14 = arith.constant 0 : i32
    %31 = arith.cmpi slt, %24, %c0_i32_14 : i32
    %32 = vector.broadcast %31 : i1 to vector<64x64xi1>
    %33 = vector.broadcast %32 : vector<64x64xi1> to vector<64x64xi1>
    %34 = arith.xori %30, %33 : vector<64x64xi1>
    %35 = arith.andi %34, %28 : vector<64x64xi1>
    %36 = vector.broadcast %24 : i32 to vector<64x64xi32>
    %37 = arith.addi %26, %36 : vector<64x64xi32>
    %38 = arith.select %35, %37, %26 : vector<64x64xi1>, vector<64x64xi32>
    %39 = arith.cmpi eq, %21, %38 : vector<64x64xi32>
    %40 = arith.extui %39 : vector<64x64xi1> to vector<64x64xi32>
    %41 = arith.sitofp %40 : vector<64x64xi32> to vector<64x64xf32>
    %42 = vector.extract_strided_slice %3 {offsets = [0, 0], sizes = [64, 8], strides = [1, 1]} : vector<64x96xf32> to vector<64x8xf32>
    %43 = vector.extract_strided_slice %3 {offsets = [0, 32], sizes = [64, 8], strides = [1, 1]} : vector<64x96xf32> to vector<64x8xf32>
    %44 = vector.extract_strided_slice %3 {offsets = [0, 64], sizes = [64, 8], strides = [1, 1]} : vector<64x96xf32> to vector<64x8xf32>
    %cst_15 = arith.constant dense<0.000000e+00> : vector<64x64xf32>
    %45 = tpu.matmul %42, %43, %cst_15 {dimension_numbers = #tpu.dot_dimension_numbers<[1], [1], [0], [0], [0, 0, 1, 0], [], []>} : vector<64x8xf32>, vector<64x8xf32>, vector<64x64xf32> -> vector<64x64xf32>
    %cst_16 = arith.constant 0.353553385 : f32
    %46 = vector.broadcast %cst_16 : f32 to vector<64x64xf32>
    %47 = arith.mulf %45, %46 : vector<64x64xf32>
    %48 = vector.extract_strided_slice %47 {offsets = [0, 0], sizes = [64, 16], strides = [1, 1]} : vector<64x64xf32> to vector<64x16xf32>
    %49 = vector.extract_strided_slice %47 {offsets = [0, 16], sizes = [64, 16], strides = [1, 1]} : vector<64x64xf32> to vector<64x16xf32>
    %50 = vector.extract_strided_slice %47 {offsets = [0, 32], sizes = [64, 16], strides = [1, 1]} : vector<64x64xf32> to vector<64x16xf32>
    %51 = vector.extract_strided_slice %47 {offsets = [0, 48], sizes = [64, 16], strides = [1, 1]} : vector<64x64xf32> to vector<64x16xf32>
    %52 = arith.maximumf %48, %49 : vector<64x16xf32>
    %53 = arith.maximumf %52, %50 : vector<64x16xf32>
    %54 = arith.maximumf %53, %51 : vector<64x16xf32>
    %55 = arith.subf %48, %54 : vector<64x16xf32>
    %56 = math.exp %55 : vector<64x16xf32>
    %57 = arith.subf %49, %54 : vector<64x16xf32>
    %58 = math.exp %57 : vector<64x16xf32>
    %59 = arith.subf %50, %54 : vector<64x16xf32>
    %60 = math.exp %59 : vector<64x16xf32>
    %61 = arith.subf %51, %54 : vector<64x16xf32>
    %62 = math.exp %61 : vector<64x16xf32>
    %63 = arith.addf %56, %58 : vector<64x16xf32>
    %64 = arith.addf %63, %60 : vector<64x16xf32>
    %65 = arith.addf %64, %62 : vector<64x16xf32>
    %cst_17 = arith.constant 1.000000e+00 : f32
    %66 = vector.broadcast %cst_17 : f32 to vector<64x16xf32>
    %67 = arith.divf %66, %65 : vector<64x16xf32>
    %68 = arith.mulf %56, %67 : vector<64x16xf32>
    %69 = arith.mulf %58, %67 : vector<64x16xf32>
    %70 = arith.mulf %60, %67 : vector<64x16xf32>
    %71 = arith.mulf %62, %67 : vector<64x16xf32>
    %72 = tpu.concatenate %68, %69, %70, %71 in 1 : vector<64x16xf32>, vector<64x16xf32>, vector<64x16xf32>, vector<64x16xf32> -> vector<64x64xf32>
    %c0_18 = arith.constant 0 : index
    %c0_19 = arith.constant 0 : index
    %c0_20 = arith.constant 0 : index
    %73 = vector.load %arg9[%c0_18, %c0_19, %c0_20] : memref<4x64x64xf32, #tpu.memory_space<vmem>>, vector<1x64x64xf32>
    %74 = vector.shape_cast %73 : vector<1x64x64xf32> to vector<64x64xf32>
    %75 = vector.shape_cast %72 : vector<64x64xf32> to vector<1x64x64xf32>
    tpu.vector_store %arg9[%c0_18, %c0_19, %c0_20], %75 {strides = array<i32>} : memref<4x64x64xf32, #tpu.memory_space<vmem>>, vector<1x64x64xf32>,
    %76 = vector.extract_strided_slice %4 {offsets = [0, 0], sizes = [8, 64], strides = [1, 1]} : vector<32x64xf32> to vector<8x64xf32>
    %cst_21 = arith.constant dense<0.000000e+00> : vector<64x64xf32>
    %77 = tpu.matmul %44, %76, %cst_21 {dimension_numbers = #tpu.dot_dimension_numbers<[1], [0], [0], [1], [0, 0, 1, 1], [], []>} : vector<64x8xf32>, vector<8x64xf32>, vector<64x64xf32> -> vector<64x64xf32>
    %c0_22 = arith.constant 0 : index
    %c0_23 = arith.constant 0 : index
    %c0_24 = arith.constant 0 : index
    %78 = vector.load %arg10[%c0_22, %c0_23, %c0_24] : memref<4x64x64xf32, #tpu.memory_space<vmem>>, vector<1x64x64xf32>
    %79 = vector.shape_cast %78 : vector<1x64x64xf32> to vector<64x64xf32>
    %80 = vector.shape_cast %77 : vector<64x64xf32> to vector<1x64x64xf32>
    tpu.vector_store %arg10[%c0_22, %c0_23, %c0_24], %80 {strides = array<i32>} : memref<4x64x64xf32, #tpu.memory_space<vmem>>, vector<1x64x64xf32>,
    %81 = arith.mulf %72, %41 : vector<64x64xf32>
    %cst_25 = arith.constant dense<0.000000e+00> : vector<64x8xf32>
    %82 = tpu.matmul %81, %44, %cst_25 {dimension_numbers = #tpu.dot_dimension_numbers<[1], [0], [0], [1], [0, 0, 1, 1], [], []>} : vector<64x64xf32>, vector<64x8xf32>, vector<64x8xf32> -> vector<64x8xf32>
    %83 = vector.extract_strided_slice %3 {offsets = [0, 8], sizes = [64, 8], strides = [1, 1]} : vector<64x96xf32> to vector<64x8xf32>
    %84 = vector.extract_strided_slice %3 {offsets = [0, 40], sizes = [64, 8], strides = [1, 1]} : vector<64x96xf32> to vector<64x8xf32>
    %85 = vector.extract_strided_slice %3 {offsets = [0, 72], sizes = [64, 8], strides = [1, 1]} : vector<64x96xf32> to vector<64x8xf32>
    %cst_26 = arith.constant dense<0.000000e+00> : vector<64x64xf32>
    %86 = tpu.matmul %83, %84, %cst_26 {dimension_numbers = #tpu.dot_dimension_numbers<[1], [1], [0], [0], [0, 0, 1, 0], [], []>} : vector<64x8xf32>, vector<64x8xf32>, vector<64x64xf32> -> vector<64x64xf32>
    %cst_27 = arith.constant 0.353553385 : f32
    %87 = vector.broadcast %cst_27 : f32 to vector<64x64xf32>
    %88 = arith.mulf %86, %87 : vector<64x64xf32>
    %89 = vector.extract_strided_slice %88 {offsets = [0, 0], sizes = [64, 16], strides = [1, 1]} : vector<64x64xf32> to vector<64x16xf32>
    %90 = vector.extract_strided_slice %88 {offsets = [0, 16], sizes = [64, 16], strides = [1, 1]} : vector<64x64xf32> to vector<64x16xf32>
    %91 = vector.extract_strided_slice %88 {offsets = [0, 32], sizes = [64, 16], strides = [1, 1]} : vector<64x64xf32> to vector<64x16xf32>
    %92 = vector.extract_strided_slice %88 {offsets = [0, 48], sizes = [64, 16], strides = [1, 1]} : vector<64x64xf32> to vector<64x16xf32>
    %93 = arith.maximumf %89, %90 : vector<64x16xf32>
    %94 = arith.maximumf %93, %91 : vector<64x16xf32>
    %95 = arith.maximumf %94, %92 : vector<64x16xf32>
    %96 = arith.subf %89, %95 : vector<64x16xf32>
    %97 = math.exp %96 : vector<64x16xf32>
    %98 = arith.subf %90, %95 : vector<64x16xf32>
    %99 = math.exp %98 : vector<64x16xf32>
    %100 = arith.subf %91, %95 : vector<64x16xf32>
    %101 = math.exp %100 : vector<64x16xf32>
    %102 = arith.subf %92, %95 : vector<64x16xf32>
    %103 = math.exp %102 : vector<64x16xf32>
    %104 = arith.addf %97, %99 : vector<64x16xf32>
    %105 = arith.addf %104, %101 : vector<64x16xf32>
    %106 = arith.addf %105, %103 : vector<64x16xf32>
    %cst_28 = arith.constant 1.000000e+00 : f32
    %107 = vector.broadcast %cst_28 : f32 to vector<64x16xf32>
    %108 = arith.divf %107, %106 : vector<64x16xf32>
    %109 = arith.mulf %97, %108 : vector<64x16xf32>
    %110 = arith.mulf %99, %108 : vector<64x16xf32>
    %111 = arith.mulf %101, %108 : vector<64x16xf32>
    %112 = arith.mulf %103, %108 : vector<64x16xf32>
    %113 = tpu.concatenate %109, %110, %111, %112 in 1 : vector<64x16xf32>, vector<64x16xf32>, vector<64x16xf32>, vector<64x16xf32> -> vector<64x64xf32>
    %c1 = arith.constant 1 : index
    %c0_29 = arith.constant 0 : index
    %c0_30 = arith.constant 0 : index
    %114 = vector.load %arg9[%c1, %c0_29, %c0_30] : memref<4x64x64xf32, #tpu.memory_space<vmem>>, vector<1x64x64xf32>
    %115 = vector.shape_cast %114 : vector<1x64x64xf32> to vector<64x64xf32>
    %116 = vector.shape_cast %113 : vector<64x64xf32> to vector<1x64x64xf32>
    tpu.vector_store %arg9[%c1, %c0_29, %c0_30], %116 {strides = array<i32>} : memref<4x64x64xf32, #tpu.memory_space<vmem>>, vector<1x64x64xf32>,
    %117 = vector.extract_strided_slice %4 {offsets = [8, 0], sizes = [8, 64], strides = [1, 1]} : vector<32x64xf32> to vector<8x64xf32>
    %cst_31 = arith.constant dense<0.000000e+00> : vector<64x64xf32>
    %118 = tpu.matmul %85, %117, %cst_31 {dimension_numbers = #tpu.dot_dimension_numbers<[1], [0], [0], [1], [0, 0, 1, 1], [], []>} : vector<64x8xf32>, vector<8x64xf32>, vector<64x64xf32> -> vector<64x64xf32>
    %c1_32 = arith.constant 1 : index
    %c0_33 = arith.constant 0 : index
    %c0_34 = arith.constant 0 : index
    %119 = vector.load %arg10[%c1_32, %c0_33, %c0_34] : memref<4x64x64xf32, #tpu.memory_space<vmem>>, vector<1x64x64xf32>
    %120 = vector.shape_cast %119 : vector<1x64x64xf32> to vector<64x64xf32>
    %121 = vector.shape_cast %118 : vector<64x64xf32> to vector<1x64x64xf32>
    tpu.vector_store %arg10[%c1_32, %c0_33, %c0_34], %121 {strides = array<i32>} : memref<4x64x64xf32, #tpu.memory_space<vmem>>, vector<1x64x64xf32>,
    %122 = arith.mulf %113, %41 : vector<64x64xf32>
    %cst_35 = arith.constant dense<0.000000e+00> : vector<64x8xf32>
    %123 = tpu.matmul %122, %85, %cst_35 {dimension_numbers = #tpu.dot_dimension_numbers<[1], [0], [0], [1], [0, 0, 1, 1], [], []>} : vector<64x64xf32>, vector<64x8xf32>, vector<64x8xf32> -> vector<64x8xf32>
    %124 = vector.extract_strided_slice %3 {offsets = [0, 16], sizes = [64, 8], strides = [1, 1]} : vector<64x96xf32> to vector<64x8xf32>
    %125 = vector.extract_strided_slice %3 {offsets = [0, 48], sizes = [64, 8], strides = [1, 1]} : vector<64x96xf32> to vector<64x8xf32>
    %126 = vector.extract_strided_slice %3 {offsets = [0, 80], sizes = [64, 8], strides = [1, 1]} : vector<64x96xf32> to vector<64x8xf32>
    %cst_36 = arith.constant dense<0.000000e+00> : vector<64x64xf32>
    %127 = tpu.matmul %124, %125, %cst_36 {dimension_numbers = #tpu.dot_dimension_numbers<[1], [1], [0], [0], [0, 0, 1, 0], [], []>} : vector<64x8xf32>, vector<64x8xf32>, vector<64x64xf32> -> vector<64x64xf32>
    %cst_37 = arith.constant 0.353553385 : f32
    %128 = vector.broadcast %cst_37 : f32 to vector<64x64xf32>
    %129 = arith.mulf %127, %128 : vector<64x64xf32>
    %130 = vector.extract_strided_slice %129 {offsets = [0, 0], sizes = [64, 16], strides = [1, 1]} : vector<64x64xf32> to vector<64x16xf32>
    %131 = vector.extract_strided_slice %129 {offsets = [0, 16], sizes = [64, 16], strides = [1, 1]} : vector<64x64xf32> to vector<64x16xf32>
    %132 = vector.extract_strided_slice %129 {offsets = [0, 32], sizes = [64, 16], strides = [1, 1]} : vector<64x64xf32> to vector<64x16xf32>
    %133 = vector.extract_strided_slice %129 {offsets = [0, 48], sizes = [64, 16], strides = [1, 1]} : vector<64x64xf32> to vector<64x16xf32>
    %134 = arith.maximumf %130, %131 : vector<64x16xf32>
    %135 = arith.maximumf %134, %132 : vector<64x16xf32>
    %136 = arith.maximumf %135, %133 : vector<64x16xf32>
    %137 = arith.subf %130, %136 : vector<64x16xf32>
    %138 = math.exp %137 : vector<64x16xf32>
    %139 = arith.subf %131, %136 : vector<64x16xf32>
    %140 = math.exp %139 : vector<64x16xf32>
    %141 = arith.subf %132, %136 : vector<64x16xf32>
    %142 = math.exp %141 : vector<64x16xf32>
    %143 = arith.subf %133, %136 : vector<64x16xf32>
    %144 = math.exp %143 : vector<64x16xf32>
    %145 = arith.addf %138, %140 : vector<64x16xf32>
    %146 = arith.addf %145, %142 : vector<64x16xf32>
    %147 = arith.addf %146, %144 : vector<64x16xf32>
    %cst_38 = arith.constant 1.000000e+00 : f32
    %148 = vector.broadcast %cst_38 : f32 to vector<64x16xf32>
    %149 = arith.divf %148, %147 : vector<64x16xf32>
    %150 = arith.mulf %138, %149 : vector<64x16xf32>
    %151 = arith.mulf %140, %149 : vector<64x16xf32>
    %152 = arith.mulf %142, %149 : vector<64x16xf32>
    %153 = arith.mulf %144, %149 : vector<64x16xf32>
    %154 = tpu.concatenate %150, %151, %152, %153 in 1 : vector<64x16xf32>, vector<64x16xf32>, vector<64x16xf32>, vector<64x16xf32> -> vector<64x64xf32>
    %c2 = arith.constant 2 : index
    %c0_39 = arith.constant 0 : index
    %c0_40 = arith.constant 0 : index
    %155 = vector.load %arg9[%c2, %c0_39, %c0_40] : memref<4x64x64xf32, #tpu.memory_space<vmem>>, vector<1x64x64xf32>
    %156 = vector.shape_cast %155 : vector<1x64x64xf32> to vector<64x64xf32>
    %157 = vector.shape_cast %154 : vector<64x64xf32> to vector<1x64x64xf32>
    tpu.vector_store %arg9[%c2, %c0_39, %c0_40], %157 {strides = array<i32>} : memref<4x64x64xf32, #tpu.memory_space<vmem>>, vector<1x64x64xf32>,
    %158 = vector.extract_strided_slice %4 {offsets = [16, 0], sizes = [8, 64], strides = [1, 1]} : vector<32x64xf32> to vector<8x64xf32>
    %cst_41 = arith.constant dense<0.000000e+00> : vector<64x64xf32>
    %159 = tpu.matmul %126, %158, %cst_41 {dimension_numbers = #tpu.dot_dimension_numbers<[1], [0], [0], [1], [0, 0, 1, 1], [], []>} : vector<64x8xf32>, vector<8x64xf32>, vector<64x64xf32> -> vector<64x64xf32>
    %c2_42 = arith.constant 2 : index
    %c0_43 = arith.constant 0 : index
    %c0_44 = arith.constant 0 : index
    %160 = vector.load %arg10[%c2_42, %c0_43, %c0_44] : memref<4x64x64xf32, #tpu.memory_space<vmem>>, vector<1x64x64xf32>
    %161 = vector.shape_cast %160 : vector<1x64x64xf32> to vector<64x64xf32>
    %162 = vector.shape_cast %159 : vector<64x64xf32> to vector<1x64x64xf32>
    tpu.vector_store %arg10[%c2_42, %c0_43, %c0_44], %162 {strides = array<i32>} : memref<4x64x64xf32, #tpu.memory_space<vmem>>, vector<1x64x64xf32>,
    %163 = arith.mulf %154, %41 : vector<64x64xf32>
    %cst_45 = arith.constant dense<0.000000e+00> : vector<64x8xf32>
    %164 = tpu.matmul %163, %126, %cst_45 {dimension_numbers = #tpu.dot_dimension_numbers<[1], [0], [0], [1], [0, 0, 1, 1], [], []>} : vector<64x64xf32>, vector<64x8xf32>, vector<64x8xf32> -> vector<64x8xf32>
    %165 = vector.extract_strided_slice %3 {offsets = [0, 24], sizes = [64, 8], strides = [1, 1]} : vector<64x96xf32> to vector<64x8xf32>
    %166 = vector.extract_strided_slice %3 {offsets = [0, 56], sizes = [64, 8], strides = [1, 1]} : vector<64x96xf32> to vector<64x8xf32>
    %167 = vector.extract_strided_slice %3 {offsets = [0, 88], sizes = [64, 8], strides = [1, 1]} : vector<64x96xf32> to vector<64x8xf32>
    %cst_46 = arith.constant dense<0.000000e+00> : vector<64x64xf32>
    %168 = tpu.matmul %165, %166, %cst_46 {dimension_numbers = #tpu.dot_dimension_numbers<[1], [1], [0], [0], [0, 0, 1, 0], [], []>} : vector<64x8xf32>, vector<64x8xf32>, vector<64x64xf32> -> vector<64x64xf32>
    %cst_47 = arith.constant 0.353553385 : f32
    %169 = vector.broadcast %cst_47 : f32 to vector<64x64xf32>
    %170 = arith.mulf %168, %169 : vector<64x64xf32>
    %171 = vector.extract_strided_slice %170 {offsets = [0, 0], sizes = [64, 16], strides = [1, 1]} : vector<64x64xf32> to vector<64x16xf32>
    %172 = vector.extract_strided_slice %170 {offsets = [0, 16], sizes = [64, 16], strides = [1, 1]} : vector<64x64xf32> to vector<64x16xf32>
    %173 = vector.extract_strided_slice %170 {offsets = [0, 32], sizes = [64, 16], strides = [1, 1]} : vector<64x64xf32> to vector<64x16xf32>
    %174 = vector.extract_strided_slice %170 {offsets = [0, 48], sizes = [64, 16], strides = [1, 1]} : vector<64x64xf32> to vector<64x16xf32>
    %175 = arith.maximumf %171, %172 : vector<64x16xf32>
    %176 = arith.maximumf %175, %173 : vector<64x16xf32>
    %177 = arith.maximumf %176, %174 : vector<64x16xf32>
    %178 = arith.subf %171, %177 : vector<64x16xf32>
    %179 = math.exp %178 : vector<64x16xf32>
    %180 = arith.subf %172, %177 : vector<64x16xf32>
    %181 = math.exp %180 : vector<64x16xf32>
    %182 = arith.subf %173, %177 : vector<64x16xf32>
    %183 = math.exp %182 : vector<64x16xf32>
    %184 = arith.subf %174, %177 : vector<64x16xf32>
    %185 = math.exp %184 : vector<64x16xf32>
    %186 = arith.addf %179, %181 : vector<64x16xf32>
    %187 = arith.addf %186, %183 : vector<64x16xf32>
    %188 = arith.addf %187, %185 : vector<64x16xf32>
    %cst_48 = arith.constant 1.000000e+00 : f32
    %189 = vector.broadcast %cst_48 : f32 to vector<64x16xf32>
    %190 = arith.divf %189, %188 : vector<64x16xf32>
    %191 = arith.mulf %179, %190 : vector<64x16xf32>
    %192 = arith.mulf %181, %190 : vector<64x16xf32>
    %193 = arith.mulf %183, %190 : vector<64x16xf32>
    %194 = arith.mulf %185, %190 : vector<64x16xf32>
    %195 = tpu.concatenate %191, %192, %193, %194 in 1 : vector<64x16xf32>, vector<64x16xf32>, vector<64x16xf32>, vector<64x16xf32> -> vector<64x64xf32>
    %c3 = arith.constant 3 : index
    %c0_49 = arith.constant 0 : index
    %c0_50 = arith.constant 0 : index
    %196 = vector.load %arg9[%c3, %c0_49, %c0_50] : memref<4x64x64xf32, #tpu.memory_space<vmem>>, vector<1x64x64xf32>
    %197 = vector.shape_cast %196 : vector<1x64x64xf32> to vector<64x64xf32>
    %198 = vector.shape_cast %195 : vector<64x64xf32> to vector<1x64x64xf32>
    tpu.vector_store %arg9[%c3, %c0_49, %c0_50], %198 {strides = array<i32>} : memref<4x64x64xf32, #tpu.memory_space<vmem>>, vector<1x64x64xf32>,
    %199 = vector.extract_strided_slice %4 {offsets = [24, 0], sizes = [8, 64], strides = [1, 1]} : vector<32x64xf32> to vector<8x64xf32>
    %cst_51 = arith.constant dense<0.000000e+00> : vector<64x64xf32>
    %200 = tpu.matmul %167, %199, %cst_51 {dimension_numbers = #tpu.dot_dimension_numbers<[1], [0], [0], [1], [0, 0, 1, 1], [], []>} : vector<64x8xf32>, vector<8x64xf32>, vector<64x64xf32> -> vector<64x64xf32>
    %c3_52 = arith.constant 3 : index
    %c0_53 = arith.constant 0 : index
    %c0_54 = arith.constant 0 : index
    %201 = vector.load %arg10[%c3_52, %c0_53, %c0_54] : memref<4x64x64xf32, #tpu.memory_space<vmem>>, vector<1x64x64xf32>
    %202 = vector.shape_cast %201 : vector<1x64x64xf32> to vector<64x64xf32>
    %203 = vector.shape_cast %200 : vector<64x64xf32> to vector<1x64x64xf32>
    tpu.vector_store %arg10[%c3_52, %c0_53, %c0_54], %203 {strides = array<i32>} : memref<4x64x64xf32, #tpu.memory_space<vmem>>, vector<1x64x64xf32>,
    %204 = arith.mulf %195, %41 : vector<64x64xf32>
    %cst_55 = arith.constant dense<0.000000e+00> : vector<64x8xf32>
    %205 = tpu.matmul %204, %167, %cst_55 {dimension_numbers = #tpu.dot_dimension_numbers<[1], [0], [0], [1], [0, 0, 1, 1], [], []>} : vector<64x64xf32>, vector<64x8xf32>, vector<64x8xf32> -> vector<64x8xf32>
    %206 = tpu.concatenate %82, %123, %164, %205 in 1 : vector<64x8xf32>, vector<64x8xf32>, vector<64x8xf32>, vector<64x8xf32> -> vector<64x32xf32>
    %c0_56 = arith.constant 0 : index
    %c0_57 = arith.constant 0 : index
    %207 = vector.load %arg3[%c0_56, %c0_57] : memref<32x32xf32, #tpu.memory_space<vmem>>, vector<32x32xf32>
    %cst_58 = arith.constant dense<0.000000e+00> : vector<64x32xf32>
    %208 = tpu.matmul %206, %207, %cst_58 {dimension_numbers = #tpu.dot_dimension_numbers<[1], [0], [0], [1], [0, 0, 1, 1], [], []>} : vector<64x32xf32>, vector<32x32xf32>, vector<64x32xf32> -> vector<64x32xf32>
    %cst_59 = arith.constant 0.353553385 : f32
    %209 = vector.broadcast %cst_59 : f32 to vector<64x32xf32>
    %210 = arith.mulf %208, %209 : vector<64x32xf32>
    %c0_60 = arith.constant 0 : index
    %c0_61 = arith.constant 0 : index
    %c0_62 = arith.constant 0 : index
    %211 = vector.load %arg9[%c0_60, %c0_61, %c0_62] : memref<4x64x64xf32, #tpu.memory_space<vmem>>, vector<1x64x64xf32>
    %212 = vector.shape_cast %211 : vector<1x64x64xf32> to vector<64x64xf32>
    %c0_63 = arith.constant 0 : index
    %c0_64 = arith.constant 0 : index
    %c0_65 = arith.constant 0 : index
    %213 = vector.load %arg10[%c0_63, %c0_64, %c0_65] : memref<4x64x64xf32, #tpu.memory_space<vmem>>, vector<1x64x64xf32>
    %214 = vector.shape_cast %213 : vector<1x64x64xf32> to vector<64x64xf32>
    %215 = vector.extract_strided_slice %210 {offsets = [0, 0], sizes = [64, 8], strides = [1, 1]} : vector<64x32xf32> to vector<64x8xf32>
    %216 = vector.extract_strided_slice %214 {offsets = [0, 0], sizes = [64, 8], strides = [1, 1]} : vector<64x64xf32> to vector<64x8xf32>
    %cst_66 = arith.constant dense<0.000000e+00> : vector<64x64xf32>
    %217 = tpu.matmul %215, %216, %cst_66 {dimension_numbers = #tpu.dot_dimension_numbers<[1], [1], [0], [0], [0, 0, 1, 0], [], []>} : vector<64x8xf32>, vector<64x8xf32>, vector<64x64xf32> -> vector<64x64xf32>
    %218 = arith.mulf %212, %217 : vector<64x64xf32>
    %219 = vector.extract_strided_slice %210 {offsets = [0, 8], sizes = [64, 8], strides = [1, 1]} : vector<64x32xf32> to vector<64x8xf32>
    %220 = vector.extract_strided_slice %214 {offsets = [0, 8], sizes = [64, 8], strides = [1, 1]} : vector<64x64xf32> to vector<64x8xf32>
    %cst_67 = arith.constant dense<0.000000e+00> : vector<64x64xf32>
    %221 = tpu.matmul %219, %220, %cst_67 {dimension_numbers = #tpu.dot_dimension_numbers<[1], [1], [0], [0], [0, 0, 1, 0], [], []>} : vector<64x8xf32>, vector<64x8xf32>, vector<64x64xf32> -> vector<64x64xf32>
    %222 = arith.mulf %212, %221 : vector<64x64xf32>
    %223 = vector.extract_strided_slice %210 {offsets = [0, 16], sizes = [64, 8], strides = [1, 1]} : vector<64x32xf32> to vector<64x8xf32>
    %224 = vector.extract_strided_slice %214 {offsets = [0, 16], sizes = [64, 8], strides = [1, 1]} : vector<64x64xf32> to vector<64x8xf32>
    %cst_68 = arith.constant dense<0.000000e+00> : vector<64x64xf32>
    %225 = tpu.matmul %223, %224, %cst_68 {dimension_numbers = #tpu.dot_dimension_numbers<[1], [1], [0], [0], [0, 0, 1, 0], [], []>} : vector<64x8xf32>, vector<64x8xf32>, vector<64x64xf32> -> vector<64x64xf32>
    %226 = arith.mulf %212, %225 : vector<64x64xf32>
    %227 = vector.extract_strided_slice %210 {offsets = [0, 24], sizes = [64, 8], strides = [1, 1]} : vector<64x32xf32> to vector<64x8xf32>
    %228 = vector.extract_strided_slice %214 {offsets = [0, 24], sizes = [64, 8], strides = [1, 1]} : vector<64x64xf32> to vector<64x8xf32>
    %cst_69 = arith.constant dense<0.000000e+00> : vector<64x64xf32>
    %229 = tpu.matmul %227, %228, %cst_69 {dimension_numbers = #tpu.dot_dimension_numbers<[1], [1], [0], [0], [0, 0, 1, 0], [], []>} : vector<64x8xf32>, vector<64x8xf32>, vector<64x64xf32> -> vector<64x64xf32>
    %230 = arith.mulf %212, %229 : vector<64x64xf32>
    %c1_70 = arith.constant 1 : index
    %c0_71 = arith.constant 0 : index
    %c0_72 = arith.constant 0 : index
    %231 = vector.load %arg9[%c1_70, %c0_71, %c0_72] : memref<4x64x64xf32, #tpu.memory_space<vmem>>, vector<1x64x64xf32>
    %232 = vector.shape_cast %231 : vector<1x64x64xf32> to vector<64x64xf32>
    %c1_73 = arith.constant 1 : index
    %c0_74 = arith.constant 0 : index
    %c0_75 = arith.constant 0 : index
    %233 = vector.load %arg10[%c1_73, %c0_74, %c0_75] : memref<4x64x64xf32, #tpu.memory_space<vmem>>, vector<1x64x64xf32>
    %234 = vector.shape_cast %233 : vector<1x64x64xf32> to vector<64x64xf32>
    %235 = vector.extract_strided_slice %210 {offsets = [0, 0], sizes = [64, 8], strides = [1, 1]} : vector<64x32xf32> to vector<64x8xf32>
    %236 = vector.extract_strided_slice %234 {offsets = [0, 0], sizes = [64, 8], strides = [1, 1]} : vector<64x64xf32> to vector<64x8xf32>
    %cst_76 = arith.constant dense<0.000000e+00> : vector<64x64xf32>
    %237 = tpu.matmul %235, %236, %cst_76 {dimension_numbers = #tpu.dot_dimension_numbers<[1], [1], [0], [0], [0, 0, 1, 0], [], []>} : vector<64x8xf32>, vector<64x8xf32>, vector<64x64xf32> -> vector<64x64xf32>
    %238 = arith.mulf %232, %237 : vector<64x64xf32>
    %239 = arith.addf %218, %238 : vector<64x64xf32>
    %240 = vector.extract_strided_slice %210 {offsets = [0, 8], sizes = [64, 8], strides = [1, 1]} : vector<64x32xf32> to vector<64x8xf32>
    %241 = vector.extract_strided_slice %234 {offsets = [0, 8], sizes = [64, 8], strides = [1, 1]} : vector<64x64xf32> to vector<64x8xf32>
    %cst_77 = arith.constant dense<0.000000e+00> : vector<64x64xf32>
    %242 = tpu.matmul %240, %241, %cst_77 {dimension_numbers = #tpu.dot_dimension_numbers<[1], [1], [0], [0], [0, 0, 1, 0], [], []>} : vector<64x8xf32>, vector<64x8xf32>, vector<64x64xf32> -> vector<64x64xf32>
    %243 = arith.mulf %232, %242 : vector<64x64xf32>
    %244 = arith.addf %222, %243 : vector<64x64xf32>
    %245 = vector.extract_strided_slice %210 {offsets = [0, 16], sizes = [64, 8], strides = [1, 1]} : vector<64x32xf32> to vector<64x8xf32>
    %246 = vector.extract_strided_slice %234 {offsets = [0, 16], sizes = [64, 8], strides = [1, 1]} : vector<64x64xf32> to vector<64x8xf32>
    %cst_78 = arith.constant dense<0.000000e+00> : vector<64x64xf32>
    %247 = tpu.matmul %245, %246, %cst_78 {dimension_numbers = #tpu.dot_dimension_numbers<[1], [1], [0], [0], [0, 0, 1, 0], [], []>} : vector<64x8xf32>, vector<64x8xf32>, vector<64x64xf32> -> vector<64x64xf32>
    %248 = arith.mulf %232, %247 : vector<64x64xf32>
    %249 = arith.addf %226, %248 : vector<64x64xf32>
    %250 = vector.extract_strided_slice %210 {offsets = [0, 24], sizes = [64, 8], strides = [1, 1]} : vector<64x32xf32> to vector<64x8xf32>
    %251 = vector.extract_strided_slice %234 {offsets = [0, 24], sizes = [64, 8], strides = [1, 1]} : vector<64x64xf32> to vector<64x8xf32>
    %cst_79 = arith.constant dense<0.000000e+00> : vector<64x64xf32>
    %252 = tpu.matmul %250, %251, %cst_79 {dimension_numbers = #tpu.dot_dimension_numbers<[1], [1], [0], [0], [0, 0, 1, 0], [], []>} : vector<64x8xf32>, vector<64x8xf32>, vector<64x64xf32> -> vector<64x64xf32>
    %253 = arith.mulf %232, %252 : vector<64x64xf32>
    %254 = arith.addf %230, %253 : vector<64x64xf32>
    %c2_80 = arith.constant 2 : index
    %c0_81 = arith.constant 0 : index
    %c0_82 = arith.constant 0 : index
    %255 = vector.load %arg9[%c2_80, %c0_81, %c0_82] : memref<4x64x64xf32, #tpu.memory_space<vmem>>, vector<1x64x64xf32>
    %256 = vector.shape_cast %255 : vector<1x64x64xf32> to vector<64x64xf32>
    %c2_83 = arith.constant 2 : index
    %c0_84 = arith.constant 0 : index
    %c0_85 = arith.constant 0 : index
    %257 = vector.load %arg10[%c2_83, %c0_84, %c0_85] : memref<4x64x64xf32, #tpu.memory_space<vmem>>, vector<1x64x64xf32>
    %258 = vector.shape_cast %257 : vector<1x64x64xf32> to vector<64x64xf32>
    %259 = vector.extract_strided_slice %210 {offsets = [0, 0], sizes = [64, 8], strides = [1, 1]} : vector<64x32xf32> to vector<64x8xf32>
    %260 = vector.extract_strided_slice %258 {offsets = [0, 0], sizes = [64, 8], strides = [1, 1]} : vector<64x64xf32> to vector<64x8xf32>
    %cst_86 = arith.constant dense<0.000000e+00> : vector<64x64xf32>
    %261 = tpu.matmul %259, %260, %cst_86 {dimension_numbers = #tpu.dot_dimension_numbers<[1], [1], [0], [0], [0, 0, 1, 0], [], []>} : vector<64x8xf32>, vector<64x8xf32>, vector<64x64xf32> -> vector<64x64xf32>
    %262 = arith.mulf %256, %261 : vector<64x64xf32>
    %263 = arith.addf %239, %262 : vector<64x64xf32>
    %264 = vector.extract_strided_slice %210 {offsets = [0, 8], sizes = [64, 8], strides = [1, 1]} : vector<64x32xf32> to vector<64x8xf32>
    %265 = vector.extract_strided_slice %258 {offsets = [0, 8], sizes = [64, 8], strides = [1, 1]} : vector<64x64xf32> to vector<64x8xf32>
    %cst_87 = arith.constant dense<0.000000e+00> : vector<64x64xf32>
    %266 = tpu.matmul %264, %265, %cst_87 {dimension_numbers = #tpu.dot_dimension_numbers<[1], [1], [0], [0], [0, 0, 1, 0], [], []>} : vector<64x8xf32>, vector<64x8xf32>, vector<64x64xf32> -> vector<64x64xf32>
    %267 = arith.mulf %256, %266 : vector<64x64xf32>
    %268 = arith.addf %244, %267 : vector<64x64xf32>
    %269 = vector.extract_strided_slice %210 {offsets = [0, 16], sizes = [64, 8], strides = [1, 1]} : vector<64x32xf32> to vector<64x8xf32>
    %270 = vector.extract_strided_slice %258 {offsets = [0, 16], sizes = [64, 8], strides = [1, 1]} : vector<64x64xf32> to vector<64x8xf32>
    %cst_88 = arith.constant dense<0.000000e+00> : vector<64x64xf32>
    %271 = tpu.matmul %269, %270, %cst_88 {dimension_numbers = #tpu.dot_dimension_numbers<[1], [1], [0], [0], [0, 0, 1, 0], [], []>} : vector<64x8xf32>, vector<64x8xf32>, vector<64x64xf32> -> vector<64x64xf32>
    %272 = arith.mulf %256, %271 : vector<64x64xf32>
    %273 = arith.addf %249, %272 : vector<64x64xf32>
    %274 = vector.extract_strided_slice %210 {offsets = [0, 24], sizes = [64, 8], strides = [1, 1]} : vector<64x32xf32> to vector<64x8xf32>
    %275 = vector.extract_strided_slice %258 {offsets = [0, 24], sizes = [64, 8], strides = [1, 1]} : vector<64x64xf32> to vector<64x8xf32>
    %cst_89 = arith.constant dense<0.000000e+00> : vector<64x64xf32>
    %276 = tpu.matmul %274, %275, %cst_89 {dimension_numbers = #tpu.dot_dimension_numbers<[1], [1], [0], [0], [0, 0, 1, 0], [], []>} : vector<64x8xf32>, vector<64x8xf32>, vector<64x64xf32> -> vector<64x64xf32>
    %277 = arith.mulf %256, %276 : vector<64x64xf32>
    %278 = arith.addf %254, %277 : vector<64x64xf32>
    %c3_90 = arith.constant 3 : index
    %c0_91 = arith.constant 0 : index
    %c0_92 = arith.constant 0 : index
    %279 = vector.load %arg9[%c3_90, %c0_91, %c0_92] : memref<4x64x64xf32, #tpu.memory_space<vmem>>, vector<1x64x64xf32>
    %280 = vector.shape_cast %279 : vector<1x64x64xf32> to vector<64x64xf32>
    %c3_93 = arith.constant 3 : index
    %c0_94 = arith.constant 0 : index
    %c0_95 = arith.constant 0 : index
    %281 = vector.load %arg10[%c3_93, %c0_94, %c0_95] : memref<4x64x64xf32, #tpu.memory_space<vmem>>, vector<1x64x64xf32>
    %282 = vector.shape_cast %281 : vector<1x64x64xf32> to vector<64x64xf32>
    %283 = vector.extract_strided_slice %210 {offsets = [0, 0], sizes = [64, 8], strides = [1, 1]} : vector<64x32xf32> to vector<64x8xf32>
    %284 = vector.extract_strided_slice %282 {offsets = [0, 0], sizes = [64, 8], strides = [1, 1]} : vector<64x64xf32> to vector<64x8xf32>
    %cst_96 = arith.constant dense<0.000000e+00> : vector<64x64xf32>
    %285 = tpu.matmul %283, %284, %cst_96 {dimension_numbers = #tpu.dot_dimension_numbers<[1], [1], [0], [0], [0, 0, 1, 0], [], []>} : vector<64x8xf32>, vector<64x8xf32>, vector<64x64xf32> -> vector<64x64xf32>
    %286 = arith.mulf %280, %285 : vector<64x64xf32>
    %287 = arith.addf %263, %286 : vector<64x64xf32>
    %288 = vector.extract_strided_slice %210 {offsets = [0, 8], sizes = [64, 8], strides = [1, 1]} : vector<64x32xf32> to vector<64x8xf32>
    %289 = vector.extract_strided_slice %282 {offsets = [0, 8], sizes = [64, 8], strides = [1, 1]} : vector<64x64xf32> to vector<64x8xf32>
    %cst_97 = arith.constant dense<0.000000e+00> : vector<64x64xf32>
    %290 = tpu.matmul %288, %289, %cst_97 {dimension_numbers = #tpu.dot_dimension_numbers<[1], [1], [0], [0], [0, 0, 1, 0], [], []>} : vector<64x8xf32>, vector<64x8xf32>, vector<64x64xf32> -> vector<64x64xf32>
    %291 = arith.mulf %280, %290 : vector<64x64xf32>
    %292 = arith.addf %268, %291 : vector<64x64xf32>
    %293 = vector.extract_strided_slice %210 {offsets = [0, 16], sizes = [64, 8], strides = [1, 1]} : vector<64x32xf32> to vector<64x8xf32>
    %294 = vector.extract_strided_slice %282 {offsets = [0, 16], sizes = [64, 8], strides = [1, 1]} : vector<64x64xf32> to vector<64x8xf32>
    %cst_98 = arith.constant dense<0.000000e+00> : vector<64x64xf32>
    %295 = tpu.matmul %293, %294, %cst_98 {dimension_numbers = #tpu.dot_dimension_numbers<[1], [1], [0], [0], [0, 0, 1, 0], [], []>} : vector<64x8xf32>, vector<64x8xf32>, vector<64x64xf32> -> vector<64x64xf32>
    %296 = arith.mulf %280, %295 : vector<64x64xf32>
    %297 = arith.addf %273, %296 : vector<64x64xf32>
    %298 = vector.extract_strided_slice %210 {offsets = [0, 24], sizes = [64, 8], strides = [1, 1]} : vector<64x32xf32> to vector<64x8xf32>
    %299 = vector.extract_strided_slice %282 {offsets = [0, 24], sizes = [64, 8], strides = [1, 1]} : vector<64x64xf32> to vector<64x8xf32>
    %cst_99 = arith.constant dense<0.000000e+00> : vector<64x64xf32>
    %300 = tpu.matmul %298, %299, %cst_99 {dimension_numbers = #tpu.dot_dimension_numbers<[1], [1], [0], [0], [0, 0, 1, 0], [], []>} : vector<64x8xf32>, vector<64x8xf32>, vector<64x64xf32> -> vector<64x64xf32>
    %301 = arith.mulf %280, %300 : vector<64x64xf32>
    %302 = arith.addf %278, %301 : vector<64x64xf32>
    %303 = vector.extract_strided_slice %287 {offsets = [0, 0], sizes = [64, 16], strides = [1, 1]} : vector<64x64xf32> to vector<64x16xf32>
    %304 = vector.extract_strided_slice %287 {offsets = [0, 16], sizes = [64, 16], strides = [1, 1]} : vector<64x64xf32> to vector<64x16xf32>
    %305 = arith.addf %303, %304 : vector<64x16xf32>
    %306 = vector.extract_strided_slice %287 {offsets = [0, 32], sizes = [64, 16], strides = [1, 1]} : vector<64x64xf32> to vector<64x16xf32>
    %307 = arith.addf %305, %306 : vector<64x16xf32>
    %308 = vector.extract_strided_slice %287 {offsets = [0, 48], sizes = [64, 16], strides = [1, 1]} : vector<64x64xf32> to vector<64x16xf32>
    %309 = arith.addf %307, %308 : vector<64x16xf32>
    %cst_100 = arith.constant dense<0xFF800000> : vector<64xf32>
    %310 = vector.multi_reduction <maximumf>, %309, %cst_100 [1] : vector<64x16xf32> to vector<64xf32>
    %311 = vector.shape_cast %310 : vector<64xf32> to vector<64x1xf32>
    %312 = vector.broadcast %311 : vector<64x1xf32> to vector<64x16xf32>
    %313 = arith.subf %309, %312 : vector<64x16xf32>
    %314 = math.exp %313 : vector<64x16xf32>
    %cst_101 = arith.constant dense<0.000000e+00> : vector<64xf32>
    %315 = vector.multi_reduction <add>, %314, %cst_101 [1] : vector<64x16xf32> to vector<64xf32>
    %316 = vector.shape_cast %315 : vector<64xf32> to vector<64x1xf32>
    %317 = vector.broadcast %316 : vector<64x1xf32> to vector<64x16xf32>
    %318 = arith.divf %314, %317 : vector<64x16xf32>
    %319 = tpu.concatenate %318, %318, %318, %318 in 1 : vector<64x16xf32>, vector<64x16xf32>, vector<64x16xf32>, vector<64x16xf32> -> vector<64x64xf32>
    %320 = vector.extract_strided_slice %292 {offsets = [0, 0], sizes = [64, 16], strides = [1, 1]} : vector<64x64xf32> to vector<64x16xf32>
    %321 = vector.extract_strided_slice %292 {offsets = [0, 16], sizes = [64, 16], strides = [1, 1]} : vector<64x64xf32> to vector<64x16xf32>
    %322 = arith.addf %320, %321 : vector<64x16xf32>
    %323 = vector.extract_strided_slice %292 {offsets = [0, 32], sizes = [64, 16], strides = [1, 1]} : vector<64x64xf32> to vector<64x16xf32>
    %324 = arith.addf %322, %323 : vector<64x16xf32>
    %325 = vector.extract_strided_slice %292 {offsets = [0, 48], sizes = [64, 16], strides = [1, 1]} : vector<64x64xf32> to vector<64x16xf32>
    %326 = arith.addf %324, %325 : vector<64x16xf32>
    %cst_102 = arith.constant dense<0xFF800000> : vector<64xf32>
    %327 = vector.multi_reduction <maximumf>, %326, %cst_102 [1] : vector<64x16xf32> to vector<64xf32>
    %328 = vector.shape_cast %327 : vector<64xf32> to vector<64x1xf32>
    %329 = vector.broadcast %328 : vector<64x1xf32> to vector<64x16xf32>
    %330 = arith.subf %326, %329 : vector<64x16xf32>
    %331 = math.exp %330 : vector<64x16xf32>
    %cst_103 = arith.constant dense<0.000000e+00> : vector<64xf32>
    %332 = vector.multi_reduction <add>, %331, %cst_103 [1] : vector<64x16xf32> to vector<64xf32>
    %333 = vector.shape_cast %332 : vector<64xf32> to vector<64x1xf32>
    %334 = vector.broadcast %333 : vector<64x1xf32> to vector<64x16xf32>
    %335 = arith.divf %331, %334 : vector<64x16xf32>
    %336 = tpu.concatenate %335, %335, %335, %335 in 1 : vector<64x16xf32>, vector<64x16xf32>, vector<64x16xf32>, vector<64x16xf32> -> vector<64x64xf32>
    %337 = vector.extract_strided_slice %297 {offsets = [0, 0], sizes = [64, 16], strides = [1, 1]} : vector<64x64xf32> to vector<64x16xf32>
    %338 = vector.extract_strided_slice %297 {offsets = [0, 16], sizes = [64, 16], strides = [1, 1]} : vector<64x64xf32> to vector<64x16xf32>
    %339 = arith.addf %337, %338 : vector<64x16xf32>
    %340 = vector.extract_strided_slice %297 {offsets = [0, 32], sizes = [64, 16], strides = [1, 1]} : vector<64x64xf32> to vector<64x16xf32>
    %341 = arith.addf %339, %340 : vector<64x16xf32>
    %342 = vector.extract_strided_slice %297 {offsets = [0, 48], sizes = [64, 16], strides = [1, 1]} : vector<64x64xf32> to vector<64x16xf32>
    %343 = arith.addf %341, %342 : vector<64x16xf32>
    %cst_104 = arith.constant dense<0xFF800000> : vector<64xf32>
    %344 = vector.multi_reduction <maximumf>, %343, %cst_104 [1] : vector<64x16xf32> to vector<64xf32>
    %345 = vector.shape_cast %344 : vector<64xf32> to vector<64x1xf32>
    %346 = vector.broadcast %345 : vector<64x1xf32> to vector<64x16xf32>
    %347 = arith.subf %343, %346 : vector<64x16xf32>
    %348 = math.exp %347 : vector<64x16xf32>
    %cst_105 = arith.constant dense<0.000000e+00> : vector<64xf32>
    %349 = vector.multi_reduction <add>, %348, %cst_105 [1] : vector<64x16xf32> to vector<64xf32>
    %350 = vector.shape_cast %349 : vector<64xf32> to vector<64x1xf32>
    %351 = vector.broadcast %350 : vector<64x1xf32> to vector<64x16xf32>
    %352 = arith.divf %348, %351 : vector<64x16xf32>
    %353 = tpu.concatenate %352, %352, %352, %352 in 1 : vector<64x16xf32>, vector<64x16xf32>, vector<64x16xf32>, vector<64x16xf32> -> vector<64x64xf32>
    %354 = vector.extract_strided_slice %302 {offsets = [0, 0], sizes = [64, 16], strides = [1, 1]} : vector<64x64xf32> to vector<64x16xf32>
    %355 = vector.extract_strided_slice %302 {offsets = [0, 16], sizes = [64, 16], strides = [1, 1]} : vector<64x64xf32> to vector<64x16xf32>
    %356 = arith.addf %354, %355 : vector<64x16xf32>
    %357 = vector.extract_strided_slice %302 {offsets = [0, 32], sizes = [64, 16], strides = [1, 1]} : vector<64x64xf32> to vector<64x16xf32>
    %358 = arith.addf %356, %357 : vector<64x16xf32>
    %359 = vector.extract_strided_slice %302 {offsets = [0, 48], sizes = [64, 16], strides = [1, 1]} : vector<64x64xf32> to vector<64x16xf32>
    %360 = arith.addf %358, %359 : vector<64x16xf32>
    %cst_106 = arith.constant dense<0xFF800000> : vector<64xf32>
    %361 = vector.multi_reduction <maximumf>, %360, %cst_106 [1] : vector<64x16xf32> to vector<64xf32>
    %362 = vector.shape_cast %361 : vector<64xf32> to vector<64x1xf32>
    %363 = vector.broadcast %362 : vector<64x1xf32> to vector<64x16xf32>
    %364 = arith.subf %360, %363 : vector<64x16xf32>
    %365 = math.exp %364 : vector<64x16xf32>
    %cst_107 = arith.constant dense<0.000000e+00> : vector<64xf32>
    %366 = vector.multi_reduction <add>, %365, %cst_107 [1] : vector<64x16xf32> to vector<64xf32>
    %367 = vector.shape_cast %366 : vector<64xf32> to vector<64x1xf32>
    %368 = vector.broadcast %367 : vector<64x1xf32> to vector<64x16xf32>
    %369 = arith.divf %365, %368 : vector<64x16xf32>
    %370 = tpu.concatenate %369, %369, %369, %369 in 1 : vector<64x16xf32>, vector<64x16xf32>, vector<64x16xf32>, vector<64x16xf32> -> vector<64x64xf32>
    %c0_108 = arith.constant 0 : index
    %c0_109 = arith.constant 0 : index
    %c0_110 = arith.constant 0 : index
    %371 = vector.load %arg9[%c0_108, %c0_109, %c0_110] : memref<4x64x64xf32, #tpu.memory_space<vmem>>, vector<1x64x64xf32>
    %372 = vector.shape_cast %371 : vector<1x64x64xf32> to vector<64x64xf32>
    %c0_111 = arith.constant 0 : index
    %c0_112 = arith.constant 0 : index
    %c0_113 = arith.constant 0 : index
    %373 = vector.load %arg10[%c0_111, %c0_112, %c0_113] : memref<4x64x64xf32, #tpu.memory_space<vmem>>, vector<1x64x64xf32>
    %374 = vector.shape_cast %373 : vector<1x64x64xf32> to vector<64x64xf32>
    %375 = arith.mulf %319, %372 : vector<64x64xf32>
    %376 = vector.extract_strided_slice %374 {offsets = [0, 32], sizes = [64, 8], strides = [1, 1]} : vector<64x64xf32> to vector<64x8xf32>
    %cst_114 = arith.constant dense<0.000000e+00> : vector<64x8xf32>
    %377 = tpu.matmul %375, %376, %cst_114 {dimension_numbers = #tpu.dot_dimension_numbers<[1], [0], [0], [1], [0, 0, 1, 1], [], []>} : vector<64x64xf32>, vector<64x8xf32>, vector<64x8xf32> -> vector<64x8xf32>
    %378 = arith.mulf %336, %372 : vector<64x64xf32>
    %379 = vector.extract_strided_slice %374 {offsets = [0, 40], sizes = [64, 8], strides = [1, 1]} : vector<64x64xf32> to vector<64x8xf32>
    %cst_115 = arith.constant dense<0.000000e+00> : vector<64x8xf32>
    %380 = tpu.matmul %378, %379, %cst_115 {dimension_numbers = #tpu.dot_dimension_numbers<[1], [0], [0], [1], [0, 0, 1, 1], [], []>} : vector<64x64xf32>, vector<64x8xf32>, vector<64x8xf32> -> vector<64x8xf32>
    %381 = arith.mulf %353, %372 : vector<64x64xf32>
    %382 = vector.extract_strided_slice %374 {offsets = [0, 48], sizes = [64, 8], strides = [1, 1]} : vector<64x64xf32> to vector<64x8xf32>
    %cst_116 = arith.constant dense<0.000000e+00> : vector<64x8xf32>
    %383 = tpu.matmul %381, %382, %cst_116 {dimension_numbers = #tpu.dot_dimension_numbers<[1], [0], [0], [1], [0, 0, 1, 1], [], []>} : vector<64x64xf32>, vector<64x8xf32>, vector<64x8xf32> -> vector<64x8xf32>
    %384 = arith.mulf %370, %372 : vector<64x64xf32>
    %385 = vector.extract_strided_slice %374 {offsets = [0, 56], sizes = [64, 8], strides = [1, 1]} : vector<64x64xf32> to vector<64x8xf32>
    %cst_117 = arith.constant dense<0.000000e+00> : vector<64x8xf32>
    %386 = tpu.matmul %384, %385, %cst_117 {dimension_numbers = #tpu.dot_dimension_numbers<[1], [0], [0], [1], [0, 0, 1, 1], [], []>} : vector<64x64xf32>, vector<64x8xf32>, vector<64x8xf32> -> vector<64x8xf32>
    %c1_118 = arith.constant 1 : index
    %c0_119 = arith.constant 0 : index
    %c0_120 = arith.constant 0 : index
    %387 = vector.load %arg9[%c1_118, %c0_119, %c0_120] : memref<4x64x64xf32, #tpu.memory_space<vmem>>, vector<1x64x64xf32>
    %388 = vector.shape_cast %387 : vector<1x64x64xf32> to vector<64x64xf32>
    %c1_121 = arith.constant 1 : index
    %c0_122 = arith.constant 0 : index
    %c0_123 = arith.constant 0 : index
    %389 = vector.load %arg10[%c1_121, %c0_122, %c0_123] : memref<4x64x64xf32, #tpu.memory_space<vmem>>, vector<1x64x64xf32>
    %390 = vector.shape_cast %389 : vector<1x64x64xf32> to vector<64x64xf32>
    %391 = arith.mulf %319, %388 : vector<64x64xf32>
    %392 = vector.extract_strided_slice %390 {offsets = [0, 32], sizes = [64, 8], strides = [1, 1]} : vector<64x64xf32> to vector<64x8xf32>
    %cst_124 = arith.constant dense<0.000000e+00> : vector<64x8xf32>
    %393 = tpu.matmul %391, %392, %cst_124 {dimension_numbers = #tpu.dot_dimension_numbers<[1], [0], [0], [1], [0, 0, 1, 1], [], []>} : vector<64x64xf32>, vector<64x8xf32>, vector<64x8xf32> -> vector<64x8xf32>
    %394 = arith.addf %377, %393 : vector<64x8xf32>
    %395 = arith.mulf %336, %388 : vector<64x64xf32>
    %396 = vector.extract_strided_slice %390 {offsets = [0, 40], sizes = [64, 8], strides = [1, 1]} : vector<64x64xf32> to vector<64x8xf32>
    %cst_125 = arith.constant dense<0.000000e+00> : vector<64x8xf32>
    %397 = tpu.matmul %395, %396, %cst_125 {dimension_numbers = #tpu.dot_dimension_numbers<[1], [0], [0], [1], [0, 0, 1, 1], [], []>} : vector<64x64xf32>, vector<64x8xf32>, vector<64x8xf32> -> vector<64x8xf32>
    %398 = arith.addf %380, %397 : vector<64x8xf32>
    %399 = arith.mulf %353, %388 : vector<64x64xf32>
    %400 = vector.extract_strided_slice %390 {offsets = [0, 48], sizes = [64, 8], strides = [1, 1]} : vector<64x64xf32> to vector<64x8xf32>
    %cst_126 = arith.constant dense<0.000000e+00> : vector<64x8xf32>
    %401 = tpu.matmul %399, %400, %cst_126 {dimension_numbers = #tpu.dot_dimension_numbers<[1], [0], [0], [1], [0, 0, 1, 1], [], []>} : vector<64x64xf32>, vector<64x8xf32>, vector<64x8xf32> -> vector<64x8xf32>
    %402 = arith.addf %383, %401 : vector<64x8xf32>
    %403 = arith.mulf %370, %388 : vector<64x64xf32>
    %404 = vector.extract_strided_slice %390 {offsets = [0, 56], sizes = [64, 8], strides = [1, 1]} : vector<64x64xf32> to vector<64x8xf32>
    %cst_127 = arith.constant dense<0.000000e+00> : vector<64x8xf32>
    %405 = tpu.matmul %403, %404, %cst_127 {dimension_numbers = #tpu.dot_dimension_numbers<[1], [0], [0], [1], [0, 0, 1, 1], [], []>} : vector<64x64xf32>, vector<64x8xf32>, vector<64x8xf32> -> vector<64x8xf32>
    %406 = arith.addf %386, %405 : vector<64x8xf32>
    %c2_128 = arith.constant 2 : index
    %c0_129 = arith.constant 0 : index
    %c0_130 = arith.constant 0 : index
    %407 = vector.load %arg9[%c2_128, %c0_129, %c0_130] : memref<4x64x64xf32, #tpu.memory_space<vmem>>, vector<1x64x64xf32>
    %408 = vector.shape_cast %407 : vector<1x64x64xf32> to vector<64x64xf32>
    %c2_131 = arith.constant 2 : index
    %c0_132 = arith.constant 0 : index
    %c0_133 = arith.constant 0 : index
    %409 = vector.load %arg10[%c2_131, %c0_132, %c0_133] : memref<4x64x64xf32, #tpu.memory_space<vmem>>, vector<1x64x64xf32>
    %410 = vector.shape_cast %409 : vector<1x64x64xf32> to vector<64x64xf32>
    %411 = arith.mulf %319, %408 : vector<64x64xf32>
    %412 = vector.extract_strided_slice %410 {offsets = [0, 32], sizes = [64, 8], strides = [1, 1]} : vector<64x64xf32> to vector<64x8xf32>
    %cst_134 = arith.constant dense<0.000000e+00> : vector<64x8xf32>
    %413 = tpu.matmul %411, %412, %cst_134 {dimension_numbers = #tpu.dot_dimension_numbers<[1], [0], [0], [1], [0, 0, 1, 1], [], []>} : vector<64x64xf32>, vector<64x8xf32>, vector<64x8xf32> -> vector<64x8xf32>
    %414 = arith.addf %394, %413 : vector<64x8xf32>
    %415 = arith.mulf %336, %408 : vector<64x64xf32>
    %416 = vector.extract_strided_slice %410 {offsets = [0, 40], sizes = [64, 8], strides = [1, 1]} : vector<64x64xf32> to vector<64x8xf32>
    %cst_135 = arith.constant dense<0.000000e+00> : vector<64x8xf32>
    %417 = tpu.matmul %415, %416, %cst_135 {dimension_numbers = #tpu.dot_dimension_numbers<[1], [0], [0], [1], [0, 0, 1, 1], [], []>} : vector<64x64xf32>, vector<64x8xf32>, vector<64x8xf32> -> vector<64x8xf32>
    %418 = arith.addf %398, %417 : vector<64x8xf32>
    %419 = arith.mulf %353, %408 : vector<64x64xf32>
    %420 = vector.extract_strided_slice %410 {offsets = [0, 48], sizes = [64, 8], strides = [1, 1]} : vector<64x64xf32> to vector<64x8xf32>
    %cst_136 = arith.constant dense<0.000000e+00> : vector<64x8xf32>
    %421 = tpu.matmul %419, %420, %cst_136 {dimension_numbers = #tpu.dot_dimension_numbers<[1], [0], [0], [1], [0, 0, 1, 1], [], []>} : vector<64x64xf32>, vector<64x8xf32>, vector<64x8xf32> -> vector<64x8xf32>
    %422 = arith.addf %402, %421 : vector<64x8xf32>
    %423 = arith.mulf %370, %408 : vector<64x64xf32>
    %424 = vector.extract_strided_slice %410 {offsets = [0, 56], sizes = [64, 8], strides = [1, 1]} : vector<64x64xf32> to vector<64x8xf32>
    %cst_137 = arith.constant dense<0.000000e+00> : vector<64x8xf32>
    %425 = tpu.matmul %423, %424, %cst_137 {dimension_numbers = #tpu.dot_dimension_numbers<[1], [0], [0], [1], [0, 0, 1, 1], [], []>} : vector<64x64xf32>, vector<64x8xf32>, vector<64x8xf32> -> vector<64x8xf32>
    %426 = arith.addf %406, %425 : vector<64x8xf32>
    %c3_138 = arith.constant 3 : index
    %c0_139 = arith.constant 0 : index
    %c0_140 = arith.constant 0 : index
    %427 = vector.load %arg9[%c3_138, %c0_139, %c0_140] : memref<4x64x64xf32, #tpu.memory_space<vmem>>, vector<1x64x64xf32>
    %428 = vector.shape_cast %427 : vector<1x64x64xf32> to vector<64x64xf32>
    %c3_141 = arith.constant 3 : index
    %c0_142 = arith.constant 0 : index
    %c0_143 = arith.constant 0 : index
    %429 = vector.load %arg10[%c3_141, %c0_142, %c0_143] : memref<4x64x64xf32, #tpu.memory_space<vmem>>, vector<1x64x64xf32>
    %430 = vector.shape_cast %429 : vector<1x64x64xf32> to vector<64x64xf32>
    %431 = arith.mulf %319, %428 : vector<64x64xf32>
    %432 = vector.extract_strided_slice %430 {offsets = [0, 32], sizes = [64, 8], strides = [1, 1]} : vector<64x64xf32> to vector<64x8xf32>
    %cst_144 = arith.constant dense<0.000000e+00> : vector<64x8xf32>
    %433 = tpu.matmul %431, %432, %cst_144 {dimension_numbers = #tpu.dot_dimension_numbers<[1], [0], [0], [1], [0, 0, 1, 1], [], []>} : vector<64x64xf32>, vector<64x8xf32>, vector<64x8xf32> -> vector<64x8xf32>
    %434 = arith.addf %414, %433 : vector<64x8xf32>
    %435 = arith.mulf %336, %428 : vector<64x64xf32>
    %436 = vector.extract_strided_slice %430 {offsets = [0, 40], sizes = [64, 8], strides = [1, 1]} : vector<64x64xf32> to vector<64x8xf32>
    %cst_145 = arith.constant dense<0.000000e+00> : vector<64x8xf32>
    %437 = tpu.matmul %435, %436, %cst_145 {dimension_numbers = #tpu.dot_dimension_numbers<[1], [0], [0], [1], [0, 0, 1, 1], [], []>} : vector<64x64xf32>, vector<64x8xf32>, vector<64x8xf32> -> vector<64x8xf32>
    %438 = arith.addf %418, %437 : vector<64x8xf32>
    %439 = arith.mulf %353, %428 : vector<64x64xf32>
    %440 = vector.extract_strided_slice %430 {offsets = [0, 48], sizes = [64, 8], strides = [1, 1]} : vector<64x64xf32> to vector<64x8xf32>
    %cst_146 = arith.constant dense<0.000000e+00> : vector<64x8xf32>
    %441 = tpu.matmul %439, %440, %cst_146 {dimension_numbers = #tpu.dot_dimension_numbers<[1], [0], [0], [1], [0, 0, 1, 1], [], []>} : vector<64x64xf32>, vector<64x8xf32>, vector<64x8xf32> -> vector<64x8xf32>
    %442 = arith.addf %422, %441 : vector<64x8xf32>
    %443 = arith.mulf %370, %428 : vector<64x64xf32>
    %444 = vector.extract_strided_slice %430 {offsets = [0, 56], sizes = [64, 8], strides = [1, 1]} : vector<64x64xf32> to vector<64x8xf32>
    %cst_147 = arith.constant dense<0.000000e+00> : vector<64x8xf32>
    %445 = tpu.matmul %443, %444, %cst_147 {dimension_numbers = #tpu.dot_dimension_numbers<[1], [0], [0], [1], [0, 0, 1, 1], [], []>} : vector<64x64xf32>, vector<64x8xf32>, vector<64x8xf32> -> vector<64x8xf32>
    %446 = arith.addf %426, %445 : vector<64x8xf32>
    %447 = tpu.concatenate %434, %438, %442, %446 in 1 : vector<64x8xf32>, vector<64x8xf32>, vector<64x8xf32>, vector<64x8xf32> -> vector<64x32xf32>
    %c0_148 = arith.constant 0 : index
    %c0_149 = arith.constant 0 : index
    %448 = vector.load %arg5[%c0_148, %c0_149] : memref<32x32xf32, #tpu.memory_space<vmem>>, vector<32x32xf32>
    %cst_150 = arith.constant dense<0.000000e+00> : vector<64x32xf32>
    %449 = tpu.matmul %447, %448, %cst_150 {dimension_numbers = #tpu.dot_dimension_numbers<[1], [0], [0], [1], [0, 0, 1, 1], [], []>} : vector<64x32xf32>, vector<32x32xf32>, vector<64x32xf32> -> vector<64x32xf32>
    %c0_151 = arith.constant 0 : index
    %c0_152 = arith.constant 0 : index
    %450 = vector.load %arg6[%c0_151, %c0_152] : memref<1x32xf32, #tpu.memory_space<vmem>>, vector<1x32xf32>
    %451 = vector.broadcast %450 : vector<1x32xf32> to vector<64x32xf32>
    %452 = arith.addf %449, %451 : vector<64x32xf32>
    %c0_153 = arith.constant 0 : index
    %c0_154 = arith.constant 0 : index
    %c0_155 = arith.constant 0 : index
    %453 = vector.load %arg7[%c0_153, %c0_154, %c0_155] : memref<1x64x32xf32, #tpu.memory_space<vmem>>, vector<1x64x32xf32>
    %454 = vector.shape_cast %453 : vector<1x64x32xf32> to vector<64x32xf32>
    %455 = vector.shape_cast %452 : vector<64x32xf32> to vector<1x64x32xf32>
    tpu.vector_store %arg7[%c0_153, %c0_154, %c0_155], %455 {strides = array<i32>} : memref<1x64x32xf32, #tpu.memory_space<vmem>>, vector<1x64x32xf32>,
    %456 = tpu.concatenate %318, %335, %352, %369 in 1 : vector<64x16xf32>, vector<64x16xf32>, vector<64x16xf32>, vector<64x16xf32> -> vector<64x64xf32>
    %c0_156 = arith.constant 0 : index
    %c0_157 = arith.constant 0 : index
    %c0_158 = arith.constant 0 : index
    %457 = vector.load %arg8[%c0_156, %c0_157, %c0_158] : memref<1x64x64xf32, #tpu.memory_space<vmem>>, vector<1x64x64xf32>
    %458 = vector.shape_cast %457 : vector<1x64x64xf32> to vector<64x64xf32>
    %459 = vector.shape_cast %456 : vector<64x64xf32> to vector<1x64x64xf32>
    tpu.vector_store %arg8[%c0_156, %c0_157, %c0_158], %459 {strides = array<i32>} : memref<1x64x64xf32, #tpu.memory_space<vmem>>, vector<1x64x64xf32>,
    return
  }
  func.func @transform_0(%arg0: i32) -> (i32, i32, i32) {
    %c0_i32 = arith.constant 0 : i32
    %c0_i32_0 = arith.constant 0 : i32
    %c0_i32_1 = arith.constant 0 : i32
    return %arg0, %c0_i32, %c0_i32_0 : i32, i32, i32
  }
  func.func @transform_1(%arg0: i32) -> (i32, i32) {
    %c0_i32 = arith.constant 0 : i32
    %c0_i32_0 = arith.constant 0 : i32
    %c0_i32_1 = arith.constant 0 : i32
    return %c0_i32, %c0_i32_0 : i32, i32
  }
  func.func @transform_2(%arg0: i32) -> (i32, i32) {
    %c0_i32 = arith.constant 0 : i32
    %c0_i32_0 = arith.constant 0 : i32
    %c0_i32_1 = arith.constant 0 : i32
    return %c0_i32, %c0_i32_0 : i32, i32
  }
  func.func @transform_3(%arg0: i32) -> (i32, i32) {
    %c0_i32 = arith.constant 0 : i32
    %c0_i32_0 = arith.constant 0 : i32
    %c0_i32_1 = arith.constant 0 : i32
    return %c0_i32, %c0_i32_0 : i32, i32
  }
  func.func @transform_4(%arg0: i32) -> (i32, i32) {
    %c0_i32 = arith.constant 0 : i32
    %c0_i32_0 = arith.constant 0 : i32
    %c0_i32_1 = arith.constant 0 : i32
    return %c0_i32, %c0_i32_0 : i32, i32
  }
  func.func @transform_5(%arg0: i32) -> (i32, i32) {
    %c0_i32 = arith.constant 0 : i32
    %c0_i32_0 = arith.constant 0 : i32
    %c0_i32_1 = arith.constant 0 : i32
    return %c0_i32, %c0_i32_0 : i32, i32
  }
  func.func @transform_6(%arg0: i32) -> (i32, i32, i32) {
    %c0_i32 = arith.constant 0 : i32
    %c0_i32_0 = arith.constant 0 : i32
    %c0_i32_1 = arith.constant 0 : i32
    return %arg0, %c0_i32, %c0_i32_0 : i32, i32, i32
  }
  func.func @transform_7(%arg0: i32) -> (i32, i32, i32) {
    %c0_i32 = arith.constant 0 : i32
    %c0_i32_0 = arith.constant 0 : i32
    %c0_i32_1 = arith.constant 0 : i32
    return %arg0, %c0_i32, %c0_i32_0 : i32, i32, i32
  }
}

</mosaic_0001>

<llo_original>
// kernel: tpu_custom_call.1
$region0: #{tpu_custom_call.1}
  #allocation0 [shape = 'u32[]', space=smem, size = 0x4, offset = 0x4, fixed_abs, tag = 'smem constant byte address 0x4 - core index']
  #allocation1 [shape = 'u32[72,128]{1,0:T(1,128)}', space=vmem, size = 0x9000, scoped, tag = 'internal scratch']
  #allocation2 [shape = 'f32[4,64,64]{2,1,0:T(8,128)}', space=vmem, size = 0x20000, scoped, tag = 'scratch operand']
  #allocation3 [shape = 'f32[4,64,64]{2,1,0:T(8,128)}', space=vmem, size = 0x20000, scoped, tag = 'scratch operand']
  %s0 = inlined_call_operand.vmem [shape: f32[2,64,32], index: 0, kind: input, shape index: {}]
  %s1 = inlined_call_operand.vmem [shape: f32[32,96], index: 1, kind: input, shape index: {}]
  %s2 = inlined_call_operand.vmem [shape: f32[32,32], index: 2, kind: input, shape index: {}]
  %s3 = inlined_call_operand.vmem [shape: f32[32,64], index: 3, kind: input, shape index: {}]
  %s4 = inlined_call_operand.vmem [shape: f32[32,32], index: 4, kind: input, shape index: {}]
  %s5 = inlined_call_operand.vmem [shape: f32[1,32], index: 5, kind: input, shape index: {}]
  %s6 = inlined_call_operand.vmem [shape: f32[2,64,32], index: 6, kind: output, shape index: {0}]
  %s7 = inlined_call_operand.hbm [shape: f32[2,64,64], index: 7, kind: output, shape index: {1}]
  %8 = xla_tuple %s6, %s7
  %s9 = sld [smem:[#allocation0]]
  $region65: #{tpu_custom_call.1} parent=0
    _
  %s11 = ssub.s32 1, %s9
  %s12 = scalar_select 0, %s11, %s9
  $region1: #{tpu_custom_call.1} parent=0
    #allocation4 [shape = 'u8[65536]{0}', space=vmem, size = 0x10000, scoped, tag = 'output window, operand 1']
    #allocation5 [shape = 's32[2]{0}', space=sflag, size = 0x8, scoped, tag = 'scoped memory for tpu_custom_call.1']
    %13 = vsyncpa [#allocation5], 0
    %s14 = scalar_lea.sflag [#allocation5], 1
    %15 = vsyncpa %s14, 0
    loop: start=0, step=1, limit=4
    $region2: #{tpu_custom_call.1} parent=1 // loop_pre_header
      _
    $region3: #{tpu_custom_call.1} parent=1 // loop_header
      %s17 = sphi 0, %s21
      %p18 = scmp.ge.s32.totalorder %s17, 4
      %s27 = sphi 0, %s29
      %s30 = sphi 0, %s27
      %s31 = sphi 0, %s30
      %s47 = sphi 0, %s31
      %s51 = sphi 0, %s51
      %s53 = sphi 0, %s51
      %s54 = sphi 0, %s53
      %s68 = sphi 0, %s54
      %s72 = sphi 0, %s72
      %s74 = sphi 0, %s72
      %s75 = sphi 0, %s74
      %s89 = sphi 0, %s75
      %s93 = sphi 0, %s93
      %s95 = sphi 0, %s93
      %s96 = sphi 0, %s95
      %s110 = sphi 0, %s96
      %s114 = sphi 0, %s114
      %s116 = sphi 0, %s114
      %s117 = sphi 0, %s116
      %s131 = sphi 0, %s117
      %s135 = sphi 0, %s135
      %s137 = sphi 0, %s135
      %s138 = sphi 0, %s137
      %s152 = sphi 0, %s138
      %s158 = sphi 0, %s160
      %s161 = sphi 0, %s158
      %s162 = sphi 0, %s161
      %s178 = sphi 0, %s162
      %s184 = sphi 0, %s186
      %s187 = sphi 0, %s184
      %s188 = sphi 0, %s187
      %s204 = sphi 0, %s188
    $region4: #{tpu_custom_call.1} parent=1 // loop_header_branch
      %20 = sbr.rel (%p18) target = $region8
    $region5: #{tpu_custom_call.1} parent=1 // loop_body
      %s22 = ssub.s32 %s17, 1
      %s23 = ssub.s32 %s17, 2
      %s24 = sadd.s32 %s17, 1
      %s25 = ssub.s32 %s17, %s24
      %p26 = scmp.eq.s32.totalorder %s25, 0
      %s28 = sadd.s32 %s27, 1
      %s29 = scalar_select %p26, %s27, %s28
      %p32 = pneg %p26
      %p33 = scmp.eq.s32.totalorder %s17, 1
      %p34 = por %p32, %p33
      %p35 = scmp.ne.s32.totalorder %s27, %s30
      %p36 = scmp.eq.s32.totalorder %s17, 0
      %p37 = por %p35, %p36
      %p38 = scmp.ne.s32.totalorder %s27, %s30
      %p39 = scmp.eq.s32.totalorder %s22, 1
      %p40 = por %p38, %p39
      %p41 = scmp.ne.s32.totalorder %s30, %s31
      %p42 = scmp.eq.s32.totalorder %s22, 0
      %p43 = por %p41, %p42
      %p44 = scmp.ne.s32.totalorder %s30, %s31
      %p45 = scmp.eq.s32.totalorder %s23, 1
      %p46 = por %p44, %p45
      %p48 = scmp.ne.s32.totalorder %s31, %s47
      %p49 = scmp.eq.s32.totalorder %s23, 0
      %p50 = por %p48, %p49
      %s52 = sadd.s32 %s51, 1
      %p55 = scmp.eq.s32.totalorder %s17, 1
      %p56 = scmp.ne.s32.totalorder %s51, %s53
      %p57 = scmp.eq.s32.totalorder %s17, 0
      %p58 = por %p56, %p57
      %p59 = scmp.ne.s32.totalorder %s51, %s53
      %p60 = scmp.eq.s32.totalorder %s22, 1
      %p61 = por %p59, %p60
      %p62 = scmp.ne.s32.totalorder %s53, %s54
      %p63 = scmp.eq.s32.totalorder %s22, 0
      %p64 = por %p62, %p63
      %p65 = scmp.ne.s32.totalorder %s53, %s54
      %p66 = scmp.eq.s32.totalorder %s23, 1
      %p67 = por %p65, %p66
      %p69 = scmp.ne.s32.totalorder %s54, %s68
      %p70 = scmp.eq.s32.totalorder %s23, 0
      %p71 = por %p69, %p70
      %s73 = sadd.s32 %s72, 1
      %p76 = scmp.eq.s32.totalorder %s17, 1
      %p77 = scmp.ne.s32.totalorder %s72, %s74
      %p78 = scmp.eq.s32.totalorder %s17, 0
      %p79 = por %p77, %p78
      %p80 = scmp.ne.s32.totalorder %s72, %s74
      %p81 = scmp.eq.s32.totalorder %s22, 1
      %p82 = por %p80, %p81
      %p83 = scmp.ne.s32.totalorder %s74, %s75
      %p84 = scmp.eq.s32.totalorder %s22, 0
      %p85 = por %p83, %p84
      %p86 = scmp.ne.s32.totalorder %s74, %s75
      %p87 = scmp.eq.s32.totalorder %s23, 1
      %p88 = por %p86, %p87
      %p90 = scmp.ne.s32.totalorder %s75, %s89
      %p91 = scmp.eq.s32.totalorder %s23, 0
      %p92 = por %p90, %p91
      %s94 = sadd.s32 %s93, 1
      %p97 = scmp.eq.s32.totalorder %s17, 1
      %p98 = scmp.ne.s32.totalorder %s93, %s95
      %p99 = scmp.eq.s32.totalorder %s17, 0
      %p100 = por %p98, %p99
      %p101 = scmp.ne.s32.totalorder %s93, %s95
      %p102 = scmp.eq.s32.totalorder %s22, 1
      %p103 = por %p101, %p102
      %p104 = scmp.ne.s32.totalorder %s95, %s96
      %p105 = scmp.eq.s32.totalorder %s22, 0
      %p106 = por %p104, %p105
      %p107 = scmp.ne.s32.totalorder %s95, %s96
      %p108 = scmp.eq.s32.totalorder %s23, 1
      %p109 = por %p107, %p108
      %p111 = scmp.ne.s32.totalorder %s96, %s110
      %p112 = scmp.eq.s32.totalorder %s23, 0
      %p113 = por %p111, %p112
      %s115 = sadd.s32 %s114, 1
      %p118 = scmp.eq.s32.totalorder %s17, 1
      %p119 = scmp.ne.s32.totalorder %s114, %s116
      %p120 = scmp.eq.s32.totalorder %s17, 0
      %p121 = por %p119, %p120
      %p122 = scmp.ne.s32.totalorder %s114, %s116
      %p123 = scmp.eq.s32.totalorder %s22, 1
      %p124 = por %p122, %p123
      %p125 = scmp.ne.s32.totalorder %s116, %s117
      %p126 = scmp.eq.s32.totalorder %s22, 0
      %p127 = por %p125, %p126
      %p128 = scmp.ne.s32.totalorder %s116, %s117
      %p129 = scmp.eq.s32.totalorder %s23, 1
      %p130 = por %p128, %p129
      %p132 = scmp.ne.s32.totalorder %s117, %s131
      %p133 = scmp.eq.s32.totalorder %s23, 0
      %p134 = por %p132, %p133
      %s136 = sadd.s32 %s135, 1
      %p139 = scmp.eq.s32.totalorder %s17, 1
      %p140 = scmp.ne.s32.totalorder %s135, %s137
      %p141 = scmp.eq.s32.totalorder %s17, 0
      %p142 = por %p140, %p141
      %p143 = scmp.ne.s32.totalorder %s135, %s137
      %p144 = scmp.eq.s32.totalorder %s22, 1
      %p145 = por %p143, %p144
      %p146 = scmp.ne.s32.totalorder %s137, %s138
      %p147 = scmp.eq.s32.totalorder %s22, 0
      %p148 = por %p146, %p147
      %p149 = scmp.ne.s32.totalorder %s137, %s138
      %p150 = scmp.eq.s32.totalorder %s23, 1
      %p151 = por %p149, %p150
      %p153 = scmp.ne.s32.totalorder %s138, %s152
      %p154 = scmp.eq.s32.totalorder %s23, 0
      %p155 = por %p153, %p154
      %s156 = ssub.s32 %s17, %s24
      %p157 = scmp.eq.s32.totalorder %s156, 0
      %s159 = sadd.s32 %s158, 1
      %s160 = scalar_select %p157, %s158, %s159
      %p163 = pneg %p157
      %p164 = scmp.eq.s32.totalorder %s17, 1
      %p165 = por %p163, %p164
      %p166 = scmp.ne.s32.totalorder %s158, %s161
      %p167 = scmp.eq.s32.totalorder %s17, 0
      %p168 = por %p166, %p167
      %p169 = scmp.ne.s32.totalorder %s158, %s161
      %p170 = scmp.eq.s32.totalorder %s22, 1
      %p171 = por %p169, %p170
      %p172 = scmp.ne.s32.totalorder %s161, %s162
      %p173 = scmp.eq.s32.totalorder %s22, 0
      %p174 = por %p172, %p173
      %p175 = scmp.ne.s32.totalorder %s161, %s162
      %p176 = scmp.eq.s32.totalorder %s23, 1
      %p177 = por %p175, %p176
      %p179 = scmp.ne.s32.totalorder %s162, %s178
      %p180 = scmp.eq.s32.totalorder %s23, 0
      %p181 = por %p179, %p180
      %s182 = ssub.s32 %s17, %s24
      %p183 = scmp.eq.s32.totalorder %s182, 0
      %s185 = sadd.s32 %s184, 1
      %s186 = scalar_select %p183, %s184, %s185
      %p189 = pneg %p183
      %p190 = scmp.eq.s32.totalorder %s17, 1
      %p191 = por %p189, %p190
      %p192 = scmp.ne.s32.totalorder %s184, %s187
      %p193 = scmp.eq.s32.totalorder %s17, 0
      %p194 = por %p192, %p193
      %p195 = scmp.ne.s32.totalorder %s184, %s187
      %p196 = scmp.eq.s32.totalorder %s22, 1
      %p197 = por %p195, %p196
      %p198 = scmp.ne.s32.totalorder %s187, %s188
      %p199 = scmp.eq.s32.totalorder %s22, 0
      %p200 = por %p198, %p199
      %p201 = scmp.ne.s32.totalorder %s187, %s188
      %p202 = scmp.eq.s32.totalorder %s23, 1
      %p203 = por %p201, %p202
      %p205 = scmp.ne.s32.totalorder %s188, %s204
      %p206 = scmp.eq.s32.totalorder %s23, 0
      %p207 = por %p205, %p206
      %p208 = scmp.le.s32.totalorder 1, %s17
      %p209 = scmp.lt.s32.totalorder %s17, 3
      %p210 = pnand %p208, %p209
      %p211 = pneg %p210
      // Predicated region
      $region9: #{tpu_custom_call.1} parent=5 // pred_check
        _
      $region10: #{tpu_custom_call.1} parent=5 // pred_check_branch
        %213 = sbr.rel (%p210) target = $region12
      $region11: #{tpu_custom_call.1} parent=5 // pred_region
        %s214 = ssub.s32 %s17, 1
        // Predicated region
        $region13: #{tpu_custom_call.1} parent=11 // pred_check
          %p215 = pneg %p64
        $region14: #{tpu_custom_call.1} parent=11 // pred_check_branch
          %217 = sbr.rel (%p215) target = $region16
        $region15: #{tpu_custom_call.1} parent=11 // pred_region
          _
        $region16: #{tpu_custom_call.1} parent=11 // pred_fallthru
          _
        // Predicated region
        $region17: #{tpu_custom_call.1} parent=11 // pred_check
          %p218 = pneg %p85
        $region18: #{tpu_custom_call.1} parent=11 // pred_check_branch
          %220 = sbr.rel (%p218) target = $region20
        $region19: #{tpu_custom_call.1} parent=11 // pred_region
          _
        $region20: #{tpu_custom_call.1} parent=11 // pred_fallthru
          _
        // Predicated region
        $region21: #{tpu_custom_call.1} parent=11 // pred_check
          %p221 = pneg %p106
        $region22: #{tpu_custom_call.1} parent=11 // pred_check_branch
          %223 = sbr.rel (%p221) target = $region24
        $region23: #{tpu_custom_call.1} parent=11 // pred_region
          _
        $region24: #{tpu_custom_call.1} parent=11 // pred_fallthru
          _
        // Predicated region
        $region25: #{tpu_custom_call.1} parent=11 // pred_check
          %p224 = pneg %p127
        $region26: #{tpu_custom_call.1} parent=11 // pred_check_branch
          %226 = sbr.rel (%p224) target = $region28
        $region27: #{tpu_custom_call.1} parent=11 // pred_region
          _
        $region28: #{tpu_custom_call.1} parent=11 // pred_fallthru
          _
        // Predicated region
        $region29: #{tpu_custom_call.1} parent=11 // pred_check
          %p227 = pneg %p148
        $region30: #{tpu_custom_call.1} parent=11 // pred_check_branch
          %229 = sbr.rel (%p227) target = $region32
        $region31: #{tpu_custom_call.1} parent=11 // pred_region
          _
        $region32: #{tpu_custom_call.1} parent=11 // pred_fallthru
          _
      $region12: #{tpu_custom_call.1} parent=5 // pred_fallthru
        _
      %p230 = scmp.lt.s32.totalorder %s17, 2
      // Predicated region
      $region33: #{tpu_custom_call.1} parent=5 // pred_check
        %p231 = pneg %p230
      $region34: #{tpu_custom_call.1} parent=5 // pred_check_branch
        %233 = sbr.rel (%p231) target = $region36
      $region35: #{tpu_custom_call.1} parent=5 // pred_region
        // Predicated region
        $region37: #{tpu_custom_call.1} parent=35 // pred_check
          %p234 = pneg %p37
        $region38: #{tpu_custom_call.1} parent=35 // pred_check_branch
          %236 = sbr.rel (%p234) target = $region40
        $region39: #{tpu_custom_call.1} parent=35 // pred_region
          %p237 = scmp.lt.s32.totalorder %s17, 1
          %s238 = scalar_select %p237, %s17, 1
          %s239 = smul.addr %s238, 8
          %s240 = smul.addr %s239, 8
          %s241 = scalar_lea.vmem %s0, %s240
        $region40: #{tpu_custom_call.1} parent=35 // pred_fallthru
          _
      $region36: #{tpu_custom_call.1} parent=5 // pred_fallthru
        _
      %p242 = scmp.le.s32.totalorder 1, %s17
      %p243 = scmp.lt.s32.totalorder %s17, 3
      %p244 = pnand %p242, %p243
      %p245 = pneg %p244
      // Predicated region
      $region41: #{tpu_custom_call.1} parent=5 // pred_check
        _
      $region42: #{tpu_custom_call.1} parent=5 // pred_check_branch
        %247 = sbr.rel (%p244) target = $region44
      $region43: #{tpu_custom_call.1} parent=5 // pred_region
        %s248 = ssub.s32 %s17, 1
        %p249 = scmp.lt.s32.totalorder %s22, 1
        %s250 = scalar_select %p249, %s22, 1
        %s251 = smul.addr %s250, 8
        %s252 = smul.addr %s251, 8
        %s253 = scalar_lea.vmem %s0, %s252
        %p254 = pneg %p43
        %p255 = pneg %p40
        %p256 = pneg %p64
        %p257 = pneg %p61
        %p258 = pneg %p85
        %p259 = pneg %p82
        %p260 = pneg %p106
        %p261 = pneg %p103
        %p262 = pneg %p127
        %p263 = pneg %p124
        %p264 = pneg %p148
        %p265 = pneg %p145
        %p266 = pneg %p174
        %p267 = pneg %p171
        %p268 = scmp.lt.s32.totalorder %s22, 1
        %s269 = scalar_select %p268, %s22, 1
        %s270 = smul.addr %s269, 8
        %s271 = smul.addr %s270, 8
        %s272 = scalar_lea.vmem %s6, %s271
        %p273 = pneg %p200
        %p274 = pneg %p197
        %s275 = sand.u32 %s187, 1
        %s276 = scalar_lea.sflag [#allocation5], %s275
        %s277 = sand.u32 %s187, 1
        %s278 = smul.addr %s277, 64
        %s279 = scalar_lea.vmem [#allocation4], %s278
        %p280 = scmp.lt.s32.totalorder %s22, 1
        %s281 = scalar_select %p280, %s22, 1
        %s282 = smul.addr %s281, 8
        %s283 = smul.addr %s282, 8
        %s284 = scalar_lea.vmem %s0, %s283
        %p285 = scmp.lt.s32.totalorder %s22, 1
        %s286 = scalar_select %p285, %s22, 1
        %s287 = smul.addr %s286, 8
        %s288 = smul.addr %s287, 8
        %s289 = scalar_lea.vmem %s6, %s288
        %v290 = vld [vmem:[%s284] sm:$0xff]
        %v291 = vld [vmem:[%s284 + $0x8] sm:$0xff]
        %v292 = vld [vmem:[%s284 + $0x10] sm:$0xff]
        %v293 = vld [vmem:[%s284 + $0x18] sm:$0xff]
        %v294 = vld [vmem:[%s284 + $0x20] sm:$0xff]
        %v295 = vld [vmem:[%s284 + $0x28] sm:$0xff]
        %v296 = vld [vmem:[%s284 + $0x30] sm:$0xff]
        %v297 = vld [vmem:[%s284 + $0x38] sm:$0xff]
        %v298 = vld [vmem:[%s1] sm:$0xff]
        %v299 = vld [vmem:[%s1 + $0x8] sm:$0xff]
        %v300 = vld [vmem:[%s1 + $0x10] sm:$0xff]
        %v301 = vld [vmem:[%s1 + $0x18] sm:$0xff]
        %vm302 = vcmask 261120
        %v304 = vsel %vm302, %v290, 0
        %v307 = vsel %vm302, %v291, 0
        %v310 = vsel %vm302, %v292, 0
        %v313 = vsel %vm302, %v293, 0
        %v316 = vsel %vm302, %v294, 0
        %v319 = vsel %vm302, %v295, 0
        %v322 = vsel %vm302, %v296, 0
        %v325 = vsel %vm302, %v297, 0
        %327 = vmatpush.msra.mxu0 0.0
        %328 = vmatpush.msra.mxu0 0.0
        %329 = vmatpush.msra.mxu0 0.0
        %330 = vmatpush.msra.mxu0 0.0
        %331 = vmatpush.msra.mxu0 0.0
        %332 = vmatpush.msra.mxu0 0.0
        %333 = vmatpush.msra.mxu0 0.0
        %334 = vmatpush.msra.mxu0 0.0
        %335 = vmatpush.msra.mxu0 0.0
        %336 = vmatpush.msra.mxu0 0.0
        %337 = vmatpush.msra.mxu0 0.0
        %338 = vmatpush.msra.mxu0 0.0
        %339 = vmatpush.msra.mxu0 %v301
        %340 = vmatpush.msra.mxu0 %v300
        %341 = vmatpush.msra.mxu0 %v299
        %342 = vmatpush.msra.mxu0 %v298
        %343 = vmatmul.f32.gmra.mxu0 %v304
        %v344 = vpop.f32.mrf.mxu0
        %v345 = vadd.f32 0.0, %v344
        %346 = vmatmul.f32.gmra.mxu0 %v307
        %v347 = vpop.f32.mrf.mxu0
        %v348 = vadd.f32 0.0, %v347
        %349 = vmatmul.f32.gmra.mxu0 %v310
        %v350 = vpop.f32.mrf.mxu0
        %v351 = vadd.f32 0.0, %v350
        %352 = vmatmul.f32.gmra.mxu0 %v313
        %v353 = vpop.f32.mrf.mxu0
        %v354 = vadd.f32 0.0, %v353
        %355 = vmatmul.f32.gmra.mxu0 %v316
        %v356 = vpop.f32.mrf.mxu0
        %v357 = vadd.f32 0.0, %v356
        %358 = vmatmul.f32.gmra.mxu0 %v319
        %v359 = vpop.f32.mrf.mxu0
        %v360 = vadd.f32 0.0, %v359
        %361 = vmatmul.f32.gmra.mxu0 %v322
        %v362 = vpop.f32.mrf.mxu0
        %v363 = vadd.f32 0.0, %v362
        %364 = vmatmul.f32.gmra.mxu0 %v325
        %v365 = vpop.f32.mrf.mxu0
        %v366 = vadd.f32 0.0, %v365
        %367 = vdwg.mxu0
        %v368 = vld [vmem:[%s3] sm:$0xff]
        %v369 = vld [vmem:[%s3 + $0x8] sm:$0xff]
        %v370 = vld [vmem:[%s3 + $0x10] sm:$0xff]
        %v371 = vld [vmem:[%s3 + $0x18] sm:$0xff]
        %v372 = vlaneseq
        %v373 = vshrl.u32 %v372, 7
        %v374 = vadd.s32 %v373, 8
        %v375 = vadd.s32 %v373, 16
        %v376 = vadd.s32 %v373, 24
        %v377 = vadd.s32 %v373, 32
        %v378 = vadd.s32 %v373, 40
        %v379 = vadd.s32 %v373, 48
        %v380 = vadd.s32 %v373, 56
        %vm381 = vcmp.lt.s32.totalorder %v373, 0
        %v382 = vsub.s32 0, %v373
        %v383 = vsel %vm381, %v382, %v373
        %v384 = vshrl.u32 %v383, 4
        %v385 = vand.u32 %v383, 15
        %v386 = vsub.s32 0, %v385
        %v387 = vsel %vm381, %v386, %v385
        %vm388 = vcmp.lt.s32.totalorder %v374, 0
        %v389 = vsub.s32 0, %v374
        %v390 = vsel %vm388, %v389, %v374
        %v391 = vshrl.u32 %v390, 4
        %v392 = vand.u32 %v390, 15
        %v393 = vsub.s32 0, %v392
        %v394 = vsel %vm388, %v393, %v392
        %vm395 = vcmp.lt.s32.totalorder %v375, 0
        %v396 = vsub.s32 0, %v375
        %v397 = vsel %vm395, %v396, %v375
        %v398 = vshrl.u32 %v397, 4
        %v399 = vand.u32 %v397, 15
        %v400 = vsub.s32 0, %v399
        %v401 = vsel %vm395, %v400, %v399
        %vm402 = vcmp.lt.s32.totalorder %v376, 0
        %v403 = vsub.s32 0, %v376
        %v404 = vsel %vm402, %v403, %v376
        %v405 = vshrl.u32 %v404, 4
        %v406 = vand.u32 %v404, 15
        %v407 = vsub.s32 0, %v406
        %v408 = vsel %vm402, %v407, %v406
        %vm409 = vcmp.lt.s32.totalorder %v377, 0
        %v410 = vsub.s32 0, %v377
        %v411 = vsel %vm409, %v410, %v377
        %v412 = vshrl.u32 %v411, 4
        %v413 = vand.u32 %v411, 15
        %v414 = vsub.s32 0, %v413
        %v415 = vsel %vm409, %v414, %v413
        %vm416 = vcmp.lt.s32.totalorder %v378, 0
        %v417 = vsub.s32 0, %v378
        %v418 = vsel %vm416, %v417, %v378
        %v419 = vshrl.u32 %v418, 4
        %v420 = vand.u32 %v418, 15
        %v421 = vsub.s32 0, %v420
        %v422 = vsel %vm416, %v421, %v420
        %vm423 = vcmp.lt.s32.totalorder %v379, 0
        %v424 = vsub.s32 0, %v379
        %v425 = vsel %vm423, %v424, %v379
        %v426 = vshrl.u32 %v425, 4
        %v427 = vand.u32 %v425, 15
        %v428 = vsub.s32 0, %v427
        %v429 = vsel %vm423, %v428, %v427
        %vm430 = vcmp.lt.s32.totalorder %v380, 0
        %v431 = vsub.s32 0, %v380
        %v432 = vsel %vm430, %v431, %v380
        %v433 = vshrl.u32 %v432, 4
        %v434 = vand.u32 %v432, 15
        %v435 = vsub.s32 0, %v434
        %v436 = vsel %vm430, %v435, %v434
        %vm437 = vcmp.ne.s32.totalorder %v387, 0
        %vm438 = vcmp.ne.s32.totalorder %v394, 0
        %vm439 = vcmp.ne.s32.totalorder %v401, 0
        %vm440 = vcmp.ne.s32.totalorder %v408, 0
        %vm441 = vcmp.ne.s32.totalorder %v415, 0
        %vm442 = vcmp.ne.s32.totalorder %v422, 0
        %vm443 = vcmp.ne.s32.totalorder %v429, 0
        %vm444 = vcmp.ne.s32.totalorder %v436, 0
        %vm445 = vcmp.lt.s32.totalorder %v387, 0
        %vm446 = vcmp.lt.s32.totalorder %v394, 0
        %vm447 = vcmp.lt.s32.totalorder %v401, 0
        %vm448 = vcmp.lt.s32.totalorder %v408, 0
        %vm449 = vcmp.lt.s32.totalorder %v415, 0
        %vm450 = vcmp.lt.s32.totalorder %v422, 0
        %vm451 = vcmp.lt.s32.totalorder %v429, 0
        %vm452 = vcmp.lt.s32.totalorder %v436, 0
        %vm453 = vmand %vm445, %vm437
        %vm454 = vmand %vm446, %vm438
        %vm455 = vmand %vm447, %vm439
        %vm456 = vmand %vm448, %vm440
        %vm457 = vmand %vm449, %vm441
        %vm458 = vmand %vm450, %vm442
        %vm459 = vmand %vm451, %vm443
        %vm460 = vmand %vm452, %vm444
        %v461 = vadd.s32 %v387, 16
        %v462 = vadd.s32 %v394, 16
        %v463 = vadd.s32 %v401, 16
        %v464 = vadd.s32 %v408, 16
        %v465 = vadd.s32 %v415, 16
        %v466 = vadd.s32 %v422, 16
        %v467 = vadd.s32 %v429, 16
        %v468 = vadd.s32 %v436, 16
        %v469 = vsel %vm453, %v461, %v387
        %v470 = vsel %vm454, %v462, %v394
        %v471 = vsel %vm455, %v463, %v401
        %v472 = vsel %vm456, %v464, %v408
        %v473 = vsel %vm457, %v465, %v415
        %v474 = vsel %vm458, %v466, %v422
        %v475 = vsel %vm459, %v467, %v429
        %v476 = vsel %vm460, %v468, %v436
        %v477 = vlaneseq
        %v478 = vand.u32 %v477, 127
        %vm479 = vcmp.lt.s32.totalorder %v478, 0
        %v480 = vsub.s32 0, %v478
        %v481 = vsel %vm479, %v480, %v478
        %v482 = vshrl.u32 %v481, 4
        %v483 = vand.u32 %v481, 15
        %v484 = vsub.s32 0, %v483
        %v485 = vsel %vm479, %v484, %v483
        %vm486 = vcmp.ne.s32.totalorder %v485, 0
        %vm487 = vcmp.lt.s32.totalorder %v485, 0
        %vm488 = vmand %vm487, %vm486
        %v489 = vadd.s32 %v485, 16
        %v490 = vsel %vm488, %v489, %v485
        %vm491 = vcmp.eq.s32.totalorder %v469, %v490
        %vm492 = vcmp.eq.s32.totalorder %v470, %v490
        %vm493 = vcmp.eq.s32.totalorder %v471, %v490
        %vm494 = vcmp.eq.s32.totalorder %v472, %v490
        %vm495 = vcmp.eq.s32.totalorder %v473, %v490
        %vm496 = vcmp.eq.s32.totalorder %v474, %v490
        %vm497 = vcmp.eq.s32.totalorder %v475, %v490
        %vm498 = vcmp.eq.s32.totalorder %v476, %v490
        %v499 = vsel %vm491, 1, 0
        %v500 = vsel %vm492, 1, 0
        %v501 = vsel %vm493, 1, 0
        %v502 = vsel %vm494, 1, 0
        %v503 = vsel %vm495, 1, 0
        %v504 = vsel %vm496, 1, 0
        %v505 = vsel %vm497, 1, 0
        %v506 = vsel %vm498, 1, 0
        %v507 = vcvt.s32.f32 %v499
        %v508 = vcvt.s32.f32 %v500
        %v509 = vcvt.s32.f32 %v501
        %v510 = vcvt.s32.f32 %v502
        %v511 = vcvt.s32.f32 %v503
        %v512 = vcvt.s32.f32 %v504
        %v513 = vcvt.s32.f32 %v505
        %v514 = vcvt.s32.f32 %v506
        %523 = vrot.lane.b32.xlu0 %v345, 96
        %v524 = vpop.permute.xlu0 %523
        %525 = vrot.lane.b32.xlu0 %v348, 96
        %v526 = vpop.permute.xlu0 %525
        %527 = vrot.lane.b32.xlu0 %v351, 96
        %v528 = vpop.permute.xlu0 %527
        %529 = vrot.lane.b32.xlu0 %v354, 96
        %v530 = vpop.permute.xlu0 %529
        %531 = vrot.lane.b32.xlu0 %v357, 96
        %v532 = vpop.permute.xlu0 %531
        %533 = vrot.lane.b32.xlu0 %v360, 96
        %v534 = vpop.permute.xlu0 %533
        %535 = vrot.lane.b32.xlu0 %v363, 96
        %v536 = vpop.permute.xlu0 %535
        %537 = vrot.lane.b32.xlu0 %v366, 96
        %v538 = vpop.permute.xlu0 %537
        %vm539 = vcmask 64512
        %v540 = vsel %vm539, %v345, 0
        %v542 = vsel %vm539, %v348, 0
        %v544 = vsel %vm539, %v351, 0
        %v546 = vsel %vm539, %v354, 0
        %v548 = vsel %vm539, %v357, 0
        %v550 = vsel %vm539, %v360, 0
        %v552 = vsel %vm539, %v363, 0
        %v554 = vsel %vm539, %v366, 0
        %v556 = vsel %vm539, %v524, 0
        %v558 = vsel %vm539, %v526, 0
        %v560 = vsel %vm539, %v528, 0
        %v562 = vsel %vm539, %v530, 0
        %v564 = vsel %vm539, %v532, 0
        %v566 = vsel %vm539, %v534, 0
        %v568 = vsel %vm539, %v536, 0
        %v570 = vsel %vm539, %v538, 0
        %572 = vmatpush.xpose.msra.mxu0 0.0
        %573 = vmatpush.xpose.msra.mxu0 0.0
        %574 = vmatpush.xpose.msra.mxu0 0.0
        %575 = vmatpush.xpose.msra.mxu0 0.0
        %576 = vmatpush.xpose.msra.mxu0 0.0
        %577 = vmatpush.xpose.msra.mxu0 0.0
        %578 = vmatpush.xpose.msra.mxu0 0.0
        %579 = vmatpush.xpose.msra.mxu0 0.0
        %580 = vmatpush.xpose.msra.mxu0 %v570
        %581 = vmatpush.xpose.msra.mxu0 %v568
        %582 = vmatpush.xpose.msra.mxu0 %v566
        %583 = vmatpush.xpose.msra.mxu0 %v564
        %584 = vmatpush.xpose.msra.mxu0 %v562
        %585 = vmatpush.xpose.msra.mxu0 %v560
        %586 = vmatpush.xpose.msra.mxu0 %v558
        %587 = vmatpush.xpose.msra.mxu0 %v556
        %588 = vmatmul.f32.gmra.mxu0 %v540
        %v589 = vpop.f32.mrf.mxu0
        %v590 = vadd.f32 0.0, %v589
        %591 = vmatmul.f32.gmra.mxu0 %v542
        %v592 = vpop.f32.mrf.mxu0
        %v593 = vadd.f32 0.0, %v592
        %594 = vmatmul.f32.gmra.mxu0 %v544
        %v595 = vpop.f32.mrf.mxu0
        %v596 = vadd.f32 0.0, %v595
        %597 = vmatmul.f32.gmra.mxu0 %v546
        %v598 = vpop.f32.mrf.mxu0
        %v599 = vadd.f32 0.0, %v598
        %600 = vmatmul.f32.gmra.mxu0 %v548
        %v601 = vpop.f32.mrf.mxu0
        %v602 = vadd.f32 0.0, %v601
        %603 = vmatmul.f32.gmra.mxu0 %v550
        %v604 = vpop.f32.mrf.mxu0
        %v605 = vadd.f32 0.0, %v604
        %606 = vmatmul.f32.gmra.mxu0 %v552
        %v607 = vpop.f32.mrf.mxu0
        %v608 = vadd.f32 0.0, %v607
        %609 = vmatmul.f32.gmra.mxu0 %v554
        %v610 = vpop.f32.mrf.mxu0
        %v611 = vadd.f32 0.0, %v610
        %612 = vdwg.mxu0
        %v613 = vmul.f32 %v590, 0.35355338
        %v614 = vmul.f32 %v593, 0.35355338
        %v615 = vmul.f32 %v596, 0.35355338
        %v616 = vmul.f32 %v599, 0.35355338
        %v617 = vmul.f32 %v602, 0.35355338
        %v618 = vmul.f32 %v605, 0.35355338
        %v619 = vmul.f32 %v608, 0.35355338
        %v620 = vmul.f32 %v611, 0.35355338
        %629 = vrot.lane.b32.xlu0 %v613, 112
        %v630 = vpop.permute.xlu0 %629
        %631 = vrot.lane.b32.xlu0 %v614, 112
        %v632 = vpop.permute.xlu0 %631
        %633 = vrot.lane.b32.xlu0 %v615, 112
        %v634 = vpop.permute.xlu0 %633
        %635 = vrot.lane.b32.xlu0 %v616, 112
        %v636 = vpop.permute.xlu0 %635
        %637 = vrot.lane.b32.xlu0 %v617, 112
        %v638 = vpop.permute.xlu0 %637
        %639 = vrot.lane.b32.xlu0 %v618, 112
        %v640 = vpop.permute.xlu0 %639
        %641 = vrot.lane.b32.xlu0 %v619, 112
        %v642 = vpop.permute.xlu0 %641
        %643 = vrot.lane.b32.xlu0 %v620, 112
        %v644 = vpop.permute.xlu0 %643
        %v653 = vmax.f32 %v613, %v630
        %v654 = vmax.f32 %v614, %v632
        %v655 = vmax.f32 %v615, %v634
        %v656 = vmax.f32 %v616, %v636
        %v657 = vmax.f32 %v617, %v638
        %v658 = vmax.f32 %v618, %v640
        %v659 = vmax.f32 %v619, %v642
        %v660 = vmax.f32 %v620, %v644
        %661 = vrot.lane.b32.xlu0 %v613, 96
        %v662 = vpop.permute.xlu0 %661
        %663 = vrot.lane.b32.xlu0 %v614, 96
        %v664 = vpop.permute.xlu0 %663
        %665 = vrot.lane.b32.xlu0 %v615, 96
        %v666 = vpop.permute.xlu0 %665
        %667 = vrot.lane.b32.xlu0 %v616, 96
        %v668 = vpop.permute.xlu0 %667
        %669 = vrot.lane.b32.xlu0 %v617, 96
        %v670 = vpop.permute.xlu0 %669
        %671 = vrot.lane.b32.xlu0 %v618, 96
        %v672 = vpop.permute.xlu0 %671
        %673 = vrot.lane.b32.xlu0 %v619, 96
        %v674 = vpop.permute.xlu0 %673
        %675 = vrot.lane.b32.xlu0 %v620, 96
        %v676 = vpop.permute.xlu0 %675
        %v685 = vmax.f32 %v653, %v662
        %v686 = vmax.f32 %v654, %v664
        %v687 = vmax.f32 %v655, %v666
        %v688 = vmax.f32 %v656, %v668
        %v689 = vmax.f32 %v657, %v670
        %v690 = vmax.f32 %v658, %v672
        %v691 = vmax.f32 %v659, %v674
        %v692 = vmax.f32 %v660, %v676
        %693 = vrot.lane.b32.xlu0 %v613, 80
        %v694 = vpop.permute.xlu0 %693
        %695 = vrot.lane.b32.xlu0 %v614, 80
        %v696 = vpop.permute.xlu0 %695
        %697 = vrot.lane.b32.xlu0 %v615, 80
        %v698 = vpop.permute.xlu0 %697
        %699 = vrot.lane.b32.xlu0 %v616, 80
        %v700 = vpop.permute.xlu0 %699
        %701 = vrot.lane.b32.xlu0 %v617, 80
        %v702 = vpop.permute.xlu0 %701
        %703 = vrot.lane.b32.xlu0 %v618, 80
        %v704 = vpop.permute.xlu0 %703
        %705 = vrot.lane.b32.xlu0 %v619, 80
        %v706 = vpop.permute.xlu0 %705
        %707 = vrot.lane.b32.xlu0 %v620, 80
        %v708 = vpop.permute.xlu0 %707
        %v717 = vmax.f32 %v685, %v694
        %v718 = vmax.f32 %v686, %v696
        %v719 = vmax.f32 %v687, %v698
        %v720 = vmax.f32 %v688, %v700
        %v721 = vmax.f32 %v689, %v702
        %v722 = vmax.f32 %v690, %v704
        %v723 = vmax.f32 %v691, %v706
        %v724 = vmax.f32 %v692, %v708
        %v725 = vsub.f32 %v613, %v717
        %v726 = vsub.f32 %v614, %v718
        %v727 = vsub.f32 %v615, %v719
        %v728 = vsub.f32 %v616, %v720
        %v729 = vsub.f32 %v617, %v721
        %v730 = vsub.f32 %v618, %v722
        %v731 = vsub.f32 %v619, %v723
        %v732 = vsub.f32 %v620, %v724
        %v733 = vmul.f32 %v725, 1.442695
        %v734 = vpow.pop %v733
        %v735 = vmul.f32 %v726, 1.442695
        %v736 = vpow.pop %v735
        %v737 = vmul.f32 %v727, 1.442695
        %v738 = vpow.pop %v737
        %v739 = vmul.f32 %v728, 1.442695
        %v740 = vpow.pop %v739
        %v741 = vmul.f32 %v729, 1.442695
        %v742 = vpow.pop %v741
        %v743 = vmul.f32 %v730, 1.442695
        %v744 = vpow.pop %v743
        %v745 = vmul.f32 %v731, 1.442695
        %v746 = vpow.pop %v745
        %v747 = vmul.f32 %v732, 1.442695
        %v748 = vpow.pop %v747
        %757 = vrot.lane.b32.xlu0 %v717, 16
        %v758 = vpop.permute.xlu0 %757
        %759 = vrot.lane.b32.xlu0 %v718, 16
        %v760 = vpop.permute.xlu0 %759
        %761 = vrot.lane.b32.xlu0 %v719, 16
        %v762 = vpop.permute.xlu0 %761
        %763 = vrot.lane.b32.xlu0 %v720, 16
        %v764 = vpop.permute.xlu0 %763
        %765 = vrot.lane.b32.xlu0 %v721, 16
        %v766 = vpop.permute.xlu0 %765
        %767 = vrot.lane.b32.xlu0 %v722, 16
        %v768 = vpop.permute.xlu0 %767
        %769 = vrot.lane.b32.xlu0 %v723, 16
        %v770 = vpop.permute.xlu0 %769
        %771 = vrot.lane.b32.xlu0 %v724, 16
        %v772 = vpop.permute.xlu0 %771
        %v781 = vsub.f32 %v613, %v758
        %v782 = vsub.f32 %v614, %v760
        %v783 = vsub.f32 %v615, %v762
        %v784 = vsub.f32 %v616, %v764
        %v785 = vsub.f32 %v617, %v766
        %v786 = vsub.f32 %v618, %v768
        %v787 = vsub.f32 %v619, %v770
        %v788 = vsub.f32 %v620, %v772
        %v789 = vmul.f32 %v781, 1.442695
        %v790 = vpow.pop %v789
        %v791 = vmul.f32 %v782, 1.442695
        %v792 = vpow.pop %v791
        %v793 = vmul.f32 %v783, 1.442695
        %v794 = vpow.pop %v793
        %v795 = vmul.f32 %v784, 1.442695
        %v796 = vpow.pop %v795
        %v797 = vmul.f32 %v785, 1.442695
        %v798 = vpow.pop %v797
        %v799 = vmul.f32 %v786, 1.442695
        %v800 = vpow.pop %v799
        %v801 = vmul.f32 %v787, 1.442695
        %v802 = vpow.pop %v801
        %v803 = vmul.f32 %v788, 1.442695
        %v804 = vpow.pop %v803
        %805 = vrot.lane.b32.xlu0 %v717, 32
        %v806 = vpop.permute.xlu0 %805
        %807 = vrot.lane.b32.xlu0 %v718, 32
        %v808 = vpop.permute.xlu0 %807
        %809 = vrot.lane.b32.xlu0 %v719, 32
        %v810 = vpop.permute.xlu0 %809
        %811 = vrot.lane.b32.xlu0 %v720, 32
        %v812 = vpop.permute.xlu0 %811
        %813 = vrot.lane.b32.xlu0 %v721, 32
        %v814 = vpop.permute.xlu0 %813
        %815 = vrot.lane.b32.xlu0 %v722, 32
        %v816 = vpop.permute.xlu0 %815
        %817 = vrot.lane.b32.xlu0 %v723, 32
        %v818 = vpop.permute.xlu0 %817
        %819 = vrot.lane.b32.xlu0 %v724, 32
        %v820 = vpop.permute.xlu0 %819
        %v829 = vsub.f32 %v613, %v806
        %v830 = vsub.f32 %v614, %v808
        %v831 = vsub.f32 %v615, %v810
        %v832 = vsub.f32 %v616, %v812
        %v833 = vsub.f32 %v617, %v814
        %v834 = vsub.f32 %v618, %v816
        %v835 = vsub.f32 %v619, %v818
        %v836 = vsub.f32 %v620, %v820
        %v837 = vmul.f32 %v829, 1.442695
        %v838 = vpow.pop %v837
        %v839 = vmul.f32 %v830, 1.442695
        %v840 = vpow.pop %v839
        %v841 = vmul.f32 %v831, 1.442695
        %v842 = vpow.pop %v841
        %v843 = vmul.f32 %v832, 1.442695
        %v844 = vpow.pop %v843
        %v845 = vmul.f32 %v833, 1.442695
        %v846 = vpow.pop %v845
        %v847 = vmul.f32 %v834, 1.442695
        %v848 = vpow.pop %v847
        %v849 = vmul.f32 %v835, 1.442695
        %v850 = vpow.pop %v849
        %v851 = vmul.f32 %v836, 1.442695
        %v852 = vpow.pop %v851
        %853 = vrot.lane.b32.xlu0 %v717, 48
        %v854 = vpop.permute.xlu0 %853
        %855 = vrot.lane.b32.xlu0 %v718, 48
        %v856 = vpop.permute.xlu0 %855
        %857 = vrot.lane.b32.xlu0 %v719, 48
        %v858 = vpop.permute.xlu0 %857
        %859 = vrot.lane.b32.xlu0 %v720, 48
        %v860 = vpop.permute.xlu0 %859
        %861 = vrot.lane.b32.xlu0 %v721, 48
        %v862 = vpop.permute.xlu0 %861
        %863 = vrot.lane.b32.xlu0 %v722, 48
        %v864 = vpop.permute.xlu0 %863
        %865 = vrot.lane.b32.xlu0 %v723, 48
        %v866 = vpop.permute.xlu0 %865
        %867 = vrot.lane.b32.xlu0 %v724, 48
        %v868 = vpop.permute.xlu0 %867
        %v877 = vsub.f32 %v613, %v854
        %v878 = vsub.f32 %v614, %v856
        %v879 = vsub.f32 %v615, %v858
        %v880 = vsub.f32 %v616, %v860
        %v881 = vsub.f32 %v617, %v862
        %v882 = vsub.f32 %v618, %v864
        %v883 = vsub.f32 %v619, %v866
        %v884 = vsub.f32 %v620, %v868
        %v885 = vmul.f32 %v877, 1.442695
        %v886 = vpow.pop %v885
        %v887 = vmul.f32 %v878, 1.442695
        %v888 = vpow.pop %v887
        %v889 = vmul.f32 %v879, 1.442695
        %v890 = vpow.pop %v889
        %v891 = vmul.f32 %v880, 1.442695
        %v892 = vpow.pop %v891
        %v893 = vmul.f32 %v881, 1.442695
        %v894 = vpow.pop %v893
        %v895 = vmul.f32 %v882, 1.442695
        %v896 = vpow.pop %v895
        %v897 = vmul.f32 %v883, 1.442695
        %v898 = vpow.pop %v897
        %v899 = vmul.f32 %v884, 1.442695
        %v900 = vpow.pop %v899
        %909 = vrot.lane.b32.xlu0 %v790, 112
        %v910 = vpop.permute.xlu0 %909
        %911 = vrot.lane.b32.xlu0 %v792, 112
        %v912 = vpop.permute.xlu0 %911
        %913 = vrot.lane.b32.xlu0 %v794, 112
        %v914 = vpop.permute.xlu0 %913
        %915 = vrot.lane.b32.xlu0 %v796, 112
        %v916 = vpop.permute.xlu0 %915
        %917 = vrot.lane.b32.xlu0 %v798, 112
        %v918 = vpop.permute.xlu0 %917
        %919 = vrot.lane.b32.xlu0 %v800, 112
        %v920 = vpop.permute.xlu0 %919
        %921 = vrot.lane.b32.xlu0 %v802, 112
        %v922 = vpop.permute.xlu0 %921
        %923 = vrot.lane.b32.xlu0 %v804, 112
        %v924 = vpop.permute.xlu0 %923
        %v933 = vadd.f32 %v734, %v910
        %v934 = vadd.f32 %v736, %v912
        %v935 = vadd.f32 %v738, %v914
        %v936 = vadd.f32 %v740, %v916
        %v937 = vadd.f32 %v742, %v918
        %v938 = vadd.f32 %v744, %v920
        %v939 = vadd.f32 %v746, %v922
        %v940 = vadd.f32 %v748, %v924
        %949 = vrot.lane.b32.xlu0 %v838, 96
        %v950 = vpop.permute.xlu0 %949
        %951 = vrot.lane.b32.xlu0 %v840, 96
        %v952 = vpop.permute.xlu0 %951
        %953 = vrot.lane.b32.xlu0 %v842, 96
        %v954 = vpop.permute.xlu0 %953
        %955 = vrot.lane.b32.xlu0 %v844, 96
        %v956 = vpop.permute.xlu0 %955
        %957 = vrot.lane.b32.xlu0 %v846, 96
        %v958 = vpop.permute.xlu0 %957
        %959 = vrot.lane.b32.xlu0 %v848, 96
        %v960 = vpop.permute.xlu0 %959
        %961 = vrot.lane.b32.xlu0 %v850, 96
        %v962 = vpop.permute.xlu0 %961
        %963 = vrot.lane.b32.xlu0 %v852, 96
        %v964 = vpop.permute.xlu0 %963
        %v973 = vadd.f32 %v933, %v950
        %v974 = vadd.f32 %v934, %v952
        %v975 = vadd.f32 %v935, %v954
        %v976 = vadd.f32 %v936, %v956
        %v977 = vadd.f32 %v937, %v958
        %v978 = vadd.f32 %v938, %v960
        %v979 = vadd.f32 %v939, %v962
        %v980 = vadd.f32 %v940, %v964
        %989 = vrot.lane.b32.xlu0 %v886, 80
        %v990 = vpop.permute.xlu0 %989
        %991 = vrot.lane.b32.xlu0 %v888, 80
        %v992 = vpop.permute.xlu0 %991
        %993 = vrot.lane.b32.xlu0 %v890, 80
        %v994 = vpop.permute.xlu0 %993
        %995 = vrot.lane.b32.xlu0 %v892, 80
        %v996 = vpop.permute.xlu0 %995
        %997 = vrot.lane.b32.xlu0 %v894, 80
        %v998 = vpop.permute.xlu0 %997
        %999 = vrot.lane.b32.xlu0 %v896, 80
        %v1000 = vpop.permute.xlu0 %999
        %1001 = vrot.lane.b32.xlu0 %v898, 80
        %v1002 = vpop.permute.xlu0 %1001
        %1003 = vrot.lane.b32.xlu0 %v900, 80
        %v1004 = vpop.permute.xlu0 %1003
        %v1013 = vadd.f32 %v973, %v990
        %v1014 = vadd.f32 %v974, %v992
        %v1015 = vadd.f32 %v975, %v994
        %v1016 = vadd.f32 %v976, %v996
        %v1017 = vadd.f32 %v977, %v998
        %v1018 = vadd.f32 %v978, %v1000
        %v1019 = vadd.f32 %v979, %v1002
        %v1020 = vadd.f32 %v980, %v1004
        %v1021 = vrcp.pop %v1013
        %v1022 = vmul.f32 %v1013, %v1021
        %v1023 = vsub.f32 1.0, %v1022
        %v1024 = vmul.f32 %v1021, %v1023
        %v1025 = vadd.f32 %v1021, %v1024
        %vm1026 = vweird.f32 %v1013
        %vm1027 = vweird.f32 %v1021
        %vm1028 = vmor %vm1026, %vm1027
        %v1029 = vsel %vm1028, %v1021, %v1025
        %v1030 = vand.u32 2147483647, %v1013
        %vm1031 = vcmp.eq.f32.partialorder %v1030, 8.507059e+37
        %v1032 = vand.u32 %v1013, 2147483648
        %v1033 = vor.u32 1.1754944e-38, %v1032
        %v1034 = vsel %vm1031, %v1033, %v1029
        %v1035 = vmul.f32 1.0, %v1034
        %v1036 = vrcp.pop %v1014
        %v1037 = vmul.f32 %v1014, %v1036
        %v1038 = vsub.f32 1.0, %v1037
        %v1039 = vmul.f32 %v1036, %v1038
        %v1040 = vadd.f32 %v1036, %v1039
        %vm1041 = vweird.f32 %v1014
        %vm1042 = vweird.f32 %v1036
        %vm1043 = vmor %vm1041, %vm1042
        %v1044 = vsel %vm1043, %v1036, %v1040
        %v1045 = vand.u32 2147483647, %v1014
        %vm1046 = vcmp.eq.f32.partialorder %v1045, 8.507059e+37
        %v1047 = vand.u32 %v1014, 2147483648
        %v1048 = vor.u32 1.1754944e-38, %v1047
        %v1049 = vsel %vm1046, %v1048, %v1044
        %v1050 = vmul.f32 1.0, %v1049
        %v1051 = vrcp.pop %v1015
        %v1052 = vmul.f32 %v1015, %v1051
        %v1053 = vsub.f32 1.0, %v1052
        %v1054 = vmul.f32 %v1051, %v1053
        %v1055 = vadd.f32 %v1051, %v1054
        %vm1056 = vweird.f32 %v1015
        %vm1057 = vweird.f32 %v1051
        %vm1058 = vmor %vm1056, %vm1057
        %v1059 = vsel %vm1058, %v1051, %v1055
        %v1060 = vand.u32 2147483647, %v1015
        %vm1061 = vcmp.eq.f32.partialorder %v1060, 8.507059e+37
        %v1062 = vand.u32 %v1015, 2147483648
        %v1063 = vor.u32 1.1754944e-38, %v1062
        %v1064 = vsel %vm1061, %v1063, %v1059
        %v1065 = vmul.f32 1.0, %v1064
        %v1066 = vrcp.pop %v1016
        %v1067 = vmul.f32 %v1016, %v1066
        %v1068 = vsub.f32 1.0, %v1067
        %v1069 = vmul.f32 %v1066, %v1068
        %v1070 = vadd.f32 %v1066, %v1069
        %vm1071 = vweird.f32 %v1016
        %vm1072 = vweird.f32 %v1066
        %vm1073 = vmor %vm1071, %vm1072
        %v1074 = vsel %vm1073, %v1066, %v1070
        %v1075 = vand.u32 2147483647, %v1016
        %vm1076 = vcmp.eq.f32.partialorder %v1075, 8.507059e+37
        %v1077 = vand.u32 %v1016, 2147483648
        %v1078 = vor.u32 1.1754944e-38, %v1077
        %v1079 = vsel %vm1076, %v1078, %v1074
        %v1080 = vmul.f32 1.0, %v1079
        %v1081 = vrcp.pop %v1017
        %v1082 = vmul.f32 %v1017, %v1081
        %v1083 = vsub.f32 1.0, %v1082
        %v1084 = vmul.f32 %v1081, %v1083
        %v1085 = vadd.f32 %v1081, %v1084
        %vm1086 = vweird.f32 %v1017
        %vm1087 = vweird.f32 %v1081
        %vm1088 = vmor %vm1086, %vm1087
        %v1089 = vsel %vm1088, %v1081, %v1085
        %v1090 = vand.u32 2147483647, %v1017
        %vm1091 = vcmp.eq.f32.partialorder %v1090, 8.507059e+37
        %v1092 = vand.u32 %v1017, 2147483648
        %v1093 = vor.u32 1.1754944e-38, %v1092
        %v1094 = vsel %vm1091, %v1093, %v1089
        %v1095 = vmul.f32 1.0, %v1094
        %v1096 = vrcp.pop %v1018
        %v1097 = vmul.f32 %v1018, %v1096
        %v1098 = vsub.f32 1.0, %v1097
        %v1099 = vmul.f32 %v1096, %v1098
        %v1100 = vadd.f32 %v1096, %v1099
        %vm1101 = vweird.f32 %v1018
        %vm1102 = vweird.f32 %v1096
        %vm1103 = vmor %vm1101, %vm1102
        %v1104 = vsel %vm1103, %v1096, %v1100
        %v1105 = vand.u32 2147483647, %v1018
        %vm1106 = vcmp.eq.f32.partialorder %v1105, 8.507059e+37
        %v1107 = vand.u32 %v1018, 2147483648
        %v1108 = vor.u32 1.1754944e-38, %v1107
        %v1109 = vsel %vm1106, %v1108, %v1104
        %v1110 = vmul.f32 1.0, %v1109
        %v1111 = vrcp.pop %v1019
        %v1112 = vmul.f32 %v1019, %v1111
        %v1113 = vsub.f32 1.0, %v1112
        %v1114 = vmul.f32 %v1111, %v1113
        %v1115 = vadd.f32 %v1111, %v1114
        %vm1116 = vweird.f32 %v1019
        %vm1117 = vweird.f32 %v1111
        %vm1118 = vmor %vm1116, %vm1117
        %v1119 = vsel %vm1118, %v1111, %v1115
        %v1120 = vand.u32 2147483647, %v1019
        %vm1121 = vcmp.eq.f32.partialorder %v1120, 8.507059e+37
        %v1122 = vand.u32 %v1019, 2147483648
        %v1123 = vor.u32 1.1754944e-38, %v1122
        %v1124 = vsel %vm1121, %v1123, %v1119
        %v1125 = vmul.f32 1.0, %v1124
        %v1126 = vrcp.pop %v1020
        %v1127 = vmul.f32 %v1020, %v1126
        %v1128 = vsub.f32 1.0, %v1127
        %v1129 = vmul.f32 %v1126, %v1128
        %v1130 = vadd.f32 %v1126, %v1129
        %vm1131 = vweird.f32 %v1020
        %vm1132 = vweird.f32 %v1126
        %vm1133 = vmor %vm1131, %vm1132
        %v1134 = vsel %vm1133, %v1126, %v1130
        %v1135 = vand.u32 2147483647, %v1020
        %vm1136 = vcmp.eq.f32.partialorder %v1135, 8.507059e+37
        %v1137 = vand.u32 %v1020, 2147483648
        %v1138 = vor.u32 1.1754944e-38, %v1137
        %v1139 = vsel %vm1136, %v1138, %v1134
        %v1140 = vmul.f32 1.0, %v1139
        %v1141 = vmul.f32 %v734, %v1035
        %v1142 = vmul.f32 %v736, %v1050
        %v1143 = vmul.f32 %v738, %v1065
        %v1144 = vmul.f32 %v740, %v1080
        %v1145 = vmul.f32 %v742, %v1095
        %v1146 = vmul.f32 %v744, %v1110
        %v1147 = vmul.f32 %v746, %v1125
        %v1148 = vmul.f32 %v748, %v1140
        %1157 = vrot.lane.b32.xlu0 %v1035, 16
        %v1158 = vpop.permute.xlu0 %1157
        %1159 = vrot.lane.b32.xlu0 %v1050, 16
        %v1160 = vpop.permute.xlu0 %1159
        %1161 = vrot.lane.b32.xlu0 %v1065, 16
        %v1162 = vpop.permute.xlu0 %1161
        %1163 = vrot.lane.b32.xlu0 %v1080, 16
        %v1164 = vpop.permute.xlu0 %1163
        %1165 = vrot.lane.b32.xlu0 %v1095, 16
        %v1166 = vpop.permute.xlu0 %1165
        %1167 = vrot.lane.b32.xlu0 %v1110, 16
        %v1168 = vpop.permute.xlu0 %1167
        %1169 = vrot.lane.b32.xlu0 %v1125, 16
        %v1170 = vpop.permute.xlu0 %1169
        %1171 = vrot.lane.b32.xlu0 %v1140, 16
        %v1172 = vpop.permute.xlu0 %1171
        %v1181 = vmul.f32 %v790, %v1158
        %v1182 = vmul.f32 %v792, %v1160
        %v1183 = vmul.f32 %v794, %v1162
        %v1184 = vmul.f32 %v796, %v1164
        %v1185 = vmul.f32 %v798, %v1166
        %v1186 = vmul.f32 %v800, %v1168
        %v1187 = vmul.f32 %v802, %v1170
        %v1188 = vmul.f32 %v804, %v1172
        %1189 = vrot.lane.b32.xlu0 %v1035, 32
        %v1190 = vpop.permute.xlu0 %1189
        %1191 = vrot.lane.b32.xlu0 %v1050, 32
        %v1192 = vpop.permute.xlu0 %1191
        %1193 = vrot.lane.b32.xlu0 %v1065, 32
        %v1194 = vpop.permute.xlu0 %1193
        %1195 = vrot.lane.b32.xlu0 %v1080, 32
        %v1196 = vpop.permute.xlu0 %1195
        %1197 = vrot.lane.b32.xlu0 %v1095, 32
        %v1198 = vpop.permute.xlu0 %1197
        %1199 = vrot.lane.b32.xlu0 %v1110, 32
        %v1200 = vpop.permute.xlu0 %1199
        %1201 = vrot.lane.b32.xlu0 %v1125, 32
        %v1202 = vpop.permute.xlu0 %1201
        %1203 = vrot.lane.b32.xlu0 %v1140, 32
        %v1204 = vpop.permute.xlu0 %1203
        %v1213 = vmul.f32 %v838, %v1190
        %v1214 = vmul.f32 %v840, %v1192
        %v1215 = vmul.f32 %v842, %v1194
        %v1216 = vmul.f32 %v844, %v1196
        %v1217 = vmul.f32 %v846, %v1198
        %v1218 = vmul.f32 %v848, %v1200
        %v1219 = vmul.f32 %v850, %v1202
        %v1220 = vmul.f32 %v852, %v1204
        %1221 = vrot.lane.b32.xlu0 %v1035, 48
        %v1222 = vpop.permute.xlu0 %1221
        %1223 = vrot.lane.b32.xlu0 %v1050, 48
        %v1224 = vpop.permute.xlu0 %1223
        %1225 = vrot.lane.b32.xlu0 %v1065, 48
        %v1226 = vpop.permute.xlu0 %1225
        %1227 = vrot.lane.b32.xlu0 %v1080, 48
        %v1228 = vpop.permute.xlu0 %1227
        %1229 = vrot.lane.b32.xlu0 %v1095, 48
        %v1230 = vpop.permute.xlu0 %1229
        %1231 = vrot.lane.b32.xlu0 %v1110, 48
        %v1232 = vpop.permute.xlu0 %1231
        %1233 = vrot.lane.b32.xlu0 %v1125, 48
        %v1234 = vpop.permute.xlu0 %1233
        %1235 = vrot.lane.b32.xlu0 %v1140, 48
        %v1236 = vpop.permute.xlu0 %1235
        %v1245 = vmul.f32 %v886, %v1222
        %v1246 = vmul.f32 %v888, %v1224
        %v1247 = vmul.f32 %v890, %v1226
        %v1248 = vmul.f32 %v892, %v1228
        %v1249 = vmul.f32 %v894, %v1230
        %v1250 = vmul.f32 %v896, %v1232
        %v1251 = vmul.f32 %v898, %v1234
        %v1252 = vmul.f32 %v900, %v1236
        %vm1253 = vcmask 130048
        %v1254 = vsel %vm1253, %v1141, %v1181
        %v1255 = vsel %vm1253, %v1142, %v1182
        %v1256 = vsel %vm1253, %v1143, %v1183
        %v1257 = vsel %vm1253, %v1144, %v1184
        %v1258 = vsel %vm1253, %v1145, %v1185
        %v1259 = vsel %vm1253, %v1146, %v1186
        %v1260 = vsel %vm1253, %v1147, %v1187
        %v1261 = vsel %vm1253, %v1148, %v1188
        %v1262 = vsel %vm302, %v1254, %v1213
        %v1263 = vsel %vm302, %v1255, %v1214
        %v1264 = vsel %vm302, %v1256, %v1215
        %v1265 = vsel %vm302, %v1257, %v1216
        %v1266 = vsel %vm302, %v1258, %v1217
        %v1267 = vsel %vm302, %v1259, %v1218
        %v1268 = vsel %vm302, %v1260, %v1219
        %v1269 = vsel %vm302, %v1261, %v1220
        %vm1270 = vcmask 392192
        %v1271 = vsel %vm1270, %v1262, %v1245
        %v1272 = vsel %vm1270, %v1263, %v1246
        %v1273 = vsel %vm1270, %v1264, %v1247
        %v1274 = vsel %vm1270, %v1265, %v1248
        %v1275 = vsel %vm1270, %v1266, %v1249
        %v1276 = vsel %vm1270, %v1267, %v1250
        %v1277 = vsel %vm1270, %v1268, %v1251
        %v1278 = vsel %vm1270, %v1269, %v1252
        %vm1279 = vcmask 523264
        %1280 = vst.msk [vmem:[#allocation2] sm:$0xff] %vm1279, %v1271
        %1281 = vst.msk [vmem:[#allocation2 + $0x8] sm:$0xff] %vm1279, %v1272
        %1282 = vst.msk [vmem:[#allocation2 + $0x10] sm:$0xff] %vm1279, %v1273
        %1283 = vst.msk [vmem:[#allocation2 + $0x18] sm:$0xff] %vm1279, %v1274
        %1284 = vst.msk [vmem:[#allocation2 + $0x20] sm:$0xff] %vm1279, %v1275
        %1285 = vst.msk [vmem:[#allocation2 + $0x28] sm:$0xff] %vm1279, %v1276
        %1286 = vst.msk [vmem:[#allocation2 + $0x30] sm:$0xff] %vm1279, %v1277
        %1287 = vst.msk [vmem:[#allocation2 + $0x38] sm:$0xff] %vm1279, %v1278
        %1288 = vrot.lane.b32.xlu0 %v345, 64
        %v1289 = vpop.permute.xlu0 %1288
        %1290 = vrot.lane.b32.xlu0 %v348, 64
        %v1291 = vpop.permute.xlu0 %1290
        %1292 = vrot.lane.b32.xlu0 %v351, 64
        %v1293 = vpop.permute.xlu0 %1292
        %1294 = vrot.lane.b32.xlu0 %v354, 64
        %v1295 = vpop.permute.xlu0 %1294
        %1296 = vrot.lane.b32.xlu0 %v357, 64
        %v1297 = vpop.permute.xlu0 %1296
        %1298 = vrot.lane.b32.xlu0 %v360, 64
        %v1299 = vpop.permute.xlu0 %1298
        %1300 = vrot.lane.b32.xlu0 %v363, 64
        %v1301 = vpop.permute.xlu0 %1300
        %1302 = vrot.lane.b32.xlu0 %v366, 64
        %v1303 = vpop.permute.xlu0 %1302
        %v1304 = vsel %vm539, %v1289, 0
        %v1306 = vsel %vm539, %v1291, 0
        %v1308 = vsel %vm539, %v1293, 0
        %v1310 = vsel %vm539, %v1295, 0
        %v1312 = vsel %vm539, %v1297, 0
        %v1314 = vsel %vm539, %v1299, 0
        %v1316 = vsel %vm539, %v1301, 0
        %v1318 = vsel %vm539, %v1303, 0
        %1320 = vmatpush.msra.mxu0 0.0
        %1321 = vmatpush.msra.mxu0 0.0
        %1322 = vmatpush.msra.mxu0 0.0
        %1323 = vmatpush.msra.mxu0 0.0
        %1324 = vmatpush.msra.mxu0 0.0
        %1325 = vmatpush.msra.mxu0 0.0
        %1326 = vmatpush.msra.mxu0 0.0
        %1327 = vmatpush.msra.mxu0 0.0
        %1328 = vmatpush.msra.mxu0 0.0
        %1329 = vmatpush.msra.mxu0 0.0
        %1330 = vmatpush.msra.mxu0 0.0
        %1331 = vmatpush.msra.mxu0 0.0
        %1332 = vmatpush.msra.mxu0 0.0
        %1333 = vmatpush.msra.mxu0 0.0
        %1334 = vmatpush.msra.mxu0 0.0
        %1335 = vmatpush.msra.mxu0 %v368
        %1336 = vmatmul.f32.gmra.mxu0 %v1304
        %v1337 = vpop.f32.mrf.mxu0
        %v1338 = vadd.f32 0.0, %v1337
        %1339 = vmatmul.f32.gmra.mxu0 %v1306
        %v1340 = vpop.f32.mrf.mxu0
        %v1341 = vadd.f32 0.0, %v1340
        %1342 = vmatmul.f32.gmra.mxu0 %v1308
        %v1343 = vpop.f32.mrf.mxu0
        %v1344 = vadd.f32 0.0, %v1343
        %1345 = vmatmul.f32.gmra.mxu0 %v1310
        %v1346 = vpop.f32.mrf.mxu0
        %v1347 = vadd.f32 0.0, %v1346
        %1348 = vmatmul.f32.gmra.mxu0 %v1312
        %v1349 = vpop.f32.mrf.mxu0
        %v1350 = vadd.f32 0.0, %v1349
        %1351 = vmatmul.f32.gmra.mxu0 %v1314
        %v1352 = vpop.f32.mrf.mxu0
        %v1353 = vadd.f32 0.0, %v1352
        %1354 = vmatmul.f32.gmra.mxu0 %v1316
        %v1355 = vpop.f32.mrf.mxu0
        %v1356 = vadd.f32 0.0, %v1355
        %1357 = vmatmul.f32.gmra.mxu0 %v1318
        %v1358 = vpop.f32.mrf.mxu0
        %v1359 = vadd.f32 0.0, %v1358
        %1360 = vdwg.mxu0
        %1361 = vst.msk [vmem:[#allocation3] sm:$0xff] %vm1279, %v1338
        %1362 = vst.msk [vmem:[#allocation3 + $0x8] sm:$0xff] %vm1279, %v1341
        %1363 = vst.msk [vmem:[#allocation3 + $0x10] sm:$0xff] %vm1279, %v1344
        %1364 = vst.msk [vmem:[#allocation3 + $0x18] sm:$0xff] %vm1279, %v1347
        %1365 = vst.msk [vmem:[#allocation3 + $0x20] sm:$0xff] %vm1279, %v1350
        %1366 = vst.msk [vmem:[#allocation3 + $0x28] sm:$0xff] %vm1279, %v1353
        %1367 = vst.msk [vmem:[#allocation3 + $0x30] sm:$0xff] %vm1279, %v1356
        %1368 = vst.msk [vmem:[#allocation3 + $0x38] sm:$0xff] %vm1279, %v1359
        %v1369 = vmul.f32 %v1271, %v507
        %v1370 = vmul.f32 %v1272, %v508
        %v1371 = vmul.f32 %v1273, %v509
        %v1372 = vmul.f32 %v1274, %v510
        %v1373 = vmul.f32 %v1275, %v511
        %v1374 = vmul.f32 %v1276, %v512
        %v1375 = vmul.f32 %v1277, %v513
        %v1376 = vmul.f32 %v1278, %v514
        %v1386 = vsel %vm1279, %v1369, 0
        %v1389 = vsel %vm1279, %v1370, 0
        %v1392 = vsel %vm1279, %v1371, 0
        %v1395 = vsel %vm1279, %v1372, 0
        %v1398 = vsel %vm1279, %v1373, 0
        %v1401 = vsel %vm1279, %v1374, 0
        %v1404 = vsel %vm1279, %v1375, 0
        %v1407 = vsel %vm1279, %v1376, 0
        %1409 = vmatpush.msra.mxu0 0.0
        %1410 = vmatpush.msra.mxu0 0.0
        %1411 = vmatpush.msra.mxu0 0.0
        %1412 = vmatpush.msra.mxu0 0.0
        %1413 = vmatpush.msra.mxu0 0.0
        %1414 = vmatpush.msra.mxu0 0.0
        %1415 = vmatpush.msra.mxu0 0.0
        %1416 = vmatpush.msra.mxu0 0.0
        %1417 = vmatpush.msra.mxu0 %v1303
        %1418 = vmatpush.msra.mxu0 %v1301
        %1419 = vmatpush.msra.mxu0 %v1299
        %1420 = vmatpush.msra.mxu0 %v1297
        %1421 = vmatpush.msra.mxu0 %v1295
        %1422 = vmatpush.msra.mxu0 %v1293
        %1423 = vmatpush.msra.mxu0 %v1291
        %1424 = vmatpush.msra.mxu0 %v1289
        %1425 = vmatmul.f32.gmra.mxu0 %v1386
        %v1426 = vpop.f32.mrf.mxu0
        %v1427 = vadd.f32 0.0, %v1426
        %1428 = vmatmul.f32.gmra.mxu0 %v1389
        %v1429 = vpop.f32.mrf.mxu0
        %v1430 = vadd.f32 0.0, %v1429
        %1431 = vmatmul.f32.gmra.mxu0 %v1392
        %v1432 = vpop.f32.mrf.mxu0
        %v1433 = vadd.f32 0.0, %v1432
        %1434 = vmatmul.f32.gmra.mxu0 %v1395
        %v1435 = vpop.f32.mrf.mxu0
        %v1436 = vadd.f32 0.0, %v1435
        %1437 = vmatmul.f32.gmra.mxu0 %v1398
        %v1438 = vpop.f32.mrf.mxu0
        %v1439 = vadd.f32 0.0, %v1438
        %1440 = vmatmul.f32.gmra.mxu0 %v1401
        %v1441 = vpop.f32.mrf.mxu0
        %v1442 = vadd.f32 0.0, %v1441
        %1443 = vmatmul.f32.gmra.mxu0 %v1404
        %v1444 = vpop.f32.mrf.mxu0
        %v1445 = vadd.f32 0.0, %v1444
        %1446 = vmatmul.f32.gmra.mxu0 %v1407
        %v1447 = vpop.f32.mrf.mxu0
        %v1448 = vadd.f32 0.0, %v1447
        %1449 = vdwg.mxu0
        %1450 = vrot.lane.b32.xlu0 %v345, 120
        %v1451 = vpop.permute.xlu0 %1450
        %1452 = vrot.lane.b32.xlu0 %v348, 120
        %v1453 = vpop.permute.xlu0 %1452
        %1454 = vrot.lane.b32.xlu0 %v351, 120
        %v1455 = vpop.permute.xlu0 %1454
        %1456 = vrot.lane.b32.xlu0 %v354, 120
        %v1457 = vpop.permute.xlu0 %1456
        %1458 = vrot.lane.b32.xlu0 %v357, 120
        %v1459 = vpop.permute.xlu0 %1458
        %1460 = vrot.lane.b32.xlu0 %v360, 120
        %v1461 = vpop.permute.xlu0 %1460
        %1462 = vrot.lane.b32.xlu0 %v363, 120
        %v1463 = vpop.permute.xlu0 %1462
        %1464 = vrot.lane.b32.xlu0 %v366, 120
        %v1465 = vpop.permute.xlu0 %1464
        %1466 = vrot.lane.b32.xlu0 %v345, 88
        %v1467 = vpop.permute.xlu0 %1466
        %1468 = vrot.lane.b32.xlu0 %v348, 88
        %v1469 = vpop.permute.xlu0 %1468
        %1470 = vrot.lane.b32.xlu0 %v351, 88
        %v1471 = vpop.permute.xlu0 %1470
        %1472 = vrot.lane.b32.xlu0 %v354, 88
        %v1473 = vpop.permute.xlu0 %1472
        %1474 = vrot.lane.b32.xlu0 %v357, 88
        %v1475 = vpop.permute.xlu0 %1474
        %1476 = vrot.lane.b32.xlu0 %v360, 88
        %v1477 = vpop.permute.xlu0 %1476
        %1478 = vrot.lane.b32.xlu0 %v363, 88
        %v1479 = vpop.permute.xlu0 %1478
        %1480 = vrot.lane.b32.xlu0 %v366, 88
        %v1481 = vpop.permute.xlu0 %1480
        %v1482 = vsel %vm539, %v1451, 0
        %v1484 = vsel %vm539, %v1453, 0
        %v1486 = vsel %vm539, %v1455, 0
        %v1488 = vsel %vm539, %v1457, 0
        %v1490 = vsel %vm539, %v1459, 0
        %v1492 = vsel %vm539, %v1461, 0
        %v1494 = vsel %vm539, %v1463, 0
        %v1496 = vsel %vm539, %v1465, 0
        %v1498 = vsel %vm539, %v1467, 0
        %v1500 = vsel %vm539, %v1469, 0
        %v1502 = vsel %vm539, %v1471, 0
        %v1504 = vsel %vm539, %v1473, 0
        %v1506 = vsel %vm539, %v1475, 0
        %v1508 = vsel %vm539, %v1477, 0
        %v1510 = vsel %vm539, %v1479, 0
        %v1512 = vsel %vm539, %v1481, 0
        %1514 = vmatpush.xpose.msra.mxu0 0.0
        %1515 = vmatpush.xpose.msra.mxu0 0.0
        %1516 = vmatpush.xpose.msra.mxu0 0.0
        %1517 = vmatpush.xpose.msra.mxu0 0.0
        %1518 = vmatpush.xpose.msra.mxu0 0.0
        %1519 = vmatpush.xpose.msra.mxu0 0.0
        %1520 = vmatpush.xpose.msra.mxu0 0.0
        %1521 = vmatpush.xpose.msra.mxu0 0.0
        %1522 = vmatpush.xpose.msra.mxu0 %v1512
        %1523 = vmatpush.xpose.msra.mxu0 %v1510
        %1524 = vmatpush.xpose.msra.mxu0 %v1508
        %1525 = vmatpush.xpose.msra.mxu0 %v1506
        %1526 = vmatpush.xpose.msra.mxu0 %v1504
        %1527 = vmatpush.xpose.msra.mxu0 %v1502
        %1528 = vmatpush.xpose.msra.mxu0 %v1500
        %1529 = vmatpush.xpose.msra.mxu0 %v1498
        %1530 = vmatmul.f32.gmra.mxu0 %v1482
        %v1531 = vpop.f32.mrf.mxu0
        %v1532 = vadd.f32 0.0, %v1531
        %1533 = vmatmul.f32.gmra.mxu0 %v1484
        %v1534 = vpop.f32.mrf.mxu0
        %v1535 = vadd.f32 0.0, %v1534
        %1536 = vmatmul.f32.gmra.mxu0 %v1486
        %v1537 = vpop.f32.mrf.mxu0
        %v1538 = vadd.f32 0.0, %v1537
        %1539 = vmatmul.f32.gmra.mxu0 %v1488
        %v1540 = vpop.f32.mrf.mxu0
        %v1541 = vadd.f32 0.0, %v1540
        %1542 = vmatmul.f32.gmra.mxu0 %v1490
        %v1543 = vpop.f32.mrf.mxu0
        %v1544 = vadd.f32 0.0, %v1543
        %1545 = vmatmul.f32.gmra.mxu0 %v1492
        %v1546 = vpop.f32.mrf.mxu0
        %v1547 = vadd.f32 0.0, %v1546
        %1548 = vmatmul.f32.gmra.mxu0 %v1494
        %v1549 = vpop.f32.mrf.mxu0
        %v1550 = vadd.f32 0.0, %v1549
        %1551 = vmatmul.f32.gmra.mxu0 %v1496
        %v1552 = vpop.f32.mrf.mxu0
        %v1553 = vadd.f32 0.0, %v1552
        %1554 = vdwg.mxu0
        %v1555 = vmul.f32 %v1532, 0.35355338
        %v1556 = vmul.f32 %v1535, 0.35355338
        %v1557 = vmul.f32 %v1538, 0.35355338
        %v1558 = vmul.f32 %v1541, 0.35355338
        %v1559 = vmul.f32 %v1544, 0.35355338
        %v1560 = vmul.f32 %v1547, 0.35355338
        %v1561 = vmul.f32 %v1550, 0.35355338
        %v1562 = vmul.f32 %v1553, 0.35355338
        %1571 = vrot.lane.b32.xlu0 %v1555, 112
        %v1572 = vpop.permute.xlu0 %1571
        %1573 = vrot.lane.b32.xlu0 %v1556, 112
        %v1574 = vpop.permute.xlu0 %1573
        %1575 = vrot.lane.b32.xlu0 %v1557, 112
        %v1576 = vpop.permute.xlu0 %1575
        %1577 = vrot.lane.b32.xlu0 %v1558, 112
        %v1578 = vpop.permute.xlu0 %1577
        %1579 = vrot.lane.b32.xlu0 %v1559, 112
        %v1580 = vpop.permute.xlu0 %1579
        %1581 = vrot.lane.b32.xlu0 %v1560, 112
        %v1582 = vpop.permute.xlu0 %1581
        %1583 = vrot.lane.b32.xlu0 %v1561, 112
        %v1584 = vpop.permute.xlu0 %1583
        %1585 = vrot.lane.b32.xlu0 %v1562, 112
        %v1586 = vpop.permute.xlu0 %1585
        %v1595 = vmax.f32 %v1555, %v1572
        %v1596 = vmax.f32 %v1556, %v1574
        %v1597 = vmax.f32 %v1557, %v1576
        %v1598 = vmax.f32 %v1558, %v1578
        %v1599 = vmax.f32 %v1559, %v1580
        %v1600 = vmax.f32 %v1560, %v1582
        %v1601 = vmax.f32 %v1561, %v1584
        %v1602 = vmax.f32 %v1562, %v1586
        %1603 = vrot.lane.b32.xlu0 %v1555, 96
        %v1604 = vpop.permute.xlu0 %1603
        %1605 = vrot.lane.b32.xlu0 %v1556, 96
        %v1606 = vpop.permute.xlu0 %1605
        %1607 = vrot.lane.b32.xlu0 %v1557, 96
        %v1608 = vpop.permute.xlu0 %1607
        %1609 = vrot.lane.b32.xlu0 %v1558, 96
        %v1610 = vpop.permute.xlu0 %1609
        %1611 = vrot.lane.b32.xlu0 %v1559, 96
        %v1612 = vpop.permute.xlu0 %1611
        %1613 = vrot.lane.b32.xlu0 %v1560, 96
        %v1614 = vpop.permute.xlu0 %1613
        %1615 = vrot.lane.b32.xlu0 %v1561, 96
        %v1616 = vpop.permute.xlu0 %1615
        %1617 = vrot.lane.b32.xlu0 %v1562, 96
        %v1618 = vpop.permute.xlu0 %1617
        %v1627 = vmax.f32 %v1595, %v1604
        %v1628 = vmax.f32 %v1596, %v1606
        %v1629 = vmax.f32 %v1597, %v1608
        %v1630 = vmax.f32 %v1598, %v1610
        %v1631 = vmax.f32 %v1599, %v1612
        %v1632 = vmax.f32 %v1600, %v1614
        %v1633 = vmax.f32 %v1601, %v1616
        %v1634 = vmax.f32 %v1602, %v1618
        %1635 = vrot.lane.b32.xlu0 %v1555, 80
        %v1636 = vpop.permute.xlu0 %1635
        %1637 = vrot.lane.b32.xlu0 %v1556, 80
        %v1638 = vpop.permute.xlu0 %1637
        %1639 = vrot.lane.b32.xlu0 %v1557, 80
        %v1640 = vpop.permute.xlu0 %1639
        %1641 = vrot.lane.b32.xlu0 %v1558, 80
        %v1642 = vpop.permute.xlu0 %1641
        %1643 = vrot.lane.b32.xlu0 %v1559, 80
        %v1644 = vpop.permute.xlu0 %1643
        %1645 = vrot.lane.b32.xlu0 %v1560, 80
        %v1646 = vpop.permute.xlu0 %1645
        %1647 = vrot.lane.b32.xlu0 %v1561, 80
        %v1648 = vpop.permute.xlu0 %1647
        %1649 = vrot.lane.b32.xlu0 %v1562, 80
        %v1650 = vpop.permute.xlu0 %1649
        %v1659 = vmax.f32 %v1627, %v1636
        %v1660 = vmax.f32 %v1628, %v1638
        %v1661 = vmax.f32 %v1629, %v1640
        %v1662 = vmax.f32 %v1630, %v1642
        %v1663 = vmax.f32 %v1631, %v1644
        %v1664 = vmax.f32 %v1632, %v1646
        %v1665 = vmax.f32 %v1633, %v1648
        %v1666 = vmax.f32 %v1634, %v1650
        %v1667 = vsub.f32 %v1555, %v1659
        %v1668 = vsub.f32 %v1556, %v1660
        %v1669 = vsub.f32 %v1557, %v1661
        %v1670 = vsub.f32 %v1558, %v1662
        %v1671 = vsub.f32 %v1559, %v1663
        %v1672 = vsub.f32 %v1560, %v1664
        %v1673 = vsub.f32 %v1561, %v1665
        %v1674 = vsub.f32 %v1562, %v1666
        %v1675 = vmul.f32 %v1667, 1.442695
        %v1676 = vpow.pop %v1675
        %v1677 = vmul.f32 %v1668, 1.442695
        %v1678 = vpow.pop %v1677
        %v1679 = vmul.f32 %v1669, 1.442695
        %v1680 = vpow.pop %v1679
        %v1681 = vmul.f32 %v1670, 1.442695
        %v1682 = vpow.pop %v1681
        %v1683 = vmul.f32 %v1671, 1.442695
        %v1684 = vpow.pop %v1683
        %v1685 = vmul.f32 %v1672, 1.442695
        %v1686 = vpow.pop %v1685
        %v1687 = vmul.f32 %v1673, 1.442695
        %v1688 = vpow.pop %v1687
        %v1689 = vmul.f32 %v1674, 1.442695
        %v1690 = vpow.pop %v1689
        %1699 = vrot.lane.b32.xlu0 %v1659, 16
        %v1700 = vpop.permute.xlu0 %1699
        %1701 = vrot.lane.b32.xlu0 %v1660, 16
        %v1702 = vpop.permute.xlu0 %1701
        %1703 = vrot.lane.b32.xlu0 %v1661, 16
        %v1704 = vpop.permute.xlu0 %1703
        %1705 = vrot.lane.b32.xlu0 %v1662, 16
        %v1706 = vpop.permute.xlu0 %1705
        %1707 = vrot.lane.b32.xlu0 %v1663, 16
        %v1708 = vpop.permute.xlu0 %1707
        %1709 = vrot.lane.b32.xlu0 %v1664, 16
        %v1710 = vpop.permute.xlu0 %1709
        %1711 = vrot.lane.b32.xlu0 %v1665, 16
        %v1712 = vpop.permute.xlu0 %1711
        %1713 = vrot.lane.b32.xlu0 %v1666, 16
        %v1714 = vpop.permute.xlu0 %1713
        %v1723 = vsub.f32 %v1555, %v1700
        %v1724 = vsub.f32 %v1556, %v1702
        %v1725 = vsub.f32 %v1557, %v1704
        %v1726 = vsub.f32 %v1558, %v1706
        %v1727 = vsub.f32 %v1559, %v1708
        %v1728 = vsub.f32 %v1560, %v1710
        %v1729 = vsub.f32 %v1561, %v1712
        %v1730 = vsub.f32 %v1562, %v1714
        %v1731 = vmul.f32 %v1723, 1.442695
        %v1732 = vpow.pop %v1731
        %v1733 = vmul.f32 %v1724, 1.442695
        %v1734 = vpow.pop %v1733
        %v1735 = vmul.f32 %v1725, 1.442695
        %v1736 = vpow.pop %v1735
        %v1737 = vmul.f32 %v1726, 1.442695
        %v1738 = vpow.pop %v1737
        %v1739 = vmul.f32 %v1727, 1.442695
        %v1740 = vpow.pop %v1739
        %v1741 = vmul.f32 %v1728, 1.442695
        %v1742 = vpow.pop %v1741
        %v1743 = vmul.f32 %v1729, 1.442695
        %v1744 = vpow.pop %v1743
        %v1745 = vmul.f32 %v1730, 1.442695
        %v1746 = vpow.pop %v1745
        %1747 = vrot.lane.b32.xlu0 %v1659, 32
        %v1748 = vpop.permute.xlu0 %1747
        %1749 = vrot.lane.b32.xlu0 %v1660, 32
        %v1750 = vpop.permute.xlu0 %1749
        %1751 = vrot.lane.b32.xlu0 %v1661, 32
        %v1752 = vpop.permute.xlu0 %1751
        %1753 = vrot.lane.b32.xlu0 %v1662, 32
        %v1754 = vpop.permute.xlu0 %1753
        %1755 = vrot.lane.b32.xlu0 %v1663, 32
        %v1756 = vpop.permute.xlu0 %1755
        %1757 = vrot.lane.b32.xlu0 %v1664, 32
        %v1758 = vpop.permute.xlu0 %1757
        %1759 = vrot.lane.b32.xlu0 %v1665, 32
        %v1760 = vpop.permute.xlu0 %1759
        %1761 = vrot.lane.b32.xlu0 %v1666, 32
        %v1762 = vpop.permute.xlu0 %1761
        %v1771 = vsub.f32 %v1555, %v1748
        %v1772 = vsub.f32 %v1556, %v1750
        %v1773 = vsub.f32 %v1557, %v1752
        %v1774 = vsub.f32 %v1558, %v1754
        %v1775 = vsub.f32 %v1559, %v1756
        %v1776 = vsub.f32 %v1560, %v1758
        %v1777 = vsub.f32 %v1561, %v1760
        %v1778 = vsub.f32 %v1562, %v1762
        %v1779 = vmul.f32 %v1771, 1.442695
        %v1780 = vpow.pop %v1779
        %v1781 = vmul.f32 %v1772, 1.442695
        %v1782 = vpow.pop %v1781
        %v1783 = vmul.f32 %v1773, 1.442695
        %v1784 = vpow.pop %v1783
        %v1785 = vmul.f32 %v1774, 1.442695
        %v1786 = vpow.pop %v1785
        %v1787 = vmul.f32 %v1775, 1.442695
        %v1788 = vpow.pop %v1787
        %v1789 = vmul.f32 %v1776, 1.442695
        %v1790 = vpow.pop %v1789
        %v1791 = vmul.f32 %v1777, 1.442695
        %v1792 = vpow.pop %v1791
        %v1793 = vmul.f32 %v1778, 1.442695
        %v1794 = vpow.pop %v1793
        %1795 = vrot.lane.b32.xlu0 %v1659, 48
        %v1796 = vpop.permute.xlu0 %1795
        %1797 = vrot.lane.b32.xlu0 %v1660, 48
        %v1798 = vpop.permute.xlu0 %1797
        %1799 = vrot.lane.b32.xlu0 %v1661, 48
        %v1800 = vpop.permute.xlu0 %1799
        %1801 = vrot.lane.b32.xlu0 %v1662, 48
        %v1802 = vpop.permute.xlu0 %1801
        %1803 = vrot.lane.b32.xlu0 %v1663, 48
        %v1804 = vpop.permute.xlu0 %1803
        %1805 = vrot.lane.b32.xlu0 %v1664, 48
        %v1806 = vpop.permute.xlu0 %1805
        %1807 = vrot.lane.b32.xlu0 %v1665, 48
        %v1808 = vpop.permute.xlu0 %1807
        %1809 = vrot.lane.b32.xlu0 %v1666, 48
        %v1810 = vpop.permute.xlu0 %1809
        %v1819 = vsub.f32 %v1555, %v1796
        %v1820 = vsub.f32 %v1556, %v1798
        %v1821 = vsub.f32 %v1557, %v1800
        %v1822 = vsub.f32 %v1558, %v1802
        %v1823 = vsub.f32 %v1559, %v1804
        %v1824 = vsub.f32 %v1560, %v1806
        %v1825 = vsub.f32 %v1561, %v1808
        %v1826 = vsub.f32 %v1562, %v1810
        %v1827 = vmul.f32 %v1819, 1.442695
        %v1828 = vpow.pop %v1827
        %v1829 = vmul.f32 %v1820, 1.442695
        %v1830 = vpow.pop %v1829
        %v1831 = vmul.f32 %v1821, 1.442695
        %v1832 = vpow.pop %v1831
        %v1833 = vmul.f32 %v1822, 1.442695
        %v1834 = vpow.pop %v1833
        %v1835 = vmul.f32 %v1823, 1.442695
        %v1836 = vpow.pop %v1835
        %v1837 = vmul.f32 %v1824, 1.442695
        %v1838 = vpow.pop %v1837
        %v1839 = vmul.f32 %v1825, 1.442695
        %v1840 = vpow.pop %v1839
        %v1841 = vmul.f32 %v1826, 1.442695
        %v1842 = vpow.pop %v1841
        %1851 = vrot.lane.b32.xlu0 %v1732, 112
        %v1852 = vpop.permute.xlu0 %1851
        %1853 = vrot.lane.b32.xlu0 %v1734, 112
        %v1854 = vpop.permute.xlu0 %1853
        %1855 = vrot.lane.b32.xlu0 %v1736, 112
        %v1856 = vpop.permute.xlu0 %1855
        %1857 = vrot.lane.b32.xlu0 %v1738, 112
        %v1858 = vpop.permute.xlu0 %1857
        %1859 = vrot.lane.b32.xlu0 %v1740, 112
        %v1860 = vpop.permute.xlu0 %1859
        %1861 = vrot.lane.b32.xlu0 %v1742, 112
        %v1862 = vpop.permute.xlu0 %1861
        %1863 = vrot.lane.b32.xlu0 %v1744, 112
        %v1864 = vpop.permute.xlu0 %1863
        %1865 = vrot.lane.b32.xlu0 %v1746, 112
        %v1866 = vpop.permute.xlu0 %1865
        %v1875 = vadd.f32 %v1676, %v1852
        %v1876 = vadd.f32 %v1678, %v1854
        %v1877 = vadd.f32 %v1680, %v1856
        %v1878 = vadd.f32 %v1682, %v1858
        %v1879 = vadd.f32 %v1684, %v1860
        %v1880 = vadd.f32 %v1686, %v1862
        %v1881 = vadd.f32 %v1688, %v1864
        %v1882 = vadd.f32 %v1690, %v1866
        %1891 = vrot.lane.b32.xlu0 %v1780, 96
        %v1892 = vpop.permute.xlu0 %1891
        %1893 = vrot.lane.b32.xlu0 %v1782, 96
        %v1894 = vpop.permute.xlu0 %1893
        %1895 = vrot.lane.b32.xlu0 %v1784, 96
        %v1896 = vpop.permute.xlu0 %1895
        %1897 = vrot.lane.b32.xlu0 %v1786, 96
        %v1898 = vpop.permute.xlu0 %1897
        %1899 = vrot.lane.b32.xlu0 %v1788, 96
        %v1900 = vpop.permute.xlu0 %1899
        %1901 = vrot.lane.b32.xlu0 %v1790, 96
        %v1902 = vpop.permute.xlu0 %1901
        %1903 = vrot.lane.b32.xlu0 %v1792, 96
        %v1904 = vpop.permute.xlu0 %1903
        %1905 = vrot.lane.b32.xlu0 %v1794, 96
        %v1906 = vpop.permute.xlu0 %1905
        %v1915 = vadd.f32 %v1875, %v1892
        %v1916 = vadd.f32 %v1876, %v1894
        %v1917 = vadd.f32 %v1877, %v1896
        %v1918 = vadd.f32 %v1878, %v1898
        %v1919 = vadd.f32 %v1879, %v1900
        %v1920 = vadd.f32 %v1880, %v1902
        %v1921 = vadd.f32 %v1881, %v1904
        %v1922 = vadd.f32 %v1882, %v1906
        %1931 = vrot.lane.b32.xlu0 %v1828, 80
        %v1932 = vpop.permute.xlu0 %1931
        %1933 = vrot.lane.b32.xlu0 %v1830, 80
        %v1934 = vpop.permute.xlu0 %1933
        %1935 = vrot.lane.b32.xlu0 %v1832, 80
        %v1936 = vpop.permute.xlu0 %1935
        %1937 = vrot.lane.b32.xlu0 %v1834, 80
        %v1938 = vpop.permute.xlu0 %1937
        %1939 = vrot.lane.b32.xlu0 %v1836, 80
        %v1940 = vpop.permute.xlu0 %1939
        %1941 = vrot.lane.b32.xlu0 %v1838, 80
        %v1942 = vpop.permute.xlu0 %1941
        %1943 = vrot.lane.b32.xlu0 %v1840, 80
        %v1944 = vpop.permute.xlu0 %1943
        %1945 = vrot.lane.b32.xlu0 %v1842, 80
        %v1946 = vpop.permute.xlu0 %1945
        %v1955 = vadd.f32 %v1915, %v1932
        %v1956 = vadd.f32 %v1916, %v1934
        %v1957 = vadd.f32 %v1917, %v1936
        %v1958 = vadd.f32 %v1918, %v1938
        %v1959 = vadd.f32 %v1919, %v1940
        %v1960 = vadd.f32 %v1920, %v1942
        %v1961 = vadd.f32 %v1921, %v1944
        %v1962 = vadd.f32 %v1922, %v1946
        %v1963 = vrcp.pop %v1955
        %v1964 = vmul.f32 %v1955, %v1963
        %v1965 = vsub.f32 1.0, %v1964
        %v1966 = vmul.f32 %v1963, %v1965
        %v1967 = vadd.f32 %v1963, %v1966
        %vm1968 = vweird.f32 %v1955
        %vm1969 = vweird.f32 %v1963
        %vm1970 = vmor %vm1968, %vm1969
        %v1971 = vsel %vm1970, %v1963, %v1967
        %v1972 = vand.u32 2147483647, %v1955
        %vm1973 = vcmp.eq.f32.partialorder %v1972, 8.507059e+37
        %v1974 = vand.u32 %v1955, 2147483648
        %v1975 = vor.u32 1.1754944e-38, %v1974
        %v1976 = vsel %vm1973, %v1975, %v1971
        %v1977 = vmul.f32 1.0, %v1976
        %v1978 = vrcp.pop %v1956
        %v1979 = vmul.f32 %v1956, %v1978
        %v1980 = vsub.f32 1.0, %v1979
        %v1981 = vmul.f32 %v1978, %v1980
        %v1982 = vadd.f32 %v1978, %v1981
        %vm1983 = vweird.f32 %v1956
        %vm1984 = vweird.f32 %v1978
        %vm1985 = vmor %vm1983, %vm1984
        %v1986 = vsel %vm1985, %v1978, %v1982
        %v1987 = vand.u32 2147483647, %v1956
        %vm1988 = vcmp.eq.f32.partialorder %v1987, 8.507059e+37
        %v1989 = vand.u32 %v1956, 2147483648
        %v1990 = vor.u32 1.1754944e-38, %v1989
        %v1991 = vsel %vm1988, %v1990, %v1986
        %v1992 = vmul.f32 1.0, %v1991
        %v1993 = vrcp.pop %v1957
        %v1994 = vmul.f32 %v1957, %v1993
        %v1995 = vsub.f32 1.0, %v1994
        %v1996 = vmul.f32 %v1993, %v1995
        %v1997 = vadd.f32 %v1993, %v1996
        %vm1998 = vweird.f32 %v1957
        %vm1999 = vweird.f32 %v1993
        %vm2000 = vmor %vm1998, %vm1999
        %v2001 = vsel %vm2000, %v1993, %v1997
        %v2002 = vand.u32 2147483647, %v1957
        %vm2003 = vcmp.eq.f32.partialorder %v2002, 8.507059e+37
        %v2004 = vand.u32 %v1957, 2147483648
        %v2005 = vor.u32 1.1754944e-38, %v2004
        %v2006 = vsel %vm2003, %v2005, %v2001
        %v2007 = vmul.f32 1.0, %v2006
        %v2008 = vrcp.pop %v1958
        %v2009 = vmul.f32 %v1958, %v2008
        %v2010 = vsub.f32 1.0, %v2009
        %v2011 = vmul.f32 %v2008, %v2010
        %v2012 = vadd.f32 %v2008, %v2011
        %vm2013 = vweird.f32 %v1958
        %vm2014 = vweird.f32 %v2008
        %vm2015 = vmor %vm2013, %vm2014
        %v2016 = vsel %vm2015, %v2008, %v2012
        %v2017 = vand.u32 2147483647, %v1958
        %vm2018 = vcmp.eq.f32.partialorder %v2017, 8.507059e+37
        %v2019 = vand.u32 %v1958, 2147483648
        %v2020 = vor.u32 1.1754944e-38, %v2019
        %v2021 = vsel %vm2018, %v2020, %v2016
        %v2022 = vmul.f32 1.0, %v2021
        %v2023 = vrcp.pop %v1959
        %v2024 = vmul.f32 %v1959, %v2023
        %v2025 = vsub.f32 1.0, %v2024
        %v2026 = vmul.f32 %v2023, %v2025
        %v2027 = vadd.f32 %v2023, %v2026
        %vm2028 = vweird.f32 %v1959
        %vm2029 = vweird.f32 %v2023
        %vm2030 = vmor %vm2028, %vm2029
        %v2031 = vsel %vm2030, %v2023, %v2027
        %v2032 = vand.u32 2147483647, %v1959
        %vm2033 = vcmp.eq.f32.partialorder %v2032, 8.507059e+37
        %v2034 = vand.u32 %v1959, 2147483648
        %v2035 = vor.u32 1.1754944e-38, %v2034
        %v2036 = vsel %vm2033, %v2035, %v2031
        %v2037 = vmul.f32 1.0, %v2036
        %v2038 = vrcp.pop %v1960
        %v2039 = vmul.f32 %v1960, %v2038
        %v2040 = vsub.f32 1.0, %v2039
        %v2041 = vmul.f32 %v2038, %v2040
        %v2042 = vadd.f32 %v2038, %v2041
        %vm2043 = vweird.f32 %v1960
        %vm2044 = vweird.f32 %v2038
        %vm2045 = vmor %vm2043, %vm2044
        %v2046 = vsel %vm2045, %v2038, %v2042
        %v2047 = vand.u32 2147483647, %v1960
        %vm2048 = vcmp.eq.f32.partialorder %v2047, 8.507059e+37
        %v2049 = vand.u32 %v1960, 2147483648
        %v2050 = vor.u32 1.1754944e-38, %v2049
        %v2051 = vsel %vm2048, %v2050, %v2046
        %v2052 = vmul.f32 1.0, %v2051
        %v2053 = vrcp.pop %v1961
        %v2054 = vmul.f32 %v1961, %v2053
        %v2055 = vsub.f32 1.0, %v2054
        %v2056 = vmul.f32 %v2053, %v2055
        %v2057 = vadd.f32 %v2053, %v2056
        %vm2058 = vweird.f32 %v1961
        %vm2059 = vweird.f32 %v2053
        %vm2060 = vmor %vm2058, %vm2059
        %v2061 = vsel %vm2060, %v2053, %v2057
        %v2062 = vand.u32 2147483647, %v1961
        %vm2063 = vcmp.eq.f32.partialorder %v2062, 8.507059e+37
        %v2064 = vand.u32 %v1961, 2147483648
        %v2065 = vor.u32 1.1754944e-38, %v2064
        %v2066 = vsel %vm2063, %v2065, %v2061
        %v2067 = vmul.f32 1.0, %v2066
        %v2068 = vrcp.pop %v1962
        %v2069 = vmul.f32 %v1962, %v2068
        %v2070 = vsub.f32 1.0, %v2069
        %v2071 = vmul.f32 %v2068, %v2070
        %v2072 = vadd.f32 %v2068, %v2071
        %vm2073 = vweird.f32 %v1962
        %vm2074 = vweird.f32 %v2068
        %vm2075 = vmor %vm2073, %vm2074
        %v2076 = vsel %vm2075, %v2068, %v2072
        %v2077 = vand.u32 2147483647, %v1962
        %vm2078 = vcmp.eq.f32.partialorder %v2077, 8.507059e+37
        %v2079 = vand.u32 %v1962, 2147483648
        %v2080 = vor.u32 1.1754944e-38, %v2079
        %v2081 = vsel %vm2078, %v2080, %v2076
        %v2082 = vmul.f32 1.0, %v2081
        %v2083 = vmul.f32 %v1676, %v1977
        %v2084 = vmul.f32 %v1678, %v1992
        %v2085 = vmul.f32 %v1680, %v2007
        %v2086 = vmul.f32 %v1682, %v2022
        %v2087 = vmul.f32 %v1684, %v2037
        %v2088 = vmul.f32 %v1686, %v2052
        %v2089 = vmul.f32 %v1688, %v2067
        %v2090 = vmul.f32 %v1690, %v2082
        %2099 = vrot.lane.b32.xlu0 %v1977, 16
        %v2100 = vpop.permute.xlu0 %2099
        %2101 = vrot.lane.b32.xlu0 %v1992, 16
        %v2102 = vpop.permute.xlu0 %2101
        %2103 = vrot.lane.b32.xlu0 %v2007, 16
        %v2104 = vpop.permute.xlu0 %2103
        %2105 = vrot.lane.b32.xlu0 %v2022, 16
        %v2106 = vpop.permute.xlu0 %2105
        %2107 = vrot.lane.b32.xlu0 %v2037, 16
        %v2108 = vpop.permute.xlu0 %2107
        %2109 = vrot.lane.b32.xlu0 %v2052, 16
        %v2110 = vpop.permute.xlu0 %2109
        %2111 = vrot.lane.b32.xlu0 %v2067, 16
        %v2112 = vpop.permute.xlu0 %2111
        %2113 = vrot.lane.b32.xlu0 %v2082, 16
        %v2114 = vpop.permute.xlu0 %2113
        %v2123 = vmul.f32 %v1732, %v2100
        %v2124 = vmul.f32 %v1734, %v2102
        %v2125 = vmul.f32 %v1736, %v2104
        %v2126 = vmul.f32 %v1738, %v2106
        %v2127 = vmul.f32 %v1740, %v2108
        %v2128 = vmul.f32 %v1742, %v2110
        %v2129 = vmul.f32 %v1744, %v2112
        %v2130 = vmul.f32 %v1746, %v2114
        %2131 = vrot.lane.b32.xlu0 %v1977, 32
        %v2132 = vpop.permute.xlu0 %2131
        %2133 = vrot.lane.b32.xlu0 %v1992, 32
        %v2134 = vpop.permute.xlu0 %2133
        %2135 = vrot.lane.b32.xlu0 %v2007, 32
        %v2136 = vpop.permute.xlu0 %2135
        %2137 = vrot.lane.b32.xlu0 %v2022, 32
        %v2138 = vpop.permute.xlu0 %2137
        %2139 = vrot.lane.b32.xlu0 %v2037, 32
        %v2140 = vpop.permute.xlu0 %2139
        %2141 = vrot.lane.b32.xlu0 %v2052, 32
        %v2142 = vpop.permute.xlu0 %2141
        %2143 = vrot.lane.b32.xlu0 %v2067, 32
        %v2144 = vpop.permute.xlu0 %2143
        %2145 = vrot.lane.b32.xlu0 %v2082, 32
        %v2146 = vpop.permute.xlu0 %2145
        %v2155 = vmul.f32 %v1780, %v2132
        %v2156 = vmul.f32 %v1782, %v2134
        %v2157 = vmul.f32 %v1784, %v2136
        %v2158 = vmul.f32 %v1786, %v2138
        %v2159 = vmul.f32 %v1788, %v2140
        %v2160 = vmul.f32 %v1790, %v2142
        %v2161 = vmul.f32 %v1792, %v2144
        %v2162 = vmul.f32 %v1794, %v2146
        %2163 = vrot.lane.b32.xlu0 %v1977, 48
        %v2164 = vpop.permute.xlu0 %2163
        %2165 = vrot.lane.b32.xlu0 %v1992, 48
        %v2166 = vpop.permute.xlu0 %2165
        %2167 = vrot.lane.b32.xlu0 %v2007, 48
        %v2168 = vpop.permute.xlu0 %2167
        %2169 = vrot.lane.b32.xlu0 %v2022, 48
        %v2170 = vpop.permute.xlu0 %2169
        %2171 = vrot.lane.b32.xlu0 %v2037, 48
        %v2172 = vpop.permute.xlu0 %2171
        %2173 = vrot.lane.b32.xlu0 %v2052, 48
        %v2174 = vpop.permute.xlu0 %2173
        %2175 = vrot.lane.b32.xlu0 %v2067, 48
        %v2176 = vpop.permute.xlu0 %2175
        %2177 = vrot.lane.b32.xlu0 %v2082, 48
        %v2178 = vpop.permute.xlu0 %2177
        %v2187 = vmul.f32 %v1828, %v2164
        %v2188 = vmul.f32 %v1830, %v2166
        %v2189 = vmul.f32 %v1832, %v2168
        %v2190 = vmul.f32 %v1834, %v2170
        %v2191 = vmul.f32 %v1836, %v2172
        %v2192 = vmul.f32 %v1838, %v2174
        %v2193 = vmul.f32 %v1840, %v2176
        %v2194 = vmul.f32 %v1842, %v2178
        %v2195 = vsel %vm1253, %v2083, %v2123
        %v2196 = vsel %vm1253, %v2084, %v2124
        %v2197 = vsel %vm1253, %v2085, %v2125
        %v2198 = vsel %vm1253, %v2086, %v2126
        %v2199 = vsel %vm1253, %v2087, %v2127
        %v2200 = vsel %vm1253, %v2088, %v2128
        %v2201 = vsel %vm1253, %v2089, %v2129
        %v2202 = vsel %vm1253, %v2090, %v2130
        %v2203 = vsel %vm302, %v2195, %v2155
        %v2204 = vsel %vm302, %v2196, %v2156
        %v2205 = vsel %vm302, %v2197, %v2157
        %v2206 = vsel %vm302, %v2198, %v2158
        %v2207 = vsel %vm302, %v2199, %v2159
        %v2208 = vsel %vm302, %v2200, %v2160
        %v2209 = vsel %vm302, %v2201, %v2161
        %v2210 = vsel %vm302, %v2202, %v2162
        %v2211 = vsel %vm1270, %v2203, %v2187
        %v2212 = vsel %vm1270, %v2204, %v2188
        %v2213 = vsel %vm1270, %v2205, %v2189
        %v2214 = vsel %vm1270, %v2206, %v2190
        %v2215 = vsel %vm1270, %v2207, %v2191
        %v2216 = vsel %vm1270, %v2208, %v2192
        %v2217 = vsel %vm1270, %v2209, %v2193
        %v2218 = vsel %vm1270, %v2210, %v2194
        %s2219 = scalar_lea.vmem [#allocation2], 64
        %2220 = vst.msk [vmem:[%s2219] sm:$0xff] %vm1279, %v2211
        %2221 = vst.msk [vmem:[%s2219 + $0x8] sm:$0xff] %vm1279, %v2212
        %2222 = vst.msk [vmem:[%s2219 + $0x10] sm:$0xff] %vm1279, %v2213
        %2223 = vst.msk [vmem:[%s2219 + $0x18] sm:$0xff] %vm1279, %v2214
        %2224 = vst.msk [vmem:[%s2219 + $0x20] sm:$0xff] %vm1279, %v2215
        %2225 = vst.msk [vmem:[%s2219 + $0x28] sm:$0xff] %vm1279, %v2216
        %2226 = vst.msk [vmem:[%s2219 + $0x30] sm:$0xff] %vm1279, %v2217
        %2227 = vst.msk [vmem:[%s2219 + $0x38] sm:$0xff] %vm1279, %v2218
        %2228 = vrot.lane.b32.xlu0 %v345, 56
        %v2229 = vpop.permute.xlu0 %2228
        %2230 = vrot.lane.b32.xlu0 %v348, 56
        %v2231 = vpop.permute.xlu0 %2230
        %2232 = vrot.lane.b32.xlu0 %v351, 56
        %v2233 = vpop.permute.xlu0 %2232
        %2234 = vrot.lane.b32.xlu0 %v354, 56
        %v2235 = vpop.permute.xlu0 %2234
        %2236 = vrot.lane.b32.xlu0 %v357, 56
        %v2237 = vpop.permute.xlu0 %2236
        %2238 = vrot.lane.b32.xlu0 %v360, 56
        %v2239 = vpop.permute.xlu0 %2238
        %2240 = vrot.lane.b32.xlu0 %v363, 56
        %v2241 = vpop.permute.xlu0 %2240
        %2242 = vrot.lane.b32.xlu0 %v366, 56
        %v2243 = vpop.permute.xlu0 %2242
        %v2244 = vsel %vm539, %v2229, 0
        %v2246 = vsel %vm539, %v2231, 0
        %v2248 = vsel %vm539, %v2233, 0
        %v2250 = vsel %vm539, %v2235, 0
        %v2252 = vsel %vm539, %v2237, 0
        %v2254 = vsel %vm539, %v2239, 0
        %v2256 = vsel %vm539, %v2241, 0
        %v2258 = vsel %vm539, %v2243, 0
        %2260 = vmatpush.msra.mxu0 0.0
        %2261 = vmatpush.msra.mxu0 0.0
        %2262 = vmatpush.msra.mxu0 0.0
        %2263 = vmatpush.msra.mxu0 0.0
        %2264 = vmatpush.msra.mxu0 0.0
        %2265 = vmatpush.msra.mxu0 0.0
        %2266 = vmatpush.msra.mxu0 0.0
        %2267 = vmatpush.msra.mxu0 0.0
        %2268 = vmatpush.msra.mxu0 0.0
        %2269 = vmatpush.msra.mxu0 0.0
        %2270 = vmatpush.msra.mxu0 0.0
        %2271 = vmatpush.msra.mxu0 0.0
        %2272 = vmatpush.msra.mxu0 0.0
        %2273 = vmatpush.msra.mxu0 0.0
        %2274 = vmatpush.msra.mxu0 0.0
        %2275 = vmatpush.msra.mxu0 %v369
        %2276 = vmatmul.f32.gmra.mxu0 %v2244
        %v2277 = vpop.f32.mrf.mxu0
        %v2278 = vadd.f32 0.0, %v2277
        %2279 = vmatmul.f32.gmra.mxu0 %v2246
        %v2280 = vpop.f32.mrf.mxu0
        %v2281 = vadd.f32 0.0, %v2280
        %2282 = vmatmul.f32.gmra.mxu0 %v2248
        %v2283 = vpop.f32.mrf.mxu0
        %v2284 = vadd.f32 0.0, %v2283
        %2285 = vmatmul.f32.gmra.mxu0 %v2250
        %v2286 = vpop.f32.mrf.mxu0
        %v2287 = vadd.f32 0.0, %v2286
        %2288 = vmatmul.f32.gmra.mxu0 %v2252
        %v2289 = vpop.f32.mrf.mxu0
        %v2290 = vadd.f32 0.0, %v2289
        %2291 = vmatmul.f32.gmra.mxu0 %v2254
        %v2292 = vpop.f32.mrf.mxu0
        %v2293 = vadd.f32 0.0, %v2292
        %2294 = vmatmul.f32.gmra.mxu0 %v2256
        %v2295 = vpop.f32.mrf.mxu0
        %v2296 = vadd.f32 0.0, %v2295
        %2297 = vmatmul.f32.gmra.mxu0 %v2258
        %v2298 = vpop.f32.mrf.mxu0
        %v2299 = vadd.f32 0.0, %v2298
        %2300 = vdwg.mxu0
        %s2301 = scalar_lea.vmem [#allocation3], 64
        %2302 = vst.msk [vmem:[%s2301] sm:$0xff] %vm1279, %v2278
        %2303 = vst.msk [vmem:[%s2301 + $0x8] sm:$0xff] %vm1279, %v2281
        %2304 = vst.msk [vmem:[%s2301 + $0x10] sm:$0xff] %vm1279, %v2284
        %2305 = vst.msk [vmem:[%s2301 + $0x18] sm:$0xff] %vm1279, %v2287
        %2306 = vst.msk [vmem:[%s2301 + $0x20] sm:$0xff] %vm1279, %v2290
        %2307 = vst.msk [vmem:[%s2301 + $0x28] sm:$0xff] %vm1279, %v2293
        %2308 = vst.msk [vmem:[%s2301 + $0x30] sm:$0xff] %vm1279, %v2296
        %2309 = vst.msk [vmem:[%s2301 + $0x38] sm:$0xff] %vm1279, %v2299
        %v2310 = vmul.f32 %v2211, %v507
        %v2311 = vmul.f32 %v2212, %v508
        %v2312 = vmul.f32 %v2213, %v509
        %v2313 = vmul.f32 %v2214, %v510
        %v2314 = vmul.f32 %v2215, %v511
        %v2315 = vmul.f32 %v2216, %v512
        %v2316 = vmul.f32 %v2217, %v513
        %v2317 = vmul.f32 %v2218, %v514
        %v2327 = vsel %vm1279, %v2310, 0
        %v2330 = vsel %vm1279, %v2311, 0
        %v2333 = vsel %vm1279, %v2312, 0
        %v2336 = vsel %vm1279, %v2313, 0
        %v2339 = vsel %vm1279, %v2314, 0
        %v2342 = vsel %vm1279, %v2315, 0
        %v2345 = vsel %vm1279, %v2316, 0
        %v2348 = vsel %vm1279, %v2317, 0
        %2350 = vmatpush.msra.mxu0 0.0
        %2351 = vmatpush.msra.mxu0 0.0
        %2352 = vmatpush.msra.mxu0 0.0
        %2353 = vmatpush.msra.mxu0 0.0
        %2354 = vmatpush.msra.mxu0 0.0
        %2355 = vmatpush.msra.mxu0 0.0
        %2356 = vmatpush.msra.mxu0 0.0
        %2357 = vmatpush.msra.mxu0 0.0
        %2358 = vmatpush.msra.mxu0 %v2243
        %2359 = vmatpush.msra.mxu0 %v2241
        %2360 = vmatpush.msra.mxu0 %v2239
        %2361 = vmatpush.msra.mxu0 %v2237
        %2362 = vmatpush.msra.mxu0 %v2235
        %2363 = vmatpush.msra.mxu0 %v2233
        %2364 = vmatpush.msra.mxu0 %v2231
        %2365 = vmatpush.msra.mxu0 %v2229
        %2366 = vmatmul.f32.gmra.mxu0 %v2327
        %v2367 = vpop.f32.mrf.mxu0
        %v2368 = vadd.f32 0.0, %v2367
        %2369 = vmatmul.f32.gmra.mxu0 %v2330
        %v2370 = vpop.f32.mrf.mxu0
        %v2371 = vadd.f32 0.0, %v2370
        %2372 = vmatmul.f32.gmra.mxu0 %v2333
        %v2373 = vpop.f32.mrf.mxu0
        %v2374 = vadd.f32 0.0, %v2373
        %2375 = vmatmul.f32.gmra.mxu0 %v2336
        %v2376 = vpop.f32.mrf.mxu0
        %v2377 = vadd.f32 0.0, %v2376
        %2378 = vmatmul.f32.gmra.mxu0 %v2339
        %v2379 = vpop.f32.mrf.mxu0
        %v2380 = vadd.f32 0.0, %v2379
        %2381 = vmatmul.f32.gmra.mxu0 %v2342
        %v2382 = vpop.f32.mrf.mxu0
        %v2383 = vadd.f32 0.0, %v2382
        %2384 = vmatmul.f32.gmra.mxu0 %v2345
        %v2385 = vpop.f32.mrf.mxu0
        %v2386 = vadd.f32 0.0, %v2385
        %2387 = vmatmul.f32.gmra.mxu0 %v2348
        %v2388 = vpop.f32.mrf.mxu0
        %v2389 = vadd.f32 0.0, %v2388
        %2390 = vdwg.mxu0
        %2391 = vrot.lane.b32.xlu0 %v345, 112
        %v2392 = vpop.permute.xlu0 %2391
        %2393 = vrot.lane.b32.xlu0 %v348, 112
        %v2394 = vpop.permute.xlu0 %2393
        %2395 = vrot.lane.b32.xlu0 %v351, 112
        %v2396 = vpop.permute.xlu0 %2395
        %2397 = vrot.lane.b32.xlu0 %v354, 112
        %v2398 = vpop.permute.xlu0 %2397
        %2399 = vrot.lane.b32.xlu0 %v357, 112
        %v2400 = vpop.permute.xlu0 %2399
        %2401 = vrot.lane.b32.xlu0 %v360, 112
        %v2402 = vpop.permute.xlu0 %2401
        %2403 = vrot.lane.b32.xlu0 %v363, 112
        %v2404 = vpop.permute.xlu0 %2403
        %2405 = vrot.lane.b32.xlu0 %v366, 112
        %v2406 = vpop.permute.xlu0 %2405
        %2407 = vrot.lane.b32.xlu0 %v345, 80
        %v2408 = vpop.permute.xlu0 %2407
        %2409 = vrot.lane.b32.xlu0 %v348, 80
        %v2410 = vpop.permute.xlu0 %2409
        %2411 = vrot.lane.b32.xlu0 %v351, 80
        %v2412 = vpop.permute.xlu0 %2411
        %2413 = vrot.lane.b32.xlu0 %v354, 80
        %v2414 = vpop.permute.xlu0 %2413
        %2415 = vrot.lane.b32.xlu0 %v357, 80
        %v2416 = vpop.permute.xlu0 %2415
        %2417 = vrot.lane.b32.xlu0 %v360, 80
        %v2418 = vpop.permute.xlu0 %2417
        %2419 = vrot.lane.b32.xlu0 %v363, 80
        %v2420 = vpop.permute.xlu0 %2419
        %2421 = vrot.lane.b32.xlu0 %v366, 80
        %v2422 = vpop.permute.xlu0 %2421
        %v2423 = vsel %vm539, %v2392, 0
        %v2425 = vsel %vm539, %v2394, 0
        %v2427 = vsel %vm539, %v2396, 0
        %v2429 = vsel %vm539, %v2398, 0
        %v2431 = vsel %vm539, %v2400, 0
        %v2433 = vsel %vm539, %v2402, 0
        %v2435 = vsel %vm539, %v2404, 0
        %v2437 = vsel %vm539, %v2406, 0
        %v2439 = vsel %vm539, %v2408, 0
        %v2441 = vsel %vm539, %v2410, 0
        %v2443 = vsel %vm539, %v2412, 0
        %v2445 = vsel %vm539, %v2414, 0
        %v2447 = vsel %vm539, %v2416, 0
        %v2449 = vsel %vm539, %v2418, 0
        %v2451 = vsel %vm539, %v2420, 0
        %v2453 = vsel %vm539, %v2422, 0
        %2455 = vmatpush.xpose.msra.mxu0 0.0
        %2456 = vmatpush.xpose.msra.mxu0 0.0
        %2457 = vmatpush.xpose.msra.mxu0 0.0
        %2458 = vmatpush.xpose.msra.mxu0 0.0
        %2459 = vmatpush.xpose.msra.mxu0 0.0
        %2460 = vmatpush.xpose.msra.mxu0 0.0
        %2461 = vmatpush.xpose.msra.mxu0 0.0
        %2462 = vmatpush.xpose.msra.mxu0 0.0
        %2463 = vmatpush.xpose.msra.mxu0 %v2453
        %2464 = vmatpush.xpose.msra.mxu0 %v2451
        %2465 = vmatpush.xpose.msra.mxu0 %v2449
        %2466 = vmatpush.xpose.msra.mxu0 %v2447
        %2467 = vmatpush.xpose.msra.mxu0 %v2445
        %2468 = vmatpush.xpose.msra.mxu0 %v2443
        %2469 = vmatpush.xpose.msra.mxu0 %v2441
        %2470 = vmatpush.xpose.msra.mxu0 %v2439
        %2471 = vmatmul.f32.gmra.mxu0 %v2423
        %v2472 = vpop.f32.mrf.mxu0
        %v2473 = vadd.f32 0.0, %v2472
        %2474 = vmatmul.f32.gmra.mxu0 %v2425
        %v2475 = vpop.f32.mrf.mxu0
        %v2476 = vadd.f32 0.0, %v2475
        %2477 = vmatmul.f32.gmra.mxu0 %v2427
        %v2478 = vpop.f32.mrf.mxu0
        %v2479 = vadd.f32 0.0, %v2478
        %2480 = vmatmul.f32.gmra.mxu0 %v2429
        %v2481 = vpop.f32.mrf.mxu0
        %v2482 = vadd.f32 0.0, %v2481
        %2483 = vmatmul.f32.gmra.mxu0 %v2431
        %v2484 = vpop.f32.mrf.mxu0
        %v2485 = vadd.f32 0.0, %v2484
        %2486 = vmatmul.f32.gmra.mxu0 %v2433
        %v2487 = vpop.f32.mrf.mxu0
        %v2488 = vadd.f32 0.0, %v2487
        %2489 = vmatmul.f32.gmra.mxu0 %v2435
        %v2490 = vpop.f32.mrf.mxu0
        %v2491 = vadd.f32 0.0, %v2490
        %2492 = vmatmul.f32.gmra.mxu0 %v2437
        %v2493 = vpop.f32.mrf.mxu0
        %v2494 = vadd.f32 0.0, %v2493
        %2495 = vdwg.mxu0
        %v2496 = vmul.f32 %v2473, 0.35355338
        %v2497 = vmul.f32 %v2476, 0.35355338
        %v2498 = vmul.f32 %v2479, 0.35355338
        %v2499 = vmul.f32 %v2482, 0.35355338
        %v2500 = vmul.f32 %v2485, 0.35355338
        %v2501 = vmul.f32 %v2488, 0.35355338
        %v2502 = vmul.f32 %v2491, 0.35355338
        %v2503 = vmul.f32 %v2494, 0.35355338
        %2512 = vrot.lane.b32.xlu0 %v2496, 112
        %v2513 = vpop.permute.xlu0 %2512
        %2514 = vrot.lane.b32.xlu0 %v2497, 112
        %v2515 = vpop.permute.xlu0 %2514
        %2516 = vrot.lane.b32.xlu0 %v2498, 112
        %v2517 = vpop.permute.xlu0 %2516
        %2518 = vrot.lane.b32.xlu0 %v2499, 112
        %v2519 = vpop.permute.xlu0 %2518
        %2520 = vrot.lane.b32.xlu0 %v2500, 112
        %v2521 = vpop.permute.xlu0 %2520
        %2522 = vrot.lane.b32.xlu0 %v2501, 112
        %v2523 = vpop.permute.xlu0 %2522
        %2524 = vrot.lane.b32.xlu0 %v2502, 112
        %v2525 = vpop.permute.xlu0 %2524
        %2526 = vrot.lane.b32.xlu0 %v2503, 112
        %v2527 = vpop.permute.xlu0 %2526
        %v2536 = vmax.f32 %v2496, %v2513
        %v2537 = vmax.f32 %v2497, %v2515
        %v2538 = vmax.f32 %v2498, %v2517
        %v2539 = vmax.f32 %v2499, %v2519
        %v2540 = vmax.f32 %v2500, %v2521
        %v2541 = vmax.f32 %v2501, %v2523
        %v2542 = vmax.f32 %v2502, %v2525
        %v2543 = vmax.f32 %v2503, %v2527
        %2544 = vrot.lane.b32.xlu0 %v2496, 96
        %v2545 = vpop.permute.xlu0 %2544
        %2546 = vrot.lane.b32.xlu0 %v2497, 96
        %v2547 = vpop.permute.xlu0 %2546
        %2548 = vrot.lane.b32.xlu0 %v2498, 96
        %v2549 = vpop.permute.xlu0 %2548
        %2550 = vrot.lane.b32.xlu0 %v2499, 96
        %v2551 = vpop.permute.xlu0 %2550
        %2552 = vrot.lane.b32.xlu0 %v2500, 96
        %v2553 = vpop.permute.xlu0 %2552
        %2554 = vrot.lane.b32.xlu0 %v2501, 96
        %v2555 = vpop.permute.xlu0 %2554
        %2556 = vrot.lane.b32.xlu0 %v2502, 96
        %v2557 = vpop.permute.xlu0 %2556
        %2558 = vrot.lane.b32.xlu0 %v2503, 96
        %v2559 = vpop.permute.xlu0 %2558
        %v2568 = vmax.f32 %v2536, %v2545
        %v2569 = vmax.f32 %v2537, %v2547
        %v2570 = vmax.f32 %v2538, %v2549
        %v2571 = vmax.f32 %v2539, %v2551
        %v2572 = vmax.f32 %v2540, %v2553
        %v2573 = vmax.f32 %v2541, %v2555
        %v2574 = vmax.f32 %v2542, %v2557
        %v2575 = vmax.f32 %v2543, %v2559
        %2576 = vrot.lane.b32.xlu0 %v2496, 80
        %v2577 = vpop.permute.xlu0 %2576
        %2578 = vrot.lane.b32.xlu0 %v2497, 80
        %v2579 = vpop.permute.xlu0 %2578
        %2580 = vrot.lane.b32.xlu0 %v2498, 80
        %v2581 = vpop.permute.xlu0 %2580
        %2582 = vrot.lane.b32.xlu0 %v2499, 80
        %v2583 = vpop.permute.xlu0 %2582
        %2584 = vrot.lane.b32.xlu0 %v2500, 80
        %v2585 = vpop.permute.xlu0 %2584
        %2586 = vrot.lane.b32.xlu0 %v2501, 80
        %v2587 = vpop.permute.xlu0 %2586
        %2588 = vrot.lane.b32.xlu0 %v2502, 80
        %v2589 = vpop.permute.xlu0 %2588
        %2590 = vrot.lane.b32.xlu0 %v2503, 80
        %v2591 = vpop.permute.xlu0 %2590
        %v2600 = vmax.f32 %v2568, %v2577
        %v2601 = vmax.f32 %v2569, %v2579
        %v2602 = vmax.f32 %v2570, %v2581
        %v2603 = vmax.f32 %v2571, %v2583
        %v2604 = vmax.f32 %v2572, %v2585
        %v2605 = vmax.f32 %v2573, %v2587
        %v2606 = vmax.f32 %v2574, %v2589
        %v2607 = vmax.f32 %v2575, %v2591
        %v2608 = vsub.f32 %v2496, %v2600
        %v2609 = vsub.f32 %v2497, %v2601
        %v2610 = vsub.f32 %v2498, %v2602
        %v2611 = vsub.f32 %v2499, %v2603
        %v2612 = vsub.f32 %v2500, %v2604
        %v2613 = vsub.f32 %v2501, %v2605
        %v2614 = vsub.f32 %v2502, %v2606
        %v2615 = vsub.f32 %v2503, %v2607
        %v2616 = vmul.f32 %v2608, 1.442695
        %v2617 = vpow.pop %v2616
        %v2618 = vmul.f32 %v2609, 1.442695
        %v2619 = vpow.pop %v2618
        %v2620 = vmul.f32 %v2610, 1.442695
        %v2621 = vpow.pop %v2620
        %v2622 = vmul.f32 %v2611, 1.442695
        %v2623 = vpow.pop %v2622
        %v2624 = vmul.f32 %v2612, 1.442695
        %v2625 = vpow.pop %v2624
        %v2626 = vmul.f32 %v2613, 1.442695
        %v2627 = vpow.pop %v2626
        %v2628 = vmul.f32 %v2614, 1.442695
        %v2629 = vpow.pop %v2628
        %v2630 = vmul.f32 %v2615, 1.442695
        %v2631 = vpow.pop %v2630
        %2640 = vrot.lane.b32.xlu0 %v2600, 16
        %v2641 = vpop.permute.xlu0 %2640
        %2642 = vrot.lane.b32.xlu0 %v2601, 16
        %v2643 = vpop.permute.xlu0 %2642
        %2644 = vrot.lane.b32.xlu0 %v2602, 16
        %v2645 = vpop.permute.xlu0 %2644
        %2646 = vrot.lane.b32.xlu0 %v2603, 16
        %v2647 = vpop.permute.xlu0 %2646
        %2648 = vrot.lane.b32.xlu0 %v2604, 16
        %v2649 = vpop.permute.xlu0 %2648
        %2650 = vrot.lane.b32.xlu0 %v2605, 16
        %v2651 = vpop.permute.xlu0 %2650
        %2652 = vrot.lane.b32.xlu0 %v2606, 16
        %v2653 = vpop.permute.xlu0 %2652
        %2654 = vrot.lane.b32.xlu0 %v2607, 16
        %v2655 = vpop.permute.xlu0 %2654
        %v2664 = vsub.f32 %v2496, %v2641
        %v2665 = vsub.f32 %v2497, %v2643
        %v2666 = vsub.f32 %v2498, %v2645
        %v2667 = vsub.f32 %v2499, %v2647
        %v2668 = vsub.f32 %v2500, %v2649
        %v2669 = vsub.f32 %v2501, %v2651
        %v2670 = vsub.f32 %v2502, %v2653
        %v2671 = vsub.f32 %v2503, %v2655
        %v2672 = vmul.f32 %v2664, 1.442695
        %v2673 = vpow.pop %v2672
        %v2674 = vmul.f32 %v2665, 1.442695
        %v2675 = vpow.pop %v2674
        %v2676 = vmul.f32 %v2666, 1.442695
        %v2677 = vpow.pop %v2676
        %v2678 = vmul.f32 %v2667, 1.442695
        %v2679 = vpow.pop %v2678
        %v2680 = vmul.f32 %v2668, 1.442695
        %v2681 = vpow.pop %v2680
        %v2682 = vmul.f32 %v2669, 1.442695
        %v2683 = vpow.pop %v2682
        %v2684 = vmul.f32 %v2670, 1.442695
        %v2685 = vpow.pop %v2684
        %v2686 = vmul.f32 %v2671, 1.442695
        %v2687 = vpow.pop %v2686
        %2688 = vrot.lane.b32.xlu0 %v2600, 32
        %v2689 = vpop.permute.xlu0 %2688
        %2690 = vrot.lane.b32.xlu0 %v2601, 32
        %v2691 = vpop.permute.xlu0 %2690
        %2692 = vrot.lane.b32.xlu0 %v2602, 32
        %v2693 = vpop.permute.xlu0 %2692
        %2694 = vrot.lane.b32.xlu0 %v2603, 32
        %v2695 = vpop.permute.xlu0 %2694
        %2696 = vrot.lane.b32.xlu0 %v2604, 32
        %v2697 = vpop.permute.xlu0 %2696
        %2698 = vrot.lane.b32.xlu0 %v2605, 32
        %v2699 = vpop.permute.xlu0 %2698
        %2700 = vrot.lane.b32.xlu0 %v2606, 32
        %v2701 = vpop.permute.xlu0 %2700
        %2702 = vrot.lane.b32.xlu0 %v2607, 32
        %v2703 = vpop.permute.xlu0 %2702
        %v2712 = vsub.f32 %v2496, %v2689
        %v2713 = vsub.f32 %v2497, %v2691
        %v2714 = vsub.f32 %v2498, %v2693
        %v2715 = vsub.f32 %v2499, %v2695
        %v2716 = vsub.f32 %v2500, %v2697
        %v2717 = vsub.f32 %v2501, %v2699
        %v2718 = vsub.f32 %v2502, %v2701
        %v2719 = vsub.f32 %v2503, %v2703
        %v2720 = vmul.f32 %v2712, 1.442695
        %v2721 = vpow.pop %v2720
        %v2722 = vmul.f32 %v2713, 1.442695
        %v2723 = vpow.pop %v2722
        %v2724 = vmul.f32 %v2714, 1.442695
        %v2725 = vpow.pop %v2724
        %v2726 = vmul.f32 %v2715, 1.442695
        %v2727 = vpow.pop %v2726
        %v2728 = vmul.f32 %v2716, 1.442695
        %v2729 = vpow.pop %v2728
        %v2730 = vmul.f32 %v2717, 1.442695
        %v2731 = vpow.pop %v2730
        %v2732 = vmul.f32 %v2718, 1.442695
        %v2733 = vpow.pop %v2732
        %v2734 = vmul.f32 %v2719, 1.442695
        %v2735 = vpow.pop %v2734
        %2736 = vrot.lane.b32.xlu0 %v2600, 48
        %v2737 = vpop.permute.xlu0 %2736
        %2738 = vrot.lane.b32.xlu0 %v2601, 48
        %v2739 = vpop.permute.xlu0 %2738
        %2740 = vrot.lane.b32.xlu0 %v2602, 48
        %v2741 = vpop.permute.xlu0 %2740
        %2742 = vrot.lane.b32.xlu0 %v2603, 48
        %v2743 = vpop.permute.xlu0 %2742
        %2744 = vrot.lane.b32.xlu0 %v2604, 48
        %v2745 = vpop.permute.xlu0 %2744
        %2746 = vrot.lane.b32.xlu0 %v2605, 48
        %v2747 = vpop.permute.xlu0 %2746
        %2748 = vrot.lane.b32.xlu0 %v2606, 48
        %v2749 = vpop.permute.xlu0 %2748
        %2750 = vrot.lane.b32.xlu0 %v2607, 48
        %v2751 = vpop.permute.xlu0 %2750
        %v2760 = vsub.f32 %v2496, %v2737
        %v2761 = vsub.f32 %v2497, %v2739
        %v2762 = vsub.f32 %v2498, %v2741
        %v2763 = vsub.f32 %v2499, %v2743
        %v2764 = vsub.f32 %v2500, %v2745
        %v2765 = vsub.f32 %v2501, %v2747
        %v2766 = vsub.f32 %v2502, %v2749
        %v2767 = vsub.f32 %v2503, %v2751
        %v2768 = vmul.f32 %v2760, 1.442695
        %v2769 = vpow.pop %v2768
        %v2770 = vmul.f32 %v2761, 1.442695
        %v2771 = vpow.pop %v2770
        %v2772 = vmul.f32 %v2762, 1.442695
        %v2773 = vpow.pop %v2772
        %v2774 = vmul.f32 %v2763, 1.442695
        %v2775 = vpow.pop %v2774
        %v2776 = vmul.f32 %v2764, 1.442695
        %v2777 = vpow.pop %v2776
        %v2778 = vmul.f32 %v2765, 1.442695
        %v2779 = vpow.pop %v2778
        %v2780 = vmul.f32 %v2766, 1.442695
        %v2781 = vpow.pop %v2780
        %v2782 = vmul.f32 %v2767, 1.442695
        %v2783 = vpow.pop %v2782
        %2792 = vrot.lane.b32.xlu0 %v2673, 112
        %v2793 = vpop.permute.xlu0 %2792
        %2794 = vrot.lane.b32.xlu0 %v2675, 112
        %v2795 = vpop.permute.xlu0 %2794
        %2796 = vrot.lane.b32.xlu0 %v2677, 112
        %v2797 = vpop.permute.xlu0 %2796
        %2798 = vrot.lane.b32.xlu0 %v2679, 112
        %v2799 = vpop.permute.xlu0 %2798
        %2800 = vrot.lane.b32.xlu0 %v2681, 112
        %v2801 = vpop.permute.xlu0 %2800
        %2802 = vrot.lane.b32.xlu0 %v2683, 112
        %v2803 = vpop.permute.xlu0 %2802
        %2804 = vrot.lane.b32.xlu0 %v2685, 112
        %v2805 = vpop.permute.xlu0 %2804
        %2806 = vrot.lane.b32.xlu0 %v2687, 112
        %v2807 = vpop.permute.xlu0 %2806
        %v2816 = vadd.f32 %v2617, %v2793
        %v2817 = vadd.f32 %v2619, %v2795
        %v2818 = vadd.f32 %v2621, %v2797
        %v2819 = vadd.f32 %v2623, %v2799
        %v2820 = vadd.f32 %v2625, %v2801
        %v2821 = vadd.f32 %v2627, %v2803
        %v2822 = vadd.f32 %v2629, %v2805
        %v2823 = vadd.f32 %v2631, %v2807
        %2832 = vrot.lane.b32.xlu0 %v2721, 96
        %v2833 = vpop.permute.xlu0 %2832
        %2834 = vrot.lane.b32.xlu0 %v2723, 96
        %v2835 = vpop.permute.xlu0 %2834
        %2836 = vrot.lane.b32.xlu0 %v2725, 96
        %v2837 = vpop.permute.xlu0 %2836
        %2838 = vrot.lane.b32.xlu0 %v2727, 96
        %v2839 = vpop.permute.xlu0 %2838
        %2840 = vrot.lane.b32.xlu0 %v2729, 96
        %v2841 = vpop.permute.xlu0 %2840
        %2842 = vrot.lane.b32.xlu0 %v2731, 96
        %v2843 = vpop.permute.xlu0 %2842
        %2844 = vrot.lane.b32.xlu0 %v2733, 96
        %v2845 = vpop.permute.xlu0 %2844
        %2846 = vrot.lane.b32.xlu0 %v2735, 96
        %v2847 = vpop.permute.xlu0 %2846
        %v2856 = vadd.f32 %v2816, %v2833
        %v2857 = vadd.f32 %v2817, %v2835
        %v2858 = vadd.f32 %v2818, %v2837
        %v2859 = vadd.f32 %v2819, %v2839
        %v2860 = vadd.f32 %v2820, %v2841
        %v2861 = vadd.f32 %v2821, %v2843
        %v2862 = vadd.f32 %v2822, %v2845
        %v2863 = vadd.f32 %v2823, %v2847
        %2872 = vrot.lane.b32.xlu0 %v2769, 80
        %v2873 = vpop.permute.xlu0 %2872
        %2874 = vrot.lane.b32.xlu0 %v2771, 80
        %v2875 = vpop.permute.xlu0 %2874
        %2876 = vrot.lane.b32.xlu0 %v2773, 80
        %v2877 = vpop.permute.xlu0 %2876
        %2878 = vrot.lane.b32.xlu0 %v2775, 80
        %v2879 = vpop.permute.xlu0 %2878
        %2880 = vrot.lane.b32.xlu0 %v2777, 80
        %v2881 = vpop.permute.xlu0 %2880
        %2882 = vrot.lane.b32.xlu0 %v2779, 80
        %v2883 = vpop.permute.xlu0 %2882
        %2884 = vrot.lane.b32.xlu0 %v2781, 80
        %v2885 = vpop.permute.xlu0 %2884
        %2886 = vrot.lane.b32.xlu0 %v2783, 80
        %v2887 = vpop.permute.xlu0 %2886
        %v2896 = vadd.f32 %v2856, %v2873
        %v2897 = vadd.f32 %v2857, %v2875
        %v2898 = vadd.f32 %v2858, %v2877
        %v2899 = vadd.f32 %v2859, %v2879
        %v2900 = vadd.f32 %v2860, %v2881
        %v2901 = vadd.f32 %v2861, %v2883
        %v2902 = vadd.f32 %v2862, %v2885
        %v2903 = vadd.f32 %v2863, %v2887
        %v2904 = vrcp.pop %v2896
        %v2905 = vmul.f32 %v2896, %v2904
        %v2906 = vsub.f32 1.0, %v2905
        %v2907 = vmul.f32 %v2904, %v2906
        %v2908 = vadd.f32 %v2904, %v2907
        %vm2909 = vweird.f32 %v2896
        %vm2910 = vweird.f32 %v2904
        %vm2911 = vmor %vm2909, %vm2910
        %v2912 = vsel %vm2911, %v2904, %v2908
        %v2913 = vand.u32 2147483647, %v2896
        %vm2914 = vcmp.eq.f32.partialorder %v2913, 8.507059e+37
        %v2915 = vand.u32 %v2896, 2147483648
        %v2916 = vor.u32 1.1754944e-38, %v2915
        %v2917 = vsel %vm2914, %v2916, %v2912
        %v2918 = vmul.f32 1.0, %v2917
        %v2919 = vrcp.pop %v2897
        %v2920 = vmul.f32 %v2897, %v2919
        %v2921 = vsub.f32 1.0, %v2920
        %v2922 = vmul.f32 %v2919, %v2921
        %v2923 = vadd.f32 %v2919, %v2922
        %vm2924 = vweird.f32 %v2897
        %vm2925 = vweird.f32 %v2919
        %vm2926 = vmor %vm2924, %vm2925
        %v2927 = vsel %vm2926, %v2919, %v2923
        %v2928 = vand.u32 2147483647, %v2897
        %vm2929 = vcmp.eq.f32.partialorder %v2928, 8.507059e+37
        %v2930 = vand.u32 %v2897, 2147483648
        %v2931 = vor.u32 1.1754944e-38, %v2930
        %v2932 = vsel %vm2929, %v2931, %v2927
        %v2933 = vmul.f32 1.0, %v2932
        %v2934 = vrcp.pop %v2898
        %v2935 = vmul.f32 %v2898, %v2934
        %v2936 = vsub.f32 1.0, %v2935
        %v2937 = vmul.f32 %v2934, %v2936
        %v2938 = vadd.f32 %v2934, %v2937
        %vm2939 = vweird.f32 %v2898
        %vm2940 = vweird.f32 %v2934
        %vm2941 = vmor %vm2939, %vm2940
        %v2942 = vsel %vm2941, %v2934, %v2938
        %v2943 = vand.u32 2147483647, %v2898
        %vm2944 = vcmp.eq.f32.partialorder %v2943, 8.507059e+37
        %v2945 = vand.u32 %v2898, 2147483648
        %v2946 = vor.u32 1.1754944e-38, %v2945
        %v2947 = vsel %vm2944, %v2946, %v2942
        %v2948 = vmul.f32 1.0, %v2947
        %v2949 = vrcp.pop %v2899
        %v2950 = vmul.f32 %v2899, %v2949
        %v2951 = vsub.f32 1.0, %v2950
        %v2952 = vmul.f32 %v2949, %v2951
        %v2953 = vadd.f32 %v2949, %v2952
        %vm2954 = vweird.f32 %v2899
        %vm2955 = vweird.f32 %v2949
        %vm2956 = vmor %vm2954, %vm2955
        %v2957 = vsel %vm2956, %v2949, %v2953
        %v2958 = vand.u32 2147483647, %v2899
        %vm2959 = vcmp.eq.f32.partialorder %v2958, 8.507059e+37
        %v2960 = vand.u32 %v2899, 2147483648
        %v2961 = vor.u32 1.1754944e-38, %v2960
        %v2962 = vsel %vm2959, %v2961, %v2957
        %v2963 = vmul.f32 1.0, %v2962
        %v2964 = vrcp.pop %v2900
        %v2965 = vmul.f32 %v2900, %v2964
        %v2966 = vsub.f32 1.0, %v2965
        %v2967 = vmul.f32 %v2964, %v2966
        %v2968 = vadd.f32 %v2964, %v2967
        %vm2969 = vweird.f32 %v2900
        %vm2970 = vweird.f32 %v2964
        %vm2971 = vmor %vm2969, %vm2970
        %v2972 = vsel %vm2971, %v2964, %v2968
        %v2973 = vand.u32 2147483647, %v2900
        %vm2974 = vcmp.eq.f32.partialorder %v2973, 8.507059e+37
        %v2975 = vand.u32 %v2900, 2147483648
        %v2976 = vor.u32 1.1754944e-38, %v2975
        %v2977 = vsel %vm2974, %v2976, %v2972
        %v2978 = vmul.f32 1.0, %v2977
        %v2979 = vrcp.pop %v2901
        %v2980 = vmul.f32 %v2901, %v2979
        %v2981 = vsub.f32 1.0, %v2980
        %v2982 = vmul.f32 %v2979, %v2981
        %v2983 = vadd.f32 %v2979, %v2982
        %vm2984 = vweird.f32 %v2901
        %vm2985 = vweird.f32 %v2979
        %vm2986 = vmor %vm2984, %vm2985
        %v2987 = vsel %vm2986, %v2979, %v2983
        %v2988 = vand.u32 2147483647, %v2901
        %vm2989 = vcmp.eq.f32.partialorder %v2988, 8.507059e+37
        %v2990 = vand.u32 %v2901, 2147483648
        %v2991 = vor.u32 1.1754944e-38, %v2990
        %v2992 = vsel %vm2989, %v2991, %v2987
        %v2993 = vmul.f32 1.0, %v2992
        %v2994 = vrcp.pop %v2902
        %v2995 = vmul.f32 %v2902, %v2994
        %v2996 = vsub.f32 1.0, %v2995
        %v2997 = vmul.f32 %v2994, %v2996
        %v2998 = vadd.f32 %v2994, %v2997
        %vm2999 = vweird.f32 %v2902
        %vm3000 = vweird.f32 %v2994
        %vm3001 = vmor %vm2999, %vm3000
        %v3002 = vsel %vm3001, %v2994, %v2998
        %v3003 = vand.u32 2147483647, %v2902
        %vm3004 = vcmp.eq.f32.partialorder %v3003, 8.507059e+37
        %v3005 = vand.u32 %v2902, 2147483648
        %v3006 = vor.u32 1.1754944e-38, %v3005
        %v3007 = vsel %vm3004, %v3006, %v3002
        %v3008 = vmul.f32 1.0, %v3007
        %v3009 = vrcp.pop %v2903
        %v3010 = vmul.f32 %v2903, %v3009
        %v3011 = vsub.f32 1.0, %v3010
        %v3012 = vmul.f32 %v3009, %v3011
        %v3013 = vadd.f32 %v3009, %v3012
        %vm3014 = vweird.f32 %v2903
        %vm3015 = vweird.f32 %v3009
        %vm3016 = vmor %vm3014, %vm3015
        %v3017 = vsel %vm3016, %v3009, %v3013
        %v3018 = vand.u32 2147483647, %v2903
        %vm3019 = vcmp.eq.f32.partialorder %v3018, 8.507059e+37
        %v3020 = vand.u32 %v2903, 2147483648
        %v3021 = vor.u32 1.1754944e-38, %v3020
        %v3022 = vsel %vm3019, %v3021, %v3017
        %v3023 = vmul.f32 1.0, %v3022
        %v3024 = vmul.f32 %v2617, %v2918
        %v3025 = vmul.f32 %v2619, %v2933
        %v3026 = vmul.f32 %v2621, %v2948
        %v3027 = vmul.f32 %v2623, %v2963
        %v3028 = vmul.f32 %v2625, %v2978
        %v3029 = vmul.f32 %v2627, %v2993
        %v3030 = vmul.f32 %v2629, %v3008
        %v3031 = vmul.f32 %v2631, %v3023
        %3040 = vrot.lane.b32.xlu0 %v2918, 16
        %v3041 = vpop.permute.xlu0 %3040
        %3042 = vrot.lane.b32.xlu0 %v2933, 16
        %v3043 = vpop.permute.xlu0 %3042
        %3044 = vrot.lane.b32.xlu0 %v2948, 16
        %v3045 = vpop.permute.xlu0 %3044
        %3046 = vrot.lane.b32.xlu0 %v2963, 16
        %v3047 = vpop.permute.xlu0 %3046
        %3048 = vrot.lane.b32.xlu0 %v2978, 16
        %v3049 = vpop.permute.xlu0 %3048
        %3050 = vrot.lane.b32.xlu0 %v2993, 16
        %v3051 = vpop.permute.xlu0 %3050
        %3052 = vrot.lane.b32.xlu0 %v3008, 16
        %v3053 = vpop.permute.xlu0 %3052
        %3054 = vrot.lane.b32.xlu0 %v3023, 16
        %v3055 = vpop.permute.xlu0 %3054
        %v3064 = vmul.f32 %v2673, %v3041
        %v3065 = vmul.f32 %v2675, %v3043
        %v3066 = vmul.f32 %v2677, %v3045
        %v3067 = vmul.f32 %v2679, %v3047
        %v3068 = vmul.f32 %v2681, %v3049
        %v3069 = vmul.f32 %v2683, %v3051
        %v3070 = vmul.f32 %v2685, %v3053
        %v3071 = vmul.f32 %v2687, %v3055
        %3072 = vrot.lane.b32.xlu0 %v2918, 32
        %v3073 = vpop.permute.xlu0 %3072
        %3074 = vrot.lane.b32.xlu0 %v2933, 32
        %v3075 = vpop.permute.xlu0 %3074
        %3076 = vrot.lane.b32.xlu0 %v2948, 32
        %v3077 = vpop.permute.xlu0 %3076
        %3078 = vrot.lane.b32.xlu0 %v2963, 32
        %v3079 = vpop.permute.xlu0 %3078
        %3080 = vrot.lane.b32.xlu0 %v2978, 32
        %v3081 = vpop.permute.xlu0 %3080
        %3082 = vrot.lane.b32.xlu0 %v2993, 32
        %v3083 = vpop.permute.xlu0 %3082
        %3084 = vrot.lane.b32.xlu0 %v3008, 32
        %v3085 = vpop.permute.xlu0 %3084
        %3086 = vrot.lane.b32.xlu0 %v3023, 32
        %v3087 = vpop.permute.xlu0 %3086
        %v3096 = vmul.f32 %v2721, %v3073
        %v3097 = vmul.f32 %v2723, %v3075
        %v3098 = vmul.f32 %v2725, %v3077
        %v3099 = vmul.f32 %v2727, %v3079
        %v3100 = vmul.f32 %v2729, %v3081
        %v3101 = vmul.f32 %v2731, %v3083
        %v3102 = vmul.f32 %v2733, %v3085
        %v3103 = vmul.f32 %v2735, %v3087
        %3104 = vrot.lane.b32.xlu0 %v2918, 48
        %v3105 = vpop.permute.xlu0 %3104
        %3106 = vrot.lane.b32.xlu0 %v2933, 48
        %v3107 = vpop.permute.xlu0 %3106
        %3108 = vrot.lane.b32.xlu0 %v2948, 48
        %v3109 = vpop.permute.xlu0 %3108
        %3110 = vrot.lane.b32.xlu0 %v2963, 48
        %v3111 = vpop.permute.xlu0 %3110
        %3112 = vrot.lane.b32.xlu0 %v2978, 48
        %v3113 = vpop.permute.xlu0 %3112
        %3114 = vrot.lane.b32.xlu0 %v2993, 48
        %v3115 = vpop.permute.xlu0 %3114
        %3116 = vrot.lane.b32.xlu0 %v3008, 48
        %v3117 = vpop.permute.xlu0 %3116
        %3118 = vrot.lane.b32.xlu0 %v3023, 48
        %v3119 = vpop.permute.xlu0 %3118
        %v3128 = vmul.f32 %v2769, %v3105
        %v3129 = vmul.f32 %v2771, %v3107
        %v3130 = vmul.f32 %v2773, %v3109
        %v3131 = vmul.f32 %v2775, %v3111
        %v3132 = vmul.f32 %v2777, %v3113
        %v3133 = vmul.f32 %v2779, %v3115
        %v3134 = vmul.f32 %v2781, %v3117
        %v3135 = vmul.f32 %v2783, %v3119
        %v3136 = vsel %vm1253, %v3024, %v3064
        %v3137 = vsel %vm1253, %v3025, %v3065
        %v3138 = vsel %vm1253, %v3026, %v3066
        %v3139 = vsel %vm1253, %v3027, %v3067
        %v3140 = vsel %vm1253, %v3028, %v3068
        %v3141 = vsel %vm1253, %v3029, %v3069
        %v3142 = vsel %vm1253, %v3030, %v3070
        %v3143 = vsel %vm1253, %v3031, %v3071
        %v3144 = vsel %vm302, %v3136, %v3096
        %v3145 = vsel %vm302, %v3137, %v3097
        %v3146 = vsel %vm302, %v3138, %v3098
        %v3147 = vsel %vm302, %v3139, %v3099
        %v3148 = vsel %vm302, %v3140, %v3100
        %v3149 = vsel %vm302, %v3141, %v3101
        %v3150 = vsel %vm302, %v3142, %v3102
        %v3151 = vsel %vm302, %v3143, %v3103
        %v3152 = vsel %vm1270, %v3144, %v3128
        %v3153 = vsel %vm1270, %v3145, %v3129
        %v3154 = vsel %vm1270, %v3146, %v3130
        %v3155 = vsel %vm1270, %v3147, %v3131
        %v3156 = vsel %vm1270, %v3148, %v3132
        %v3157 = vsel %vm1270, %v3149, %v3133
        %v3158 = vsel %vm1270, %v3150, %v3134
        %v3159 = vsel %vm1270, %v3151, %v3135
        %s3160 = scalar_lea.vmem [#allocation2], 128
        %3161 = vst.msk [vmem:[%s3160] sm:$0xff] %vm1279, %v3152
        %3162 = vst.msk [vmem:[%s3160 + $0x8] sm:$0xff] %vm1279, %v3153
        %3163 = vst.msk [vmem:[%s3160 + $0x10] sm:$0xff] %vm1279, %v3154
        %3164 = vst.msk [vmem:[%s3160 + $0x18] sm:$0xff] %vm1279, %v3155
        %3165 = vst.msk [vmem:[%s3160 + $0x20] sm:$0xff] %vm1279, %v3156
        %3166 = vst.msk [vmem:[%s3160 + $0x28] sm:$0xff] %vm1279, %v3157
        %3167 = vst.msk [vmem:[%s3160 + $0x30] sm:$0xff] %vm1279, %v3158
        %3168 = vst.msk [vmem:[%s3160 + $0x38] sm:$0xff] %vm1279, %v3159
        %3169 = vrot.lane.b32.xlu0 %v345, 48
        %v3170 = vpop.permute.xlu0 %3169
        %3171 = vrot.lane.b32.xlu0 %v348, 48
        %v3172 = vpop.permute.xlu0 %3171
        %3173 = vrot.lane.b32.xlu0 %v351, 48
        %v3174 = vpop.permute.xlu0 %3173
        %3175 = vrot.lane.b32.xlu0 %v354, 48
        %v3176 = vpop.permute.xlu0 %3175
        %3177 = vrot.lane.b32.xlu0 %v357, 48
        %v3178 = vpop.permute.xlu0 %3177
        %3179 = vrot.lane.b32.xlu0 %v360, 48
        %v3180 = vpop.permute.xlu0 %3179
        %3181 = vrot.lane.b32.xlu0 %v363, 48
        %v3182 = vpop.permute.xlu0 %3181
        %3183 = vrot.lane.b32.xlu0 %v366, 48
        %v3184 = vpop.permute.xlu0 %3183
        %v3185 = vsel %vm539, %v3170, 0
        %v3187 = vsel %vm539, %v3172, 0
        %v3189 = vsel %vm539, %v3174, 0
        %v3191 = vsel %vm539, %v3176, 0
        %v3193 = vsel %vm539, %v3178, 0
        %v3195 = vsel %vm539, %v3180, 0
        %v3197 = vsel %vm539, %v3182, 0
        %v3199 = vsel %vm539, %v3184, 0
        %3201 = vmatpush.msra.mxu0 0.0
        %3202 = vmatpush.msra.mxu0 0.0
        %3203 = vmatpush.msra.mxu0 0.0
        %3204 = vmatpush.msra.mxu0 0.0
        %3205 = vmatpush.msra.mxu0 0.0
        %3206 = vmatpush.msra.mxu0 0.0
        %3207 = vmatpush.msra.mxu0 0.0
        %3208 = vmatpush.msra.mxu0 0.0
        %3209 = vmatpush.msra.mxu0 0.0
        %3210 = vmatpush.msra.mxu0 0.0
        %3211 = vmatpush.msra.mxu0 0.0
        %3212 = vmatpush.msra.mxu0 0.0
        %3213 = vmatpush.msra.mxu0 0.0
        %3214 = vmatpush.msra.mxu0 0.0
        %3215 = vmatpush.msra.mxu0 0.0
        %3216 = vmatpush.msra.mxu0 %v370
        %3217 = vmatmul.f32.gmra.mxu0 %v3185
        %v3218 = vpop.f32.mrf.mxu0
        %v3219 = vadd.f32 0.0, %v3218
        %3220 = vmatmul.f32.gmra.mxu0 %v3187
        %v3221 = vpop.f32.mrf.mxu0
        %v3222 = vadd.f32 0.0, %v3221
        %3223 = vmatmul.f32.gmra.mxu0 %v3189
        %v3224 = vpop.f32.mrf.mxu0
        %v3225 = vadd.f32 0.0, %v3224
        %3226 = vmatmul.f32.gmra.mxu0 %v3191
        %v3227 = vpop.f32.mrf.mxu0
        %v3228 = vadd.f32 0.0, %v3227
        %3229 = vmatmul.f32.gmra.mxu0 %v3193
        %v3230 = vpop.f32.mrf.mxu0
        %v3231 = vadd.f32 0.0, %v3230
        %3232 = vmatmul.f32.gmra.mxu0 %v3195
        %v3233 = vpop.f32.mrf.mxu0
        %v3234 = vadd.f32 0.0, %v3233
        %3235 = vmatmul.f32.gmra.mxu0 %v3197
        %v3236 = vpop.f32.mrf.mxu0
        %v3237 = vadd.f32 0.0, %v3236
        %3238 = vmatmul.f32.gmra.mxu0 %v3199
        %v3239 = vpop.f32.mrf.mxu0
        %v3240 = vadd.f32 0.0, %v3239
        %3241 = vdwg.mxu0
        %s3242 = scalar_lea.vmem [#allocation3], 128
        %3243 = vst.msk [vmem:[%s3242] sm:$0xff] %vm1279, %v3219
        %3244 = vst.msk [vmem:[%s3242 + $0x8] sm:$0xff] %vm1279, %v3222
        %3245 = vst.msk [vmem:[%s3242 + $0x10] sm:$0xff] %vm1279, %v3225
        %3246 = vst.msk [vmem:[%s3242 + $0x18] sm:$0xff] %vm1279, %v3228
        %3247 = vst.msk [vmem:[%s3242 + $0x20] sm:$0xff] %vm1279, %v3231
        %3248 = vst.msk [vmem:[%s3242 + $0x28] sm:$0xff] %vm1279, %v3234
        %3249 = vst.msk [vmem:[%s3242 + $0x30] sm:$0xff] %vm1279, %v3237
        %3250 = vst.msk [vmem:[%s3242 + $0x38] sm:$0xff] %vm1279, %v3240
        %v3251 = vmul.f32 %v3152, %v507
        %v3252 = vmul.f32 %v3153, %v508
        %v3253 = vmul.f32 %v3154, %v509
        %v3254 = vmul.f32 %v3155, %v510
        %v3255 = vmul.f32 %v3156, %v511
        %v3256 = vmul.f32 %v3157, %v512
        %v3257 = vmul.f32 %v3158, %v513
        %v3258 = vmul.f32 %v3159, %v514
        %v3268 = vsel %vm1279, %v3251, 0
        %v3271 = vsel %vm1279, %v3252, 0
        %v3274 = vsel %vm1279, %v3253, 0
        %v3277 = vsel %vm1279, %v3254, 0
        %v3280 = vsel %vm1279, %v3255, 0
        %v3283 = vsel %vm1279, %v3256, 0
        %v3286 = vsel %vm1279, %v3257, 0
        %v3289 = vsel %vm1279, %v3258, 0
        %3291 = vmatpush.msra.mxu0 0.0
        %3292 = vmatpush.msra.mxu0 0.0
        %3293 = vmatpush.msra.mxu0 0.0
        %3294 = vmatpush.msra.mxu0 0.0
        %3295 = vmatpush.msra.mxu0 0.0
        %3296 = vmatpush.msra.mxu0 0.0
        %3297 = vmatpush.msra.mxu0 0.0
        %3298 = vmatpush.msra.mxu0 0.0
        %3299 = vmatpush.msra.mxu0 %v3184
        %3300 = vmatpush.msra.mxu0 %v3182
        %3301 = vmatpush.msra.mxu0 %v3180
        %3302 = vmatpush.msra.mxu0 %v3178
        %3303 = vmatpush.msra.mxu0 %v3176
        %3304 = vmatpush.msra.mxu0 %v3174
        %3305 = vmatpush.msra.mxu0 %v3172
        %3306 = vmatpush.msra.mxu0 %v3170
        %3307 = vmatmul.f32.gmra.mxu0 %v3268
        %v3308 = vpop.f32.mrf.mxu0
        %v3309 = vadd.f32 0.0, %v3308
        %3310 = vmatmul.f32.gmra.mxu0 %v3271
        %v3311 = vpop.f32.mrf.mxu0
        %v3312 = vadd.f32 0.0, %v3311
        %3313 = vmatmul.f32.gmra.mxu0 %v3274
        %v3314 = vpop.f32.mrf.mxu0
        %v3315 = vadd.f32 0.0, %v3314
        %3316 = vmatmul.f32.gmra.mxu0 %v3277
        %v3317 = vpop.f32.mrf.mxu0
        %v3318 = vadd.f32 0.0, %v3317
        %3319 = vmatmul.f32.gmra.mxu0 %v3280
        %v3320 = vpop.f32.mrf.mxu0
        %v3321 = vadd.f32 0.0, %v3320
        %3322 = vmatmul.f32.gmra.mxu0 %v3283
        %v3323 = vpop.f32.mrf.mxu0
        %v3324 = vadd.f32 0.0, %v3323
        %3325 = vmatmul.f32.gmra.mxu0 %v3286
        %v3326 = vpop.f32.mrf.mxu0
        %v3327 = vadd.f32 0.0, %v3326
        %3328 = vmatmul.f32.gmra.mxu0 %v3289
        %v3329 = vpop.f32.mrf.mxu0
        %v3330 = vadd.f32 0.0, %v3329
        %3331 = vdwg.mxu0
        %3332 = vrot.lane.b32.xlu0 %v345, 104
        %v3333 = vpop.permute.xlu0 %3332
        %3334 = vrot.lane.b32.xlu0 %v348, 104
        %v3335 = vpop.permute.xlu0 %3334
        %3336 = vrot.lane.b32.xlu0 %v351, 104
        %v3337 = vpop.permute.xlu0 %3336
        %3338 = vrot.lane.b32.xlu0 %v354, 104
        %v3339 = vpop.permute.xlu0 %3338
        %3340 = vrot.lane.b32.xlu0 %v357, 104
        %v3341 = vpop.permute.xlu0 %3340
        %3342 = vrot.lane.b32.xlu0 %v360, 104
        %v3343 = vpop.permute.xlu0 %3342
        %3344 = vrot.lane.b32.xlu0 %v363, 104
        %v3345 = vpop.permute.xlu0 %3344
        %3346 = vrot.lane.b32.xlu0 %v366, 104
        %v3347 = vpop.permute.xlu0 %3346
        %3348 = vrot.lane.b32.xlu0 %v345, 72
        %v3349 = vpop.permute.xlu0 %3348
        %3350 = vrot.lane.b32.xlu0 %v348, 72
        %v3351 = vpop.permute.xlu0 %3350
        %3352 = vrot.lane.b32.xlu0 %v351, 72
        %v3353 = vpop.permute.xlu0 %3352
        %3354 = vrot.lane.b32.xlu0 %v354, 72
        %v3355 = vpop.permute.xlu0 %3354
        %3356 = vrot.lane.b32.xlu0 %v357, 72
        %v3357 = vpop.permute.xlu0 %3356
        %3358 = vrot.lane.b32.xlu0 %v360, 72
        %v3359 = vpop.permute.xlu0 %3358
        %3360 = vrot.lane.b32.xlu0 %v363, 72
        %v3361 = vpop.permute.xlu0 %3360
        %3362 = vrot.lane.b32.xlu0 %v366, 72
        %v3363 = vpop.permute.xlu0 %3362
        %v3364 = vsel %vm539, %v3333, 0
        %v3366 = vsel %vm539, %v3335, 0
        %v3368 = vsel %vm539, %v3337, 0
        %v3370 = vsel %vm539, %v3339, 0
        %v3372 = vsel %vm539, %v3341, 0
        %v3374 = vsel %vm539, %v3343, 0
        %v3376 = vsel %vm539, %v3345, 0
        %v3378 = vsel %vm539, %v3347, 0
        %v3380 = vsel %vm539, %v3349, 0
        %v3382 = vsel %vm539, %v3351, 0
        %v3384 = vsel %vm539, %v3353, 0
        %v3386 = vsel %vm539, %v3355, 0
        %v3388 = vsel %vm539, %v3357, 0
        %v3390 = vsel %vm539, %v3359, 0
        %v3392 = vsel %vm539, %v3361, 0
        %v3394 = vsel %vm539, %v3363, 0
        %3396 = vmatpush.xpose.msra.mxu0 0.0
        %3397 = vmatpush.xpose.msra.mxu0 0.0
        %3398 = vmatpush.xpose.msra.mxu0 0.0
        %3399 = vmatpush.xpose.msra.mxu0 0.0
        %3400 = vmatpush.xpose.msra.mxu0 0.0
        %3401 = vmatpush.xpose.msra.mxu0 0.0
        %3402 = vmatpush.xpose.msra.mxu0 0.0
        %3403 = vmatpush.xpose.msra.mxu0 0.0
        %3404 = vmatpush.xpose.msra.mxu0 %v3394
        %3405 = vmatpush.xpose.msra.mxu0 %v3392
        %3406 = vmatpush.xpose.msra.mxu0 %v3390
        %3407 = vmatpush.xpose.msra.mxu0 %v3388
        %3408 = vmatpush.xpose.msra.mxu0 %v3386
        %3409 = vmatpush.xpose.msra.mxu0 %v3384
        %3410 = vmatpush.xpose.msra.mxu0 %v3382
        %3411 = vmatpush.xpose.msra.mxu0 %v3380
        %3412 = vmatmul.f32.gmra.mxu0 %v3364
        %v3413 = vpop.f32.mrf.mxu0
        %v3414 = vadd.f32 0.0, %v3413
        %3415 = vmatmul.f32.gmra.mxu0 %v3366
        %v3416 = vpop.f32.mrf.mxu0
        %v3417 = vadd.f32 0.0, %v3416
        %3418 = vmatmul.f32.gmra.mxu0 %v3368
        %v3419 = vpop.f32.mrf.mxu0
        %v3420 = vadd.f32 0.0, %v3419
        %3421 = vmatmul.f32.gmra.mxu0 %v3370
        %v3422 = vpop.f32.mrf.mxu0
        %v3423 = vadd.f32 0.0, %v3422
        %3424 = vmatmul.f32.gmra.mxu0 %v3372
        %v3425 = vpop.f32.mrf.mxu0
        %v3426 = vadd.f32 0.0, %v3425
        %3427 = vmatmul.f32.gmra.mxu0 %v3374
        %v3428 = vpop.f32.mrf.mxu0
        %v3429 = vadd.f32 0.0, %v3428
        %3430 = vmatmul.f32.gmra.mxu0 %v3376
        %v3431 = vpop.f32.mrf.mxu0
        %v3432 = vadd.f32 0.0, %v3431
        %3433 = vmatmul.f32.gmra.mxu0 %v3378
        %v3434 = vpop.f32.mrf.mxu0
        %v3435 = vadd.f32 0.0, %v3434
        %3436 = vdwg.mxu0
        %v3437 = vmul.f32 %v3414, 0.35355338
        %v3438 = vmul.f32 %v3417, 0.35355338
        %v3439 = vmul.f32 %v3420, 0.35355338
        %v3440 = vmul.f32 %v3423, 0.35355338
        %v3441 = vmul.f32 %v3426, 0.35355338
        %v3442 = vmul.f32 %v3429, 0.35355338
        %v3443 = vmul.f32 %v3432, 0.35355338
        %v3444 = vmul.f32 %v3435, 0.35355338
        %3453 = vrot.lane.b32.xlu0 %v3437, 112
        %v3454 = vpop.permute.xlu0 %3453
        %3455 = vrot.lane.b32.xlu0 %v3438, 112
        %v3456 = vpop.permute.xlu0 %3455
        %3457 = vrot.lane.b32.xlu0 %v3439, 112
        %v3458 = vpop.permute.xlu0 %3457
        %3459 = vrot.lane.b32.xlu0 %v3440, 112
        %v3460 = vpop.permute.xlu0 %3459
        %3461 = vrot.lane.b32.xlu0 %v3441, 112
        %v3462 = vpop.permute.xlu0 %3461
        %3463 = vrot.lane.b32.xlu0 %v3442, 112
        %v3464 = vpop.permute.xlu0 %3463
        %3465 = vrot.lane.b32.xlu0 %v3443, 112
        %v3466 = vpop.permute.xlu0 %3465
        %3467 = vrot.lane.b32.xlu0 %v3444, 112
        %v3468 = vpop.permute.xlu0 %3467
        %v3477 = vmax.f32 %v3437, %v3454
        %v3478 = vmax.f32 %v3438, %v3456
        %v3479 = vmax.f32 %v3439, %v3458
        %v3480 = vmax.f32 %v3440, %v3460
        %v3481 = vmax.f32 %v3441, %v3462
        %v3482 = vmax.f32 %v3442, %v3464
        %v3483 = vmax.f32 %v3443, %v3466
        %v3484 = vmax.f32 %v3444, %v3468
        %3485 = vrot.lane.b32.xlu0 %v3437, 96
        %v3486 = vpop.permute.xlu0 %3485
        %3487 = vrot.lane.b32.xlu0 %v3438, 96
        %v3488 = vpop.permute.xlu0 %3487
        %3489 = vrot.lane.b32.xlu0 %v3439, 96
        %v3490 = vpop.permute.xlu0 %3489
        %3491 = vrot.lane.b32.xlu0 %v3440, 96
        %v3492 = vpop.permute.xlu0 %3491
        %3493 = vrot.lane.b32.xlu0 %v3441, 96
        %v3494 = vpop.permute.xlu0 %3493
        %3495 = vrot.lane.b32.xlu0 %v3442, 96
        %v3496 = vpop.permute.xlu0 %3495
        %3497 = vrot.lane.b32.xlu0 %v3443, 96
        %v3498 = vpop.permute.xlu0 %3497
        %3499 = vrot.lane.b32.xlu0 %v3444, 96
        %v3500 = vpop.permute.xlu0 %3499
        %v3509 = vmax.f32 %v3477, %v3486
        %v3510 = vmax.f32 %v3478, %v3488
        %v3511 = vmax.f32 %v3479, %v3490
        %v3512 = vmax.f32 %v3480, %v3492
        %v3513 = vmax.f32 %v3481, %v3494
        %v3514 = vmax.f32 %v3482, %v3496
        %v3515 = vmax.f32 %v3483, %v3498
        %v3516 = vmax.f32 %v3484, %v3500
        %3517 = vrot.lane.b32.xlu0 %v3437, 80
        %v3518 = vpop.permute.xlu0 %3517
        %3519 = vrot.lane.b32.xlu0 %v3438, 80
        %v3520 = vpop.permute.xlu0 %3519
        %3521 = vrot.lane.b32.xlu0 %v3439, 80
        %v3522 = vpop.permute.xlu0 %3521
        %3523 = vrot.lane.b32.xlu0 %v3440, 80
        %v3524 = vpop.permute.xlu0 %3523
        %3525 = vrot.lane.b32.xlu0 %v3441, 80
        %v3526 = vpop.permute.xlu0 %3525
        %3527 = vrot.lane.b32.xlu0 %v3442, 80
        %v3528 = vpop.permute.xlu0 %3527
        %3529 = vrot.lane.b32.xlu0 %v3443, 80
        %v3530 = vpop.permute.xlu0 %3529
        %3531 = vrot.lane.b32.xlu0 %v3444, 80
        %v3532 = vpop.permute.xlu0 %3531
        %v3541 = vmax.f32 %v3509, %v3518
        %v3542 = vmax.f32 %v3510, %v3520
        %v3543 = vmax.f32 %v3511, %v3522
        %v3544 = vmax.f32 %v3512, %v3524
        %v3545 = vmax.f32 %v3513, %v3526
        %v3546 = vmax.f32 %v3514, %v3528
        %v3547 = vmax.f32 %v3515, %v3530
        %v3548 = vmax.f32 %v3516, %v3532
        %v3549 = vsub.f32 %v3437, %v3541
        %v3550 = vsub.f32 %v3438, %v3542
        %v3551 = vsub.f32 %v3439, %v3543
        %v3552 = vsub.f32 %v3440, %v3544
        %v3553 = vsub.f32 %v3441, %v3545
        %v3554 = vsub.f32 %v3442, %v3546
        %v3555 = vsub.f32 %v3443, %v3547
        %v3556 = vsub.f32 %v3444, %v3548
        %v3557 = vmul.f32 %v3549, 1.442695
        %v3558 = vpow.pop %v3557
        %v3559 = vmul.f32 %v3550, 1.442695
        %v3560 = vpow.pop %v3559
        %v3561 = vmul.f32 %v3551, 1.442695
        %v3562 = vpow.pop %v3561
        %v3563 = vmul.f32 %v3552, 1.442695
        %v3564 = vpow.pop %v3563
        %v3565 = vmul.f32 %v3553, 1.442695
        %v3566 = vpow.pop %v3565
        %v3567 = vmul.f32 %v3554, 1.442695
        %v3568 = vpow.pop %v3567
        %v3569 = vmul.f32 %v3555, 1.442695
        %v3570 = vpow.pop %v3569
        %v3571 = vmul.f32 %v3556, 1.442695
        %v3572 = vpow.pop %v3571
        %3581 = vrot.lane.b32.xlu0 %v3541, 16
        %v3582 = vpop.permute.xlu0 %3581
        %3583 = vrot.lane.b32.xlu0 %v3542, 16
        %v3584 = vpop.permute.xlu0 %3583
        %3585 = vrot.lane.b32.xlu0 %v3543, 16
        %v3586 = vpop.permute.xlu0 %3585
        %3587 = vrot.lane.b32.xlu0 %v3544, 16
        %v3588 = vpop.permute.xlu0 %3587
        %3589 = vrot.lane.b32.xlu0 %v3545, 16
        %v3590 = vpop.permute.xlu0 %3589
        %3591 = vrot.lane.b32.xlu0 %v3546, 16
        %v3592 = vpop.permute.xlu0 %3591
        %3593 = vrot.lane.b32.xlu0 %v3547, 16
        %v3594 = vpop.permute.xlu0 %3593
        %3595 = vrot.lane.b32.xlu0 %v3548, 16
        %v3596 = vpop.permute.xlu0 %3595
        %v3605 = vsub.f32 %v3437, %v3582
        %v3606 = vsub.f32 %v3438, %v3584
        %v3607 = vsub.f32 %v3439, %v3586
        %v3608 = vsub.f32 %v3440, %v3588
        %v3609 = vsub.f32 %v3441, %v3590
        %v3610 = vsub.f32 %v3442, %v3592
        %v3611 = vsub.f32 %v3443, %v3594
        %v3612 = vsub.f32 %v3444, %v3596
        %v3613 = vmul.f32 %v3605, 1.442695
        %v3614 = vpow.pop %v3613
        %v3615 = vmul.f32 %v3606, 1.442695
        %v3616 = vpow.pop %v3615
        %v3617 = vmul.f32 %v3607, 1.442695
        %v3618 = vpow.pop %v3617
        %v3619 = vmul.f32 %v3608, 1.442695
        %v3620 = vpow.pop %v3619
        %v3621 = vmul.f32 %v3609, 1.442695
        %v3622 = vpow.pop %v3621
        %v3623 = vmul.f32 %v3610, 1.442695
        %v3624 = vpow.pop %v3623
        %v3625 = vmul.f32 %v3611, 1.442695
        %v3626 = vpow.pop %v3625
        %v3627 = vmul.f32 %v3612, 1.442695
        %v3628 = vpow.pop %v3627
        %3629 = vrot.lane.b32.xlu0 %v3541, 32
        %v3630 = vpop.permute.xlu0 %3629
        %3631 = vrot.lane.b32.xlu0 %v3542, 32
        %v3632 = vpop.permute.xlu0 %3631
        %3633 = vrot.lane.b32.xlu0 %v3543, 32
        %v3634 = vpop.permute.xlu0 %3633
        %3635 = vrot.lane.b32.xlu0 %v3544, 32
        %v3636 = vpop.permute.xlu0 %3635
        %3637 = vrot.lane.b32.xlu0 %v3545, 32
        %v3638 = vpop.permute.xlu0 %3637
        %3639 = vrot.lane.b32.xlu0 %v3546, 32
        %v3640 = vpop.permute.xlu0 %3639
        %3641 = vrot.lane.b32.xlu0 %v3547, 32
        %v3642 = vpop.permute.xlu0 %3641
        %3643 = vrot.lane.b32.xlu0 %v3548, 32
        %v3644 = vpop.permute.xlu0 %3643
        %v3653 = vsub.f32 %v3437, %v3630
        %v3654 = vsub.f32 %v3438, %v3632
        %v3655 = vsub.f32 %v3439, %v3634
        %v3656 = vsub.f32 %v3440, %v3636
        %v3657 = vsub.f32 %v3441, %v3638
        %v3658 = vsub.f32 %v3442, %v3640
        %v3659 = vsub.f32 %v3443, %v3642
        %v3660 = vsub.f32 %v3444, %v3644
        %v3661 = vmul.f32 %v3653, 1.442695
        %v3662 = vpow.pop %v3661
        %v3663 = vmul.f32 %v3654, 1.442695
        %v3664 = vpow.pop %v3663
        %v3665 = vmul.f32 %v3655, 1.442695
        %v3666 = vpow.pop %v3665
        %v3667 = vmul.f32 %v3656, 1.442695
        %v3668 = vpow.pop %v3667
        %v3669 = vmul.f32 %v3657, 1.442695
        %v3670 = vpow.pop %v3669
        %v3671 = vmul.f32 %v3658, 1.442695
        %v3672 = vpow.pop %v3671
        %v3673 = vmul.f32 %v3659, 1.442695
        %v3674 = vpow.pop %v3673
        %v3675 = vmul.f32 %v3660, 1.442695
        %v3676 = vpow.pop %v3675
        %3677 = vrot.lane.b32.xlu0 %v3541, 48
        %v3678 = vpop.permute.xlu0 %3677
        %3679 = vrot.lane.b32.xlu0 %v3542, 48
        %v3680 = vpop.permute.xlu0 %3679
        %3681 = vrot.lane.b32.xlu0 %v3543, 48
        %v3682 = vpop.permute.xlu0 %3681
        %3683 = vrot.lane.b32.xlu0 %v3544, 48
        %v3684 = vpop.permute.xlu0 %3683
        %3685 = vrot.lane.b32.xlu0 %v3545, 48
        %v3686 = vpop.permute.xlu0 %3685
        %3687 = vrot.lane.b32.xlu0 %v3546, 48
        %v3688 = vpop.permute.xlu0 %3687
        %3689 = vrot.lane.b32.xlu0 %v3547, 48
        %v3690 = vpop.permute.xlu0 %3689
        %3691 = vrot.lane.b32.xlu0 %v3548, 48
        %v3692 = vpop.permute.xlu0 %3691
        %v3701 = vsub.f32 %v3437, %v3678
        %v3702 = vsub.f32 %v3438, %v3680
        %v3703 = vsub.f32 %v3439, %v3682
        %v3704 = vsub.f32 %v3440, %v3684
        %v3705 = vsub.f32 %v3441, %v3686
        %v3706 = vsub.f32 %v3442, %v3688
        %v3707 = vsub.f32 %v3443, %v3690
        %v3708 = vsub.f32 %v3444, %v3692
        %v3709 = vmul.f32 %v3701, 1.442695
        %v3710 = vpow.pop %v3709
        %v3711 = vmul.f32 %v3702, 1.442695
        %v3712 = vpow.pop %v3711
        %v3713 = vmul.f32 %v3703, 1.442695
        %v3714 = vpow.pop %v3713
        %v3715 = vmul.f32 %v3704, 1.442695
        %v3716 = vpow.pop %v3715
        %v3717 = vmul.f32 %v3705, 1.442695
        %v3718 = vpow.pop %v3717
        %v3719 = vmul.f32 %v3706, 1.442695
        %v3720 = vpow.pop %v3719
        %v3721 = vmul.f32 %v3707, 1.442695
        %v3722 = vpow.pop %v3721
        %v3723 = vmul.f32 %v3708, 1.442695
        %v3724 = vpow.pop %v3723
        %3733 = vrot.lane.b32.xlu0 %v3614, 112
        %v3734 = vpop.permute.xlu0 %3733
        %3735 = vrot.lane.b32.xlu0 %v3616, 112
        %v3736 = vpop.permute.xlu0 %3735
        %3737 = vrot.lane.b32.xlu0 %v3618, 112
        %v3738 = vpop.permute.xlu0 %3737
        %3739 = vrot.lane.b32.xlu0 %v3620, 112
        %v3740 = vpop.permute.xlu0 %3739
        %3741 = vrot.lane.b32.xlu0 %v3622, 112
        %v3742 = vpop.permute.xlu0 %3741
        %3743 = vrot.lane.b32.xlu0 %v3624, 112
        %v3744 = vpop.permute.xlu0 %3743
        %3745 = vrot.lane.b32.xlu0 %v3626, 112
        %v3746 = vpop.permute.xlu0 %3745
        %3747 = vrot.lane.b32.xlu0 %v3628, 112
        %v3748 = vpop.permute.xlu0 %3747
        %v3757 = vadd.f32 %v3558, %v3734
        %v3758 = vadd.f32 %v3560, %v3736
        %v3759 = vadd.f32 %v3562, %v3738
        %v3760 = vadd.f32 %v3564, %v3740
        %v3761 = vadd.f32 %v3566, %v3742
        %v3762 = vadd.f32 %v3568, %v3744
        %v3763 = vadd.f32 %v3570, %v3746
        %v3764 = vadd.f32 %v3572, %v3748
        %3773 = vrot.lane.b32.xlu0 %v3662, 96
        %v3774 = vpop.permute.xlu0 %3773
        %3775 = vrot.lane.b32.xlu0 %v3664, 96
        %v3776 = vpop.permute.xlu0 %3775
        %3777 = vrot.lane.b32.xlu0 %v3666, 96
        %v3778 = vpop.permute.xlu0 %3777
        %3779 = vrot.lane.b32.xlu0 %v3668, 96
        %v3780 = vpop.permute.xlu0 %3779
        %3781 = vrot.lane.b32.xlu0 %v3670, 96
        %v3782 = vpop.permute.xlu0 %3781
        %3783 = vrot.lane.b32.xlu0 %v3672, 96
        %v3784 = vpop.permute.xlu0 %3783
        %3785 = vrot.lane.b32.xlu0 %v3674, 96
        %v3786 = vpop.permute.xlu0 %3785
        %3787 = vrot.lane.b32.xlu0 %v3676, 96
        %v3788 = vpop.permute.xlu0 %3787
        %v3797 = vadd.f32 %v3757, %v3774
        %v3798 = vadd.f32 %v3758, %v3776
        %v3799 = vadd.f32 %v3759, %v3778
        %v3800 = vadd.f32 %v3760, %v3780
        %v3801 = vadd.f32 %v3761, %v3782
        %v3802 = vadd.f32 %v3762, %v3784
        %v3803 = vadd.f32 %v3763, %v3786
        %v3804 = vadd.f32 %v3764, %v3788
        %3813 = vrot.lane.b32.xlu0 %v3710, 80
        %v3814 = vpop.permute.xlu0 %3813
        %3815 = vrot.lane.b32.xlu0 %v3712, 80
        %v3816 = vpop.permute.xlu0 %3815
        %3817 = vrot.lane.b32.xlu0 %v3714, 80
        %v3818 = vpop.permute.xlu0 %3817
        %3819 = vrot.lane.b32.xlu0 %v3716, 80
        %v3820 = vpop.permute.xlu0 %3819
        %3821 = vrot.lane.b32.xlu0 %v3718, 80
        %v3822 = vpop.permute.xlu0 %3821
        %3823 = vrot.lane.b32.xlu0 %v3720, 80
        %v3824 = vpop.permute.xlu0 %3823
        %3825 = vrot.lane.b32.xlu0 %v3722, 80
        %v3826 = vpop.permute.xlu0 %3825
        %3827 = vrot.lane.b32.xlu0 %v3724, 80
        %v3828 = vpop.permute.xlu0 %3827
        %v3837 = vadd.f32 %v3797, %v3814
        %v3838 = vadd.f32 %v3798, %v3816
        %v3839 = vadd.f32 %v3799, %v3818
        %v3840 = vadd.f32 %v3800, %v3820
        %v3841 = vadd.f32 %v3801, %v3822
        %v3842 = vadd.f32 %v3802, %v3824
        %v3843 = vadd.f32 %v3803, %v3826
        %v3844 = vadd.f32 %v3804, %v3828
        %v3845 = vrcp.pop %v3837
        %v3846 = vmul.f32 %v3837, %v3845
        %v3847 = vsub.f32 1.0, %v3846
        %v3848 = vmul.f32 %v3845, %v3847
        %v3849 = vadd.f32 %v3845, %v3848
        %vm3850 = vweird.f32 %v3837
        %vm3851 = vweird.f32 %v3845
        %vm3852 = vmor %vm3850, %vm3851
        %v3853 = vsel %vm3852, %v3845, %v3849
        %v3854 = vand.u32 2147483647, %v3837
        %vm3855 = vcmp.eq.f32.partialorder %v3854, 8.507059e+37
        %v3856 = vand.u32 %v3837, 2147483648
        %v3857 = vor.u32 1.1754944e-38, %v3856
        %v3858 = vsel %vm3855, %v3857, %v3853
        %v3859 = vmul.f32 1.0, %v3858
        %v3860 = vrcp.pop %v3838
        %v3861 = vmul.f32 %v3838, %v3860
        %v3862 = vsub.f32 1.0, %v3861
        %v3863 = vmul.f32 %v3860, %v3862
        %v3864 = vadd.f32 %v3860, %v3863
        %vm3865 = vweird.f32 %v3838
        %vm3866 = vweird.f32 %v3860
        %vm3867 = vmor %vm3865, %vm3866
        %v3868 = vsel %vm3867, %v3860, %v3864
        %v3869 = vand.u32 2147483647, %v3838
        %vm3870 = vcmp.eq.f32.partialorder %v3869, 8.507059e+37
        %v3871 = vand.u32 %v3838, 2147483648
        %v3872 = vor.u32 1.1754944e-38, %v3871
        %v3873 = vsel %vm3870, %v3872, %v3868
        %v3874 = vmul.f32 1.0, %v3873
        %v3875 = vrcp.pop %v3839
        %v3876 = vmul.f32 %v3839, %v3875
        %v3877 = vsub.f32 1.0, %v3876
        %v3878 = vmul.f32 %v3875, %v3877
        %v3879 = vadd.f32 %v3875, %v3878
        %vm3880 = vweird.f32 %v3839
        %vm3881 = vweird.f32 %v3875
        %vm3882 = vmor %vm3880, %vm3881
        %v3883 = vsel %vm3882, %v3875, %v3879
        %v3884 = vand.u32 2147483647, %v3839
        %vm3885 = vcmp.eq.f32.partialorder %v3884, 8.507059e+37
        %v3886 = vand.u32 %v3839, 2147483648
        %v3887 = vor.u32 1.1754944e-38, %v3886
        %v3888 = vsel %vm3885, %v3887, %v3883
        %v3889 = vmul.f32 1.0, %v3888
        %v3890 = vrcp.pop %v3840
        %v3891 = vmul.f32 %v3840, %v3890
        %v3892 = vsub.f32 1.0, %v3891
        %v3893 = vmul.f32 %v3890, %v3892
        %v3894 = vadd.f32 %v3890, %v3893
        %vm3895 = vweird.f32 %v3840
        %vm3896 = vweird.f32 %v3890
        %vm3897 = vmor %vm3895, %vm3896
        %v3898 = vsel %vm3897, %v3890, %v3894
        %v3899 = vand.u32 2147483647, %v3840
        %vm3900 = vcmp.eq.f32.partialorder %v3899, 8.507059e+37
        %v3901 = vand.u32 %v3840, 2147483648
        %v3902 = vor.u32 1.1754944e-38, %v3901
        %v3903 = vsel %vm3900, %v3902, %v3898
        %v3904 = vmul.f32 1.0, %v3903
        %v3905 = vrcp.pop %v3841
        %v3906 = vmul.f32 %v3841, %v3905
        %v3907 = vsub.f32 1.0, %v3906
        %v3908 = vmul.f32 %v3905, %v3907
        %v3909 = vadd.f32 %v3905, %v3908
        %vm3910 = vweird.f32 %v3841
        %vm3911 = vweird.f32 %v3905
        %vm3912 = vmor %vm3910, %vm3911
        %v3913 = vsel %vm3912, %v3905, %v3909
        %v3914 = vand.u32 2147483647, %v3841
        %vm3915 = vcmp.eq.f32.partialorder %v3914, 8.507059e+37
        %v3916 = vand.u32 %v3841, 2147483648
        %v3917 = vor.u32 1.1754944e-38, %v3916
        %v3918 = vsel %vm3915, %v3917, %v3913
        %v3919 = vmul.f32 1.0, %v3918
        %v3920 = vrcp.pop %v3842
        %v3921 = vmul.f32 %v3842, %v3920
        %v3922 = vsub.f32 1.0, %v3921
        %v3923 = vmul.f32 %v3920, %v3922
        %v3924 = vadd.f32 %v3920, %v3923
        %vm3925 = vweird.f32 %v3842
        %vm3926 = vweird.f32 %v3920
        %vm3927 = vmor %vm3925, %vm3926
        %v3928 = vsel %vm3927, %v3920, %v3924
        %v3929 = vand.u32 2147483647, %v3842
        %vm3930 = vcmp.eq.f32.partialorder %v3929, 8.507059e+37
        %v3931 = vand.u32 %v3842, 2147483648
        %v3932 = vor.u32 1.1754944e-38, %v3931
        %v3933 = vsel %vm3930, %v3932, %v3928
        %v3934 = vmul.f32 1.0, %v3933
        %v3935 = vrcp.pop %v3843
        %v3936 = vmul.f32 %v3843, %v3935
        %v3937 = vsub.f32 1.0, %v3936
        %v3938 = vmul.f32 %v3935, %v3937
        %v3939 = vadd.f32 %v3935, %v3938
        %vm3940 = vweird.f32 %v3843
        %vm3941 = vweird.f32 %v3935
        %vm3942 = vmor %vm3940, %vm3941
        %v3943 = vsel %vm3942, %v3935, %v3939
        %v3944 = vand.u32 2147483647, %v3843
        %vm3945 = vcmp.eq.f32.partialorder %v3944, 8.507059e+37
        %v3946 = vand.u32 %v3843, 2147483648
        %v3947 = vor.u32 1.1754944e-38, %v3946
        %v3948 = vsel %vm3945, %v3947, %v3943
        %v3949 = vmul.f32 1.0, %v3948
        %v3950 = vrcp.pop %v3844
        %v3951 = vmul.f32 %v3844, %v3950
        %v3952 = vsub.f32 1.0, %v3951
        %v3953 = vmul.f32 %v3950, %v3952
        %v3954 = vadd.f32 %v3950, %v3953
        %vm3955 = vweird.f32 %v3844
        %vm3956 = vweird.f32 %v3950
        %vm3957 = vmor %vm3955, %vm3956
        %v3958 = vsel %vm3957, %v3950, %v3954
        %v3959 = vand.u32 2147483647, %v3844
        %vm3960 = vcmp.eq.f32.partialorder %v3959, 8.507059e+37
        %v3961 = vand.u32 %v3844, 2147483648
        %v3962 = vor.u32 1.1754944e-38, %v3961
        %v3963 = vsel %vm3960, %v3962, %v3958
        %v3964 = vmul.f32 1.0, %v3963
        %v3965 = vmul.f32 %v3558, %v3859
        %v3966 = vmul.f32 %v3560, %v3874
        %v3967 = vmul.f32 %v3562, %v3889
        %v3968 = vmul.f32 %v3564, %v3904
        %v3969 = vmul.f32 %v3566, %v3919
        %v3970 = vmul.f32 %v3568, %v3934
        %v3971 = vmul.f32 %v3570, %v3949
        %v3972 = vmul.f32 %v3572, %v3964
        %3981 = vrot.lane.b32.xlu0 %v3859, 16
        %v3982 = vpop.permute.xlu0 %3981
        %3983 = vrot.lane.b32.xlu0 %v3874, 16
        %v3984 = vpop.permute.xlu0 %3983
        %3985 = vrot.lane.b32.xlu0 %v3889, 16
        %v3986 = vpop.permute.xlu0 %3985
        %3987 = vrot.lane.b32.xlu0 %v3904, 16
        %v3988 = vpop.permute.xlu0 %3987
        %3989 = vrot.lane.b32.xlu0 %v3919, 16
        %v3990 = vpop.permute.xlu0 %3989
        %3991 = vrot.lane.b32.xlu0 %v3934, 16
        %v3992 = vpop.permute.xlu0 %3991
        %3993 = vrot.lane.b32.xlu0 %v3949, 16
        %v3994 = vpop.permute.xlu0 %3993
        %3995 = vrot.lane.b32.xlu0 %v3964, 16
        %v3996 = vpop.permute.xlu0 %3995
        %v4005 = vmul.f32 %v3614, %v3982
        %v4006 = vmul.f32 %v3616, %v3984
        %v4007 = vmul.f32 %v3618, %v3986
        %v4008 = vmul.f32 %v3620, %v3988
        %v4009 = vmul.f32 %v3622, %v3990
        %v4010 = vmul.f32 %v3624, %v3992
        %v4011 = vmul.f32 %v3626, %v3994
        %v4012 = vmul.f32 %v3628, %v3996
        %4013 = vrot.lane.b32.xlu0 %v3859, 32
        %v4014 = vpop.permute.xlu0 %4013
        %4015 = vrot.lane.b32.xlu0 %v3874, 32
        %v4016 = vpop.permute.xlu0 %4015
        %4017 = vrot.lane.b32.xlu0 %v3889, 32
        %v4018 = vpop.permute.xlu0 %4017
        %4019 = vrot.lane.b32.xlu0 %v3904, 32
        %v4020 = vpop.permute.xlu0 %4019
        %4021 = vrot.lane.b32.xlu0 %v3919, 32
        %v4022 = vpop.permute.xlu0 %4021
        %4023 = vrot.lane.b32.xlu0 %v3934, 32
        %v4024 = vpop.permute.xlu0 %4023
        %4025 = vrot.lane.b32.xlu0 %v3949, 32
        %v4026 = vpop.permute.xlu0 %4025
        %4027 = vrot.lane.b32.xlu0 %v3964, 32
        %v4028 = vpop.permute.xlu0 %4027
        %v4037 = vmul.f32 %v3662, %v4014
        %v4038 = vmul.f32 %v3664, %v4016
        %v4039 = vmul.f32 %v3666, %v4018
        %v4040 = vmul.f32 %v3668, %v4020
        %v4041 = vmul.f32 %v3670, %v4022
        %v4042 = vmul.f32 %v3672, %v4024
        %v4043 = vmul.f32 %v3674, %v4026
        %v4044 = vmul.f32 %v3676, %v4028
        %4045 = vrot.lane.b32.xlu0 %v3859, 48
        %v4046 = vpop.permute.xlu0 %4045
        %4047 = vrot.lane.b32.xlu0 %v3874, 48
        %v4048 = vpop.permute.xlu0 %4047
        %4049 = vrot.lane.b32.xlu0 %v3889, 48
        %v4050 = vpop.permute.xlu0 %4049
        %4051 = vrot.lane.b32.xlu0 %v3904, 48
        %v4052 = vpop.permute.xlu0 %4051
        %4053 = vrot.lane.b32.xlu0 %v3919, 48
        %v4054 = vpop.permute.xlu0 %4053
        %4055 = vrot.lane.b32.xlu0 %v3934, 48
        %v4056 = vpop.permute.xlu0 %4055
        %4057 = vrot.lane.b32.xlu0 %v3949, 48
        %v4058 = vpop.permute.xlu0 %4057
        %4059 = vrot.lane.b32.xlu0 %v3964, 48
        %v4060 = vpop.permute.xlu0 %4059
        %v4069 = vmul.f32 %v3710, %v4046
        %v4070 = vmul.f32 %v3712, %v4048
        %v4071 = vmul.f32 %v3714, %v4050
        %v4072 = vmul.f32 %v3716, %v4052
        %v4073 = vmul.f32 %v3718, %v4054
        %v4074 = vmul.f32 %v3720, %v4056
        %v4075 = vmul.f32 %v3722, %v4058
        %v4076 = vmul.f32 %v3724, %v4060
        %v4077 = vsel %vm1253, %v3965, %v4005
        %v4078 = vsel %vm1253, %v3966, %v4006
        %v4079 = vsel %vm1253, %v3967, %v4007
        %v4080 = vsel %vm1253, %v3968, %v4008
        %v4081 = vsel %vm1253, %v3969, %v4009
        %v4082 = vsel %vm1253, %v3970, %v4010
        %v4083 = vsel %vm1253, %v3971, %v4011
        %v4084 = vsel %vm1253, %v3972, %v4012
        %v4085 = vsel %vm302, %v4077, %v4037
        %v4086 = vsel %vm302, %v4078, %v4038
        %v4087 = vsel %vm302, %v4079, %v4039
        %v4088 = vsel %vm302, %v4080, %v4040
        %v4089 = vsel %vm302, %v4081, %v4041
        %v4090 = vsel %vm302, %v4082, %v4042
        %v4091 = vsel %vm302, %v4083, %v4043
        %v4092 = vsel %vm302, %v4084, %v4044
        %v4093 = vsel %vm1270, %v4085, %v4069
        %v4094 = vsel %vm1270, %v4086, %v4070
        %v4095 = vsel %vm1270, %v4087, %v4071
        %v4096 = vsel %vm1270, %v4088, %v4072
        %v4097 = vsel %vm1270, %v4089, %v4073
        %v4098 = vsel %vm1270, %v4090, %v4074
        %v4099 = vsel %vm1270, %v4091, %v4075
        %v4100 = vsel %vm1270, %v4092, %v4076
        %s4101 = scalar_lea.vmem [#allocation2], 192
        %4102 = vst.msk [vmem:[%s4101] sm:$0xff] %vm1279, %v4093
        %4103 = vst.msk [vmem:[%s4101 + $0x8] sm:$0xff] %vm1279, %v4094
        %4104 = vst.msk [vmem:[%s4101 + $0x10] sm:$0xff] %vm1279, %v4095
        %4105 = vst.msk [vmem:[%s4101 + $0x18] sm:$0xff] %vm1279, %v4096
        %4106 = vst.msk [vmem:[%s4101 + $0x20] sm:$0xff] %vm1279, %v4097
        %4107 = vst.msk [vmem:[%s4101 + $0x28] sm:$0xff] %vm1279, %v4098
        %4108 = vst.msk [vmem:[%s4101 + $0x30] sm:$0xff] %vm1279, %v4099
        %4109 = vst.msk [vmem:[%s4101 + $0x38] sm:$0xff] %vm1279, %v4100
        %4110 = vrot.lane.b32.xlu0 %v345, 40
        %v4111 = vpop.permute.xlu0 %4110
        %4112 = vrot.lane.b32.xlu0 %v348, 40
        %v4113 = vpop.permute.xlu0 %4112
        %4114 = vrot.lane.b32.xlu0 %v351, 40
        %v4115 = vpop.permute.xlu0 %4114
        %4116 = vrot.lane.b32.xlu0 %v354, 40
        %v4117 = vpop.permute.xlu0 %4116
        %4118 = vrot.lane.b32.xlu0 %v357, 40
        %v4119 = vpop.permute.xlu0 %4118
        %4120 = vrot.lane.b32.xlu0 %v360, 40
        %v4121 = vpop.permute.xlu0 %4120
        %4122 = vrot.lane.b32.xlu0 %v363, 40
        %v4123 = vpop.permute.xlu0 %4122
        %4124 = vrot.lane.b32.xlu0 %v366, 40
        %v4125 = vpop.permute.xlu0 %4124
        %v4126 = vsel %vm539, %v4111, 0
        %v4128 = vsel %vm539, %v4113, 0
        %v4130 = vsel %vm539, %v4115, 0
        %v4132 = vsel %vm539, %v4117, 0
        %v4134 = vsel %vm539, %v4119, 0
        %v4136 = vsel %vm539, %v4121, 0
        %v4138 = vsel %vm539, %v4123, 0
        %v4140 = vsel %vm539, %v4125, 0
        %4142 = vmatpush.msra.mxu0 0.0
        %4143 = vmatpush.msra.mxu0 0.0
        %4144 = vmatpush.msra.mxu0 0.0
        %4145 = vmatpush.msra.mxu0 0.0
        %4146 = vmatpush.msra.mxu0 0.0
        %4147 = vmatpush.msra.mxu0 0.0
        %4148 = vmatpush.msra.mxu0 0.0
        %4149 = vmatpush.msra.mxu0 0.0
        %4150 = vmatpush.msra.mxu0 0.0
        %4151 = vmatpush.msra.mxu0 0.0
        %4152 = vmatpush.msra.mxu0 0.0
        %4153 = vmatpush.msra.mxu0 0.0
        %4154 = vmatpush.msra.mxu0 0.0
        %4155 = vmatpush.msra.mxu0 0.0
        %4156 = vmatpush.msra.mxu0 0.0
        %4157 = vmatpush.msra.mxu0 %v371
        %4158 = vmatmul.f32.gmra.mxu0 %v4126
        %v4159 = vpop.f32.mrf.mxu0
        %v4160 = vadd.f32 0.0, %v4159
        %4161 = vmatmul.f32.gmra.mxu0 %v4128
        %v4162 = vpop.f32.mrf.mxu0
        %v4163 = vadd.f32 0.0, %v4162
        %4164 = vmatmul.f32.gmra.mxu0 %v4130
        %v4165 = vpop.f32.mrf.mxu0
        %v4166 = vadd.f32 0.0, %v4165
        %4167 = vmatmul.f32.gmra.mxu0 %v4132
        %v4168 = vpop.f32.mrf.mxu0
        %v4169 = vadd.f32 0.0, %v4168
        %4170 = vmatmul.f32.gmra.mxu0 %v4134
        %v4171 = vpop.f32.mrf.mxu0
        %v4172 = vadd.f32 0.0, %v4171
        %4173 = vmatmul.f32.gmra.mxu0 %v4136
        %v4174 = vpop.f32.mrf.mxu0
        %v4175 = vadd.f32 0.0, %v4174
        %4176 = vmatmul.f32.gmra.mxu0 %v4138
        %v4177 = vpop.f32.mrf.mxu0
        %v4178 = vadd.f32 0.0, %v4177
        %4179 = vmatmul.f32.gmra.mxu0 %v4140
        %v4180 = vpop.f32.mrf.mxu0
        %v4181 = vadd.f32 0.0, %v4180
        %4182 = vdwg.mxu0
        %s4183 = scalar_lea.vmem [#allocation3], 192
        %4184 = vst.msk [vmem:[%s4183] sm:$0xff] %vm1279, %v4160
        %4185 = vst.msk [vmem:[%s4183 + $0x8] sm:$0xff] %vm1279, %v4163
        %4186 = vst.msk [vmem:[%s4183 + $0x10] sm:$0xff] %vm1279, %v4166
        %4187 = vst.msk [vmem:[%s4183 + $0x18] sm:$0xff] %vm1279, %v4169
        %4188 = vst.msk [vmem:[%s4183 + $0x20] sm:$0xff] %vm1279, %v4172
        %4189 = vst.msk [vmem:[%s4183 + $0x28] sm:$0xff] %vm1279, %v4175
        %4190 = vst.msk [vmem:[%s4183 + $0x30] sm:$0xff] %vm1279, %v4178
        %4191 = vst.msk [vmem:[%s4183 + $0x38] sm:$0xff] %vm1279, %v4181
        %v4192 = vmul.f32 %v4093, %v507
        %v4193 = vmul.f32 %v4094, %v508
        %v4194 = vmul.f32 %v4095, %v509
        %v4195 = vmul.f32 %v4096, %v510
        %v4196 = vmul.f32 %v4097, %v511
        %v4197 = vmul.f32 %v4098, %v512
        %v4198 = vmul.f32 %v4099, %v513
        %v4199 = vmul.f32 %v4100, %v514
        %v4209 = vsel %vm1279, %v4192, 0
        %v4212 = vsel %vm1279, %v4193, 0
        %v4215 = vsel %vm1279, %v4194, 0
        %v4218 = vsel %vm1279, %v4195, 0
        %v4221 = vsel %vm1279, %v4196, 0
        %v4224 = vsel %vm1279, %v4197, 0
        %v4227 = vsel %vm1279, %v4198, 0
        %v4230 = vsel %vm1279, %v4199, 0
        %4232 = vmatpush.msra.mxu0 0.0
        %4233 = vmatpush.msra.mxu0 0.0
        %4234 = vmatpush.msra.mxu0 0.0
        %4235 = vmatpush.msra.mxu0 0.0
        %4236 = vmatpush.msra.mxu0 0.0
        %4237 = vmatpush.msra.mxu0 0.0
        %4238 = vmatpush.msra.mxu0 0.0
        %4239 = vmatpush.msra.mxu0 0.0
        %4240 = vmatpush.msra.mxu0 %v4125
        %4241 = vmatpush.msra.mxu0 %v4123
        %4242 = vmatpush.msra.mxu0 %v4121
        %4243 = vmatpush.msra.mxu0 %v4119
        %4244 = vmatpush.msra.mxu0 %v4117
        %4245 = vmatpush.msra.mxu0 %v4115
        %4246 = vmatpush.msra.mxu0 %v4113
        %4247 = vmatpush.msra.mxu0 %v4111
        %4248 = vmatmul.f32.gmra.mxu0 %v4209
        %v4249 = vpop.f32.mrf.mxu0
        %v4250 = vadd.f32 0.0, %v4249
        %4251 = vmatmul.f32.gmra.mxu0 %v4212
        %v4252 = vpop.f32.mrf.mxu0
        %v4253 = vadd.f32 0.0, %v4252
        %4254 = vmatmul.f32.gmra.mxu0 %v4215
        %v4255 = vpop.f32.mrf.mxu0
        %v4256 = vadd.f32 0.0, %v4255
        %4257 = vmatmul.f32.gmra.mxu0 %v4218
        %v4258 = vpop.f32.mrf.mxu0
        %v4259 = vadd.f32 0.0, %v4258
        %4260 = vmatmul.f32.gmra.mxu0 %v4221
        %v4261 = vpop.f32.mrf.mxu0
        %v4262 = vadd.f32 0.0, %v4261
        %4263 = vmatmul.f32.gmra.mxu0 %v4224
        %v4264 = vpop.f32.mrf.mxu0
        %v4265 = vadd.f32 0.0, %v4264
        %4266 = vmatmul.f32.gmra.mxu0 %v4227
        %v4267 = vpop.f32.mrf.mxu0
        %v4268 = vadd.f32 0.0, %v4267
        %4269 = vmatmul.f32.gmra.mxu0 %v4230
        %v4270 = vpop.f32.mrf.mxu0
        %v4271 = vadd.f32 0.0, %v4270
        %4272 = vdwg.mxu0
        %4281 = vrot.lane.b32.xlu0 %v2368, 8
        %v4282 = vpop.permute.xlu0 %4281
        %4283 = vrot.lane.b32.xlu0 %v2371, 8
        %v4284 = vpop.permute.xlu0 %4283
        %4285 = vrot.lane.b32.xlu0 %v2374, 8
        %v4286 = vpop.permute.xlu0 %4285
        %4287 = vrot.lane.b32.xlu0 %v2377, 8
        %v4288 = vpop.permute.xlu0 %4287
        %4289 = vrot.lane.b32.xlu0 %v2380, 8
        %v4290 = vpop.permute.xlu0 %4289
        %4291 = vrot.lane.b32.xlu0 %v2383, 8
        %v4292 = vpop.permute.xlu0 %4291
        %4293 = vrot.lane.b32.xlu0 %v2386, 8
        %v4294 = vpop.permute.xlu0 %4293
        %4295 = vrot.lane.b32.xlu0 %v2389, 8
        %v4296 = vpop.permute.xlu0 %4295
        %4313 = vrot.lane.b32.xlu0 %v3309, 16
        %v4314 = vpop.permute.xlu0 %4313
        %4315 = vrot.lane.b32.xlu0 %v3312, 16
        %v4316 = vpop.permute.xlu0 %4315
        %4317 = vrot.lane.b32.xlu0 %v3315, 16
        %v4318 = vpop.permute.xlu0 %4317
        %4319 = vrot.lane.b32.xlu0 %v3318, 16
        %v4320 = vpop.permute.xlu0 %4319
        %4321 = vrot.lane.b32.xlu0 %v3321, 16
        %v4322 = vpop.permute.xlu0 %4321
        %4323 = vrot.lane.b32.xlu0 %v3324, 16
        %v4324 = vpop.permute.xlu0 %4323
        %4325 = vrot.lane.b32.xlu0 %v3327, 16
        %v4326 = vpop.permute.xlu0 %4325
        %4327 = vrot.lane.b32.xlu0 %v3330, 16
        %v4328 = vpop.permute.xlu0 %4327
        %4345 = vrot.lane.b32.xlu0 %v4250, 24
        %v4346 = vpop.permute.xlu0 %4345
        %4347 = vrot.lane.b32.xlu0 %v4253, 24
        %v4348 = vpop.permute.xlu0 %4347
        %4349 = vrot.lane.b32.xlu0 %v4256, 24
        %v4350 = vpop.permute.xlu0 %4349
        %4351 = vrot.lane.b32.xlu0 %v4259, 24
        %v4352 = vpop.permute.xlu0 %4351
        %4353 = vrot.lane.b32.xlu0 %v4262, 24
        %v4354 = vpop.permute.xlu0 %4353
        %4355 = vrot.lane.b32.xlu0 %v4265, 24
        %v4356 = vpop.permute.xlu0 %4355
        %4357 = vrot.lane.b32.xlu0 %v4268, 24
        %v4358 = vpop.permute.xlu0 %4357
        %4359 = vrot.lane.b32.xlu0 %v4271, 24
        %v4360 = vpop.permute.xlu0 %4359
        %v4369 = vsel %vm539, %v1427, %v4282
        %v4370 = vsel %vm539, %v1430, %v4284
        %v4371 = vsel %vm539, %v1433, %v4286
        %v4372 = vsel %vm539, %v1436, %v4288
        %v4373 = vsel %vm539, %v1439, %v4290
        %v4374 = vsel %vm539, %v1442, %v4292
        %v4375 = vsel %vm539, %v1445, %v4294
        %v4376 = vsel %vm539, %v1448, %v4296
        %v4377 = vsel %vm1253, %v4369, %v4314
        %v4378 = vsel %vm1253, %v4370, %v4316
        %v4379 = vsel %vm1253, %v4371, %v4318
        %v4380 = vsel %vm1253, %v4372, %v4320
        %v4381 = vsel %vm1253, %v4373, %v4322
        %v4382 = vsel %vm1253, %v4374, %v4324
        %v4383 = vsel %vm1253, %v4375, %v4326
        %v4384 = vsel %vm1253, %v4376, %v4328
        %vm4385 = vcmask 195584
        %v4386 = vsel %vm4385, %v4377, %v4346
        %v4387 = vsel %vm4385, %v4378, %v4348
        %v4388 = vsel %vm4385, %v4379, %v4350
        %v4389 = vsel %vm4385, %v4380, %v4352
        %v4390 = vsel %vm4385, %v4381, %v4354
        %v4391 = vsel %vm4385, %v4382, %v4356
        %v4392 = vsel %vm4385, %v4383, %v4358
        %v4393 = vsel %vm4385, %v4384, %v4360
        %v4394 = vld [vmem:[%s2] sm:$0xff]
        %v4395 = vld [vmem:[%s2 + $0x8] sm:$0xff]
        %v4396 = vld [vmem:[%s2 + $0x10] sm:$0xff]
        %v4397 = vld [vmem:[%s2 + $0x18] sm:$0xff]
        %v4399 = vsel %vm302, %v4386, 0
        %v4402 = vsel %vm302, %v4387, 0
        %v4405 = vsel %vm302, %v4388, 0
        %v4408 = vsel %vm302, %v4389, 0
        %v4411 = vsel %vm302, %v4390, 0
        %v4414 = vsel %vm302, %v4391, 0
        %v4417 = vsel %vm302, %v4392, 0
        %v4420 = vsel %vm302, %v4393, 0
        %4422 = vmatpush.msra.mxu0 0.0
        %4423 = vmatpush.msra.mxu0 0.0
        %4424 = vmatpush.msra.mxu0 0.0
        %4425 = vmatpush.msra.mxu0 0.0
        %4426 = vmatpush.msra.mxu0 0.0
        %4427 = vmatpush.msra.mxu0 0.0
        %4428 = vmatpush.msra.mxu0 0.0
        %4429 = vmatpush.msra.mxu0 0.0
        %4430 = vmatpush.msra.mxu0 0.0
        %4431 = vmatpush.msra.mxu0 0.0
        %4432 = vmatpush.msra.mxu0 0.0
        %4433 = vmatpush.msra.mxu0 0.0
        %4434 = vmatpush.msra.mxu0 %v4397
        %4435 = vmatpush.msra.mxu0 %v4396
        %4436 = vmatpush.msra.mxu0 %v4395
        %4437 = vmatpush.msra.mxu0 %v4394
        %4438 = vmatmul.f32.gmra.mxu0 %v4399
        %v4439 = vpop.f32.mrf.mxu0
        %v4440 = vadd.f32 0.0, %v4439
        %4441 = vmatmul.f32.gmra.mxu0 %v4402
        %v4442 = vpop.f32.mrf.mxu0
        %v4443 = vadd.f32 0.0, %v4442
        %4444 = vmatmul.f32.gmra.mxu0 %v4405
        %v4445 = vpop.f32.mrf.mxu0
        %v4446 = vadd.f32 0.0, %v4445
        %4447 = vmatmul.f32.gmra.mxu0 %v4408
        %v4448 = vpop.f32.mrf.mxu0
        %v4449 = vadd.f32 0.0, %v4448
        %4450 = vmatmul.f32.gmra.mxu0 %v4411
        %v4451 = vpop.f32.mrf.mxu0
        %v4452 = vadd.f32 0.0, %v4451
        %4453 = vmatmul.f32.gmra.mxu0 %v4414
        %v4454 = vpop.f32.mrf.mxu0
        %v4455 = vadd.f32 0.0, %v4454
        %4456 = vmatmul.f32.gmra.mxu0 %v4417
        %v4457 = vpop.f32.mrf.mxu0
        %v4458 = vadd.f32 0.0, %v4457
        %4459 = vmatmul.f32.gmra.mxu0 %v4420
        %v4460 = vpop.f32.mrf.mxu0
        %v4461 = vadd.f32 0.0, %v4460
        %4462 = vdwg.mxu0
        %v4463 = vmul.f32 %v4440, 0.35355338
        %v4464 = vmul.f32 %v4443, 0.35355338
        %v4465 = vmul.f32 %v4446, 0.35355338
        %v4466 = vmul.f32 %v4449, 0.35355338
        %v4467 = vmul.f32 %v4452, 0.35355338
        %v4468 = vmul.f32 %v4455, 0.35355338
        %v4469 = vmul.f32 %v4458, 0.35355338
        %v4470 = vmul.f32 %v4461, 0.35355338
        %v4471 = vld [vmem:[#allocation2] sm:$0xff]
        %v4472 = vld [vmem:[#allocation2 + $0x8] sm:$0xff]
        %v4473 = vld [vmem:[#allocation2 + $0x10] sm:$0xff]
        %v4474 = vld [vmem:[#allocation2 + $0x18] sm:$0xff]
        %v4475 = vld [vmem:[#allocation2 + $0x20] sm:$0xff]
        %v4476 = vld [vmem:[#allocation2 + $0x28] sm:$0xff]
        %v4477 = vld [vmem:[#allocation2 + $0x30] sm:$0xff]
        %v4478 = vld [vmem:[#allocation2 + $0x38] sm:$0xff]
        %v4479 = vld [vmem:[#allocation3] sm:$0xff]
        %v4480 = vld [vmem:[#allocation3 + $0x8] sm:$0xff]
        %v4481 = vld [vmem:[#allocation3 + $0x10] sm:$0xff]
        %v4482 = vld [vmem:[#allocation3 + $0x18] sm:$0xff]
        %v4483 = vld [vmem:[#allocation3 + $0x20] sm:$0xff]
        %v4484 = vld [vmem:[#allocation3 + $0x28] sm:$0xff]
        %v4485 = vld [vmem:[#allocation3 + $0x30] sm:$0xff]
        %v4486 = vld [vmem:[#allocation3 + $0x38] sm:$0xff]
        %v4488 = vsel %vm539, %v4463, 0
        %v4491 = vsel %vm539, %v4464, 0
        %v4494 = vsel %vm539, %v4465, 0
        %v4497 = vsel %vm539, %v4466, 0
        %v4500 = vsel %vm539, %v4467, 0
        %v4503 = vsel %vm539, %v4468, 0
        %v4506 = vsel %vm539, %v4469, 0
        %v4509 = vsel %vm539, %v4470, 0
        %v4512 = vsel %vm539, %v4479, 0
        %v4515 = vsel %vm539, %v4480, 0
        %v4518 = vsel %vm539, %v4481, 0
        %v4521 = vsel %vm539, %v4482, 0
        %v4524 = vsel %vm539, %v4483, 0
        %v4527 = vsel %vm539, %v4484, 0
        %v4530 = vsel %vm539, %v4485, 0
        %v4533 = vsel %vm539, %v4486, 0
        %4535 = vmatpush.xpose.msra.mxu0 0.0
        %4536 = vmatpush.xpose.msra.mxu0 0.0
        %4537 = vmatpush.xpose.msra.mxu0 0.0
        %4538 = vmatpush.xpose.msra.mxu0 0.0
        %4539 = vmatpush.xpose.msra.mxu0 0.0
        %4540 = vmatpush.xpose.msra.mxu0 0.0
        %4541 = vmatpush.xpose.msra.mxu0 0.0
        %4542 = vmatpush.xpose.msra.mxu0 0.0
        %4543 = vmatpush.xpose.msra.mxu0 %v4533
        %4544 = vmatpush.xpose.msra.mxu0 %v4530
        %4545 = vmatpush.xpose.msra.mxu0 %v4527
        %4546 = vmatpush.xpose.msra.mxu0 %v4524
        %4547 = vmatpush.xpose.msra.mxu0 %v4521
        %4548 = vmatpush.xpose.msra.mxu0 %v4518
        %4549 = vmatpush.xpose.msra.mxu0 %v4515
        %4550 = vmatpush.xpose.msra.mxu0 %v4512
        %4551 = vmatmul.f32.gmra.mxu0 %v4488
        %v4552 = vpop.f32.mrf.mxu0
        %v4553 = vadd.f32 0.0, %v4552
        %4554 = vmatmul.f32.gmra.mxu0 %v4491
        %v4555 = vpop.f32.mrf.mxu0
        %v4556 = vadd.f32 0.0, %v4555
        %4557 = vmatmul.f32.gmra.mxu0 %v4494
        %v4558 = vpop.f32.mrf.mxu0
        %v4559 = vadd.f32 0.0, %v4558
        %4560 = vmatmul.f32.gmra.mxu0 %v4497
        %v4561 = vpop.f32.mrf.mxu0
        %v4562 = vadd.f32 0.0, %v4561
        %4563 = vmatmul.f32.gmra.mxu0 %v4500
        %v4564 = vpop.f32.mrf.mxu0
        %v4565 = vadd.f32 0.0, %v4564
        %4566 = vmatmul.f32.gmra.mxu0 %v4503
        %v4567 = vpop.f32.mrf.mxu0
        %v4568 = vadd.f32 0.0, %v4567
        %4569 = vmatmul.f32.gmra.mxu0 %v4506
        %v4570 = vpop.f32.mrf.mxu0
        %v4571 = vadd.f32 0.0, %v4570
        %4572 = vmatmul.f32.gmra.mxu0 %v4509
        %v4573 = vpop.f32.mrf.mxu0
        %v4574 = vadd.f32 0.0, %v4573
        %4575 = vdwg.mxu0
        %v4576 = vmul.f32 %v4471, %v4553
        %v4577 = vmul.f32 %v4472, %v4556
        %v4578 = vmul.f32 %v4473, %v4559
        %v4579 = vmul.f32 %v4474, %v4562
        %v4580 = vmul.f32 %v4475, %v4565
        %v4581 = vmul.f32 %v4476, %v4568
        %v4582 = vmul.f32 %v4477, %v4571
        %v4583 = vmul.f32 %v4478, %v4574
        %4584 = vrot.lane.b32.xlu0 %v4463, 120
        %v4585 = vpop.permute.xlu0 %4584
        %4586 = vrot.lane.b32.xlu0 %v4464, 120
        %v4587 = vpop.permute.xlu0 %4586
        %4588 = vrot.lane.b32.xlu0 %v4465, 120
        %v4589 = vpop.permute.xlu0 %4588
        %4590 = vrot.lane.b32.xlu0 %v4466, 120
        %v4591 = vpop.permute.xlu0 %4590
        %4592 = vrot.lane.b32.xlu0 %v4467, 120
        %v4593 = vpop.permute.xlu0 %4592
        %4594 = vrot.lane.b32.xlu0 %v4468, 120
        %v4595 = vpop.permute.xlu0 %4594
        %4596 = vrot.lane.b32.xlu0 %v4469, 120
        %v4597 = vpop.permute.xlu0 %4596
        %4598 = vrot.lane.b32.xlu0 %v4470, 120
        %v4599 = vpop.permute.xlu0 %4598
        %4600 = vrot.lane.b32.xlu0 %v4479, 120
        %v4601 = vpop.permute.xlu0 %4600
        %4602 = vrot.lane.b32.xlu0 %v4480, 120
        %v4603 = vpop.permute.xlu0 %4602
        %4604 = vrot.lane.b32.xlu0 %v4481, 120
        %v4605 = vpop.permute.xlu0 %4604
        %4606 = vrot.lane.b32.xlu0 %v4482, 120
        %v4607 = vpop.permute.xlu0 %4606
        %4608 = vrot.lane.b32.xlu0 %v4483, 120
        %v4609 = vpop.permute.xlu0 %4608
        %4610 = vrot.lane.b32.xlu0 %v4484, 120
        %v4611 = vpop.permute.xlu0 %4610
        %4612 = vrot.lane.b32.xlu0 %v4485, 120
        %v4613 = vpop.permute.xlu0 %4612
        %4614 = vrot.lane.b32.xlu0 %v4486, 120
        %v4615 = vpop.permute.xlu0 %4614
        %v4616 = vsel %vm539, %v4585, 0
        %v4618 = vsel %vm539, %v4587, 0
        %v4620 = vsel %vm539, %v4589, 0
        %v4622 = vsel %vm539, %v4591, 0
        %v4624 = vsel %vm539, %v4593, 0
        %v4626 = vsel %vm539, %v4595, 0
        %v4628 = vsel %vm539, %v4597, 0
        %v4630 = vsel %vm539, %v4599, 0
        %v4632 = vsel %vm539, %v4601, 0
        %v4634 = vsel %vm539, %v4603, 0
        %v4636 = vsel %vm539, %v4605, 0
        %v4638 = vsel %vm539, %v4607, 0
        %v4640 = vsel %vm539, %v4609, 0
        %v4642 = vsel %vm539, %v4611, 0
        %v4644 = vsel %vm539, %v4613, 0
        %v4646 = vsel %vm539, %v4615, 0
        %4648 = vmatpush.xpose.msra.mxu0 0.0
        %4649 = vmatpush.xpose.msra.mxu0 0.0
        %4650 = vmatpush.xpose.msra.mxu0 0.0
        %4651 = vmatpush.xpose.msra.mxu0 0.0
        %4652 = vmatpush.xpose.msra.mxu0 0.0
        %4653 = vmatpush.xpose.msra.mxu0 0.0
        %4654 = vmatpush.xpose.msra.mxu0 0.0
        %4655 = vmatpush.xpose.msra.mxu0 0.0
        %4656 = vmatpush.xpose.msra.mxu0 %v4646
        %4657 = vmatpush.xpose.msra.mxu0 %v4644
        %4658 = vmatpush.xpose.msra.mxu0 %v4642
        %4659 = vmatpush.xpose.msra.mxu0 %v4640
        %4660 = vmatpush.xpose.msra.mxu0 %v4638
        %4661 = vmatpush.xpose.msra.mxu0 %v4636
        %4662 = vmatpush.xpose.msra.mxu0 %v4634
        %4663 = vmatpush.xpose.msra.mxu0 %v4632
        %4664 = vmatmul.f32.gmra.mxu0 %v4616
        %v4665 = vpop.f32.mrf.mxu0
        %v4666 = vadd.f32 0.0, %v4665
        %4667 = vmatmul.f32.gmra.mxu0 %v4618
        %v4668 = vpop.f32.mrf.mxu0
        %v4669 = vadd.f32 0.0, %v4668
        %4670 = vmatmul.f32.gmra.mxu0 %v4620
        %v4671 = vpop.f32.mrf.mxu0
        %v4672 = vadd.f32 0.0, %v4671
        %4673 = vmatmul.f32.gmra.mxu0 %v4622
        %v4674 = vpop.f32.mrf.mxu0
        %v4675 = vadd.f32 0.0, %v4674
        %4676 = vmatmul.f32.gmra.mxu0 %v4624
        %v4677 = vpop.f32.mrf.mxu0
        %v4678 = vadd.f32 0.0, %v4677
        %4679 = vmatmul.f32.gmra.mxu0 %v4626
        %v4680 = vpop.f32.mrf.mxu0
        %v4681 = vadd.f32 0.0, %v4680
        %4682 = vmatmul.f32.gmra.mxu0 %v4628
        %v4683 = vpop.f32.mrf.mxu0
        %v4684 = vadd.f32 0.0, %v4683
        %4685 = vmatmul.f32.gmra.mxu0 %v4630
        %v4686 = vpop.f32.mrf.mxu0
        %v4687 = vadd.f32 0.0, %v4686
        %4688 = vdwg.mxu0
        %v4689 = vmul.f32 %v4471, %v4666
        %v4690 = vmul.f32 %v4472, %v4669
        %v4691 = vmul.f32 %v4473, %v4672
        %v4692 = vmul.f32 %v4474, %v4675
        %v4693 = vmul.f32 %v4475, %v4678
        %v4694 = vmul.f32 %v4476, %v4681
        %v4695 = vmul.f32 %v4477, %v4684
        %v4696 = vmul.f32 %v4478, %v4687
        %4697 = vrot.lane.b32.xlu0 %v4463, 112
        %v4698 = vpop.permute.xlu0 %4697
        %4699 = vrot.lane.b32.xlu0 %v4464, 112
        %v4700 = vpop.permute.xlu0 %4699
        %4701 = vrot.lane.b32.xlu0 %v4465, 112
        %v4702 = vpop.permute.xlu0 %4701
        %4703 = vrot.lane.b32.xlu0 %v4466, 112
        %v4704 = vpop.permute.xlu0 %4703
        %4705 = vrot.lane.b32.xlu0 %v4467, 112
        %v4706 = vpop.permute.xlu0 %4705
        %4707 = vrot.lane.b32.xlu0 %v4468, 112
        %v4708 = vpop.permute.xlu0 %4707
        %4709 = vrot.lane.b32.xlu0 %v4469, 112
        %v4710 = vpop.permute.xlu0 %4709
        %4711 = vrot.lane.b32.xlu0 %v4470, 112
        %v4712 = vpop.permute.xlu0 %4711
        %4713 = vrot.lane.b32.xlu0 %v4479, 112
        %v4714 = vpop.permute.xlu0 %4713
        %4715 = vrot.lane.b32.xlu0 %v4480, 112
        %v4716 = vpop.permute.xlu0 %4715
        %4717 = vrot.lane.b32.xlu0 %v4481, 112
        %v4718 = vpop.permute.xlu0 %4717
        %4719 = vrot.lane.b32.xlu0 %v4482, 112
        %v4720 = vpop.permute.xlu0 %4719
        %4721 = vrot.lane.b32.xlu0 %v4483, 112
        %v4722 = vpop.permute.xlu0 %4721
        %4723 = vrot.lane.b32.xlu0 %v4484, 112
        %v4724 = vpop.permute.xlu0 %4723
        %4725 = vrot.lane.b32.xlu0 %v4485, 112
        %v4726 = vpop.permute.xlu0 %4725
        %4727 = vrot.lane.b32.xlu0 %v4486, 112
        %v4728 = vpop.permute.xlu0 %4727
        %v4729 = vsel %vm539, %v4698, 0
        %v4731 = vsel %vm539, %v4700, 0
        %v4733 = vsel %vm539, %v4702, 0
        %v4735 = vsel %vm539, %v4704, 0
        %v4737 = vsel %vm539, %v4706, 0
        %v4739 = vsel %vm539, %v4708, 0
        %v4741 = vsel %vm539, %v4710, 0
        %v4743 = vsel %vm539, %v4712, 0
        %v4745 = vsel %vm539, %v4714, 0
        %v4747 = vsel %vm539, %v4716, 0
        %v4749 = vsel %vm539, %v4718, 0
        %v4751 = vsel %vm539, %v4720, 0
        %v4753 = vsel %vm539, %v4722, 0
        %v4755 = vsel %vm539, %v4724, 0
        %v4757 = vsel %vm539, %v4726, 0
        %v4759 = vsel %vm539, %v4728, 0
        %4761 = vmatpush.xpose.msra.mxu0 0.0
        %4762 = vmatpush.xpose.msra.mxu0 0.0
        %4763 = vmatpush.xpose.msra.mxu0 0.0
        %4764 = vmatpush.xpose.msra.mxu0 0.0
        %4765 = vmatpush.xpose.msra.mxu0 0.0
        %4766 = vmatpush.xpose.msra.mxu0 0.0
        %4767 = vmatpush.xpose.msra.mxu0 0.0
        %4768 = vmatpush.xpose.msra.mxu0 0.0
        %4769 = vmatpush.xpose.msra.mxu0 %v4759
        %4770 = vmatpush.xpose.msra.mxu0 %v4757
        %4771 = vmatpush.xpose.msra.mxu0 %v4755
        %4772 = vmatpush.xpose.msra.mxu0 %v4753
        %4773 = vmatpush.xpose.msra.mxu0 %v4751
        %4774 = vmatpush.xpose.msra.mxu0 %v4749
        %4775 = vmatpush.xpose.msra.mxu0 %v4747
        %4776 = vmatpush.xpose.msra.mxu0 %v4745
        %4777 = vmatmul.f32.gmra.mxu0 %v4729
        %v4778 = vpop.f32.mrf.mxu0
        %v4779 = vadd.f32 0.0, %v4778
        %4780 = vmatmul.f32.gmra.mxu0 %v4731
        %v4781 = vpop.f32.mrf.mxu0
        %v4782 = vadd.f32 0.0, %v4781
        %4783 = vmatmul.f32.gmra.mxu0 %v4733
        %v4784 = vpop.f32.mrf.mxu0
        %v4785 = vadd.f32 0.0, %v4784
        %4786 = vmatmul.f32.gmra.mxu0 %v4735
        %v4787 = vpop.f32.mrf.mxu0
        %v4788 = vadd.f32 0.0, %v4787
        %4789 = vmatmul.f32.gmra.mxu0 %v4737
        %v4790 = vpop.f32.mrf.mxu0
        %v4791 = vadd.f32 0.0, %v4790
        %4792 = vmatmul.f32.gmra.mxu0 %v4739
        %v4793 = vpop.f32.mrf.mxu0
        %v4794 = vadd.f32 0.0, %v4793
        %4795 = vmatmul.f32.gmra.mxu0 %v4741
        %v4796 = vpop.f32.mrf.mxu0
        %v4797 = vadd.f32 0.0, %v4796
        %4798 = vmatmul.f32.gmra.mxu0 %v4743
        %v4799 = vpop.f32.mrf.mxu0
        %v4800 = vadd.f32 0.0, %v4799
        %4801 = vdwg.mxu0
        %v4802 = vmul.f32 %v4471, %v4779
        %v4803 = vmul.f32 %v4472, %v4782
        %v4804 = vmul.f32 %v4473, %v4785
        %v4805 = vmul.f32 %v4474, %v4788
        %v4806 = vmul.f32 %v4475, %v4791
        %v4807 = vmul.f32 %v4476, %v4794
        %v4808 = vmul.f32 %v4477, %v4797
        %v4809 = vmul.f32 %v4478, %v4800
        %4810 = vrot.lane.b32.xlu0 %v4463, 104
        %v4811 = vpop.permute.xlu0 %4810
        %4812 = vrot.lane.b32.xlu0 %v4464, 104
        %v4813 = vpop.permute.xlu0 %4812
        %4814 = vrot.lane.b32.xlu0 %v4465, 104
        %v4815 = vpop.permute.xlu0 %4814
        %4816 = vrot.lane.b32.xlu0 %v4466, 104
        %v4817 = vpop.permute.xlu0 %4816
        %4818 = vrot.lane.b32.xlu0 %v4467, 104
        %v4819 = vpop.permute.xlu0 %4818
        %4820 = vrot.lane.b32.xlu0 %v4468, 104
        %v4821 = vpop.permute.xlu0 %4820
        %4822 = vrot.lane.b32.xlu0 %v4469, 104
        %v4823 = vpop.permute.xlu0 %4822
        %4824 = vrot.lane.b32.xlu0 %v4470, 104
        %v4825 = vpop.permute.xlu0 %4824
        %4826 = vrot.lane.b32.xlu0 %v4479, 104
        %v4827 = vpop.permute.xlu0 %4826
        %4828 = vrot.lane.b32.xlu0 %v4480, 104
        %v4829 = vpop.permute.xlu0 %4828
        %4830 = vrot.lane.b32.xlu0 %v4481, 104
        %v4831 = vpop.permute.xlu0 %4830
        %4832 = vrot.lane.b32.xlu0 %v4482, 104
        %v4833 = vpop.permute.xlu0 %4832
        %4834 = vrot.lane.b32.xlu0 %v4483, 104
        %v4835 = vpop.permute.xlu0 %4834
        %4836 = vrot.lane.b32.xlu0 %v4484, 104
        %v4837 = vpop.permute.xlu0 %4836
        %4838 = vrot.lane.b32.xlu0 %v4485, 104
        %v4839 = vpop.permute.xlu0 %4838
        %4840 = vrot.lane.b32.xlu0 %v4486, 104
        %v4841 = vpop.permute.xlu0 %4840
        %v4842 = vsel %vm539, %v4811, 0
        %v4844 = vsel %vm539, %v4813, 0
        %v4846 = vsel %vm539, %v4815, 0
        %v4848 = vsel %vm539, %v4817, 0
        %v4850 = vsel %vm539, %v4819, 0
        %v4852 = vsel %vm539, %v4821, 0
        %v4854 = vsel %vm539, %v4823, 0
        %v4856 = vsel %vm539, %v4825, 0
        %v4858 = vsel %vm539, %v4827, 0
        %v4860 = vsel %vm539, %v4829, 0
        %v4862 = vsel %vm539, %v4831, 0
        %v4864 = vsel %vm539, %v4833, 0
        %v4866 = vsel %vm539, %v4835, 0
        %v4868 = vsel %vm539, %v4837, 0
        %v4870 = vsel %vm539, %v4839, 0
        %v4872 = vsel %vm539, %v4841, 0
        %4874 = vmatpush.xpose.msra.mxu0 0.0
        %4875 = vmatpush.xpose.msra.mxu0 0.0
        %4876 = vmatpush.xpose.msra.mxu0 0.0
        %4877 = vmatpush.xpose.msra.mxu0 0.0
        %4878 = vmatpush.xpose.msra.mxu0 0.0
        %4879 = vmatpush.xpose.msra.mxu0 0.0
        %4880 = vmatpush.xpose.msra.mxu0 0.0
        %4881 = vmatpush.xpose.msra.mxu0 0.0
        %4882 = vmatpush.xpose.msra.mxu0 %v4872
        %4883 = vmatpush.xpose.msra.mxu0 %v4870
        %4884 = vmatpush.xpose.msra.mxu0 %v4868
        %4885 = vmatpush.xpose.msra.mxu0 %v4866
        %4886 = vmatpush.xpose.msra.mxu0 %v4864
        %4887 = vmatpush.xpose.msra.mxu0 %v4862
        %4888 = vmatpush.xpose.msra.mxu0 %v4860
        %4889 = vmatpush.xpose.msra.mxu0 %v4858
        %4890 = vmatmul.f32.gmra.mxu0 %v4842
        %v4891 = vpop.f32.mrf.mxu0
        %v4892 = vadd.f32 0.0, %v4891
        %4893 = vmatmul.f32.gmra.mxu0 %v4844
        %v4894 = vpop.f32.mrf.mxu0
        %v4895 = vadd.f32 0.0, %v4894
        %4896 = vmatmul.f32.gmra.mxu0 %v4846
        %v4897 = vpop.f32.mrf.mxu0
        %v4898 = vadd.f32 0.0, %v4897
        %4899 = vmatmul.f32.gmra.mxu0 %v4848
        %v4900 = vpop.f32.mrf.mxu0
        %v4901 = vadd.f32 0.0, %v4900
        %4902 = vmatmul.f32.gmra.mxu0 %v4850
        %v4903 = vpop.f32.mrf.mxu0
        %v4904 = vadd.f32 0.0, %v4903
        %4905 = vmatmul.f32.gmra.mxu0 %v4852
        %v4906 = vpop.f32.mrf.mxu0
        %v4907 = vadd.f32 0.0, %v4906
        %4908 = vmatmul.f32.gmra.mxu0 %v4854
        %v4909 = vpop.f32.mrf.mxu0
        %v4910 = vadd.f32 0.0, %v4909
        %4911 = vmatmul.f32.gmra.mxu0 %v4856
        %v4912 = vpop.f32.mrf.mxu0
        %v4913 = vadd.f32 0.0, %v4912
        %4914 = vdwg.mxu0
        %v4915 = vmul.f32 %v4471, %v4892
        %v4916 = vmul.f32 %v4472, %v4895
        %v4917 = vmul.f32 %v4473, %v4898
        %v4918 = vmul.f32 %v4474, %v4901
        %v4919 = vmul.f32 %v4475, %v4904
        %v4920 = vmul.f32 %v4476, %v4907
        %v4921 = vmul.f32 %v4477, %v4910
        %v4922 = vmul.f32 %v4478, %v4913
        %v4923 = vld [vmem:[%s2219] sm:$0xff]
        %v4924 = vld [vmem:[%s2219 + $0x8] sm:$0xff]
        %v4925 = vld [vmem:[%s2219 + $0x10] sm:$0xff]
        %v4926 = vld [vmem:[%s2219 + $0x18] sm:$0xff]
        %v4927 = vld [vmem:[%s2219 + $0x20] sm:$0xff]
        %v4928 = vld [vmem:[%s2219 + $0x28] sm:$0xff]
        %v4929 = vld [vmem:[%s2219 + $0x30] sm:$0xff]
        %v4930 = vld [vmem:[%s2219 + $0x38] sm:$0xff]
        %v4931 = vld [vmem:[%s2301] sm:$0xff]
        %v4932 = vld [vmem:[%s2301 + $0x8] sm:$0xff]
        %v4933 = vld [vmem:[%s2301 + $0x10] sm:$0xff]
        %v4934 = vld [vmem:[%s2301 + $0x18] sm:$0xff]
        %v4935 = vld [vmem:[%s2301 + $0x20] sm:$0xff]
        %v4936 = vld [vmem:[%s2301 + $0x28] sm:$0xff]
        %v4937 = vld [vmem:[%s2301 + $0x30] sm:$0xff]
        %v4938 = vld [vmem:[%s2301 + $0x38] sm:$0xff]
        %v4940 = vsel %vm539, %v4931, 0
        %v4943 = vsel %vm539, %v4932, 0
        %v4946 = vsel %vm539, %v4933, 0
        %v4949 = vsel %vm539, %v4934, 0
        %v4952 = vsel %vm539, %v4935, 0
        %v4955 = vsel %vm539, %v4936, 0
        %v4958 = vsel %vm539, %v4937, 0
        %v4961 = vsel %vm539, %v4938, 0
        %4963 = vmatpush.xpose.msra.mxu0 0.0
        %4964 = vmatpush.xpose.msra.mxu0 0.0
        %4965 = vmatpush.xpose.msra.mxu0 0.0
        %4966 = vmatpush.xpose.msra.mxu0 0.0
        %4967 = vmatpush.xpose.msra.mxu0 0.0
        %4968 = vmatpush.xpose.msra.mxu0 0.0
        %4969 = vmatpush.xpose.msra.mxu0 0.0
        %4970 = vmatpush.xpose.msra.mxu0 0.0
        %4971 = vmatpush.xpose.msra.mxu0 %v4961
        %4972 = vmatpush.xpose.msra.mxu0 %v4958
        %4973 = vmatpush.xpose.msra.mxu0 %v4955
        %4974 = vmatpush.xpose.msra.mxu0 %v4952
        %4975 = vmatpush.xpose.msra.mxu0 %v4949
        %4976 = vmatpush.xpose.msra.mxu0 %v4946
        %4977 = vmatpush.xpose.msra.mxu0 %v4943
        %4978 = vmatpush.xpose.msra.mxu0 %v4940
        %4979 = vmatmul.f32.gmra.mxu0 %v4488
        %v4980 = vpop.f32.mrf.mxu0
        %v4981 = vadd.f32 0.0, %v4980
        %4982 = vmatmul.f32.gmra.mxu0 %v4491
        %v4983 = vpop.f32.mrf.mxu0
        %v4984 = vadd.f32 0.0, %v4983
        %4985 = vmatmul.f32.gmra.mxu0 %v4494
        %v4986 = vpop.f32.mrf.mxu0
        %v4987 = vadd.f32 0.0, %v4986
        %4988 = vmatmul.f32.gmra.mxu0 %v4497
        %v4989 = vpop.f32.mrf.mxu0
        %v4990 = vadd.f32 0.0, %v4989
        %4991 = vmatmul.f32.gmra.mxu0 %v4500
        %v4992 = vpop.f32.mrf.mxu0
        %v4993 = vadd.f32 0.0, %v4992
        %4994 = vmatmul.f32.gmra.mxu0 %v4503
        %v4995 = vpop.f32.mrf.mxu0
        %v4996 = vadd.f32 0.0, %v4995
        %4997 = vmatmul.f32.gmra.mxu0 %v4506
        %v4998 = vpop.f32.mrf.mxu0
        %v4999 = vadd.f32 0.0, %v4998
        %5000 = vmatmul.f32.gmra.mxu0 %v4509
        %v5001 = vpop.f32.mrf.mxu0
        %v5002 = vadd.f32 0.0, %v5001
        %5003 = vdwg.mxu0
        %v5004 = vmul.f32 %v4923, %v4981
        %v5005 = vmul.f32 %v4924, %v4984
        %v5006 = vmul.f32 %v4925, %v4987
        %v5007 = vmul.f32 %v4926, %v4990
        %v5008 = vmul.f32 %v4927, %v4993
        %v5009 = vmul.f32 %v4928, %v4996
        %v5010 = vmul.f32 %v4929, %v4999
        %v5011 = vmul.f32 %v4930, %v5002
        %v5012 = vadd.f32 %v4576, %v5004
        %v5013 = vadd.f32 %v4577, %v5005
        %v5014 = vadd.f32 %v4578, %v5006
        %v5015 = vadd.f32 %v4579, %v5007
        %v5016 = vadd.f32 %v4580, %v5008
        %v5017 = vadd.f32 %v4581, %v5009
        %v5018 = vadd.f32 %v4582, %v5010
        %v5019 = vadd.f32 %v4583, %v5011
        %5020 = vrot.lane.b32.xlu0 %v4931, 120
        %v5021 = vpop.permute.xlu0 %5020
        %5022 = vrot.lane.b32.xlu0 %v4932, 120
        %v5023 = vpop.permute.xlu0 %5022
        %5024 = vrot.lane.b32.xlu0 %v4933, 120
        %v5025 = vpop.permute.xlu0 %5024
        %5026 = vrot.lane.b32.xlu0 %v4934, 120
        %v5027 = vpop.permute.xlu0 %5026
        %5028 = vrot.lane.b32.xlu0 %v4935, 120
        %v5029 = vpop.permute.xlu0 %5028
        %5030 = vrot.lane.b32.xlu0 %v4936, 120
        %v5031 = vpop.permute.xlu0 %5030
        %5032 = vrot.lane.b32.xlu0 %v4937, 120
        %v5033 = vpop.permute.xlu0 %5032
        %5034 = vrot.lane.b32.xlu0 %v4938, 120
        %v5035 = vpop.permute.xlu0 %5034
        %v5036 = vsel %vm539, %v5021, 0
        %v5038 = vsel %vm539, %v5023, 0
        %v5040 = vsel %vm539, %v5025, 0
        %v5042 = vsel %vm539, %v5027, 0
        %v5044 = vsel %vm539, %v5029, 0
        %v5046 = vsel %vm539, %v5031, 0
        %v5048 = vsel %vm539, %v5033, 0
        %v5050 = vsel %vm539, %v5035, 0
        %5052 = vmatpush.xpose.msra.mxu0 0.0
        %5053 = vmatpush.xpose.msra.mxu0 0.0
        %5054 = vmatpush.xpose.msra.mxu0 0.0
        %5055 = vmatpush.xpose.msra.mxu0 0.0
        %5056 = vmatpush.xpose.msra.mxu0 0.0
        %5057 = vmatpush.xpose.msra.mxu0 0.0
        %5058 = vmatpush.xpose.msra.mxu0 0.0
        %5059 = vmatpush.xpose.msra.mxu0 0.0
        %5060 = vmatpush.xpose.msra.mxu0 %v5050
        %5061 = vmatpush.xpose.msra.mxu0 %v5048
        %5062 = vmatpush.xpose.msra.mxu0 %v5046
        %5063 = vmatpush.xpose.msra.mxu0 %v5044
        %5064 = vmatpush.xpose.msra.mxu0 %v5042
        %5065 = vmatpush.xpose.msra.mxu0 %v5040
        %5066 = vmatpush.xpose.msra.mxu0 %v5038
        %5067 = vmatpush.xpose.msra.mxu0 %v5036
        %5068 = vmatmul.f32.gmra.mxu0 %v4616
        %v5069 = vpop.f32.mrf.mxu0
        %v5070 = vadd.f32 0.0, %v5069
        %5071 = vmatmul.f32.gmra.mxu0 %v4618
        %v5072 = vpop.f32.mrf.mxu0
        %v5073 = vadd.f32 0.0, %v5072
        %5074 = vmatmul.f32.gmra.mxu0 %v4620
        %v5075 = vpop.f32.mrf.mxu0
        %v5076 = vadd.f32 0.0, %v5075
        %5077 = vmatmul.f32.gmra.mxu0 %v4622
        %v5078 = vpop.f32.mrf.mxu0
        %v5079 = vadd.f32 0.0, %v5078
        %5080 = vmatmul.f32.gmra.mxu0 %v4624
        %v5081 = vpop.f32.mrf.mxu0
        %v5082 = vadd.f32 0.0, %v5081
        %5083 = vmatmul.f32.gmra.mxu0 %v4626
        %v5084 = vpop.f32.mrf.mxu0
        %v5085 = vadd.f32 0.0, %v5084
        %5086 = vmatmul.f32.gmra.mxu0 %v4628
        %v5087 = vpop.f32.mrf.mxu0
        %v5088 = vadd.f32 0.0, %v5087
        %5089 = vmatmul.f32.gmra.mxu0 %v4630
        %v5090 = vpop.f32.mrf.mxu0
        %v5091 = vadd.f32 0.0, %v5090
        %5092 = vdwg.mxu0
        %v5093 = vmul.f32 %v4923, %v5070
        %v5094 = vmul.f32 %v4924, %v5073
        %v5095 = vmul.f32 %v4925, %v5076
        %v5096 = vmul.f32 %v4926, %v5079
        %v5097 = vmul.f32 %v4927, %v5082
        %v5098 = vmul.f32 %v4928, %v5085
        %v5099 = vmul.f32 %v4929, %v5088
        %v5100 = vmul.f32 %v4930, %v5091
        %v5101 = vadd.f32 %v4689, %v5093
        %v5102 = vadd.f32 %v4690, %v5094
        %v5103 = vadd.f32 %v4691, %v5095
        %v5104 = vadd.f32 %v4692, %v5096
        %v5105 = vadd.f32 %v4693, %v5097
        %v5106 = vadd.f32 %v4694, %v5098
        %v5107 = vadd.f32 %v4695, %v5099
        %v5108 = vadd.f32 %v4696, %v5100
        %5109 = vrot.lane.b32.xlu0 %v4931, 112
        %v5110 = vpop.permute.xlu0 %5109
        %5111 = vrot.lane.b32.xlu0 %v4932, 112
        %v5112 = vpop.permute.xlu0 %5111
        %5113 = vrot.lane.b32.xlu0 %v4933, 112
        %v5114 = vpop.permute.xlu0 %5113
        %5115 = vrot.lane.b32.xlu0 %v4934, 112
        %v5116 = vpop.permute.xlu0 %5115
        %5117 = vrot.lane.b32.xlu0 %v4935, 112
        %v5118 = vpop.permute.xlu0 %5117
        %5119 = vrot.lane.b32.xlu0 %v4936, 112
        %v5120 = vpop.permute.xlu0 %5119
        %5121 = vrot.lane.b32.xlu0 %v4937, 112
        %v5122 = vpop.permute.xlu0 %5121
        %5123 = vrot.lane.b32.xlu0 %v4938, 112
        %v5124 = vpop.permute.xlu0 %5123
        %v5125 = vsel %vm539, %v5110, 0
        %v5127 = vsel %vm539, %v5112, 0
        %v5129 = vsel %vm539, %v5114, 0
        %v5131 = vsel %vm539, %v5116, 0
        %v5133 = vsel %vm539, %v5118, 0
        %v5135 = vsel %vm539, %v5120, 0
        %v5137 = vsel %vm539, %v5122, 0
        %v5139 = vsel %vm539, %v5124, 0
        %5141 = vmatpush.xpose.msra.mxu0 0.0
        %5142 = vmatpush.xpose.msra.mxu0 0.0
        %5143 = vmatpush.xpose.msra.mxu0 0.0
        %5144 = vmatpush.xpose.msra.mxu0 0.0
        %5145 = vmatpush.xpose.msra.mxu0 0.0
        %5146 = vmatpush.xpose.msra.mxu0 0.0
        %5147 = vmatpush.xpose.msra.mxu0 0.0
        %5148 = vmatpush.xpose.msra.mxu0 0.0
        %5149 = vmatpush.xpose.msra.mxu0 %v5139
        %5150 = vmatpush.xpose.msra.mxu0 %v5137
        %5151 = vmatpush.xpose.msra.mxu0 %v5135
        %5152 = vmatpush.xpose.msra.mxu0 %v5133
        %5153 = vmatpush.xpose.msra.mxu0 %v5131
        %5154 = vmatpush.xpose.msra.mxu0 %v5129
        %5155 = vmatpush.xpose.msra.mxu0 %v5127
        %5156 = vmatpush.xpose.msra.mxu0 %v5125
        %5157 = vmatmul.f32.gmra.mxu0 %v4729
        %v5158 = vpop.f32.mrf.mxu0
        %v5159 = vadd.f32 0.0, %v5158
        %5160 = vmatmul.f32.gmra.mxu0 %v4731
        %v5161 = vpop.f32.mrf.mxu0
        %v5162 = vadd.f32 0.0, %v5161
        %5163 = vmatmul.f32.gmra.mxu0 %v4733
        %v5164 = vpop.f32.mrf.mxu0
        %v5165 = vadd.f32 0.0, %v5164
        %5166 = vmatmul.f32.gmra.mxu0 %v4735
        %v5167 = vpop.f32.mrf.mxu0
        %v5168 = vadd.f32 0.0, %v5167
        %5169 = vmatmul.f32.gmra.mxu0 %v4737
        %v5170 = vpop.f32.mrf.mxu0
        %v5171 = vadd.f32 0.0, %v5170
        %5172 = vmatmul.f32.gmra.mxu0 %v4739
        %v5173 = vpop.f32.mrf.mxu0
        %v5174 = vadd.f32 0.0, %v5173
        %5175 = vmatmul.f32.gmra.mxu0 %v4741
        %v5176 = vpop.f32.mrf.mxu0
        %v5177 = vadd.f32 0.0, %v5176
        %5178 = vmatmul.f32.gmra.mxu0 %v4743
        %v5179 = vpop.f32.mrf.mxu0
        %v5180 = vadd.f32 0.0, %v5179
        %5181 = vdwg.mxu0
        %v5182 = vmul.f32 %v4923, %v5159
        %v5183 = vmul.f32 %v4924, %v5162
        %v5184 = vmul.f32 %v4925, %v5165
        %v5185 = vmul.f32 %v4926, %v5168
        %v5186 = vmul.f32 %v4927, %v5171
        %v5187 = vmul.f32 %v4928, %v5174
        %v5188 = vmul.f32 %v4929, %v5177
        %v5189 = vmul.f32 %v4930, %v5180
        %v5190 = vadd.f32 %v4802, %v5182
        %v5191 = vadd.f32 %v4803, %v5183
        %v5192 = vadd.f32 %v4804, %v5184
        %v5193 = vadd.f32 %v4805, %v5185
        %v5194 = vadd.f32 %v4806, %v5186
        %v5195 = vadd.f32 %v4807, %v5187
        %v5196 = vadd.f32 %v4808, %v5188
        %v5197 = vadd.f32 %v4809, %v5189
        %5198 = vrot.lane.b32.xlu0 %v4931, 104
        %v5199 = vpop.permute.xlu0 %5198
        %5200 = vrot.lane.b32.xlu0 %v4932, 104
        %v5201 = vpop.permute.xlu0 %5200
        %5202 = vrot.lane.b32.xlu0 %v4933, 104
        %v5203 = vpop.permute.xlu0 %5202
        %5204 = vrot.lane.b32.xlu0 %v4934, 104
        %v5205 = vpop.permute.xlu0 %5204
        %5206 = vrot.lane.b32.xlu0 %v4935, 104
        %v5207 = vpop.permute.xlu0 %5206
        %5208 = vrot.lane.b32.xlu0 %v4936, 104
        %v5209 = vpop.permute.xlu0 %5208
        %5210 = vrot.lane.b32.xlu0 %v4937, 104
        %v5211 = vpop.permute.xlu0 %5210
        %5212 = vrot.lane.b32.xlu0 %v4938, 104
        %v5213 = vpop.permute.xlu0 %5212
        %v5214 = vsel %vm539, %v5199, 0
        %v5216 = vsel %vm539, %v5201, 0
        %v5218 = vsel %vm539, %v5203, 0
        %v5220 = vsel %vm539, %v5205, 0
        %v5222 = vsel %vm539, %v5207, 0
        %v5224 = vsel %vm539, %v5209, 0
        %v5226 = vsel %vm539, %v5211, 0
        %v5228 = vsel %vm539, %v5213, 0
        %5230 = vmatpush.xpose.msra.mxu0 0.0
        %5231 = vmatpush.xpose.msra.mxu0 0.0
        %5232 = vmatpush.xpose.msra.mxu0 0.0
        %5233 = vmatpush.xpose.msra.mxu0 0.0
        %5234 = vmatpush.xpose.msra.mxu0 0.0
        %5235 = vmatpush.xpose.msra.mxu0 0.0
        %5236 = vmatpush.xpose.msra.mxu0 0.0
        %5237 = vmatpush.xpose.msra.mxu0 0.0
        %5238 = vmatpush.xpose.msra.mxu0 %v5228
        %5239 = vmatpush.xpose.msra.mxu0 %v5226
        %5240 = vmatpush.xpose.msra.mxu0 %v5224
        %5241 = vmatpush.xpose.msra.mxu0 %v5222
        %5242 = vmatpush.xpose.msra.mxu0 %v5220
        %5243 = vmatpush.xpose.msra.mxu0 %v5218
        %5244 = vmatpush.xpose.msra.mxu0 %v5216
        %5245 = vmatpush.xpose.msra.mxu0 %v5214
        %5246 = vmatmul.f32.gmra.mxu0 %v4842
        %v5247 = vpop.f32.mrf.mxu0
        %v5248 = vadd.f32 0.0, %v5247
        %5249 = vmatmul.f32.gmra.mxu0 %v4844
        %v5250 = vpop.f32.mrf.mxu0
        %v5251 = vadd.f32 0.0, %v5250
        %5252 = vmatmul.f32.gmra.mxu0 %v4846
        %v5253 = vpop.f32.mrf.mxu0
        %v5254 = vadd.f32 0.0, %v5253
        %5255 = vmatmul.f32.gmra.mxu0 %v4848
        %v5256 = vpop.f32.mrf.mxu0
        %v5257 = vadd.f32 0.0, %v5256
        %5258 = vmatmul.f32.gmra.mxu0 %v4850
        %v5259 = vpop.f32.mrf.mxu0
        %v5260 = vadd.f32 0.0, %v5259
        %5261 = vmatmul.f32.gmra.mxu0 %v4852
        %v5262 = vpop.f32.mrf.mxu0
        %v5263 = vadd.f32 0.0, %v5262
        %5264 = vmatmul.f32.gmra.mxu0 %v4854
        %v5265 = vpop.f32.mrf.mxu0
        %v5266 = vadd.f32 0.0, %v5265
        %5267 = vmatmul.f32.gmra.mxu0 %v4856
        %v5268 = vpop.f32.mrf.mxu0
        %v5269 = vadd.f32 0.0, %v5268
        %5270 = vdwg.mxu0
        %v5271 = vmul.f32 %v4923, %v5248
        %v5272 = vmul.f32 %v4924, %v5251
        %v5273 = vmul.f32 %v4925, %v5254
        %v5274 = vmul.f32 %v4926, %v5257
        %v5275 = vmul.f32 %v4927, %v5260
        %v5276 = vmul.f32 %v4928, %v5263
        %v5277 = vmul.f32 %v4929, %v5266
        %v5278 = vmul.f32 %v4930, %v5269
        %v5279 = vadd.f32 %v4915, %v5271
        %v5280 = vadd.f32 %v4916, %v5272
        %v5281 = vadd.f32 %v4917, %v5273
        %v5282 = vadd.f32 %v4918, %v5274
        %v5283 = vadd.f32 %v4919, %v5275
        %v5284 = vadd.f32 %v4920, %v5276
        %v5285 = vadd.f32 %v4921, %v5277
        %v5286 = vadd.f32 %v4922, %v5278
        %v5287 = vld [vmem:[%s3160] sm:$0xff]
        %v5288 = vld [vmem:[%s3160 + $0x8] sm:$0xff]
        %v5289 = vld [vmem:[%s3160 + $0x10] sm:$0xff]
        %v5290 = vld [vmem:[%s3160 + $0x18] sm:$0xff]
        %v5291 = vld [vmem:[%s3160 + $0x20] sm:$0xff]
        %v5292 = vld [vmem:[%s3160 + $0x28] sm:$0xff]
        %v5293 = vld [vmem:[%s3160 + $0x30] sm:$0xff]
        %v5294 = vld [vmem:[%s3160 + $0x38] sm:$0xff]
        %v5295 = vld [vmem:[%s3242] sm:$0xff]
        %v5296 = vld [vmem:[%s3242 + $0x8] sm:$0xff]
        %v5297 = vld [vmem:[%s3242 + $0x10] sm:$0xff]
        %v5298 = vld [vmem:[%s3242 + $0x18] sm:$0xff]
        %v5299 = vld [vmem:[%s3242 + $0x20] sm:$0xff]
        %v5300 = vld [vmem:[%s3242 + $0x28] sm:$0xff]
        %v5301 = vld [vmem:[%s3242 + $0x30] sm:$0xff]
        %v5302 = vld [vmem:[%s3242 + $0x38] sm:$0xff]
        %v5304 = vsel %vm539, %v5295, 0
        %v5307 = vsel %vm539, %v5296, 0
        %v5310 = vsel %vm539, %v5297, 0
        %v5313 = vsel %vm539, %v5298, 0
        %v5316 = vsel %vm539, %v5299, 0
        %v5319 = vsel %vm539, %v5300, 0
        %v5322 = vsel %vm539, %v5301, 0
        %v5325 = vsel %vm539, %v5302, 0
        %5327 = vmatpush.xpose.msra.mxu0 0.0
        %5328 = vmatpush.xpose.msra.mxu0 0.0
        %5329 = vmatpush.xpose.msra.mxu0 0.0
        %5330 = vmatpush.xpose.msra.mxu0 0.0
        %5331 = vmatpush.xpose.msra.mxu0 0.0
        %5332 = vmatpush.xpose.msra.mxu0 0.0
        %5333 = vmatpush.xpose.msra.mxu0 0.0
        %5334 = vmatpush.xpose.msra.mxu0 0.0
        %5335 = vmatpush.xpose.msra.mxu0 %v5325
        %5336 = vmatpush.xpose.msra.mxu0 %v5322
        %5337 = vmatpush.xpose.msra.mxu0 %v5319
        %5338 = vmatpush.xpose.msra.mxu0 %v5316
        %5339 = vmatpush.xpose.msra.mxu0 %v5313
        %5340 = vmatpush.xpose.msra.mxu0 %v5310
        %5341 = vmatpush.xpose.msra.mxu0 %v5307
        %5342 = vmatpush.xpose.msra.mxu0 %v5304
        %5343 = vmatmul.f32.gmra.mxu0 %v4488
        %v5344 = vpop.f32.mrf.mxu0
        %v5345 = vadd.f32 0.0, %v5344
        %5346 = vmatmul.f32.gmra.mxu0 %v4491
        %v5347 = vpop.f32.mrf.mxu0
        %v5348 = vadd.f32 0.0, %v5347
        %5349 = vmatmul.f32.gmra.mxu0 %v4494
        %v5350 = vpop.f32.mrf.mxu0
        %v5351 = vadd.f32 0.0, %v5350
        %5352 = vmatmul.f32.gmra.mxu0 %v4497
        %v5353 = vpop.f32.mrf.mxu0
        %v5354 = vadd.f32 0.0, %v5353
        %5355 = vmatmul.f32.gmra.mxu0 %v4500
        %v5356 = vpop.f32.mrf.mxu0
        %v5357 = vadd.f32 0.0, %v5356
        %5358 = vmatmul.f32.gmra.mxu0 %v4503
        %v5359 = vpop.f32.mrf.mxu0
        %v5360 = vadd.f32 0.0, %v5359
        %5361 = vmatmul.f32.gmra.mxu0 %v4506
        %v5362 = vpop.f32.mrf.mxu0
        %v5363 = vadd.f32 0.0, %v5362
        %5364 = vmatmul.f32.gmra.mxu0 %v4509
        %v5365 = vpop.f32.mrf.mxu0
        %v5366 = vadd.f32 0.0, %v5365
        %5367 = vdwg.mxu0
        %v5368 = vmul.f32 %v5287, %v5345
        %v5369 = vmul.f32 %v5288, %v5348
        %v5370 = vmul.f32 %v5289, %v5351
        %v5371 = vmul.f32 %v5290, %v5354
        %v5372 = vmul.f32 %v5291, %v5357
        %v5373 = vmul.f32 %v5292, %v5360
        %v5374 = vmul.f32 %v5293, %v5363
        %v5375 = vmul.f32 %v5294, %v5366
        %v5376 = vadd.f32 %v5012, %v5368
        %v5377 = vadd.f32 %v5013, %v5369
        %v5378 = vadd.f32 %v5014, %v5370
        %v5379 = vadd.f32 %v5015, %v5371
        %v5380 = vadd.f32 %v5016, %v5372
        %v5381 = vadd.f32 %v5017, %v5373
        %v5382 = vadd.f32 %v5018, %v5374
        %v5383 = vadd.f32 %v5019, %v5375
        %5384 = vrot.lane.b32.xlu0 %v5295, 120
        %v5385 = vpop.permute.xlu0 %5384
        %5386 = vrot.lane.b32.xlu0 %v5296, 120
        %v5387 = vpop.permute.xlu0 %5386
        %5388 = vrot.lane.b32.xlu0 %v5297, 120
        %v5389 = vpop.permute.xlu0 %5388
        %5390 = vrot.lane.b32.xlu0 %v5298, 120
        %v5391 = vpop.permute.xlu0 %5390
        %5392 = vrot.lane.b32.xlu0 %v5299, 120
        %v5393 = vpop.permute.xlu0 %5392
        %5394 = vrot.lane.b32.xlu0 %v5300, 120
        %v5395 = vpop.permute.xlu0 %5394
        %5396 = vrot.lane.b32.xlu0 %v5301, 120
        %v5397 = vpop.permute.xlu0 %5396
        %5398 = vrot.lane.b32.xlu0 %v5302, 120
        %v5399 = vpop.permute.xlu0 %5398
        %v5400 = vsel %vm539, %v5385, 0
        %v5402 = vsel %vm539, %v5387, 0
        %v5404 = vsel %vm539, %v5389, 0
        %v5406 = vsel %vm539, %v5391, 0
        %v5408 = vsel %vm539, %v5393, 0
        %v5410 = vsel %vm539, %v5395, 0
        %v5412 = vsel %vm539, %v5397, 0
        %v5414 = vsel %vm539, %v5399, 0
        %5416 = vmatpush.xpose.msra.mxu0 0.0
        %5417 = vmatpush.xpose.msra.mxu0 0.0
        %5418 = vmatpush.xpose.msra.mxu0 0.0
        %5419 = vmatpush.xpose.msra.mxu0 0.0
        %5420 = vmatpush.xpose.msra.mxu0 0.0
        %5421 = vmatpush.xpose.msra.mxu0 0.0
        %5422 = vmatpush.xpose.msra.mxu0 0.0
        %5423 = vmatpush.xpose.msra.mxu0 0.0
        %5424 = vmatpush.xpose.msra.mxu0 %v5414
        %5425 = vmatpush.xpose.msra.mxu0 %v5412
        %5426 = vmatpush.xpose.msra.mxu0 %v5410
        %5427 = vmatpush.xpose.msra.mxu0 %v5408
        %5428 = vmatpush.xpose.msra.mxu0 %v5406
        %5429 = vmatpush.xpose.msra.mxu0 %v5404
        %5430 = vmatpush.xpose.msra.mxu0 %v5402
        %5431 = vmatpush.xpose.msra.mxu0 %v5400
        %5432 = vmatmul.f32.gmra.mxu0 %v4616
        %v5433 = vpop.f32.mrf.mxu0
        %v5434 = vadd.f32 0.0, %v5433
        %5435 = vmatmul.f32.gmra.mxu0 %v4618
        %v5436 = vpop.f32.mrf.mxu0
        %v5437 = vadd.f32 0.0, %v5436
        %5438 = vmatmul.f32.gmra.mxu0 %v4620
        %v5439 = vpop.f32.mrf.mxu0
        %v5440 = vadd.f32 0.0, %v5439
        %5441 = vmatmul.f32.gmra.mxu0 %v4622
        %v5442 = vpop.f32.mrf.mxu0
        %v5443 = vadd.f32 0.0, %v5442
        %5444 = vmatmul.f32.gmra.mxu0 %v4624
        %v5445 = vpop.f32.mrf.mxu0
        %v5446 = vadd.f32 0.0, %v5445
        %5447 = vmatmul.f32.gmra.mxu0 %v4626
        %v5448 = vpop.f32.mrf.mxu0
        %v5449 = vadd.f32 0.0, %v5448
        %5450 = vmatmul.f32.gmra.mxu0 %v4628
        %v5451 = vpop.f32.mrf.mxu0
        %v5452 = vadd.f32 0.0, %v5451
        %5453 = vmatmul.f32.gmra.mxu0 %v4630
        %v5454 = vpop.f32.mrf.mxu0
        %v5455 = vadd.f32 0.0, %v5454
        %5456 = vdwg.mxu0
        %v5457 = vmul.f32 %v5287, %v5434
        %v5458 = vmul.f32 %v5288, %v5437
        %v5459 = vmul.f32 %v5289, %v5440
        %v5460 = vmul.f32 %v5290, %v5443
        %v5461 = vmul.f32 %v5291, %v5446
        %v5462 = vmul.f32 %v5292, %v5449
        %v5463 = vmul.f32 %v5293, %v5452
        %v5464 = vmul.f32 %v5294, %v5455
        %v5465 = vadd.f32 %v5101, %v5457
        %v5466 = vadd.f32 %v5102, %v5458
        %v5467 = vadd.f32 %v5103, %v5459
        %v5468 = vadd.f32 %v5104, %v5460
        %v5469 = vadd.f32 %v5105, %v5461
        %v5470 = vadd.f32 %v5106, %v5462
        %v5471 = vadd.f32 %v5107, %v5463
        %v5472 = vadd.f32 %v5108, %v5464
        %5473 = vrot.lane.b32.xlu0 %v5295, 112
        %v5474 = vpop.permute.xlu0 %5473
        %5475 = vrot.lane.b32.xlu0 %v5296, 112
        %v5476 = vpop.permute.xlu0 %5475
        %5477 = vrot.lane.b32.xlu0 %v5297, 112
        %v5478 = vpop.permute.xlu0 %5477
        %5479 = vrot.lane.b32.xlu0 %v5298, 112
        %v5480 = vpop.permute.xlu0 %5479
        %5481 = vrot.lane.b32.xlu0 %v5299, 112
        %v5482 = vpop.permute.xlu0 %5481
        %5483 = vrot.lane.b32.xlu0 %v5300, 112
        %v5484 = vpop.permute.xlu0 %5483
        %5485 = vrot.lane.b32.xlu0 %v5301, 112
        %v5486 = vpop.permute.xlu0 %5485
        %5487 = vrot.lane.b32.xlu0 %v5302, 112
        %v5488 = vpop.permute.xlu0 %5487
        %v5489 = vsel %vm539, %v5474, 0
        %v5491 = vsel %vm539, %v5476, 0
        %v5493 = vsel %vm539, %v5478, 0
        %v5495 = vsel %vm539, %v5480, 0
        %v5497 = vsel %vm539, %v5482, 0
        %v5499 = vsel %vm539, %v5484, 0
        %v5501 = vsel %vm539, %v5486, 0
        %v5503 = vsel %vm539, %v5488, 0
        %5505 = vmatpush.xpose.msra.mxu0 0.0
        %5506 = vmatpush.xpose.msra.mxu0 0.0
        %5507 = vmatpush.xpose.msra.mxu0 0.0
        %5508 = vmatpush.xpose.msra.mxu0 0.0
        %5509 = vmatpush.xpose.msra.mxu0 0.0
        %5510 = vmatpush.xpose.msra.mxu0 0.0
        %5511 = vmatpush.xpose.msra.mxu0 0.0
        %5512 = vmatpush.xpose.msra.mxu0 0.0
        %5513 = vmatpush.xpose.msra.mxu0 %v5503
        %5514 = vmatpush.xpose.msra.mxu0 %v5501
        %5515 = vmatpush.xpose.msra.mxu0 %v5499
        %5516 = vmatpush.xpose.msra.mxu0 %v5497
        %5517 = vmatpush.xpose.msra.mxu0 %v5495
        %5518 = vmatpush.xpose.msra.mxu0 %v5493
        %5519 = vmatpush.xpose.msra.mxu0 %v5491
        %5520 = vmatpush.xpose.msra.mxu0 %v5489
        %5521 = vmatmul.f32.gmra.mxu0 %v4729
        %v5522 = vpop.f32.mrf.mxu0
        %v5523 = vadd.f32 0.0, %v5522
        %5524 = vmatmul.f32.gmra.mxu0 %v4731
        %v5525 = vpop.f32.mrf.mxu0
        %v5526 = vadd.f32 0.0, %v5525
        %5527 = vmatmul.f32.gmra.mxu0 %v4733
        %v5528 = vpop.f32.mrf.mxu0
        %v5529 = vadd.f32 0.0, %v5528
        %5530 = vmatmul.f32.gmra.mxu0 %v4735
        %v5531 = vpop.f32.mrf.mxu0
        %v5532 = vadd.f32 0.0, %v5531
        %5533 = vmatmul.f32.gmra.mxu0 %v4737
        %v5534 = vpop.f32.mrf.mxu0
        %v5535 = vadd.f32 0.0, %v5534
        %5536 = vmatmul.f32.gmra.mxu0 %v4739
        %v5537 = vpop.f32.mrf.mxu0
        %v5538 = vadd.f32 0.0, %v5537
        %5539 = vmatmul.f32.gmra.mxu0 %v4741
        %v5540 = vpop.f32.mrf.mxu0
        %v5541 = vadd.f32 0.0, %v5540
        %5542 = vmatmul.f32.gmra.mxu0 %v4743
        %v5543 = vpop.f32.mrf.mxu0
        %v5544 = vadd.f32 0.0, %v5543
        %5545 = vdwg.mxu0
        %v5546 = vmul.f32 %v5287, %v5523
        %v5547 = vmul.f32 %v5288, %v5526
        %v5548 = vmul.f32 %v5289, %v5529
        %v5549 = vmul.f32 %v5290, %v5532
        %v5550 = vmul.f32 %v5291, %v5535
        %v5551 = vmul.f32 %v5292, %v5538
        %v5552 = vmul.f32 %v5293, %v5541
        %v5553 = vmul.f32 %v5294, %v5544
        %v5554 = vadd.f32 %v5190, %v5546
        %v5555 = vadd.f32 %v5191, %v5547
        %v5556 = vadd.f32 %v5192, %v5548
        %v5557 = vadd.f32 %v5193, %v5549
        %v5558 = vadd.f32 %v5194, %v5550
        %v5559 = vadd.f32 %v5195, %v5551
        %v5560 = vadd.f32 %v5196, %v5552
        %v5561 = vadd.f32 %v5197, %v5553
        %5562 = vrot.lane.b32.xlu0 %v5295, 104
        %v5563 = vpop.permute.xlu0 %5562
        %5564 = vrot.lane.b32.xlu0 %v5296, 104
        %v5565 = vpop.permute.xlu0 %5564
        %5566 = vrot.lane.b32.xlu0 %v5297, 104
        %v5567 = vpop.permute.xlu0 %5566
        %5568 = vrot.lane.b32.xlu0 %v5298, 104
        %v5569 = vpop.permute.xlu0 %5568
        %5570 = vrot.lane.b32.xlu0 %v5299, 104
        %v5571 = vpop.permute.xlu0 %5570
        %5572 = vrot.lane.b32.xlu0 %v5300, 104
        %v5573 = vpop.permute.xlu0 %5572
        %5574 = vrot.lane.b32.xlu0 %v5301, 104
        %v5575 = vpop.permute.xlu0 %5574
        %5576 = vrot.lane.b32.xlu0 %v5302, 104
        %v5577 = vpop.permute.xlu0 %5576
        %v5578 = vsel %vm539, %v5563, 0
        %v5580 = vsel %vm539, %v5565, 0
        %v5582 = vsel %vm539, %v5567, 0
        %v5584 = vsel %vm539, %v5569, 0
        %v5586 = vsel %vm539, %v5571, 0
        %v5588 = vsel %vm539, %v5573, 0
        %v5590 = vsel %vm539, %v5575, 0
        %v5592 = vsel %vm539, %v5577, 0
        %5594 = vmatpush.xpose.msra.mxu0 0.0
        %5595 = vmatpush.xpose.msra.mxu0 0.0
        %5596 = vmatpush.xpose.msra.mxu0 0.0
        %5597 = vmatpush.xpose.msra.mxu0 0.0
        %5598 = vmatpush.xpose.msra.mxu0 0.0
        %5599 = vmatpush.xpose.msra.mxu0 0.0
        %5600 = vmatpush.xpose.msra.mxu0 0.0
        %5601 = vmatpush.xpose.msra.mxu0 0.0
        %5602 = vmatpush.xpose.msra.mxu0 %v5592
        %5603 = vmatpush.xpose.msra.mxu0 %v5590
        %5604 = vmatpush.xpose.msra.mxu0 %v5588
        %5605 = vmatpush.xpose.msra.mxu0 %v5586
        %5606 = vmatpush.xpose.msra.mxu0 %v5584
        %5607 = vmatpush.xpose.msra.mxu0 %v5582
        %5608 = vmatpush.xpose.msra.mxu0 %v5580
        %5609 = vmatpush.xpose.msra.mxu0 %v5578
        %5610 = vmatmul.f32.gmra.mxu0 %v4842
        %v5611 = vpop.f32.mrf.mxu0
        %v5612 = vadd.f32 0.0, %v5611
        %5613 = vmatmul.f32.gmra.mxu0 %v4844
        %v5614 = vpop.f32.mrf.mxu0
        %v5615 = vadd.f32 0.0, %v5614
        %5616 = vmatmul.f32.gmra.mxu0 %v4846
        %v5617 = vpop.f32.mrf.mxu0
        %v5618 = vadd.f32 0.0, %v5617
        %5619 = vmatmul.f32.gmra.mxu0 %v4848
        %v5620 = vpop.f32.mrf.mxu0
        %v5621 = vadd.f32 0.0, %v5620
        %5622 = vmatmul.f32.gmra.mxu0 %v4850
        %v5623 = vpop.f32.mrf.mxu0
        %v5624 = vadd.f32 0.0, %v5623
        %5625 = vmatmul.f32.gmra.mxu0 %v4852
        %v5626 = vpop.f32.mrf.mxu0
        %v5627 = vadd.f32 0.0, %v5626
        %5628 = vmatmul.f32.gmra.mxu0 %v4854
        %v5629 = vpop.f32.mrf.mxu0
        %v5630 = vadd.f32 0.0, %v5629
        %5631 = vmatmul.f32.gmra.mxu0 %v4856
        %v5632 = vpop.f32.mrf.mxu0
        %v5633 = vadd.f32 0.0, %v5632
        %5634 = vdwg.mxu0
        %v5635 = vmul.f32 %v5287, %v5612
        %v5636 = vmul.f32 %v5288, %v5615
        %v5637 = vmul.f32 %v5289, %v5618
        %v5638 = vmul.f32 %v5290, %v5621
        %v5639 = vmul.f32 %v5291, %v5624
        %v5640 = vmul.f32 %v5292, %v5627
        %v5641 = vmul.f32 %v5293, %v5630
        %v5642 = vmul.f32 %v5294, %v5633
        %v5643 = vadd.f32 %v5279, %v5635
        %v5644 = vadd.f32 %v5280, %v5636
        %v5645 = vadd.f32 %v5281, %v5637
        %v5646 = vadd.f32 %v5282, %v5638
        %v5647 = vadd.f32 %v5283, %v5639
        %v5648 = vadd.f32 %v5284, %v5640
        %v5649 = vadd.f32 %v5285, %v5641
        %v5650 = vadd.f32 %v5286, %v5642
        %v5651 = vld [vmem:[%s4101] sm:$0xff]
        %v5652 = vld [vmem:[%s4101 + $0x8] sm:$0xff]
        %v5653 = vld [vmem:[%s4101 + $0x10] sm:$0xff]
        %v5654 = vld [vmem:[%s4101 + $0x18] sm:$0xff]
        %v5655 = vld [vmem:[%s4101 + $0x20] sm:$0xff]
        %v5656 = vld [vmem:[%s4101 + $0x28] sm:$0xff]
        %v5657 = vld [vmem:[%s4101 + $0x30] sm:$0xff]
        %v5658 = vld [vmem:[%s4101 + $0x38] sm:$0xff]
        %v5659 = vld [vmem:[%s4183] sm:$0xff]
        %v5660 = vld [vmem:[%s4183 + $0x8] sm:$0xff]
        %v5661 = vld [vmem:[%s4183 + $0x10] sm:$0xff]
        %v5662 = vld [vmem:[%s4183 + $0x18] sm:$0xff]
        %v5663 = vld [vmem:[%s4183 + $0x20] sm:$0xff]
        %v5664 = vld [vmem:[%s4183 + $0x28] sm:$0xff]
        %v5665 = vld [vmem:[%s4183 + $0x30] sm:$0xff]
        %v5666 = vld [vmem:[%s4183 + $0x38] sm:$0xff]
        %v5668 = vsel %vm539, %v5659, 0
        %v5671 = vsel %vm539, %v5660, 0
        %v5674 = vsel %vm539, %v5661, 0
        %v5677 = vsel %vm539, %v5662, 0
        %v5680 = vsel %vm539, %v5663, 0
        %v5683 = vsel %vm539, %v5664, 0
        %v5686 = vsel %vm539, %v5665, 0
        %v5689 = vsel %vm539, %v5666, 0
        %5691 = vmatpush.xpose.msra.mxu0 0.0
        %5692 = vmatpush.xpose.msra.mxu0 0.0
        %5693 = vmatpush.xpose.msra.mxu0 0.0
        %5694 = vmatpush.xpose.msra.mxu0 0.0
        %5695 = vmatpush.xpose.msra.mxu0 0.0
        %5696 = vmatpush.xpose.msra.mxu0 0.0
        %5697 = vmatpush.xpose.msra.mxu0 0.0
        %5698 = vmatpush.xpose.msra.mxu0 0.0
        %5699 = vmatpush.xpose.msra.mxu0 %v5689
        %5700 = vmatpush.xpose.msra.mxu0 %v5686
        %5701 = vmatpush.xpose.msra.mxu0 %v5683
        %5702 = vmatpush.xpose.msra.mxu0 %v5680
        %5703 = vmatpush.xpose.msra.mxu0 %v5677
        %5704 = vmatpush.xpose.msra.mxu0 %v5674
        %5705 = vmatpush.xpose.msra.mxu0 %v5671
        %5706 = vmatpush.xpose.msra.mxu0 %v5668
        %5707 = vmatmul.f32.gmra.mxu0 %v4488
        %v5708 = vpop.f32.mrf.mxu0
        %v5709 = vadd.f32 0.0, %v5708
        %5710 = vmatmul.f32.gmra.mxu0 %v4491
        %v5711 = vpop.f32.mrf.mxu0
        %v5712 = vadd.f32 0.0, %v5711
        %5713 = vmatmul.f32.gmra.mxu0 %v4494
        %v5714 = vpop.f32.mrf.mxu0
        %v5715 = vadd.f32 0.0, %v5714
        %5716 = vmatmul.f32.gmra.mxu0 %v4497
        %v5717 = vpop.f32.mrf.mxu0
        %v5718 = vadd.f32 0.0, %v5717
        %5719 = vmatmul.f32.gmra.mxu0 %v4500
        %v5720 = vpop.f32.mrf.mxu0
        %v5721 = vadd.f32 0.0, %v5720
        %5722 = vmatmul.f32.gmra.mxu0 %v4503
        %v5723 = vpop.f32.mrf.mxu0
        %v5724 = vadd.f32 0.0, %v5723
        %5725 = vmatmul.f32.gmra.mxu0 %v4506
        %v5726 = vpop.f32.mrf.mxu0
        %v5727 = vadd.f32 0.0, %v5726
        %5728 = vmatmul.f32.gmra.mxu0 %v4509
        %v5729 = vpop.f32.mrf.mxu0
        %v5730 = vadd.f32 0.0, %v5729
        %5731 = vdwg.mxu0
        %v5732 = vmul.f32 %v5651, %v5709
        %v5733 = vmul.f32 %v5652, %v5712
        %v5734 = vmul.f32 %v5653, %v5715
        %v5735 = vmul.f32 %v5654, %v5718
        %v5736 = vmul.f32 %v5655, %v5721
        %v5737 = vmul.f32 %v5656, %v5724
        %v5738 = vmul.f32 %v5657, %v5727
        %v5739 = vmul.f32 %v5658, %v5730
        %v5740 = vadd.f32 %v5376, %v5732
        %v5741 = vadd.f32 %v5377, %v5733
        %v5742 = vadd.f32 %v5378, %v5734
        %v5743 = vadd.f32 %v5379, %v5735
        %v5744 = vadd.f32 %v5380, %v5736
        %v5745 = vadd.f32 %v5381, %v5737
        %v5746 = vadd.f32 %v5382, %v5738
        %v5747 = vadd.f32 %v5383, %v5739
        %5748 = vrot.lane.b32.xlu0 %v5659, 120
        %v5749 = vpop.permute.xlu0 %5748
        %5750 = vrot.lane.b32.xlu0 %v5660, 120
        %v5751 = vpop.permute.xlu0 %5750
        %5752 = vrot.lane.b32.xlu0 %v5661, 120
        %v5753 = vpop.permute.xlu0 %5752
        %5754 = vrot.lane.b32.xlu0 %v5662, 120
        %v5755 = vpop.permute.xlu0 %5754
        %5756 = vrot.lane.b32.xlu0 %v5663, 120
        %v5757 = vpop.permute.xlu0 %5756
        %5758 = vrot.lane.b32.xlu0 %v5664, 120
        %v5759 = vpop.permute.xlu0 %5758
        %5760 = vrot.lane.b32.xlu0 %v5665, 120
        %v5761 = vpop.permute.xlu0 %5760
        %5762 = vrot.lane.b32.xlu0 %v5666, 120
        %v5763 = vpop.permute.xlu0 %5762
        %v5764 = vsel %vm539, %v5749, 0
        %v5766 = vsel %vm539, %v5751, 0
        %v5768 = vsel %vm539, %v5753, 0
        %v5770 = vsel %vm539, %v5755, 0
        %v5772 = vsel %vm539, %v5757, 0
        %v5774 = vsel %vm539, %v5759, 0
        %v5776 = vsel %vm539, %v5761, 0
        %v5778 = vsel %vm539, %v5763, 0
        %5780 = vmatpush.xpose.msra.mxu0 0.0
        %5781 = vmatpush.xpose.msra.mxu0 0.0
        %5782 = vmatpush.xpose.msra.mxu0 0.0
        %5783 = vmatpush.xpose.msra.mxu0 0.0
        %5784 = vmatpush.xpose.msra.mxu0 0.0
        %5785 = vmatpush.xpose.msra.mxu0 0.0
        %5786 = vmatpush.xpose.msra.mxu0 0.0
        %5787 = vmatpush.xpose.msra.mxu0 0.0
        %5788 = vmatpush.xpose.msra.mxu0 %v5778
        %5789 = vmatpush.xpose.msra.mxu0 %v5776
        %5790 = vmatpush.xpose.msra.mxu0 %v5774
        %5791 = vmatpush.xpose.msra.mxu0 %v5772
        %5792 = vmatpush.xpose.msra.mxu0 %v5770
        %5793 = vmatpush.xpose.msra.mxu0 %v5768
        %5794 = vmatpush.xpose.msra.mxu0 %v5766
        %5795 = vmatpush.xpose.msra.mxu0 %v5764
        %5796 = vmatmul.f32.gmra.mxu0 %v4616
        %v5797 = vpop.f32.mrf.mxu0
        %v5798 = vadd.f32 0.0, %v5797
        %5799 = vmatmul.f32.gmra.mxu0 %v4618
        %v5800 = vpop.f32.mrf.mxu0
        %v5801 = vadd.f32 0.0, %v5800
        %5802 = vmatmul.f32.gmra.mxu0 %v4620
        %v5803 = vpop.f32.mrf.mxu0
        %v5804 = vadd.f32 0.0, %v5803
        %5805 = vmatmul.f32.gmra.mxu0 %v4622
        %v5806 = vpop.f32.mrf.mxu0
        %v5807 = vadd.f32 0.0, %v5806
        %5808 = vmatmul.f32.gmra.mxu0 %v4624
        %v5809 = vpop.f32.mrf.mxu0
        %v5810 = vadd.f32 0.0, %v5809
        %5811 = vmatmul.f32.gmra.mxu0 %v4626
        %v5812 = vpop.f32.mrf.mxu0
        %v5813 = vadd.f32 0.0, %v5812
        %5814 = vmatmul.f32.gmra.mxu0 %v4628
        %v5815 = vpop.f32.mrf.mxu0
        %v5816 = vadd.f32 0.0, %v5815
        %5817 = vmatmul.f32.gmra.mxu0 %v4630
        %v5818 = vpop.f32.mrf.mxu0
        %v5819 = vadd.f32 0.0, %v5818
        %5820 = vdwg.mxu0
        %v5821 = vmul.f32 %v5651, %v5798
        %v5822 = vmul.f32 %v5652, %v5801
        %v5823 = vmul.f32 %v5653, %v5804
        %v5824 = vmul.f32 %v5654, %v5807
        %v5825 = vmul.f32 %v5655, %v5810
        %v5826 = vmul.f32 %v5656, %v5813
        %v5827 = vmul.f32 %v5657, %v5816
        %v5828 = vmul.f32 %v5658, %v5819
        %v5829 = vadd.f32 %v5465, %v5821
        %v5830 = vadd.f32 %v5466, %v5822
        %v5831 = vadd.f32 %v5467, %v5823
        %v5832 = vadd.f32 %v5468, %v5824
        %v5833 = vadd.f32 %v5469, %v5825
        %v5834 = vadd.f32 %v5470, %v5826
        %v5835 = vadd.f32 %v5471, %v5827
        %v5836 = vadd.f32 %v5472, %v5828
        %5837 = vrot.lane.b32.xlu0 %v5659, 112
        %v5838 = vpop.permute.xlu0 %5837
        %5839 = vrot.lane.b32.xlu0 %v5660, 112
        %v5840 = vpop.permute.xlu0 %5839
        %5841 = vrot.lane.b32.xlu0 %v5661, 112
        %v5842 = vpop.permute.xlu0 %5841
        %5843 = vrot.lane.b32.xlu0 %v5662, 112
        %v5844 = vpop.permute.xlu0 %5843
        %5845 = vrot.lane.b32.xlu0 %v5663, 112
        %v5846 = vpop.permute.xlu0 %5845
        %5847 = vrot.lane.b32.xlu0 %v5664, 112
        %v5848 = vpop.permute.xlu0 %5847
        %5849 = vrot.lane.b32.xlu0 %v5665, 112
        %v5850 = vpop.permute.xlu0 %5849
        %5851 = vrot.lane.b32.xlu0 %v5666, 112
        %v5852 = vpop.permute.xlu0 %5851
        %v5853 = vsel %vm539, %v5838, 0
        %v5855 = vsel %vm539, %v5840, 0
        %v5857 = vsel %vm539, %v5842, 0
        %v5859 = vsel %vm539, %v5844, 0
        %v5861 = vsel %vm539, %v5846, 0
        %v5863 = vsel %vm539, %v5848, 0
        %v5865 = vsel %vm539, %v5850, 0
        %v5867 = vsel %vm539, %v5852, 0
        %5869 = vmatpush.xpose.msra.mxu0 0.0
        %5870 = vmatpush.xpose.msra.mxu0 0.0
        %5871 = vmatpush.xpose.msra.mxu0 0.0
        %5872 = vmatpush.xpose.msra.mxu0 0.0
        %5873 = vmatpush.xpose.msra.mxu0 0.0
        %5874 = vmatpush.xpose.msra.mxu0 0.0
        %5875 = vmatpush.xpose.msra.mxu0 0.0
        %5876 = vmatpush.xpose.msra.mxu0 0.0
        %5877 = vmatpush.xpose.msra.mxu0 %v5867
        %5878 = vmatpush.xpose.msra.mxu0 %v5865
        %5879 = vmatpush.xpose.msra.mxu0 %v5863
        %5880 = vmatpush.xpose.msra.mxu0 %v5861
        %5881 = vmatpush.xpose.msra.mxu0 %v5859
        %5882 = vmatpush.xpose.msra.mxu0 %v5857
        %5883 = vmatpush.xpose.msra.mxu0 %v5855
        %5884 = vmatpush.xpose.msra.mxu0 %v5853
        %5885 = vmatmul.f32.gmra.mxu0 %v4729
        %v5886 = vpop.f32.mrf.mxu0
        %v5887 = vadd.f32 0.0, %v5886
        %5888 = vmatmul.f32.gmra.mxu0 %v4731
        %v5889 = vpop.f32.mrf.mxu0
        %v5890 = vadd.f32 0.0, %v5889
        %5891 = vmatmul.f32.gmra.mxu0 %v4733
        %v5892 = vpop.f32.mrf.mxu0
        %v5893 = vadd.f32 0.0, %v5892
        %5894 = vmatmul.f32.gmra.mxu0 %v4735
        %v5895 = vpop.f32.mrf.mxu0
        %v5896 = vadd.f32 0.0, %v5895
        %5897 = vmatmul.f32.gmra.mxu0 %v4737
        %v5898 = vpop.f32.mrf.mxu0
        %v5899 = vadd.f32 0.0, %v5898
        %5900 = vmatmul.f32.gmra.mxu0 %v4739
        %v5901 = vpop.f32.mrf.mxu0
        %v5902 = vadd.f32 0.0, %v5901
        %5903 = vmatmul.f32.gmra.mxu0 %v4741
        %v5904 = vpop.f32.mrf.mxu0
        %v5905 = vadd.f32 0.0, %v5904
        %5906 = vmatmul.f32.gmra.mxu0 %v4743
        %v5907 = vpop.f32.mrf.mxu0
        %v5908 = vadd.f32 0.0, %v5907
        %5909 = vdwg.mxu0
        %v5910 = vmul.f32 %v5651, %v5887
        %v5911 = vmul.f32 %v5652, %v5890
        %v5912 = vmul.f32 %v5653, %v5893
        %v5913 = vmul.f32 %v5654, %v5896
        %v5914 = vmul.f32 %v5655, %v5899
        %v5915 = vmul.f32 %v5656, %v5902
        %v5916 = vmul.f32 %v5657, %v5905
        %v5917 = vmul.f32 %v5658, %v5908
        %v5918 = vadd.f32 %v5554, %v5910
        %v5919 = vadd.f32 %v5555, %v5911
        %v5920 = vadd.f32 %v5556, %v5912
        %v5921 = vadd.f32 %v5557, %v5913
        %v5922 = vadd.f32 %v5558, %v5914
        %v5923 = vadd.f32 %v5559, %v5915
        %v5924 = vadd.f32 %v5560, %v5916
        %v5925 = vadd.f32 %v5561, %v5917
        %5926 = vrot.lane.b32.xlu0 %v5659, 104
        %v5927 = vpop.permute.xlu0 %5926
        %5928 = vrot.lane.b32.xlu0 %v5660, 104
        %v5929 = vpop.permute.xlu0 %5928
        %5930 = vrot.lane.b32.xlu0 %v5661, 104
        %v5931 = vpop.permute.xlu0 %5930
        %5932 = vrot.lane.b32.xlu0 %v5662, 104
        %v5933 = vpop.permute.xlu0 %5932
        %5934 = vrot.lane.b32.xlu0 %v5663, 104
        %v5935 = vpop.permute.xlu0 %5934
        %5936 = vrot.lane.b32.xlu0 %v5664, 104
        %v5937 = vpop.permute.xlu0 %5936
        %5938 = vrot.lane.b32.xlu0 %v5665, 104
        %v5939 = vpop.permute.xlu0 %5938
        %5940 = vrot.lane.b32.xlu0 %v5666, 104
        %v5941 = vpop.permute.xlu0 %5940
        %v5942 = vsel %vm539, %v5927, 0
        %v5944 = vsel %vm539, %v5929, 0
        %v5946 = vsel %vm539, %v5931, 0
        %v5948 = vsel %vm539, %v5933, 0
        %v5950 = vsel %vm539, %v5935, 0
        %v5952 = vsel %vm539, %v5937, 0
        %v5954 = vsel %vm539, %v5939, 0
        %v5956 = vsel %vm539, %v5941, 0
        %5958 = vmatpush.xpose.msra.mxu0 0.0
        %5959 = vmatpush.xpose.msra.mxu0 0.0
        %5960 = vmatpush.xpose.msra.mxu0 0.0
        %5961 = vmatpush.xpose.msra.mxu0 0.0
        %5962 = vmatpush.xpose.msra.mxu0 0.0
        %5963 = vmatpush.xpose.msra.mxu0 0.0
        %5964 = vmatpush.xpose.msra.mxu0 0.0
        %5965 = vmatpush.xpose.msra.mxu0 0.0
        %5966 = vmatpush.xpose.msra.mxu0 %v5956
        %5967 = vmatpush.xpose.msra.mxu0 %v5954
        %5968 = vmatpush.xpose.msra.mxu0 %v5952
        %5969 = vmatpush.xpose.msra.mxu0 %v5950
        %5970 = vmatpush.xpose.msra.mxu0 %v5948
        %5971 = vmatpush.xpose.msra.mxu0 %v5946
        %5972 = vmatpush.xpose.msra.mxu0 %v5944
        %5973 = vmatpush.xpose.msra.mxu0 %v5942
        %5974 = vmatmul.f32.gmra.mxu0 %v4842
        %v5975 = vpop.f32.mrf.mxu0
        %v5976 = vadd.f32 0.0, %v5975
        %5977 = vmatmul.f32.gmra.mxu0 %v4844
        %v5978 = vpop.f32.mrf.mxu0
        %v5979 = vadd.f32 0.0, %v5978
        %5980 = vmatmul.f32.gmra.mxu0 %v4846
        %v5981 = vpop.f32.mrf.mxu0
        %v5982 = vadd.f32 0.0, %v5981
        %5983 = vmatmul.f32.gmra.mxu0 %v4848
        %v5984 = vpop.f32.mrf.mxu0
        %v5985 = vadd.f32 0.0, %v5984
        %5986 = vmatmul.f32.gmra.mxu0 %v4850
        %v5987 = vpop.f32.mrf.mxu0
        %v5988 = vadd.f32 0.0, %v5987
        %5989 = vmatmul.f32.gmra.mxu0 %v4852
        %v5990 = vpop.f32.mrf.mxu0
        %v5991 = vadd.f32 0.0, %v5990
        %5992 = vmatmul.f32.gmra.mxu0 %v4854
        %v5993 = vpop.f32.mrf.mxu0
        %v5994 = vadd.f32 0.0, %v5993
        %5995 = vmatmul.f32.gmra.mxu0 %v4856
        %v5996 = vpop.f32.mrf.mxu0
        %v5997 = vadd.f32 0.0, %v5996
        %5998 = vdwg.mxu0
        %v5999 = vmul.f32 %v5651, %v5976
        %v6000 = vmul.f32 %v5652, %v5979
        %v6001 = vmul.f32 %v5653, %v5982
        %v6002 = vmul.f32 %v5654, %v5985
        %v6003 = vmul.f32 %v5655, %v5988
        %v6004 = vmul.f32 %v5656, %v5991
        %v6005 = vmul.f32 %v5657, %v5994
        %v6006 = vmul.f32 %v5658, %v5997
        %v6007 = vadd.f32 %v5643, %v5999
        %v6008 = vadd.f32 %v5644, %v6000
        %v6009 = vadd.f32 %v5645, %v6001
        %v6010 = vadd.f32 %v5646, %v6002
        %v6011 = vadd.f32 %v5647, %v6003
        %v6012 = vadd.f32 %v5648, %v6004
        %v6013 = vadd.f32 %v5649, %v6005
        %v6014 = vadd.f32 %v5650, %v6006
        %6023 = vrot.lane.b32.xlu0 %v5740, 112
        %v6024 = vpop.permute.xlu0 %6023
        %6025 = vrot.lane.b32.xlu0 %v5741, 112
        %v6026 = vpop.permute.xlu0 %6025
        %6027 = vrot.lane.b32.xlu0 %v5742, 112
        %v6028 = vpop.permute.xlu0 %6027
        %6029 = vrot.lane.b32.xlu0 %v5743, 112
        %v6030 = vpop.permute.xlu0 %6029
        %6031 = vrot.lane.b32.xlu0 %v5744, 112
        %v6032 = vpop.permute.xlu0 %6031
        %6033 = vrot.lane.b32.xlu0 %v5745, 112
        %v6034 = vpop.permute.xlu0 %6033
        %6035 = vrot.lane.b32.xlu0 %v5746, 112
        %v6036 = vpop.permute.xlu0 %6035
        %6037 = vrot.lane.b32.xlu0 %v5747, 112
        %v6038 = vpop.permute.xlu0 %6037
        %v6047 = vadd.f32 %v5740, %v6024
        %v6048 = vadd.f32 %v5741, %v6026
        %v6049 = vadd.f32 %v5742, %v6028
        %v6050 = vadd.f32 %v5743, %v6030
        %v6051 = vadd.f32 %v5744, %v6032
        %v6052 = vadd.f32 %v5745, %v6034
        %v6053 = vadd.f32 %v5746, %v6036
        %v6054 = vadd.f32 %v5747, %v6038
        %6055 = vrot.lane.b32.xlu0 %v5740, 96
        %v6056 = vpop.permute.xlu0 %6055
        %6057 = vrot.lane.b32.xlu0 %v5741, 96
        %v6058 = vpop.permute.xlu0 %6057
        %6059 = vrot.lane.b32.xlu0 %v5742, 96
        %v6060 = vpop.permute.xlu0 %6059
        %6061 = vrot.lane.b32.xlu0 %v5743, 96
        %v6062 = vpop.permute.xlu0 %6061
        %6063 = vrot.lane.b32.xlu0 %v5744, 96
        %v6064 = vpop.permute.xlu0 %6063
        %6065 = vrot.lane.b32.xlu0 %v5745, 96
        %v6066 = vpop.permute.xlu0 %6065
        %6067 = vrot.lane.b32.xlu0 %v5746, 96
        %v6068 = vpop.permute.xlu0 %6067
        %6069 = vrot.lane.b32.xlu0 %v5747, 96
        %v6070 = vpop.permute.xlu0 %6069
        %v6079 = vadd.f32 %v6047, %v6056
        %v6080 = vadd.f32 %v6048, %v6058
        %v6081 = vadd.f32 %v6049, %v6060
        %v6082 = vadd.f32 %v6050, %v6062
        %v6083 = vadd.f32 %v6051, %v6064
        %v6084 = vadd.f32 %v6052, %v6066
        %v6085 = vadd.f32 %v6053, %v6068
        %v6086 = vadd.f32 %v6054, %v6070
        %6087 = vrot.lane.b32.xlu0 %v5740, 80
        %v6088 = vpop.permute.xlu0 %6087
        %6089 = vrot.lane.b32.xlu0 %v5741, 80
        %v6090 = vpop.permute.xlu0 %6089
        %6091 = vrot.lane.b32.xlu0 %v5742, 80
        %v6092 = vpop.permute.xlu0 %6091
        %6093 = vrot.lane.b32.xlu0 %v5743, 80
        %v6094 = vpop.permute.xlu0 %6093
        %6095 = vrot.lane.b32.xlu0 %v5744, 80
        %v6096 = vpop.permute.xlu0 %6095
        %6097 = vrot.lane.b32.xlu0 %v5745, 80
        %v6098 = vpop.permute.xlu0 %6097
        %6099 = vrot.lane.b32.xlu0 %v5746, 80
        %v6100 = vpop.permute.xlu0 %6099
        %6101 = vrot.lane.b32.xlu0 %v5747, 80
        %v6102 = vpop.permute.xlu0 %6101
        %v6111 = vadd.f32 %v6079, %v6088
        %v6112 = vadd.f32 %v6080, %v6090
        %v6113 = vadd.f32 %v6081, %v6092
        %v6114 = vadd.f32 %v6082, %v6094
        %v6115 = vadd.f32 %v6083, %v6096
        %v6116 = vadd.f32 %v6084, %v6098
        %v6117 = vadd.f32 %v6085, %v6100
        %v6118 = vadd.f32 %v6086, %v6102
        %v6119 = vsel %vm1253, %v6111, -inf
        %6120 = vmax.xlane.f32.xlu0 %v6119
        %v6121 = vpop.xlane.xlu0 %6120
        %v6122 = vsel %vm1253, %v6112, -inf
        %6123 = vmax.xlane.f32.xlu0 %v6122
        %v6124 = vpop.xlane.xlu0 %6123
        %v6125 = vsel %vm1253, %v6113, -inf
        %6126 = vmax.xlane.f32.xlu0 %v6125
        %v6127 = vpop.xlane.xlu0 %6126
        %v6128 = vsel %vm1253, %v6114, -inf
        %6129 = vmax.xlane.f32.xlu0 %v6128
        %v6130 = vpop.xlane.xlu0 %6129
        %v6131 = vsel %vm1253, %v6115, -inf
        %6132 = vmax.xlane.f32.xlu0 %v6131
        %v6133 = vpop.xlane.xlu0 %6132
        %v6134 = vsel %vm1253, %v6116, -inf
        %6135 = vmax.xlane.f32.xlu0 %v6134
        %v6136 = vpop.xlane.xlu0 %6135
        %v6137 = vsel %vm1253, %v6117, -inf
        %6138 = vmax.xlane.f32.xlu0 %v6137
        %v6139 = vpop.xlane.xlu0 %6138
        %v6140 = vsel %vm1253, %v6118, -inf
        %6141 = vmax.xlane.f32.xlu0 %v6140
        %v6142 = vpop.xlane.xlu0 %6141
        %v6143 = vsub.f32 %v6111, %v6121
        %v6144 = vsub.f32 %v6112, %v6124
        %v6145 = vsub.f32 %v6113, %v6127
        %v6146 = vsub.f32 %v6114, %v6130
        %v6147 = vsub.f32 %v6115, %v6133
        %v6148 = vsub.f32 %v6116, %v6136
        %v6149 = vsub.f32 %v6117, %v6139
        %v6150 = vsub.f32 %v6118, %v6142
        %v6151 = vmul.f32 %v6143, 1.442695
        %v6152 = vpow.pop %v6151
        %v6153 = vmul.f32 %v6144, 1.442695
        %v6154 = vpow.pop %v6153
        %v6155 = vmul.f32 %v6145, 1.442695
        %v6156 = vpow.pop %v6155
        %v6157 = vmul.f32 %v6146, 1.442695
        %v6158 = vpow.pop %v6157
        %v6159 = vmul.f32 %v6147, 1.442695
        %v6160 = vpow.pop %v6159
        %v6161 = vmul.f32 %v6148, 1.442695
        %v6162 = vpow.pop %v6161
        %v6163 = vmul.f32 %v6149, 1.442695
        %v6164 = vpow.pop %v6163
        %v6165 = vmul.f32 %v6150, 1.442695
        %v6166 = vpow.pop %v6165
        %v6167 = vsel %vm1253, %v6152, 0.0
        %6168 = vadd.xlane.f32.xlu0 %v6167
        %v6169 = vpop.xlane.xlu0 %6168
        %v6170 = vsel %vm1253, %v6154, 0.0
        %6171 = vadd.xlane.f32.xlu0 %v6170
        %v6172 = vpop.xlane.xlu0 %6171
        %v6173 = vsel %vm1253, %v6156, 0.0
        %6174 = vadd.xlane.f32.xlu0 %v6173
        %v6175 = vpop.xlane.xlu0 %6174
        %v6176 = vsel %vm1253, %v6158, 0.0
        %6177 = vadd.xlane.f32.xlu0 %v6176
        %v6178 = vpop.xlane.xlu0 %6177
        %v6179 = vsel %vm1253, %v6160, 0.0
        %6180 = vadd.xlane.f32.xlu0 %v6179
        %v6181 = vpop.xlane.xlu0 %6180
        %v6182 = vsel %vm1253, %v6162, 0.0
        %6183 = vadd.xlane.f32.xlu0 %v6182
        %v6184 = vpop.xlane.xlu0 %6183
        %v6185 = vsel %vm1253, %v6164, 0.0
        %6186 = vadd.xlane.f32.xlu0 %v6185
        %v6187 = vpop.xlane.xlu0 %6186
        %v6188 = vsel %vm1253, %v6166, 0.0
        %6189 = vadd.xlane.f32.xlu0 %v6188
        %v6190 = vpop.xlane.xlu0 %6189
        %v6191 = vrcp.pop %v6169
        %v6192 = vmul.f32 %v6169, %v6191
        %v6193 = vsub.f32 1.0, %v6192
        %v6194 = vmul.f32 %v6191, %v6193
        %v6195 = vadd.f32 %v6191, %v6194
        %vm6196 = vweird.f32 %v6169
        %vm6197 = vweird.f32 %v6191
        %vm6198 = vmor %vm6196, %vm6197
        %v6199 = vsel %vm6198, %v6191, %v6195
        %v6200 = vand.u32 2147483647, %v6169
        %vm6201 = vcmp.eq.f32.partialorder %v6200, 8.507059e+37
        %v6202 = vand.u32 %v6169, 2147483648
        %v6203 = vor.u32 1.1754944e-38, %v6202
        %v6204 = vsel %vm6201, %v6203, %v6199
        %v6205 = vmul.f32 %v6152, %v6204
        %v6206 = vrcp.pop %v6172
        %v6207 = vmul.f32 %v6172, %v6206
        %v6208 = vsub.f32 1.0, %v6207
        %v6209 = vmul.f32 %v6206, %v6208
        %v6210 = vadd.f32 %v6206, %v6209
        %vm6211 = vweird.f32 %v6172
        %vm6212 = vweird.f32 %v6206
        %vm6213 = vmor %vm6211, %vm6212
        %v6214 = vsel %vm6213, %v6206, %v6210
        %v6215 = vand.u32 2147483647, %v6172
        %vm6216 = vcmp.eq.f32.partialorder %v6215, 8.507059e+37
        %v6217 = vand.u32 %v6172, 2147483648
        %v6218 = vor.u32 1.1754944e-38, %v6217
        %v6219 = vsel %vm6216, %v6218, %v6214
        %v6220 = vmul.f32 %v6154, %v6219
        %v6221 = vrcp.pop %v6175
        %v6222 = vmul.f32 %v6175, %v6221
        %v6223 = vsub.f32 1.0, %v6222
        %v6224 = vmul.f32 %v6221, %v6223
        %v6225 = vadd.f32 %v6221, %v6224
        %vm6226 = vweird.f32 %v6175
        %vm6227 = vweird.f32 %v6221
        %vm6228 = vmor %vm6226, %vm6227
        %v6229 = vsel %vm6228, %v6221, %v6225
        %v6230 = vand.u32 2147483647, %v6175
        %vm6231 = vcmp.eq.f32.partialorder %v6230, 8.507059e+37
        %v6232 = vand.u32 %v6175, 2147483648
        %v6233 = vor.u32 1.1754944e-38, %v6232
        %v6234 = vsel %vm6231, %v6233, %v6229
        %v6235 = vmul.f32 %v6156, %v6234
        %v6236 = vrcp.pop %v6178
        %v6237 = vmul.f32 %v6178, %v6236
        %v6238 = vsub.f32 1.0, %v6237
        %v6239 = vmul.f32 %v6236, %v6238
        %v6240 = vadd.f32 %v6236, %v6239
        %vm6241 = vweird.f32 %v6178
        %vm6242 = vweird.f32 %v6236
        %vm6243 = vmor %vm6241, %vm6242
        %v6244 = vsel %vm6243, %v6236, %v6240
        %v6245 = vand.u32 2147483647, %v6178
        %vm6246 = vcmp.eq.f32.partialorder %v6245, 8.507059e+37
        %v6247 = vand.u32 %v6178, 2147483648
        %v6248 = vor.u32 1.1754944e-38, %v6247
        %v6249 = vsel %vm6246, %v6248, %v6244
        %v6250 = vmul.f32 %v6158, %v6249
        %v6251 = vrcp.pop %v6181
        %v6252 = vmul.f32 %v6181, %v6251
        %v6253 = vsub.f32 1.0, %v6252
        %v6254 = vmul.f32 %v6251, %v6253
        %v6255 = vadd.f32 %v6251, %v6254
        %vm6256 = vweird.f32 %v6181
        %vm6257 = vweird.f32 %v6251
        %vm6258 = vmor %vm6256, %vm6257
        %v6259 = vsel %vm6258, %v6251, %v6255
        %v6260 = vand.u32 2147483647, %v6181
        %vm6261 = vcmp.eq.f32.partialorder %v6260, 8.507059e+37
        %v6262 = vand.u32 %v6181, 2147483648
        %v6263 = vor.u32 1.1754944e-38, %v6262
        %v6264 = vsel %vm6261, %v6263, %v6259
        %v6265 = vmul.f32 %v6160, %v6264
        %v6266 = vrcp.pop %v6184
        %v6267 = vmul.f32 %v6184, %v6266
        %v6268 = vsub.f32 1.0, %v6267
        %v6269 = vmul.f32 %v6266, %v6268
        %v6270 = vadd.f32 %v6266, %v6269
        %vm6271 = vweird.f32 %v6184
        %vm6272 = vweird.f32 %v6266
        %vm6273 = vmor %vm6271, %vm6272
        %v6274 = vsel %vm6273, %v6266, %v6270
        %v6275 = vand.u32 2147483647, %v6184
        %vm6276 = vcmp.eq.f32.partialorder %v6275, 8.507059e+37
        %v6277 = vand.u32 %v6184, 2147483648
        %v6278 = vor.u32 1.1754944e-38, %v6277
        %v6279 = vsel %vm6276, %v6278, %v6274
        %v6280 = vmul.f32 %v6162, %v6279
        %v6281 = vrcp.pop %v6187
        %v6282 = vmul.f32 %v6187, %v6281
        %v6283 = vsub.f32 1.0, %v6282
        %v6284 = vmul.f32 %v6281, %v6283
        %v6285 = vadd.f32 %v6281, %v6284
        %vm6286 = vweird.f32 %v6187
        %vm6287 = vweird.f32 %v6281
        %vm6288 = vmor %vm6286, %vm6287
        %v6289 = vsel %vm6288, %v6281, %v6285
        %v6290 = vand.u32 2147483647, %v6187
        %vm6291 = vcmp.eq.f32.partialorder %v6290, 8.507059e+37
        %v6292 = vand.u32 %v6187, 2147483648
        %v6293 = vor.u32 1.1754944e-38, %v6292
        %v6294 = vsel %vm6291, %v6293, %v6289
        %v6295 = vmul.f32 %v6164, %v6294
        %v6296 = vrcp.pop %v6190
        %v6297 = vmul.f32 %v6190, %v6296
        %v6298 = vsub.f32 1.0, %v6297
        %v6299 = vmul.f32 %v6296, %v6298
        %v6300 = vadd.f32 %v6296, %v6299
        %vm6301 = vweird.f32 %v6190
        %vm6302 = vweird.f32 %v6296
        %vm6303 = vmor %vm6301, %vm6302
        %v6304 = vsel %vm6303, %v6296, %v6300
        %v6305 = vand.u32 2147483647, %v6190
        %vm6306 = vcmp.eq.f32.partialorder %v6305, 8.507059e+37
        %v6307 = vand.u32 %v6190, 2147483648
        %v6308 = vor.u32 1.1754944e-38, %v6307
        %v6309 = vsel %vm6306, %v6308, %v6304
        %v6310 = vmul.f32 %v6166, %v6309
        %6319 = vrot.lane.b32.xlu0 %v6205, 16
        %v6320 = vpop.permute.xlu0 %6319
        %6321 = vrot.lane.b32.xlu0 %v6220, 16
        %v6322 = vpop.permute.xlu0 %6321
        %6323 = vrot.lane.b32.xlu0 %v6235, 16
        %v6324 = vpop.permute.xlu0 %6323
        %6325 = vrot.lane.b32.xlu0 %v6250, 16
        %v6326 = vpop.permute.xlu0 %6325
        %6327 = vrot.lane.b32.xlu0 %v6265, 16
        %v6328 = vpop.permute.xlu0 %6327
        %6329 = vrot.lane.b32.xlu0 %v6280, 16
        %v6330 = vpop.permute.xlu0 %6329
        %6331 = vrot.lane.b32.xlu0 %v6295, 16
        %v6332 = vpop.permute.xlu0 %6331
        %6333 = vrot.lane.b32.xlu0 %v6310, 16
        %v6334 = vpop.permute.xlu0 %6333
        %6343 = vrot.lane.b32.xlu0 %v6205, 32
        %v6344 = vpop.permute.xlu0 %6343
        %6345 = vrot.lane.b32.xlu0 %v6220, 32
        %v6346 = vpop.permute.xlu0 %6345
        %6347 = vrot.lane.b32.xlu0 %v6235, 32
        %v6348 = vpop.permute.xlu0 %6347
        %6349 = vrot.lane.b32.xlu0 %v6250, 32
        %v6350 = vpop.permute.xlu0 %6349
        %6351 = vrot.lane.b32.xlu0 %v6265, 32
        %v6352 = vpop.permute.xlu0 %6351
        %6353 = vrot.lane.b32.xlu0 %v6280, 32
        %v6354 = vpop.permute.xlu0 %6353
        %6355 = vrot.lane.b32.xlu0 %v6295, 32
        %v6356 = vpop.permute.xlu0 %6355
        %6357 = vrot.lane.b32.xlu0 %v6310, 32
        %v6358 = vpop.permute.xlu0 %6357
        %6367 = vrot.lane.b32.xlu0 %v6205, 48
        %v6368 = vpop.permute.xlu0 %6367
        %6369 = vrot.lane.b32.xlu0 %v6220, 48
        %v6370 = vpop.permute.xlu0 %6369
        %6371 = vrot.lane.b32.xlu0 %v6235, 48
        %v6372 = vpop.permute.xlu0 %6371
        %6373 = vrot.lane.b32.xlu0 %v6250, 48
        %v6374 = vpop.permute.xlu0 %6373
        %6375 = vrot.lane.b32.xlu0 %v6265, 48
        %v6376 = vpop.permute.xlu0 %6375
        %6377 = vrot.lane.b32.xlu0 %v6280, 48
        %v6378 = vpop.permute.xlu0 %6377
        %6379 = vrot.lane.b32.xlu0 %v6295, 48
        %v6380 = vpop.permute.xlu0 %6379
        %6381 = vrot.lane.b32.xlu0 %v6310, 48
        %v6382 = vpop.permute.xlu0 %6381
        %v6391 = vsel %vm1253, %v6205, %v6320
        %v6392 = vsel %vm1253, %v6220, %v6322
        %v6393 = vsel %vm1253, %v6235, %v6324
        %v6394 = vsel %vm1253, %v6250, %v6326
        %v6395 = vsel %vm1253, %v6265, %v6328
        %v6396 = vsel %vm1253, %v6280, %v6330
        %v6397 = vsel %vm1253, %v6295, %v6332
        %v6398 = vsel %vm1253, %v6310, %v6334
        %v6399 = vsel %vm302, %v6391, %v6344
        %v6400 = vsel %vm302, %v6392, %v6346
        %v6401 = vsel %vm302, %v6393, %v6348
        %v6402 = vsel %vm302, %v6394, %v6350
        %v6403 = vsel %vm302, %v6395, %v6352
        %v6404 = vsel %vm302, %v6396, %v6354
        %v6405 = vsel %vm302, %v6397, %v6356
        %v6406 = vsel %vm302, %v6398, %v6358
        %v6407 = vsel %vm1270, %v6399, %v6368
        %v6408 = vsel %vm1270, %v6400, %v6370
        %v6409 = vsel %vm1270, %v6401, %v6372
        %v6410 = vsel %vm1270, %v6402, %v6374
        %v6411 = vsel %vm1270, %v6403, %v6376
        %v6412 = vsel %vm1270, %v6404, %v6378
        %v6413 = vsel %vm1270, %v6405, %v6380
        %v6414 = vsel %vm1270, %v6406, %v6382
        %6423 = vrot.lane.b32.xlu0 %v5829, 112
        %v6424 = vpop.permute.xlu0 %6423
        %6425 = vrot.lane.b32.xlu0 %v5830, 112
        %v6426 = vpop.permute.xlu0 %6425
        %6427 = vrot.lane.b32.xlu0 %v5831, 112
        %v6428 = vpop.permute.xlu0 %6427
        %6429 = vrot.lane.b32.xlu0 %v5832, 112
        %v6430 = vpop.permute.xlu0 %6429
        %6431 = vrot.lane.b32.xlu0 %v5833, 112
        %v6432 = vpop.permute.xlu0 %6431
        %6433 = vrot.lane.b32.xlu0 %v5834, 112
        %v6434 = vpop.permute.xlu0 %6433
        %6435 = vrot.lane.b32.xlu0 %v5835, 112
        %v6436 = vpop.permute.xlu0 %6435
        %6437 = vrot.lane.b32.xlu0 %v5836, 112
        %v6438 = vpop.permute.xlu0 %6437
        %v6447 = vadd.f32 %v5829, %v6424
        %v6448 = vadd.f32 %v5830, %v6426
        %v6449 = vadd.f32 %v5831, %v6428
        %v6450 = vadd.f32 %v5832, %v6430
        %v6451 = vadd.f32 %v5833, %v6432
        %v6452 = vadd.f32 %v5834, %v6434
        %v6453 = vadd.f32 %v5835, %v6436
        %v6454 = vadd.f32 %v5836, %v6438
        %6455 = vrot.lane.b32.xlu0 %v5829, 96
        %v6456 = vpop.permute.xlu0 %6455
        %6457 = vrot.lane.b32.xlu0 %v5830, 96
        %v6458 = vpop.permute.xlu0 %6457
        %6459 = vrot.lane.b32.xlu0 %v5831, 96
        %v6460 = vpop.permute.xlu0 %6459
        %6461 = vrot.lane.b32.xlu0 %v5832, 96
        %v6462 = vpop.permute.xlu0 %6461
        %6463 = vrot.lane.b32.xlu0 %v5833, 96
        %v6464 = vpop.permute.xlu0 %6463
        %6465 = vrot.lane.b32.xlu0 %v5834, 96
        %v6466 = vpop.permute.xlu0 %6465
        %6467 = vrot.lane.b32.xlu0 %v5835, 96
        %v6468 = vpop.permute.xlu0 %6467
        %6469 = vrot.lane.b32.xlu0 %v5836, 96
        %v6470 = vpop.permute.xlu0 %6469
        %v6479 = vadd.f32 %v6447, %v6456
        %v6480 = vadd.f32 %v6448, %v6458
        %v6481 = vadd.f32 %v6449, %v6460
        %v6482 = vadd.f32 %v6450, %v6462
        %v6483 = vadd.f32 %v6451, %v6464
        %v6484 = vadd.f32 %v6452, %v6466
        %v6485 = vadd.f32 %v6453, %v6468
        %v6486 = vadd.f32 %v6454, %v6470
        %6487 = vrot.lane.b32.xlu0 %v5829, 80
        %v6488 = vpop.permute.xlu0 %6487
        %6489 = vrot.lane.b32.xlu0 %v5830, 80
        %v6490 = vpop.permute.xlu0 %6489
        %6491 = vrot.lane.b32.xlu0 %v5831, 80
        %v6492 = vpop.permute.xlu0 %6491
        %6493 = vrot.lane.b32.xlu0 %v5832, 80
        %v6494 = vpop.permute.xlu0 %6493
        %6495 = vrot.lane.b32.xlu0 %v5833, 80
        %v6496 = vpop.permute.xlu0 %6495
        %6497 = vrot.lane.b32.xlu0 %v5834, 80
        %v6498 = vpop.permute.xlu0 %6497
        %6499 = vrot.lane.b32.xlu0 %v5835, 80
        %v6500 = vpop.permute.xlu0 %6499
        %6501 = vrot.lane.b32.xlu0 %v5836, 80
        %v6502 = vpop.permute.xlu0 %6501
        %v6511 = vadd.f32 %v6479, %v6488
        %v6512 = vadd.f32 %v6480, %v6490
        %v6513 = vadd.f32 %v6481, %v6492
        %v6514 = vadd.f32 %v6482, %v6494
        %v6515 = vadd.f32 %v6483, %v6496
        %v6516 = vadd.f32 %v6484, %v6498
        %v6517 = vadd.f32 %v6485, %v6500
        %v6518 = vadd.f32 %v6486, %v6502
        %v6519 = vsel %vm1253, %v6511, -inf
        %6520 = vmax.xlane.f32.xlu0 %v6519
        %v6521 = vpop.xlane.xlu0 %6520
        %v6522 = vsel %vm1253, %v6512, -inf
        %6523 = vmax.xlane.f32.xlu0 %v6522
        %v6524 = vpop.xlane.xlu0 %6523
        %v6525 = vsel %vm1253, %v6513, -inf
        %6526 = vmax.xlane.f32.xlu0 %v6525
        %v6527 = vpop.xlane.xlu0 %6526
        %v6528 = vsel %vm1253, %v6514, -inf
        %6529 = vmax.xlane.f32.xlu0 %v6528
        %v6530 = vpop.xlane.xlu0 %6529
        %v6531 = vsel %vm1253, %v6515, -inf
        %6532 = vmax.xlane.f32.xlu0 %v6531
        %v6533 = vpop.xlane.xlu0 %6532
        %v6534 = vsel %vm1253, %v6516, -inf
        %6535 = vmax.xlane.f32.xlu0 %v6534
        %v6536 = vpop.xlane.xlu0 %6535
        %v6537 = vsel %vm1253, %v6517, -inf
        %6538 = vmax.xlane.f32.xlu0 %v6537
        %v6539 = vpop.xlane.xlu0 %6538
        %v6540 = vsel %vm1253, %v6518, -inf
        %6541 = vmax.xlane.f32.xlu0 %v6540
        %v6542 = vpop.xlane.xlu0 %6541
        %v6543 = vsub.f32 %v6511, %v6521
        %v6544 = vsub.f32 %v6512, %v6524
        %v6545 = vsub.f32 %v6513, %v6527
        %v6546 = vsub.f32 %v6514, %v6530
        %v6547 = vsub.f32 %v6515, %v6533
        %v6548 = vsub.f32 %v6516, %v6536
        %v6549 = vsub.f32 %v6517, %v6539
        %v6550 = vsub.f32 %v6518, %v6542
        %v6551 = vmul.f32 %v6543, 1.442695
        %v6552 = vpow.pop %v6551
        %v6553 = vmul.f32 %v6544, 1.442695
        %v6554 = vpow.pop %v6553
        %v6555 = vmul.f32 %v6545, 1.442695
        %v6556 = vpow.pop %v6555
        %v6557 = vmul.f32 %v6546, 1.442695
        %v6558 = vpow.pop %v6557
        %v6559 = vmul.f32 %v6547, 1.442695
        %v6560 = vpow.pop %v6559
        %v6561 = vmul.f32 %v6548, 1.442695
        %v6562 = vpow.pop %v6561
        %v6563 = vmul.f32 %v6549, 1.442695
        %v6564 = vpow.pop %v6563
        %v6565 = vmul.f32 %v6550, 1.442695
        %v6566 = vpow.pop %v6565
        %v6567 = vsel %vm1253, %v6552, 0.0
        %6568 = vadd.xlane.f32.xlu0 %v6567
        %v6569 = vpop.xlane.xlu0 %6568
        %v6570 = vsel %vm1253, %v6554, 0.0
        %6571 = vadd.xlane.f32.xlu0 %v6570
        %v6572 = vpop.xlane.xlu0 %6571
        %v6573 = vsel %vm1253, %v6556, 0.0
        %6574 = vadd.xlane.f32.xlu0 %v6573
        %v6575 = vpop.xlane.xlu0 %6574
        %v6576 = vsel %vm1253, %v6558, 0.0
        %6577 = vadd.xlane.f32.xlu0 %v6576
        %v6578 = vpop.xlane.xlu0 %6577
        %v6579 = vsel %vm1253, %v6560, 0.0
        %6580 = vadd.xlane.f32.xlu0 %v6579
        %v6581 = vpop.xlane.xlu0 %6580
        %v6582 = vsel %vm1253, %v6562, 0.0
        %6583 = vadd.xlane.f32.xlu0 %v6582
        %v6584 = vpop.xlane.xlu0 %6583
        %v6585 = vsel %vm1253, %v6564, 0.0
        %6586 = vadd.xlane.f32.xlu0 %v6585
        %v6587 = vpop.xlane.xlu0 %6586
        %v6588 = vsel %vm1253, %v6566, 0.0
        %6589 = vadd.xlane.f32.xlu0 %v6588
        %v6590 = vpop.xlane.xlu0 %6589
        %v6591 = vrcp.pop %v6569
        %v6592 = vmul.f32 %v6569, %v6591
        %v6593 = vsub.f32 1.0, %v6592
        %v6594 = vmul.f32 %v6591, %v6593
        %v6595 = vadd.f32 %v6591, %v6594
        %vm6596 = vweird.f32 %v6569
        %vm6597 = vweird.f32 %v6591
        %vm6598 = vmor %vm6596, %vm6597
        %v6599 = vsel %vm6598, %v6591, %v6595
        %v6600 = vand.u32 2147483647, %v6569
        %vm6601 = vcmp.eq.f32.partialorder %v6600, 8.507059e+37
        %v6602 = vand.u32 %v6569, 2147483648
        %v6603 = vor.u32 1.1754944e-38, %v6602
        %v6604 = vsel %vm6601, %v6603, %v6599
        %v6605 = vmul.f32 %v6552, %v6604
        %v6606 = vrcp.pop %v6572
        %v6607 = vmul.f32 %v6572, %v6606
        %v6608 = vsub.f32 1.0, %v6607
        %v6609 = vmul.f32 %v6606, %v6608
        %v6610 = vadd.f32 %v6606, %v6609
        %vm6611 = vweird.f32 %v6572
        %vm6612 = vweird.f32 %v6606
        %vm6613 = vmor %vm6611, %vm6612
        %v6614 = vsel %vm6613, %v6606, %v6610
        %v6615 = vand.u32 2147483647, %v6572
        %vm6616 = vcmp.eq.f32.partialorder %v6615, 8.507059e+37
        %v6617 = vand.u32 %v6572, 2147483648
        %v6618 = vor.u32 1.1754944e-38, %v6617
        %v6619 = vsel %vm6616, %v6618, %v6614
        %v6620 = vmul.f32 %v6554, %v6619
        %v6621 = vrcp.pop %v6575
        %v6622 = vmul.f32 %v6575, %v6621
        %v6623 = vsub.f32 1.0, %v6622
        %v6624 = vmul.f32 %v6621, %v6623
        %v6625 = vadd.f32 %v6621, %v6624
        %vm6626 = vweird.f32 %v6575
        %vm6627 = vweird.f32 %v6621
        %vm6628 = vmor %vm6626, %vm6627
        %v6629 = vsel %vm6628, %v6621, %v6625
        %v6630 = vand.u32 2147483647, %v6575
        %vm6631 = vcmp.eq.f32.partialorder %v6630, 8.507059e+37
        %v6632 = vand.u32 %v6575, 2147483648
        %v6633 = vor.u32 1.1754944e-38, %v6632
        %v6634 = vsel %vm6631, %v6633, %v6629
        %v6635 = vmul.f32 %v6556, %v6634
        %v6636 = vrcp.pop %v6578
        %v6637 = vmul.f32 %v6578, %v6636
        %v6638 = vsub.f32 1.0, %v6637
        %v6639 = vmul.f32 %v6636, %v6638
        %v6640 = vadd.f32 %v6636, %v6639
        %vm6641 = vweird.f32 %v6578
        %vm6642 = vweird.f32 %v6636
        %vm6643 = vmor %vm6641, %vm6642
        %v6644 = vsel %vm6643, %v6636, %v6640
        %v6645 = vand.u32 2147483647, %v6578
        %vm6646 = vcmp.eq.f32.partialorder %v6645, 8.507059e+37
        %v6647 = vand.u32 %v6578, 2147483648
        %v6648 = vor.u32 1.1754944e-38, %v6647
        %v6649 = vsel %vm6646, %v6648, %v6644
        %v6650 = vmul.f32 %v6558, %v6649
        %v6651 = vrcp.pop %v6581
        %v6652 = vmul.f32 %v6581, %v6651
        %v6653 = vsub.f32 1.0, %v6652
        %v6654 = vmul.f32 %v6651, %v6653
        %v6655 = vadd.f32 %v6651, %v6654
        %vm6656 = vweird.f32 %v6581
        %vm6657 = vweird.f32 %v6651
        %vm6658 = vmor %vm6656, %vm6657
        %v6659 = vsel %vm6658, %v6651, %v6655
        %v6660 = vand.u32 2147483647, %v6581
        %vm6661 = vcmp.eq.f32.partialorder %v6660, 8.507059e+37
        %v6662 = vand.u32 %v6581, 2147483648
        %v6663 = vor.u32 1.1754944e-38, %v6662
        %v6664 = vsel %vm6661, %v6663, %v6659
        %v6665 = vmul.f32 %v6560, %v6664
        %v6666 = vrcp.pop %v6584
        %v6667 = vmul.f32 %v6584, %v6666
        %v6668 = vsub.f32 1.0, %v6667
        %v6669 = vmul.f32 %v6666, %v6668
        %v6670 = vadd.f32 %v6666, %v6669
        %vm6671 = vweird.f32 %v6584
        %vm6672 = vweird.f32 %v6666
        %vm6673 = vmor %vm6671, %vm6672
        %v6674 = vsel %vm6673, %v6666, %v6670
        %v6675 = vand.u32 2147483647, %v6584
        %vm6676 = vcmp.eq.f32.partialorder %v6675, 8.507059e+37
        %v6677 = vand.u32 %v6584, 2147483648
        %v6678 = vor.u32 1.1754944e-38, %v6677
        %v6679 = vsel %vm6676, %v6678, %v6674
        %v6680 = vmul.f32 %v6562, %v6679
        %v6681 = vrcp.pop %v6587
        %v6682 = vmul.f32 %v6587, %v6681
        %v6683 = vsub.f32 1.0, %v6682
        %v6684 = vmul.f32 %v6681, %v6683
        %v6685 = vadd.f32 %v6681, %v6684
        %vm6686 = vweird.f32 %v6587
        %vm6687 = vweird.f32 %v6681
        %vm6688 = vmor %vm6686, %vm6687
        %v6689 = vsel %vm6688, %v6681, %v6685
        %v6690 = vand.u32 2147483647, %v6587
        %vm6691 = vcmp.eq.f32.partialorder %v6690, 8.507059e+37
        %v6692 = vand.u32 %v6587, 2147483648
        %v6693 = vor.u32 1.1754944e-38, %v6692
        %v6694 = vsel %vm6691, %v6693, %v6689
        %v6695 = vmul.f32 %v6564, %v6694
        %v6696 = vrcp.pop %v6590
        %v6697 = vmul.f32 %v6590, %v6696
        %v6698 = vsub.f32 1.0, %v6697
        %v6699 = vmul.f32 %v6696, %v6698
        %v6700 = vadd.f32 %v6696, %v6699
        %vm6701 = vweird.f32 %v6590
        %vm6702 = vweird.f32 %v6696
        %vm6703 = vmor %vm6701, %vm6702
        %v6704 = vsel %vm6703, %v6696, %v6700
        %v6705 = vand.u32 2147483647, %v6590
        %vm6706 = vcmp.eq.f32.partialorder %v6705, 8.507059e+37
        %v6707 = vand.u32 %v6590, 2147483648
        %v6708 = vor.u32 1.1754944e-38, %v6707
        %v6709 = vsel %vm6706, %v6708, %v6704
        %v6710 = vmul.f32 %v6566, %v6709
        %6719 = vrot.lane.b32.xlu0 %v6605, 16
        %v6720 = vpop.permute.xlu0 %6719
        %6721 = vrot.lane.b32.xlu0 %v6620, 16
        %v6722 = vpop.permute.xlu0 %6721
        %6723 = vrot.lane.b32.xlu0 %v6635, 16
        %v6724 = vpop.permute.xlu0 %6723
        %6725 = vrot.lane.b32.xlu0 %v6650, 16
        %v6726 = vpop.permute.xlu0 %6725
        %6727 = vrot.lane.b32.xlu0 %v6665, 16
        %v6728 = vpop.permute.xlu0 %6727
        %6729 = vrot.lane.b32.xlu0 %v6680, 16
        %v6730 = vpop.permute.xlu0 %6729
        %6731 = vrot.lane.b32.xlu0 %v6695, 16
        %v6732 = vpop.permute.xlu0 %6731
        %6733 = vrot.lane.b32.xlu0 %v6710, 16
        %v6734 = vpop.permute.xlu0 %6733
        %6743 = vrot.lane.b32.xlu0 %v6605, 32
        %v6744 = vpop.permute.xlu0 %6743
        %6745 = vrot.lane.b32.xlu0 %v6620, 32
        %v6746 = vpop.permute.xlu0 %6745
        %6747 = vrot.lane.b32.xlu0 %v6635, 32
        %v6748 = vpop.permute.xlu0 %6747
        %6749 = vrot.lane.b32.xlu0 %v6650, 32
        %v6750 = vpop.permute.xlu0 %6749
        %6751 = vrot.lane.b32.xlu0 %v6665, 32
        %v6752 = vpop.permute.xlu0 %6751
        %6753 = vrot.lane.b32.xlu0 %v6680, 32
        %v6754 = vpop.permute.xlu0 %6753
        %6755 = vrot.lane.b32.xlu0 %v6695, 32
        %v6756 = vpop.permute.xlu0 %6755
        %6757 = vrot.lane.b32.xlu0 %v6710, 32
        %v6758 = vpop.permute.xlu0 %6757
        %6767 = vrot.lane.b32.xlu0 %v6605, 48
        %v6768 = vpop.permute.xlu0 %6767
        %6769 = vrot.lane.b32.xlu0 %v6620, 48
        %v6770 = vpop.permute.xlu0 %6769
        %6771 = vrot.lane.b32.xlu0 %v6635, 48
        %v6772 = vpop.permute.xlu0 %6771
        %6773 = vrot.lane.b32.xlu0 %v6650, 48
        %v6774 = vpop.permute.xlu0 %6773
        %6775 = vrot.lane.b32.xlu0 %v6665, 48
        %v6776 = vpop.permute.xlu0 %6775
        %6777 = vrot.lane.b32.xlu0 %v6680, 48
        %v6778 = vpop.permute.xlu0 %6777
        %6779 = vrot.lane.b32.xlu0 %v6695, 48
        %v6780 = vpop.permute.xlu0 %6779
        %6781 = vrot.lane.b32.xlu0 %v6710, 48
        %v6782 = vpop.permute.xlu0 %6781
        %v6791 = vsel %vm1253, %v6605, %v6720
        %v6792 = vsel %vm1253, %v6620, %v6722
        %v6793 = vsel %vm1253, %v6635, %v6724
        %v6794 = vsel %vm1253, %v6650, %v6726
        %v6795 = vsel %vm1253, %v6665, %v6728
        %v6796 = vsel %vm1253, %v6680, %v6730
        %v6797 = vsel %vm1253, %v6695, %v6732
        %v6798 = vsel %vm1253, %v6710, %v6734
        %v6799 = vsel %vm302, %v6791, %v6744
        %v6800 = vsel %vm302, %v6792, %v6746
        %v6801 = vsel %vm302, %v6793, %v6748
        %v6802 = vsel %vm302, %v6794, %v6750
        %v6803 = vsel %vm302, %v6795, %v6752
        %v6804 = vsel %vm302, %v6796, %v6754
        %v6805 = vsel %vm302, %v6797, %v6756
        %v6806 = vsel %vm302, %v6798, %v6758
        %v6807 = vsel %vm1270, %v6799, %v6768
        %v6808 = vsel %vm1270, %v6800, %v6770
        %v6809 = vsel %vm1270, %v6801, %v6772
        %v6810 = vsel %vm1270, %v6802, %v6774
        %v6811 = vsel %vm1270, %v6803, %v6776
        %v6812 = vsel %vm1270, %v6804, %v6778
        %v6813 = vsel %vm1270, %v6805, %v6780
        %v6814 = vsel %vm1270, %v6806, %v6782
        %6823 = vrot.lane.b32.xlu0 %v5918, 112
        %v6824 = vpop.permute.xlu0 %6823
        %6825 = vrot.lane.b32.xlu0 %v5919, 112
        %v6826 = vpop.permute.xlu0 %6825
        %6827 = vrot.lane.b32.xlu0 %v5920, 112
        %v6828 = vpop.permute.xlu0 %6827
        %6829 = vrot.lane.b32.xlu0 %v5921, 112
        %v6830 = vpop.permute.xlu0 %6829
        %6831 = vrot.lane.b32.xlu0 %v5922, 112
        %v6832 = vpop.permute.xlu0 %6831
        %6833 = vrot.lane.b32.xlu0 %v5923, 112
        %v6834 = vpop.permute.xlu0 %6833
        %6835 = vrot.lane.b32.xlu0 %v5924, 112
        %v6836 = vpop.permute.xlu0 %6835
        %6837 = vrot.lane.b32.xlu0 %v5925, 112
        %v6838 = vpop.permute.xlu0 %6837
        %v6847 = vadd.f32 %v5918, %v6824
        %v6848 = vadd.f32 %v5919, %v6826
        %v6849 = vadd.f32 %v5920, %v6828
        %v6850 = vadd.f32 %v5921, %v6830
        %v6851 = vadd.f32 %v5922, %v6832
        %v6852 = vadd.f32 %v5923, %v6834
        %v6853 = vadd.f32 %v5924, %v6836
        %v6854 = vadd.f32 %v5925, %v6838
        %6855 = vrot.lane.b32.xlu0 %v5918, 96
        %v6856 = vpop.permute.xlu0 %6855
        %6857 = vrot.lane.b32.xlu0 %v5919, 96
        %v6858 = vpop.permute.xlu0 %6857
        %6859 = vrot.lane.b32.xlu0 %v5920, 96
        %v6860 = vpop.permute.xlu0 %6859
        %6861 = vrot.lane.b32.xlu0 %v5921, 96
        %v6862 = vpop.permute.xlu0 %6861
        %6863 = vrot.lane.b32.xlu0 %v5922, 96
        %v6864 = vpop.permute.xlu0 %6863
        %6865 = vrot.lane.b32.xlu0 %v5923, 96
        %v6866 = vpop.permute.xlu0 %6865
        %6867 = vrot.lane.b32.xlu0 %v5924, 96
        %v6868 = vpop.permute.xlu0 %6867
        %6869 = vrot.lane.b32.xlu0 %v5925, 96
        %v6870 = vpop.permute.xlu0 %6869
        %v6879 = vadd.f32 %v6847, %v6856
        %v6880 = vadd.f32 %v6848, %v6858
        %v6881 = vadd.f32 %v6849, %v6860
        %v6882 = vadd.f32 %v6850, %v6862
        %v6883 = vadd.f32 %v6851, %v6864
        %v6884 = vadd.f32 %v6852, %v6866
        %v6885 = vadd.f32 %v6853, %v6868
        %v6886 = vadd.f32 %v6854, %v6870
        %6887 = vrot.lane.b32.xlu0 %v5918, 80
        %v6888 = vpop.permute.xlu0 %6887
        %6889 = vrot.lane.b32.xlu0 %v5919, 80
        %v6890 = vpop.permute.xlu0 %6889
        %6891 = vrot.lane.b32.xlu0 %v5920, 80
        %v6892 = vpop.permute.xlu0 %6891
        %6893 = vrot.lane.b32.xlu0 %v5921, 80
        %v6894 = vpop.permute.xlu0 %6893
        %6895 = vrot.lane.b32.xlu0 %v5922, 80
        %v6896 = vpop.permute.xlu0 %6895
        %6897 = vrot.lane.b32.xlu0 %v5923, 80
        %v6898 = vpop.permute.xlu0 %6897
        %6899 = vrot.lane.b32.xlu0 %v5924, 80
        %v6900 = vpop.permute.xlu0 %6899
        %6901 = vrot.lane.b32.xlu0 %v5925, 80
        %v6902 = vpop.permute.xlu0 %6901
        %v6911 = vadd.f32 %v6879, %v6888
        %v6912 = vadd.f32 %v6880, %v6890
        %v6913 = vadd.f32 %v6881, %v6892
        %v6914 = vadd.f32 %v6882, %v6894
        %v6915 = vadd.f32 %v6883, %v6896
        %v6916 = vadd.f32 %v6884, %v6898
        %v6917 = vadd.f32 %v6885, %v6900
        %v6918 = vadd.f32 %v6886, %v6902
        %v6919 = vsel %vm1253, %v6911, -inf
        %6920 = vmax.xlane.f32.xlu0 %v6919
        %v6921 = vpop.xlane.xlu0 %6920
        %v6922 = vsel %vm1253, %v6912, -inf
        %6923 = vmax.xlane.f32.xlu0 %v6922
        %v6924 = vpop.xlane.xlu0 %6923
        %v6925 = vsel %vm1253, %v6913, -inf
        %6926 = vmax.xlane.f32.xlu0 %v6925
        %v6927 = vpop.xlane.xlu0 %6926
        %v6928 = vsel %vm1253, %v6914, -inf
        %6929 = vmax.xlane.f32.xlu0 %v6928
        %v6930 = vpop.xlane.xlu0 %6929
        %v6931 = vsel %vm1253, %v6915, -inf
        %6932 = vmax.xlane.f32.xlu0 %v6931
        %v6933 = vpop.xlane.xlu0 %6932
        %v6934 = vsel %vm1253, %v6916, -inf
        %6935 = vmax.xlane.f32.xlu0 %v6934
        %v6936 = vpop.xlane.xlu0 %6935
        %v6937 = vsel %vm1253, %v6917, -inf
        %6938 = vmax.xlane.f32.xlu0 %v6937
        %v6939 = vpop.xlane.xlu0 %6938
        %v6940 = vsel %vm1253, %v6918, -inf
        %6941 = vmax.xlane.f32.xlu0 %v6940
        %v6942 = vpop.xlane.xlu0 %6941
        %v6943 = vsub.f32 %v6911, %v6921
        %v6944 = vsub.f32 %v6912, %v6924
        %v6945 = vsub.f32 %v6913, %v6927
        %v6946 = vsub.f32 %v6914, %v6930
        %v6947 = vsub.f32 %v6915, %v6933
        %v6948 = vsub.f32 %v6916, %v6936
        %v6949 = vsub.f32 %v6917, %v6939
        %v6950 = vsub.f32 %v6918, %v6942
        %v6951 = vmul.f32 %v6943, 1.442695
        %v6952 = vpow.pop %v6951
        %v6953 = vmul.f32 %v6944, 1.442695
        %v6954 = vpow.pop %v6953
        %v6955 = vmul.f32 %v6945, 1.442695
        %v6956 = vpow.pop %v6955
        %v6957 = vmul.f32 %v6946, 1.442695
        %v6958 = vpow.pop %v6957
        %v6959 = vmul.f32 %v6947, 1.442695
        %v6960 = vpow.pop %v6959
        %v6961 = vmul.f32 %v6948, 1.442695
        %v6962 = vpow.pop %v6961
        %v6963 = vmul.f32 %v6949, 1.442695
        %v6964 = vpow.pop %v6963
        %v6965 = vmul.f32 %v6950, 1.442695
        %v6966 = vpow.pop %v6965
        %v6967 = vsel %vm1253, %v6952, 0.0
        %6968 = vadd.xlane.f32.xlu0 %v6967
        %v6969 = vpop.xlane.xlu0 %6968
        %v6970 = vsel %vm1253, %v6954, 0.0
        %6971 = vadd.xlane.f32.xlu0 %v6970
        %v6972 = vpop.xlane.xlu0 %6971
        %v6973 = vsel %vm1253, %v6956, 0.0
        %6974 = vadd.xlane.f32.xlu0 %v6973
        %v6975 = vpop.xlane.xlu0 %6974
        %v6976 = vsel %vm1253, %v6958, 0.0
        %6977 = vadd.xlane.f32.xlu0 %v6976
        %v6978 = vpop.xlane.xlu0 %6977
        %v6979 = vsel %vm1253, %v6960, 0.0
        %6980 = vadd.xlane.f32.xlu0 %v6979
        %v6981 = vpop.xlane.xlu0 %6980
        %v6982 = vsel %vm1253, %v6962, 0.0
        %6983 = vadd.xlane.f32.xlu0 %v6982
        %v6984 = vpop.xlane.xlu0 %6983
        %v6985 = vsel %vm1253, %v6964, 0.0
        %6986 = vadd.xlane.f32.xlu0 %v6985
        %v6987 = vpop.xlane.xlu0 %6986
        %v6988 = vsel %vm1253, %v6966, 0.0
        %6989 = vadd.xlane.f32.xlu0 %v6988
        %v6990 = vpop.xlane.xlu0 %6989
        %v6991 = vrcp.pop %v6969
        %v6992 = vmul.f32 %v6969, %v6991
        %v6993 = vsub.f32 1.0, %v6992
        %v6994 = vmul.f32 %v6991, %v6993
        %v6995 = vadd.f32 %v6991, %v6994
        %vm6996 = vweird.f32 %v6969
        %vm6997 = vweird.f32 %v6991
        %vm6998 = vmor %vm6996, %vm6997
        %v6999 = vsel %vm6998, %v6991, %v6995
        %v7000 = vand.u32 2147483647, %v6969
        %vm7001 = vcmp.eq.f32.partialorder %v7000, 8.507059e+37
        %v7002 = vand.u32 %v6969, 2147483648
        %v7003 = vor.u32 1.1754944e-38, %v7002
        %v7004 = vsel %vm7001, %v7003, %v6999
        %v7005 = vmul.f32 %v6952, %v7004
        %v7006 = vrcp.pop %v6972
        %v7007 = vmul.f32 %v6972, %v7006
        %v7008 = vsub.f32 1.0, %v7007
        %v7009 = vmul.f32 %v7006, %v7008
        %v7010 = vadd.f32 %v7006, %v7009
        %vm7011 = vweird.f32 %v6972
        %vm7012 = vweird.f32 %v7006
        %vm7013 = vmor %vm7011, %vm7012
        %v7014 = vsel %vm7013, %v7006, %v7010
        %v7015 = vand.u32 2147483647, %v6972
        %vm7016 = vcmp.eq.f32.partialorder %v7015, 8.507059e+37
        %v7017 = vand.u32 %v6972, 2147483648
        %v7018 = vor.u32 1.1754944e-38, %v7017
        %v7019 = vsel %vm7016, %v7018, %v7014
        %v7020 = vmul.f32 %v6954, %v7019
        %v7021 = vrcp.pop %v6975
        %v7022 = vmul.f32 %v6975, %v7021
        %v7023 = vsub.f32 1.0, %v7022
        %v7024 = vmul.f32 %v7021, %v7023
        %v7025 = vadd.f32 %v7021, %v7024
        %vm7026 = vweird.f32 %v6975
        %vm7027 = vweird.f32 %v7021
        %vm7028 = vmor %vm7026, %vm7027
        %v7029 = vsel %vm7028, %v7021, %v7025
        %v7030 = vand.u32 2147483647, %v6975
        %vm7031 = vcmp.eq.f32.partialorder %v7030, 8.507059e+37
        %v7032 = vand.u32 %v6975, 2147483648
        %v7033 = vor.u32 1.1754944e-38, %v7032
        %v7034 = vsel %vm7031, %v7033, %v7029
        %v7035 = vmul.f32 %v6956, %v7034
        %v7036 = vrcp.pop %v6978
        %v7037 = vmul.f32 %v6978, %v7036
        %v7038 = vsub.f32 1.0, %v7037
        %v7039 = vmul.f32 %v7036, %v7038
        %v7040 = vadd.f32 %v7036, %v7039
        %vm7041 = vweird.f32 %v6978
        %vm7042 = vweird.f32 %v7036
        %vm7043 = vmor %vm7041, %vm7042
        %v7044 = vsel %vm7043, %v7036, %v7040
        %v7045 = vand.u32 2147483647, %v6978
        %vm7046 = vcmp.eq.f32.partialorder %v7045, 8.507059e+37
        %v7047 = vand.u32 %v6978, 2147483648
        %v7048 = vor.u32 1.1754944e-38, %v7047
        %v7049 = vsel %vm7046, %v7048, %v7044
        %v7050 = vmul.f32 %v6958, %v7049
        %v7051 = vrcp.pop %v6981
        %v7052 = vmul.f32 %v6981, %v7051
        %v7053 = vsub.f32 1.0, %v7052
        %v7054 = vmul.f32 %v7051, %v7053
        %v7055 = vadd.f32 %v7051, %v7054
        %vm7056 = vweird.f32 %v6981
        %vm7057 = vweird.f32 %v7051
        %vm7058 = vmor %vm7056, %vm7057
        %v7059 = vsel %vm7058, %v7051, %v7055
        %v7060 = vand.u32 2147483647, %v6981
        %vm7061 = vcmp.eq.f32.partialorder %v7060, 8.507059e+37
        %v7062 = vand.u32 %v6981, 2147483648
        %v7063 = vor.u32 1.1754944e-38, %v7062
        %v7064 = vsel %vm7061, %v7063, %v7059
        %v7065 = vmul.f32 %v6960, %v7064
        %v7066 = vrcp.pop %v6984
        %v7067 = vmul.f32 %v6984, %v7066
        %v7068 = vsub.f32 1.0, %v7067
        %v7069 = vmul.f32 %v7066, %v7068
        %v7070 = vadd.f32 %v7066, %v7069
        %vm7071 = vweird.f32 %v6984
        %vm7072 = vweird.f32 %v7066
        %vm7073 = vmor %vm7071, %vm7072
        %v7074 = vsel %vm7073, %v7066, %v7070
        %v7075 = vand.u32 2147483647, %v6984
        %vm7076 = vcmp.eq.f32.partialorder %v7075, 8.507059e+37
        %v7077 = vand.u32 %v6984, 2147483648
        %v7078 = vor.u32 1.1754944e-38, %v7077
        %v7079 = vsel %vm7076, %v7078, %v7074
        %v7080 = vmul.f32 %v6962, %v7079
        %v7081 = vrcp.pop %v6987
        %v7082 = vmul.f32 %v6987, %v7081
        %v7083 = vsub.f32 1.0, %v7082
        %v7084 = vmul.f32 %v7081, %v7083
        %v7085 = vadd.f32 %v7081, %v7084
        %vm7086 = vweird.f32 %v6987
        %vm7087 = vweird.f32 %v7081
        %vm7088 = vmor %vm7086, %vm7087
        %v7089 = vsel %vm7088, %v7081, %v7085
        %v7090 = vand.u32 2147483647, %v6987
        %vm7091 = vcmp.eq.f32.partialorder %v7090, 8.507059e+37
        %v7092 = vand.u32 %v6987, 2147483648
        %v7093 = vor.u32 1.1754944e-38, %v7092
        %v7094 = vsel %vm7091, %v7093, %v7089
        %v7095 = vmul.f32 %v6964, %v7094
        %v7096 = vrcp.pop %v6990
        %v7097 = vmul.f32 %v6990, %v7096
        %v7098 = vsub.f32 1.0, %v7097
        %v7099 = vmul.f32 %v7096, %v7098
        %v7100 = vadd.f32 %v7096, %v7099
        %vm7101 = vweird.f32 %v6990
        %vm7102 = vweird.f32 %v7096
        %vm7103 = vmor %vm7101, %vm7102
        %v7104 = vsel %vm7103, %v7096, %v7100
        %v7105 = vand.u32 2147483647, %v6990
        %vm7106 = vcmp.eq.f32.partialorder %v7105, 8.507059e+37
        %v7107 = vand.u32 %v6990, 2147483648
        %v7108 = vor.u32 1.1754944e-38, %v7107
        %v7109 = vsel %vm7106, %v7108, %v7104
        %v7110 = vmul.f32 %v6966, %v7109
        %7119 = vrot.lane.b32.xlu0 %v7005, 16
        %v7120 = vpop.permute.xlu0 %7119
        %7121 = vrot.lane.b32.xlu0 %v7020, 16
        %v7122 = vpop.permute.xlu0 %7121
        %7123 = vrot.lane.b32.xlu0 %v7035, 16
        %v7124 = vpop.permute.xlu0 %7123
        %7125 = vrot.lane.b32.xlu0 %v7050, 16
        %v7126 = vpop.permute.xlu0 %7125
        %7127 = vrot.lane.b32.xlu0 %v7065, 16
        %v7128 = vpop.permute.xlu0 %7127
        %7129 = vrot.lane.b32.xlu0 %v7080, 16
        %v7130 = vpop.permute.xlu0 %7129
        %7131 = vrot.lane.b32.xlu0 %v7095, 16
        %v7132 = vpop.permute.xlu0 %7131
        %7133 = vrot.lane.b32.xlu0 %v7110, 16
        %v7134 = vpop.permute.xlu0 %7133
        %7143 = vrot.lane.b32.xlu0 %v7005, 32
        %v7144 = vpop.permute.xlu0 %7143
        %7145 = vrot.lane.b32.xlu0 %v7020, 32
        %v7146 = vpop.permute.xlu0 %7145
        %7147 = vrot.lane.b32.xlu0 %v7035, 32
        %v7148 = vpop.permute.xlu0 %7147
        %7149 = vrot.lane.b32.xlu0 %v7050, 32
        %v7150 = vpop.permute.xlu0 %7149
        %7151 = vrot.lane.b32.xlu0 %v7065, 32
        %v7152 = vpop.permute.xlu0 %7151
        %7153 = vrot.lane.b32.xlu0 %v7080, 32
        %v7154 = vpop.permute.xlu0 %7153
        %7155 = vrot.lane.b32.xlu0 %v7095, 32
        %v7156 = vpop.permute.xlu0 %7155
        %7157 = vrot.lane.b32.xlu0 %v7110, 32
        %v7158 = vpop.permute.xlu0 %7157
        %7167 = vrot.lane.b32.xlu0 %v7005, 48
        %v7168 = vpop.permute.xlu0 %7167
        %7169 = vrot.lane.b32.xlu0 %v7020, 48
        %v7170 = vpop.permute.xlu0 %7169
        %7171 = vrot.lane.b32.xlu0 %v7035, 48
        %v7172 = vpop.permute.xlu0 %7171
        %7173 = vrot.lane.b32.xlu0 %v7050, 48
        %v7174 = vpop.permute.xlu0 %7173
        %7175 = vrot.lane.b32.xlu0 %v7065, 48
        %v7176 = vpop.permute.xlu0 %7175
        %7177 = vrot.lane.b32.xlu0 %v7080, 48
        %v7178 = vpop.permute.xlu0 %7177
        %7179 = vrot.lane.b32.xlu0 %v7095, 48
        %v7180 = vpop.permute.xlu0 %7179
        %7181 = vrot.lane.b32.xlu0 %v7110, 48
        %v7182 = vpop.permute.xlu0 %7181
        %v7191 = vsel %vm1253, %v7005, %v7120
        %v7192 = vsel %vm1253, %v7020, %v7122
        %v7193 = vsel %vm1253, %v7035, %v7124
        %v7194 = vsel %vm1253, %v7050, %v7126
        %v7195 = vsel %vm1253, %v7065, %v7128
        %v7196 = vsel %vm1253, %v7080, %v7130
        %v7197 = vsel %vm1253, %v7095, %v7132
        %v7198 = vsel %vm1253, %v7110, %v7134
        %v7199 = vsel %vm302, %v7191, %v7144
        %v7200 = vsel %vm302, %v7192, %v7146
        %v7201 = vsel %vm302, %v7193, %v7148
        %v7202 = vsel %vm302, %v7194, %v7150
        %v7203 = vsel %vm302, %v7195, %v7152
        %v7204 = vsel %vm302, %v7196, %v7154
        %v7205 = vsel %vm302, %v7197, %v7156
        %v7206 = vsel %vm302, %v7198, %v7158
        %v7207 = vsel %vm1270, %v7199, %v7168
        %v7208 = vsel %vm1270, %v7200, %v7170
        %v7209 = vsel %vm1270, %v7201, %v7172
        %v7210 = vsel %vm1270, %v7202, %v7174
        %v7211 = vsel %vm1270, %v7203, %v7176
        %v7212 = vsel %vm1270, %v7204, %v7178
        %v7213 = vsel %vm1270, %v7205, %v7180
        %v7214 = vsel %vm1270, %v7206, %v7182
        %7223 = vrot.lane.b32.xlu0 %v6007, 112
        %v7224 = vpop.permute.xlu0 %7223
        %7225 = vrot.lane.b32.xlu0 %v6008, 112
        %v7226 = vpop.permute.xlu0 %7225
        %7227 = vrot.lane.b32.xlu0 %v6009, 112
        %v7228 = vpop.permute.xlu0 %7227
        %7229 = vrot.lane.b32.xlu0 %v6010, 112
        %v7230 = vpop.permute.xlu0 %7229
        %7231 = vrot.lane.b32.xlu0 %v6011, 112
        %v7232 = vpop.permute.xlu0 %7231
        %7233 = vrot.lane.b32.xlu0 %v6012, 112
        %v7234 = vpop.permute.xlu0 %7233
        %7235 = vrot.lane.b32.xlu0 %v6013, 112
        %v7236 = vpop.permute.xlu0 %7235
        %7237 = vrot.lane.b32.xlu0 %v6014, 112
        %v7238 = vpop.permute.xlu0 %7237
        %v7247 = vadd.f32 %v6007, %v7224
        %v7248 = vadd.f32 %v6008, %v7226
        %v7249 = vadd.f32 %v6009, %v7228
        %v7250 = vadd.f32 %v6010, %v7230
        %v7251 = vadd.f32 %v6011, %v7232
        %v7252 = vadd.f32 %v6012, %v7234
        %v7253 = vadd.f32 %v6013, %v7236
        %v7254 = vadd.f32 %v6014, %v7238
        %7255 = vrot.lane.b32.xlu0 %v6007, 96
        %v7256 = vpop.permute.xlu0 %7255
        %7257 = vrot.lane.b32.xlu0 %v6008, 96
        %v7258 = vpop.permute.xlu0 %7257
        %7259 = vrot.lane.b32.xlu0 %v6009, 96
        %v7260 = vpop.permute.xlu0 %7259
        %7261 = vrot.lane.b32.xlu0 %v6010, 96
        %v7262 = vpop.permute.xlu0 %7261
        %7263 = vrot.lane.b32.xlu0 %v6011, 96
        %v7264 = vpop.permute.xlu0 %7263
        %7265 = vrot.lane.b32.xlu0 %v6012, 96
        %v7266 = vpop.permute.xlu0 %7265
        %7267 = vrot.lane.b32.xlu0 %v6013, 96
        %v7268 = vpop.permute.xlu0 %7267
        %7269 = vrot.lane.b32.xlu0 %v6014, 96
        %v7270 = vpop.permute.xlu0 %7269
        %v7279 = vadd.f32 %v7247, %v7256
        %v7280 = vadd.f32 %v7248, %v7258
        %v7281 = vadd.f32 %v7249, %v7260
        %v7282 = vadd.f32 %v7250, %v7262
        %v7283 = vadd.f32 %v7251, %v7264
        %v7284 = vadd.f32 %v7252, %v7266
        %v7285 = vadd.f32 %v7253, %v7268
        %v7286 = vadd.f32 %v7254, %v7270
        %7287 = vrot.lane.b32.xlu0 %v6007, 80
        %v7288 = vpop.permute.xlu0 %7287
        %7289 = vrot.lane.b32.xlu0 %v6008, 80
        %v7290 = vpop.permute.xlu0 %7289
        %7291 = vrot.lane.b32.xlu0 %v6009, 80
        %v7292 = vpop.permute.xlu0 %7291
        %7293 = vrot.lane.b32.xlu0 %v6010, 80
        %v7294 = vpop.permute.xlu0 %7293
        %7295 = vrot.lane.b32.xlu0 %v6011, 80
        %v7296 = vpop.permute.xlu0 %7295
        %7297 = vrot.lane.b32.xlu0 %v6012, 80
        %v7298 = vpop.permute.xlu0 %7297
        %7299 = vrot.lane.b32.xlu0 %v6013, 80
        %v7300 = vpop.permute.xlu0 %7299
        %7301 = vrot.lane.b32.xlu0 %v6014, 80
        %v7302 = vpop.permute.xlu0 %7301
        %v7311 = vadd.f32 %v7279, %v7288
        %v7312 = vadd.f32 %v7280, %v7290
        %v7313 = vadd.f32 %v7281, %v7292
        %v7314 = vadd.f32 %v7282, %v7294
        %v7315 = vadd.f32 %v7283, %v7296
        %v7316 = vadd.f32 %v7284, %v7298
        %v7317 = vadd.f32 %v7285, %v7300
        %v7318 = vadd.f32 %v7286, %v7302
        %v7319 = vsel %vm1253, %v7311, -inf
        %7320 = vmax.xlane.f32.xlu0 %v7319
        %v7321 = vpop.xlane.xlu0 %7320
        %v7322 = vsel %vm1253, %v7312, -inf
        %7323 = vmax.xlane.f32.xlu0 %v7322
        %v7324 = vpop.xlane.xlu0 %7323
        %v7325 = vsel %vm1253, %v7313, -inf
        %7326 = vmax.xlane.f32.xlu0 %v7325
        %v7327 = vpop.xlane.xlu0 %7326
        %v7328 = vsel %vm1253, %v7314, -inf
        %7329 = vmax.xlane.f32.xlu0 %v7328
        %v7330 = vpop.xlane.xlu0 %7329
        %v7331 = vsel %vm1253, %v7315, -inf
        %7332 = vmax.xlane.f32.xlu0 %v7331
        %v7333 = vpop.xlane.xlu0 %7332
        %v7334 = vsel %vm1253, %v7316, -inf
        %7335 = vmax.xlane.f32.xlu0 %v7334
        %v7336 = vpop.xlane.xlu0 %7335
        %v7337 = vsel %vm1253, %v7317, -inf
        %7338 = vmax.xlane.f32.xlu0 %v7337
        %v7339 = vpop.xlane.xlu0 %7338
        %v7340 = vsel %vm1253, %v7318, -inf
        %7341 = vmax.xlane.f32.xlu0 %v7340
        %v7342 = vpop.xlane.xlu0 %7341
        %v7343 = vsub.f32 %v7311, %v7321
        %v7344 = vsub.f32 %v7312, %v7324
        %v7345 = vsub.f32 %v7313, %v7327
        %v7346 = vsub.f32 %v7314, %v7330
        %v7347 = vsub.f32 %v7315, %v7333
        %v7348 = vsub.f32 %v7316, %v7336
        %v7349 = vsub.f32 %v7317, %v7339
        %v7350 = vsub.f32 %v7318, %v7342
        %v7351 = vmul.f32 %v7343, 1.442695
        %v7352 = vpow.pop %v7351
        %v7353 = vmul.f32 %v7344, 1.442695
        %v7354 = vpow.pop %v7353
        %v7355 = vmul.f32 %v7345, 1.442695
        %v7356 = vpow.pop %v7355
        %v7357 = vmul.f32 %v7346, 1.442695
        %v7358 = vpow.pop %v7357
        %v7359 = vmul.f32 %v7347, 1.442695
        %v7360 = vpow.pop %v7359
        %v7361 = vmul.f32 %v7348, 1.442695
        %v7362 = vpow.pop %v7361
        %v7363 = vmul.f32 %v7349, 1.442695
        %v7364 = vpow.pop %v7363
        %v7365 = vmul.f32 %v7350, 1.442695
        %v7366 = vpow.pop %v7365
        %v7367 = vsel %vm1253, %v7352, 0.0
        %7368 = vadd.xlane.f32.xlu0 %v7367
        %v7369 = vpop.xlane.xlu0 %7368
        %v7370 = vsel %vm1253, %v7354, 0.0
        %7371 = vadd.xlane.f32.xlu0 %v7370
        %v7372 = vpop.xlane.xlu0 %7371
        %v7373 = vsel %vm1253, %v7356, 0.0
        %7374 = vadd.xlane.f32.xlu0 %v7373
        %v7375 = vpop.xlane.xlu0 %7374
        %v7376 = vsel %vm1253, %v7358, 0.0
        %7377 = vadd.xlane.f32.xlu0 %v7376
        %v7378 = vpop.xlane.xlu0 %7377
        %v7379 = vsel %vm1253, %v7360, 0.0
        %7380 = vadd.xlane.f32.xlu0 %v7379
        %v7381 = vpop.xlane.xlu0 %7380
        %v7382 = vsel %vm1253, %v7362, 0.0
        %7383 = vadd.xlane.f32.xlu0 %v7382
        %v7384 = vpop.xlane.xlu0 %7383
        %v7385 = vsel %vm1253, %v7364, 0.0
        %7386 = vadd.xlane.f32.xlu0 %v7385
        %v7387 = vpop.xlane.xlu0 %7386
        %v7388 = vsel %vm1253, %v7366, 0.0
        %7389 = vadd.xlane.f32.xlu0 %v7388
        %v7390 = vpop.xlane.xlu0 %7389
        %v7391 = vrcp.pop %v7369
        %v7392 = vmul.f32 %v7369, %v7391
        %v7393 = vsub.f32 1.0, %v7392
        %v7394 = vmul.f32 %v7391, %v7393
        %v7395 = vadd.f32 %v7391, %v7394
        %vm7396 = vweird.f32 %v7369
        %vm7397 = vweird.f32 %v7391
        %vm7398 = vmor %vm7396, %vm7397
        %v7399 = vsel %vm7398, %v7391, %v7395
        %v7400 = vand.u32 2147483647, %v7369
        %vm7401 = vcmp.eq.f32.partialorder %v7400, 8.507059e+37
        %v7402 = vand.u32 %v7369, 2147483648
        %v7403 = vor.u32 1.1754944e-38, %v7402
        %v7404 = vsel %vm7401, %v7403, %v7399
        %v7405 = vmul.f32 %v7352, %v7404
        %v7406 = vrcp.pop %v7372
        %v7407 = vmul.f32 %v7372, %v7406
        %v7408 = vsub.f32 1.0, %v7407
        %v7409 = vmul.f32 %v7406, %v7408
        %v7410 = vadd.f32 %v7406, %v7409
        %vm7411 = vweird.f32 %v7372
        %vm7412 = vweird.f32 %v7406
        %vm7413 = vmor %vm7411, %vm7412
        %v7414 = vsel %vm7413, %v7406, %v7410
        %v7415 = vand.u32 2147483647, %v7372
        %vm7416 = vcmp.eq.f32.partialorder %v7415, 8.507059e+37
        %v7417 = vand.u32 %v7372, 2147483648
        %v7418 = vor.u32 1.1754944e-38, %v7417
        %v7419 = vsel %vm7416, %v7418, %v7414
        %v7420 = vmul.f32 %v7354, %v7419
        %v7421 = vrcp.pop %v7375
        %v7422 = vmul.f32 %v7375, %v7421
        %v7423 = vsub.f32 1.0, %v7422
        %v7424 = vmul.f32 %v7421, %v7423
        %v7425 = vadd.f32 %v7421, %v7424
        %vm7426 = vweird.f32 %v7375
        %vm7427 = vweird.f32 %v7421
        %vm7428 = vmor %vm7426, %vm7427
        %v7429 = vsel %vm7428, %v7421, %v7425
        %v7430 = vand.u32 2147483647, %v7375
        %vm7431 = vcmp.eq.f32.partialorder %v7430, 8.507059e+37
        %v7432 = vand.u32 %v7375, 2147483648
        %v7433 = vor.u32 1.1754944e-38, %v7432
        %v7434 = vsel %vm7431, %v7433, %v7429
        %v7435 = vmul.f32 %v7356, %v7434
        %v7436 = vrcp.pop %v7378
        %v7437 = vmul.f32 %v7378, %v7436
        %v7438 = vsub.f32 1.0, %v7437
        %v7439 = vmul.f32 %v7436, %v7438
        %v7440 = vadd.f32 %v7436, %v7439
        %vm7441 = vweird.f32 %v7378
        %vm7442 = vweird.f32 %v7436
        %vm7443 = vmor %vm7441, %vm7442
        %v7444 = vsel %vm7443, %v7436, %v7440
        %v7445 = vand.u32 2147483647, %v7378
        %vm7446 = vcmp.eq.f32.partialorder %v7445, 8.507059e+37
        %v7447 = vand.u32 %v7378, 2147483648
        %v7448 = vor.u32 1.1754944e-38, %v7447
        %v7449 = vsel %vm7446, %v7448, %v7444
        %v7450 = vmul.f32 %v7358, %v7449
        %v7451 = vrcp.pop %v7381
        %v7452 = vmul.f32 %v7381, %v7451
        %v7453 = vsub.f32 1.0, %v7452
        %v7454 = vmul.f32 %v7451, %v7453
        %v7455 = vadd.f32 %v7451, %v7454
        %vm7456 = vweird.f32 %v7381
        %vm7457 = vweird.f32 %v7451
        %vm7458 = vmor %vm7456, %vm7457
        %v7459 = vsel %vm7458, %v7451, %v7455
        %v7460 = vand.u32 2147483647, %v7381
        %vm7461 = vcmp.eq.f32.partialorder %v7460, 8.507059e+37
        %v7462 = vand.u32 %v7381, 2147483648
        %v7463 = vor.u32 1.1754944e-38, %v7462
        %v7464 = vsel %vm7461, %v7463, %v7459
        %v7465 = vmul.f32 %v7360, %v7464
        %v7466 = vrcp.pop %v7384
        %v7467 = vmul.f32 %v7384, %v7466
        %v7468 = vsub.f32 1.0, %v7467
        %v7469 = vmul.f32 %v7466, %v7468
        %v7470 = vadd.f32 %v7466, %v7469
        %vm7471 = vweird.f32 %v7384
        %vm7472 = vweird.f32 %v7466
        %vm7473 = vmor %vm7471, %vm7472
        %v7474 = vsel %vm7473, %v7466, %v7470
        %v7475 = vand.u32 2147483647, %v7384
        %vm7476 = vcmp.eq.f32.partialorder %v7475, 8.507059e+37
        %v7477 = vand.u32 %v7384, 2147483648
        %v7478 = vor.u32 1.1754944e-38, %v7477
        %v7479 = vsel %vm7476, %v7478, %v7474
        %v7480 = vmul.f32 %v7362, %v7479
        %v7481 = vrcp.pop %v7387
        %v7482 = vmul.f32 %v7387, %v7481
        %v7483 = vsub.f32 1.0, %v7482
        %v7484 = vmul.f32 %v7481, %v7483
        %v7485 = vadd.f32 %v7481, %v7484
        %vm7486 = vweird.f32 %v7387
        %vm7487 = vweird.f32 %v7481
        %vm7488 = vmor %vm7486, %vm7487
        %v7489 = vsel %vm7488, %v7481, %v7485
        %v7490 = vand.u32 2147483647, %v7387
        %vm7491 = vcmp.eq.f32.partialorder %v7490, 8.507059e+37
        %v7492 = vand.u32 %v7387, 2147483648
        %v7493 = vor.u32 1.1754944e-38, %v7492
        %v7494 = vsel %vm7491, %v7493, %v7489
        %v7495 = vmul.f32 %v7364, %v7494
        %v7496 = vrcp.pop %v7390
        %v7497 = vmul.f32 %v7390, %v7496
        %v7498 = vsub.f32 1.0, %v7497
        %v7499 = vmul.f32 %v7496, %v7498
        %v7500 = vadd.f32 %v7496, %v7499
        %vm7501 = vweird.f32 %v7390
        %vm7502 = vweird.f32 %v7496
        %vm7503 = vmor %vm7501, %vm7502
        %v7504 = vsel %vm7503, %v7496, %v7500
        %v7505 = vand.u32 2147483647, %v7390
        %vm7506 = vcmp.eq.f32.partialorder %v7505, 8.507059e+37
        %v7507 = vand.u32 %v7390, 2147483648
        %v7508 = vor.u32 1.1754944e-38, %v7507
        %v7509 = vsel %vm7506, %v7508, %v7504
        %v7510 = vmul.f32 %v7366, %v7509
        %7519 = vrot.lane.b32.xlu0 %v7405, 16
        %v7520 = vpop.permute.xlu0 %7519
        %7521 = vrot.lane.b32.xlu0 %v7420, 16
        %v7522 = vpop.permute.xlu0 %7521
        %7523 = vrot.lane.b32.xlu0 %v7435, 16
        %v7524 = vpop.permute.xlu0 %7523
        %7525 = vrot.lane.b32.xlu0 %v7450, 16
        %v7526 = vpop.permute.xlu0 %7525
        %7527 = vrot.lane.b32.xlu0 %v7465, 16
        %v7528 = vpop.permute.xlu0 %7527
        %7529 = vrot.lane.b32.xlu0 %v7480, 16
        %v7530 = vpop.permute.xlu0 %7529
        %7531 = vrot.lane.b32.xlu0 %v7495, 16
        %v7532 = vpop.permute.xlu0 %7531
        %7533 = vrot.lane.b32.xlu0 %v7510, 16
        %v7534 = vpop.permute.xlu0 %7533
        %7543 = vrot.lane.b32.xlu0 %v7405, 32
        %v7544 = vpop.permute.xlu0 %7543
        %7545 = vrot.lane.b32.xlu0 %v7420, 32
        %v7546 = vpop.permute.xlu0 %7545
        %7547 = vrot.lane.b32.xlu0 %v7435, 32
        %v7548 = vpop.permute.xlu0 %7547
        %7549 = vrot.lane.b32.xlu0 %v7450, 32
        %v7550 = vpop.permute.xlu0 %7549
        %7551 = vrot.lane.b32.xlu0 %v7465, 32
        %v7552 = vpop.permute.xlu0 %7551
        %7553 = vrot.lane.b32.xlu0 %v7480, 32
        %v7554 = vpop.permute.xlu0 %7553
        %7555 = vrot.lane.b32.xlu0 %v7495, 32
        %v7556 = vpop.permute.xlu0 %7555
        %7557 = vrot.lane.b32.xlu0 %v7510, 32
        %v7558 = vpop.permute.xlu0 %7557
        %7567 = vrot.lane.b32.xlu0 %v7405, 48
        %v7568 = vpop.permute.xlu0 %7567
        %7569 = vrot.lane.b32.xlu0 %v7420, 48
        %v7570 = vpop.permute.xlu0 %7569
        %7571 = vrot.lane.b32.xlu0 %v7435, 48
        %v7572 = vpop.permute.xlu0 %7571
        %7573 = vrot.lane.b32.xlu0 %v7450, 48
        %v7574 = vpop.permute.xlu0 %7573
        %7575 = vrot.lane.b32.xlu0 %v7465, 48
        %v7576 = vpop.permute.xlu0 %7575
        %7577 = vrot.lane.b32.xlu0 %v7480, 48
        %v7578 = vpop.permute.xlu0 %7577
        %7579 = vrot.lane.b32.xlu0 %v7495, 48
        %v7580 = vpop.permute.xlu0 %7579
        %7581 = vrot.lane.b32.xlu0 %v7510, 48
        %v7582 = vpop.permute.xlu0 %7581
        %v7591 = vsel %vm1253, %v7405, %v7520
        %v7592 = vsel %vm1253, %v7420, %v7522
        %v7593 = vsel %vm1253, %v7435, %v7524
        %v7594 = vsel %vm1253, %v7450, %v7526
        %v7595 = vsel %vm1253, %v7465, %v7528
        %v7596 = vsel %vm1253, %v7480, %v7530
        %v7597 = vsel %vm1253, %v7495, %v7532
        %v7598 = vsel %vm1253, %v7510, %v7534
        %v7599 = vsel %vm302, %v7591, %v7544
        %v7600 = vsel %vm302, %v7592, %v7546
        %v7601 = vsel %vm302, %v7593, %v7548
        %v7602 = vsel %vm302, %v7594, %v7550
        %v7603 = vsel %vm302, %v7595, %v7552
        %v7604 = vsel %vm302, %v7596, %v7554
        %v7605 = vsel %vm302, %v7597, %v7556
        %v7606 = vsel %vm302, %v7598, %v7558
        %v7607 = vsel %vm1270, %v7599, %v7568
        %v7608 = vsel %vm1270, %v7600, %v7570
        %v7609 = vsel %vm1270, %v7601, %v7572
        %v7610 = vsel %vm1270, %v7602, %v7574
        %v7611 = vsel %vm1270, %v7603, %v7576
        %v7612 = vsel %vm1270, %v7604, %v7578
        %v7613 = vsel %vm1270, %v7605, %v7580
        %v7614 = vsel %vm1270, %v7606, %v7582
        %v7615 = vmul.f32 %v6407, %v4471
        %v7616 = vmul.f32 %v6408, %v4472
        %v7617 = vmul.f32 %v6409, %v4473
        %v7618 = vmul.f32 %v6410, %v4474
        %v7619 = vmul.f32 %v6411, %v4475
        %v7620 = vmul.f32 %v6412, %v4476
        %v7621 = vmul.f32 %v6413, %v4477
        %v7622 = vmul.f32 %v6414, %v4478
        %v7623 = vmul.f32 %v6807, %v4471
        %v7624 = vmul.f32 %v6808, %v4472
        %v7625 = vmul.f32 %v6809, %v4473
        %v7626 = vmul.f32 %v6810, %v4474
        %v7627 = vmul.f32 %v6811, %v4475
        %v7628 = vmul.f32 %v6812, %v4476
        %v7629 = vmul.f32 %v6813, %v4477
        %v7630 = vmul.f32 %v6814, %v4478
        %v7631 = vmul.f32 %v7207, %v4471
        %v7632 = vmul.f32 %v7208, %v4472
        %v7633 = vmul.f32 %v7209, %v4473
        %v7634 = vmul.f32 %v7210, %v4474
        %v7635 = vmul.f32 %v7211, %v4475
        %v7636 = vmul.f32 %v7212, %v4476
        %v7637 = vmul.f32 %v7213, %v4477
        %v7638 = vmul.f32 %v7214, %v4478
        %v7639 = vmul.f32 %v7607, %v4471
        %v7640 = vmul.f32 %v7608, %v4472
        %v7641 = vmul.f32 %v7609, %v4473
        %v7642 = vmul.f32 %v7610, %v4474
        %v7643 = vmul.f32 %v7611, %v4475
        %v7644 = vmul.f32 %v7612, %v4476
        %v7645 = vmul.f32 %v7613, %v4477
        %v7646 = vmul.f32 %v7614, %v4478
        %v7647 = vmul.f32 %v6407, %v4923
        %v7648 = vmul.f32 %v6408, %v4924
        %v7649 = vmul.f32 %v6409, %v4925
        %v7650 = vmul.f32 %v6410, %v4926
        %v7651 = vmul.f32 %v6411, %v4927
        %v7652 = vmul.f32 %v6412, %v4928
        %v7653 = vmul.f32 %v6413, %v4929
        %v7654 = vmul.f32 %v6414, %v4930
        %7655 = vrot.lane.b32.xlu0 %v4931, 96
        %v7656 = vpop.permute.xlu0 %7655
        %7657 = vrot.lane.b32.xlu0 %v4932, 96
        %v7658 = vpop.permute.xlu0 %7657
        %7659 = vrot.lane.b32.xlu0 %v4933, 96
        %v7660 = vpop.permute.xlu0 %7659
        %7661 = vrot.lane.b32.xlu0 %v4934, 96
        %v7662 = vpop.permute.xlu0 %7661
        %7663 = vrot.lane.b32.xlu0 %v4935, 96
        %v7664 = vpop.permute.xlu0 %7663
        %7665 = vrot.lane.b32.xlu0 %v4936, 96
        %v7666 = vpop.permute.xlu0 %7665
        %7667 = vrot.lane.b32.xlu0 %v4937, 96
        %v7668 = vpop.permute.xlu0 %7667
        %7669 = vrot.lane.b32.xlu0 %v4938, 96
        %v7670 = vpop.permute.xlu0 %7669
        %v7680 = vsel %vm1279, %v7647, 0
        %v7683 = vsel %vm1279, %v7648, 0
        %v7686 = vsel %vm1279, %v7649, 0
        %v7689 = vsel %vm1279, %v7650, 0
        %v7692 = vsel %vm1279, %v7651, 0
        %v7695 = vsel %vm1279, %v7652, 0
        %v7698 = vsel %vm1279, %v7653, 0
        %v7701 = vsel %vm1279, %v7654, 0
        %7703 = vmatpush.msra.mxu0 0.0
        %7704 = vmatpush.msra.mxu0 0.0
        %7705 = vmatpush.msra.mxu0 0.0
        %7706 = vmatpush.msra.mxu0 0.0
        %7707 = vmatpush.msra.mxu0 0.0
        %7708 = vmatpush.msra.mxu0 0.0
        %7709 = vmatpush.msra.mxu0 0.0
        %7710 = vmatpush.msra.mxu0 0.0
        %7711 = vmatpush.msra.mxu0 %v7670
        %7712 = vmatpush.msra.mxu0 %v7668
        %7713 = vmatpush.msra.mxu0 %v7666
        %7714 = vmatpush.msra.mxu0 %v7664
        %7715 = vmatpush.msra.mxu0 %v7662
        %7716 = vmatpush.msra.mxu0 %v7660
        %7717 = vmatpush.msra.mxu0 %v7658
        %7718 = vmatpush.msra.mxu0 %v7656
        %7719 = vmatmul.f32.gmra.mxu0 %v7680
        %v7720 = vpop.f32.mrf.mxu0
        %v7721 = vadd.f32 0.0, %v7720
        %7722 = vmatmul.f32.gmra.mxu0 %v7683
        %v7723 = vpop.f32.mrf.mxu0
        %v7724 = vadd.f32 0.0, %v7723
        %7725 = vmatmul.f32.gmra.mxu0 %v7686
        %v7726 = vpop.f32.mrf.mxu0
        %v7727 = vadd.f32 0.0, %v7726
        %7728 = vmatmul.f32.gmra.mxu0 %v7689
        %v7729 = vpop.f32.mrf.mxu0
        %v7730 = vadd.f32 0.0, %v7729
        %7731 = vmatmul.f32.gmra.mxu0 %v7692
        %v7732 = vpop.f32.mrf.mxu0
        %v7733 = vadd.f32 0.0, %v7732
        %7734 = vmatmul.f32.gmra.mxu0 %v7695
        %v7735 = vpop.f32.mrf.mxu0
        %v7736 = vadd.f32 0.0, %v7735
        %7737 = vmatmul.f32.gmra.mxu0 %v7698
        %v7738 = vpop.f32.mrf.mxu0
        %v7739 = vadd.f32 0.0, %v7738
        %7740 = vmatmul.f32.gmra.mxu0 %v7701
        %v7741 = vpop.f32.mrf.mxu0
        %v7742 = vadd.f32 0.0, %v7741
        %7743 = vdwg.mxu0
        %7744 = vrot.lane.b32.xlu0 %v4479, 96
        %v7745 = vpop.permute.xlu0 %7744
        %7746 = vrot.lane.b32.xlu0 %v4480, 96
        %v7747 = vpop.permute.xlu0 %7746
        %7748 = vrot.lane.b32.xlu0 %v4481, 96
        %v7749 = vpop.permute.xlu0 %7748
        %7750 = vrot.lane.b32.xlu0 %v4482, 96
        %v7751 = vpop.permute.xlu0 %7750
        %7752 = vrot.lane.b32.xlu0 %v4483, 96
        %v7753 = vpop.permute.xlu0 %7752
        %7754 = vrot.lane.b32.xlu0 %v4484, 96
        %v7755 = vpop.permute.xlu0 %7754
        %7756 = vrot.lane.b32.xlu0 %v4485, 96
        %v7757 = vpop.permute.xlu0 %7756
        %7758 = vrot.lane.b32.xlu0 %v4486, 96
        %v7759 = vpop.permute.xlu0 %7758
        %v7769 = vsel %vm1279, %v7615, 0
        %v7772 = vsel %vm1279, %v7616, 0
        %v7775 = vsel %vm1279, %v7617, 0
        %v7778 = vsel %vm1279, %v7618, 0
        %v7781 = vsel %vm1279, %v7619, 0
        %v7784 = vsel %vm1279, %v7620, 0
        %v7787 = vsel %vm1279, %v7621, 0
        %v7790 = vsel %vm1279, %v7622, 0
        %7792 = vmatpush.msra.mxu0 0.0
        %7793 = vmatpush.msra.mxu0 0.0
        %7794 = vmatpush.msra.mxu0 0.0
        %7795 = vmatpush.msra.mxu0 0.0
        %7796 = vmatpush.msra.mxu0 0.0
        %7797 = vmatpush.msra.mxu0 0.0
        %7798 = vmatpush.msra.mxu0 0.0
        %7799 = vmatpush.msra.mxu0 0.0
        %7800 = vmatpush.msra.mxu0 %v7759
        %7801 = vmatpush.msra.mxu0 %v7757
        %7802 = vmatpush.msra.mxu0 %v7755
        %7803 = vmatpush.msra.mxu0 %v7753
        %7804 = vmatpush.msra.mxu0 %v7751
        %7805 = vmatpush.msra.mxu0 %v7749
        %7806 = vmatpush.msra.mxu0 %v7747
        %7807 = vmatpush.msra.mxu0 %v7745
        %7808 = vmatmul.f32.gmra.mxu0 %v7769
        %v7809 = vpop.f32.mrf.mxu0
        %v7810 = vadd.f32 %v7721, %v7809
        %7811 = vmatmul.f32.gmra.mxu0 %v7772
        %v7812 = vpop.f32.mrf.mxu0
        %v7813 = vadd.f32 %v7724, %v7812
        %7814 = vmatmul.f32.gmra.mxu0 %v7775
        %v7815 = vpop.f32.mrf.mxu0
        %v7816 = vadd.f32 %v7727, %v7815
        %7817 = vmatmul.f32.gmra.mxu0 %v7778
        %v7818 = vpop.f32.mrf.mxu0
        %v7819 = vadd.f32 %v7730, %v7818
        %7820 = vmatmul.f32.gmra.mxu0 %v7781
        %v7821 = vpop.f32.mrf.mxu0
        %v7822 = vadd.f32 %v7733, %v7821
        %7823 = vmatmul.f32.gmra.mxu0 %v7784
        %v7824 = vpop.f32.mrf.mxu0
        %v7825 = vadd.f32 %v7736, %v7824
        %7826 = vmatmul.f32.gmra.mxu0 %v7787
        %v7827 = vpop.f32.mrf.mxu0
        %v7828 = vadd.f32 %v7739, %v7827
        %7829 = vmatmul.f32.gmra.mxu0 %v7790
        %v7830 = vpop.f32.mrf.mxu0
        %v7831 = vadd.f32 %v7742, %v7830
        %7832 = vdwg.mxu0
        %v7833 = vmul.f32 %v6807, %v4923
        %v7834 = vmul.f32 %v6808, %v4924
        %v7835 = vmul.f32 %v6809, %v4925
        %v7836 = vmul.f32 %v6810, %v4926
        %v7837 = vmul.f32 %v6811, %v4927
        %v7838 = vmul.f32 %v6812, %v4928
        %v7839 = vmul.f32 %v6813, %v4929
        %v7840 = vmul.f32 %v6814, %v4930
        %7841 = vrot.lane.b32.xlu0 %v4931, 88
        %v7842 = vpop.permute.xlu0 %7841
        %7843 = vrot.lane.b32.xlu0 %v4932, 88
        %v7844 = vpop.permute.xlu0 %7843
        %7845 = vrot.lane.b32.xlu0 %v4933, 88
        %v7846 = vpop.permute.xlu0 %7845
        %7847 = vrot.lane.b32.xlu0 %v4934, 88
        %v7848 = vpop.permute.xlu0 %7847
        %7849 = vrot.lane.b32.xlu0 %v4935, 88
        %v7850 = vpop.permute.xlu0 %7849
        %7851 = vrot.lane.b32.xlu0 %v4936, 88
        %v7852 = vpop.permute.xlu0 %7851
        %7853 = vrot.lane.b32.xlu0 %v4937, 88
        %v7854 = vpop.permute.xlu0 %7853
        %7855 = vrot.lane.b32.xlu0 %v4938, 88
        %v7856 = vpop.permute.xlu0 %7855
        %v7866 = vsel %vm1279, %v7833, 0
        %v7869 = vsel %vm1279, %v7834, 0
        %v7872 = vsel %vm1279, %v7835, 0
        %v7875 = vsel %vm1279, %v7836, 0
        %v7878 = vsel %vm1279, %v7837, 0
        %v7881 = vsel %vm1279, %v7838, 0
        %v7884 = vsel %vm1279, %v7839, 0
        %v7887 = vsel %vm1279, %v7840, 0
        %7889 = vmatpush.msra.mxu0 0.0
        %7890 = vmatpush.msra.mxu0 0.0
        %7891 = vmatpush.msra.mxu0 0.0
        %7892 = vmatpush.msra.mxu0 0.0
        %7893 = vmatpush.msra.mxu0 0.0
        %7894 = vmatpush.msra.mxu0 0.0
        %7895 = vmatpush.msra.mxu0 0.0
        %7896 = vmatpush.msra.mxu0 0.0
        %7897 = vmatpush.msra.mxu0 %v7856
        %7898 = vmatpush.msra.mxu0 %v7854
        %7899 = vmatpush.msra.mxu0 %v7852
        %7900 = vmatpush.msra.mxu0 %v7850
        %7901 = vmatpush.msra.mxu0 %v7848
        %7902 = vmatpush.msra.mxu0 %v7846
        %7903 = vmatpush.msra.mxu0 %v7844
        %7904 = vmatpush.msra.mxu0 %v7842
        %7905 = vmatmul.f32.gmra.mxu0 %v7866
        %v7906 = vpop.f32.mrf.mxu0
        %v7907 = vadd.f32 0.0, %v7906
        %7908 = vmatmul.f32.gmra.mxu0 %v7869
        %v7909 = vpop.f32.mrf.mxu0
        %v7910 = vadd.f32 0.0, %v7909
        %7911 = vmatmul.f32.gmra.mxu0 %v7872
        %v7912 = vpop.f32.mrf.mxu0
        %v7913 = vadd.f32 0.0, %v7912
        %7914 = vmatmul.f32.gmra.mxu0 %v7875
        %v7915 = vpop.f32.mrf.mxu0
        %v7916 = vadd.f32 0.0, %v7915
        %7917 = vmatmul.f32.gmra.mxu0 %v7878
        %v7918 = vpop.f32.mrf.mxu0
        %v7919 = vadd.f32 0.0, %v7918
        %7920 = vmatmul.f32.gmra.mxu0 %v7881
        %v7921 = vpop.f32.mrf.mxu0
        %v7922 = vadd.f32 0.0, %v7921
        %7923 = vmatmul.f32.gmra.mxu0 %v7884
        %v7924 = vpop.f32.mrf.mxu0
        %v7925 = vadd.f32 0.0, %v7924
        %7926 = vmatmul.f32.gmra.mxu0 %v7887
        %v7927 = vpop.f32.mrf.mxu0
        %v7928 = vadd.f32 0.0, %v7927
        %7929 = vdwg.mxu0
        %7930 = vrot.lane.b32.xlu0 %v4479, 88
        %v7931 = vpop.permute.xlu0 %7930
        %7932 = vrot.lane.b32.xlu0 %v4480, 88
        %v7933 = vpop.permute.xlu0 %7932
        %7934 = vrot.lane.b32.xlu0 %v4481, 88
        %v7935 = vpop.permute.xlu0 %7934
        %7936 = vrot.lane.b32.xlu0 %v4482, 88
        %v7937 = vpop.permute.xlu0 %7936
        %7938 = vrot.lane.b32.xlu0 %v4483, 88
        %v7939 = vpop.permute.xlu0 %7938
        %7940 = vrot.lane.b32.xlu0 %v4484, 88
        %v7941 = vpop.permute.xlu0 %7940
        %7942 = vrot.lane.b32.xlu0 %v4485, 88
        %v7943 = vpop.permute.xlu0 %7942
        %7944 = vrot.lane.b32.xlu0 %v4486, 88
        %v7945 = vpop.permute.xlu0 %7944
        %v7955 = vsel %vm1279, %v7623, 0
        %v7958 = vsel %vm1279, %v7624, 0
        %v7961 = vsel %vm1279, %v7625, 0
        %v7964 = vsel %vm1279, %v7626, 0
        %v7967 = vsel %vm1279, %v7627, 0
        %v7970 = vsel %vm1279, %v7628, 0
        %v7973 = vsel %vm1279, %v7629, 0
        %v7976 = vsel %vm1279, %v7630, 0
        %7978 = vmatpush.msra.mxu0 0.0
        %7979 = vmatpush.msra.mxu0 0.0
        %7980 = vmatpush.msra.mxu0 0.0
        %7981 = vmatpush.msra.mxu0 0.0
        %7982 = vmatpush.msra.mxu0 0.0
        %7983 = vmatpush.msra.mxu0 0.0
        %7984 = vmatpush.msra.mxu0 0.0
        %7985 = vmatpush.msra.mxu0 0.0
        %7986 = vmatpush.msra.mxu0 %v7945
        %7987 = vmatpush.msra.mxu0 %v7943
        %7988 = vmatpush.msra.mxu0 %v7941
        %7989 = vmatpush.msra.mxu0 %v7939
        %7990 = vmatpush.msra.mxu0 %v7937
        %7991 = vmatpush.msra.mxu0 %v7935
        %7992 = vmatpush.msra.mxu0 %v7933
        %7993 = vmatpush.msra.mxu0 %v7931
        %7994 = vmatmul.f32.gmra.mxu0 %v7955
        %v7995 = vpop.f32.mrf.mxu0
        %v7996 = vadd.f32 %v7907, %v7995
        %7997 = vmatmul.f32.gmra.mxu0 %v7958
        %v7998 = vpop.f32.mrf.mxu0
        %v7999 = vadd.f32 %v7910, %v7998
        %8000 = vmatmul.f32.gmra.mxu0 %v7961
        %v8001 = vpop.f32.mrf.mxu0
        %v8002 = vadd.f32 %v7913, %v8001
        %8003 = vmatmul.f32.gmra.mxu0 %v7964
        %v8004 = vpop.f32.mrf.mxu0
        %v8005 = vadd.f32 %v7916, %v8004
        %8006 = vmatmul.f32.gmra.mxu0 %v7967
        %v8007 = vpop.f32.mrf.mxu0
        %v8008 = vadd.f32 %v7919, %v8007
        %8009 = vmatmul.f32.gmra.mxu0 %v7970
        %v8010 = vpop.f32.mrf.mxu0
        %v8011 = vadd.f32 %v7922, %v8010
        %8012 = vmatmul.f32.gmra.mxu0 %v7973
        %v8013 = vpop.f32.mrf.mxu0
        %v8014 = vadd.f32 %v7925, %v8013
        %8015 = vmatmul.f32.gmra.mxu0 %v7976
        %v8016 = vpop.f32.mrf.mxu0
        %v8017 = vadd.f32 %v7928, %v8016
        %8018 = vdwg.mxu0
        %v8019 = vmul.f32 %v7207, %v4923
        %v8020 = vmul.f32 %v7208, %v4924
        %v8021 = vmul.f32 %v7209, %v4925
        %v8022 = vmul.f32 %v7210, %v4926
        %v8023 = vmul.f32 %v7211, %v4927
        %v8024 = vmul.f32 %v7212, %v4928
        %v8025 = vmul.f32 %v7213, %v4929
        %v8026 = vmul.f32 %v7214, %v4930
        %8027 = vrot.lane.b32.xlu0 %v4931, 80
        %v8028 = vpop.permute.xlu0 %8027
        %8029 = vrot.lane.b32.xlu0 %v4932, 80
        %v8030 = vpop.permute.xlu0 %8029
        %8031 = vrot.lane.b32.xlu0 %v4933, 80
        %v8032 = vpop.permute.xlu0 %8031
        %8033 = vrot.lane.b32.xlu0 %v4934, 80
        %v8034 = vpop.permute.xlu0 %8033
        %8035 = vrot.lane.b32.xlu0 %v4935, 80
        %v8036 = vpop.permute.xlu0 %8035
        %8037 = vrot.lane.b32.xlu0 %v4936, 80
        %v8038 = vpop.permute.xlu0 %8037
        %8039 = vrot.lane.b32.xlu0 %v4937, 80
        %v8040 = vpop.permute.xlu0 %8039
        %8041 = vrot.lane.b32.xlu0 %v4938, 80
        %v8042 = vpop.permute.xlu0 %8041
        %v8052 = vsel %vm1279, %v8019, 0
        %v8055 = vsel %vm1279, %v8020, 0
        %v8058 = vsel %vm1279, %v8021, 0
        %v8061 = vsel %vm1279, %v8022, 0
        %v8064 = vsel %vm1279, %v8023, 0
        %v8067 = vsel %vm1279, %v8024, 0
        %v8070 = vsel %vm1279, %v8025, 0
        %v8073 = vsel %vm1279, %v8026, 0
        %8075 = vmatpush.msra.mxu0 0.0
        %8076 = vmatpush.msra.mxu0 0.0
        %8077 = vmatpush.msra.mxu0 0.0
        %8078 = vmatpush.msra.mxu0 0.0
        %8079 = vmatpush.msra.mxu0 0.0
        %8080 = vmatpush.msra.mxu0 0.0
        %8081 = vmatpush.msra.mxu0 0.0
        %8082 = vmatpush.msra.mxu0 0.0
        %8083 = vmatpush.msra.mxu0 %v8042
        %8084 = vmatpush.msra.mxu0 %v8040
        %8085 = vmatpush.msra.mxu0 %v8038
        %8086 = vmatpush.msra.mxu0 %v8036
        %8087 = vmatpush.msra.mxu0 %v8034
        %8088 = vmatpush.msra.mxu0 %v8032
        %8089 = vmatpush.msra.mxu0 %v8030
        %8090 = vmatpush.msra.mxu0 %v8028
        %8091 = vmatmul.f32.gmra.mxu0 %v8052
        %v8092 = vpop.f32.mrf.mxu0
        %v8093 = vadd.f32 0.0, %v8092
        %8094 = vmatmul.f32.gmra.mxu0 %v8055
        %v8095 = vpop.f32.mrf.mxu0
        %v8096 = vadd.f32 0.0, %v8095
        %8097 = vmatmul.f32.gmra.mxu0 %v8058
        %v8098 = vpop.f32.mrf.mxu0
        %v8099 = vadd.f32 0.0, %v8098
        %8100 = vmatmul.f32.gmra.mxu0 %v8061
        %v8101 = vpop.f32.mrf.mxu0
        %v8102 = vadd.f32 0.0, %v8101
        %8103 = vmatmul.f32.gmra.mxu0 %v8064
        %v8104 = vpop.f32.mrf.mxu0
        %v8105 = vadd.f32 0.0, %v8104
        %8106 = vmatmul.f32.gmra.mxu0 %v8067
        %v8107 = vpop.f32.mrf.mxu0
        %v8108 = vadd.f32 0.0, %v8107
        %8109 = vmatmul.f32.gmra.mxu0 %v8070
        %v8110 = vpop.f32.mrf.mxu0
        %v8111 = vadd.f32 0.0, %v8110
        %8112 = vmatmul.f32.gmra.mxu0 %v8073
        %v8113 = vpop.f32.mrf.mxu0
        %v8114 = vadd.f32 0.0, %v8113
        %8115 = vdwg.mxu0
        %8116 = vrot.lane.b32.xlu0 %v4479, 80
        %v8117 = vpop.permute.xlu0 %8116
        %8118 = vrot.lane.b32.xlu0 %v4480, 80
        %v8119 = vpop.permute.xlu0 %8118
        %8120 = vrot.lane.b32.xlu0 %v4481, 80
        %v8121 = vpop.permute.xlu0 %8120
        %8122 = vrot.lane.b32.xlu0 %v4482, 80
        %v8123 = vpop.permute.xlu0 %8122
        %8124 = vrot.lane.b32.xlu0 %v4483, 80
        %v8125 = vpop.permute.xlu0 %8124
        %8126 = vrot.lane.b32.xlu0 %v4484, 80
        %v8127 = vpop.permute.xlu0 %8126
        %8128 = vrot.lane.b32.xlu0 %v4485, 80
        %v8129 = vpop.permute.xlu0 %8128
        %8130 = vrot.lane.b32.xlu0 %v4486, 80
        %v8131 = vpop.permute.xlu0 %8130
        %v8141 = vsel %vm1279, %v7631, 0
        %v8144 = vsel %vm1279, %v7632, 0
        %v8147 = vsel %vm1279, %v7633, 0
        %v8150 = vsel %vm1279, %v7634, 0
        %v8153 = vsel %vm1279, %v7635, 0
        %v8156 = vsel %vm1279, %v7636, 0
        %v8159 = vsel %vm1279, %v7637, 0
        %v8162 = vsel %vm1279, %v7638, 0
        %8164 = vmatpush.msra.mxu0 0.0
        %8165 = vmatpush.msra.mxu0 0.0
        %8166 = vmatpush.msra.mxu0 0.0
        %8167 = vmatpush.msra.mxu0 0.0
        %8168 = vmatpush.msra.mxu0 0.0
        %8169 = vmatpush.msra.mxu0 0.0
        %8170 = vmatpush.msra.mxu0 0.0
        %8171 = vmatpush.msra.mxu0 0.0
        %8172 = vmatpush.msra.mxu0 %v8131
        %8173 = vmatpush.msra.mxu0 %v8129
        %8174 = vmatpush.msra.mxu0 %v8127
        %8175 = vmatpush.msra.mxu0 %v8125
        %8176 = vmatpush.msra.mxu0 %v8123
        %8177 = vmatpush.msra.mxu0 %v8121
        %8178 = vmatpush.msra.mxu0 %v8119
        %8179 = vmatpush.msra.mxu0 %v8117
        %8180 = vmatmul.f32.gmra.mxu0 %v8141
        %v8181 = vpop.f32.mrf.mxu0
        %v8182 = vadd.f32 %v8093, %v8181
        %8183 = vmatmul.f32.gmra.mxu0 %v8144
        %v8184 = vpop.f32.mrf.mxu0
        %v8185 = vadd.f32 %v8096, %v8184
        %8186 = vmatmul.f32.gmra.mxu0 %v8147
        %v8187 = vpop.f32.mrf.mxu0
        %v8188 = vadd.f32 %v8099, %v8187
        %8189 = vmatmul.f32.gmra.mxu0 %v8150
        %v8190 = vpop.f32.mrf.mxu0
        %v8191 = vadd.f32 %v8102, %v8190
        %8192 = vmatmul.f32.gmra.mxu0 %v8153
        %v8193 = vpop.f32.mrf.mxu0
        %v8194 = vadd.f32 %v8105, %v8193
        %8195 = vmatmul.f32.gmra.mxu0 %v8156
        %v8196 = vpop.f32.mrf.mxu0
        %v8197 = vadd.f32 %v8108, %v8196
        %8198 = vmatmul.f32.gmra.mxu0 %v8159
        %v8199 = vpop.f32.mrf.mxu0
        %v8200 = vadd.f32 %v8111, %v8199
        %8201 = vmatmul.f32.gmra.mxu0 %v8162
        %v8202 = vpop.f32.mrf.mxu0
        %v8203 = vadd.f32 %v8114, %v8202
        %8204 = vdwg.mxu0
        %v8205 = vmul.f32 %v7607, %v4923
        %v8206 = vmul.f32 %v7608, %v4924
        %v8207 = vmul.f32 %v7609, %v4925
        %v8208 = vmul.f32 %v7610, %v4926
        %v8209 = vmul.f32 %v7611, %v4927
        %v8210 = vmul.f32 %v7612, %v4928
        %v8211 = vmul.f32 %v7613, %v4929
        %v8212 = vmul.f32 %v7614, %v4930
        %8213 = vrot.lane.b32.xlu0 %v4931, 72
        %v8214 = vpop.permute.xlu0 %8213
        %8215 = vrot.lane.b32.xlu0 %v4932, 72
        %v8216 = vpop.permute.xlu0 %8215
        %8217 = vrot.lane.b32.xlu0 %v4933, 72
        %v8218 = vpop.permute.xlu0 %8217
        %8219 = vrot.lane.b32.xlu0 %v4934, 72
        %v8220 = vpop.permute.xlu0 %8219
        %8221 = vrot.lane.b32.xlu0 %v4935, 72
        %v8222 = vpop.permute.xlu0 %8221
        %8223 = vrot.lane.b32.xlu0 %v4936, 72
        %v8224 = vpop.permute.xlu0 %8223
        %8225 = vrot.lane.b32.xlu0 %v4937, 72
        %v8226 = vpop.permute.xlu0 %8225
        %8227 = vrot.lane.b32.xlu0 %v4938, 72
        %v8228 = vpop.permute.xlu0 %8227
        %v8238 = vsel %vm1279, %v8205, 0
        %v8241 = vsel %vm1279, %v8206, 0
        %v8244 = vsel %vm1279, %v8207, 0
        %v8247 = vsel %vm1279, %v8208, 0
        %v8250 = vsel %vm1279, %v8209, 0
        %v8253 = vsel %vm1279, %v8210, 0
        %v8256 = vsel %vm1279, %v8211, 0
        %v8259 = vsel %vm1279, %v8212, 0
        %8261 = vmatpush.msra.mxu0 0.0
        %8262 = vmatpush.msra.mxu0 0.0
        %8263 = vmatpush.msra.mxu0 0.0
        %8264 = vmatpush.msra.mxu0 0.0
        %8265 = vmatpush.msra.mxu0 0.0
        %8266 = vmatpush.msra.mxu0 0.0
        %8267 = vmatpush.msra.mxu0 0.0
        %8268 = vmatpush.msra.mxu0 0.0
        %8269 = vmatpush.msra.mxu0 %v8228
        %8270 = vmatpush.msra.mxu0 %v8226
        %8271 = vmatpush.msra.mxu0 %v8224
        %8272 = vmatpush.msra.mxu0 %v8222
        %8273 = vmatpush.msra.mxu0 %v8220
        %8274 = vmatpush.msra.mxu0 %v8218
        %8275 = vmatpush.msra.mxu0 %v8216
        %8276 = vmatpush.msra.mxu0 %v8214
        %8277 = vmatmul.f32.gmra.mxu0 %v8238
        %v8278 = vpop.f32.mrf.mxu0
        %v8279 = vadd.f32 0.0, %v8278
        %8280 = vmatmul.f32.gmra.mxu0 %v8241
        %v8281 = vpop.f32.mrf.mxu0
        %v8282 = vadd.f32 0.0, %v8281
        %8283 = vmatmul.f32.gmra.mxu0 %v8244
        %v8284 = vpop.f32.mrf.mxu0
        %v8285 = vadd.f32 0.0, %v8284
        %8286 = vmatmul.f32.gmra.mxu0 %v8247
        %v8287 = vpop.f32.mrf.mxu0
        %v8288 = vadd.f32 0.0, %v8287
        %8289 = vmatmul.f32.gmra.mxu0 %v8250
        %v8290 = vpop.f32.mrf.mxu0
        %v8291 = vadd.f32 0.0, %v8290
        %8292 = vmatmul.f32.gmra.mxu0 %v8253
        %v8293 = vpop.f32.mrf.mxu0
        %v8294 = vadd.f32 0.0, %v8293
        %8295 = vmatmul.f32.gmra.mxu0 %v8256
        %v8296 = vpop.f32.mrf.mxu0
        %v8297 = vadd.f32 0.0, %v8296
        %8298 = vmatmul.f32.gmra.mxu0 %v8259
        %v8299 = vpop.f32.mrf.mxu0
        %v8300 = vadd.f32 0.0, %v8299
        %8301 = vdwg.mxu0
        %8302 = vrot.lane.b32.xlu0 %v4479, 72
        %v8303 = vpop.permute.xlu0 %8302
        %8304 = vrot.lane.b32.xlu0 %v4480, 72
        %v8305 = vpop.permute.xlu0 %8304
        %8306 = vrot.lane.b32.xlu0 %v4481, 72
        %v8307 = vpop.permute.xlu0 %8306
        %8308 = vrot.lane.b32.xlu0 %v4482, 72
        %v8309 = vpop.permute.xlu0 %8308
        %8310 = vrot.lane.b32.xlu0 %v4483, 72
        %v8311 = vpop.permute.xlu0 %8310
        %8312 = vrot.lane.b32.xlu0 %v4484, 72
        %v8313 = vpop.permute.xlu0 %8312
        %8314 = vrot.lane.b32.xlu0 %v4485, 72
        %v8315 = vpop.permute.xlu0 %8314
        %8316 = vrot.lane.b32.xlu0 %v4486, 72
        %v8317 = vpop.permute.xlu0 %8316
        %v8327 = vsel %vm1279, %v7639, 0
        %v8330 = vsel %vm1279, %v7640, 0
        %v8333 = vsel %vm1279, %v7641, 0
        %v8336 = vsel %vm1279, %v7642, 0
        %v8339 = vsel %vm1279, %v7643, 0
        %v8342 = vsel %vm1279, %v7644, 0
        %v8345 = vsel %vm1279, %v7645, 0
        %v8348 = vsel %vm1279, %v7646, 0
        %8350 = vmatpush.msra.mxu0 0.0
        %8351 = vmatpush.msra.mxu0 0.0
        %8352 = vmatpush.msra.mxu0 0.0
        %8353 = vmatpush.msra.mxu0 0.0
        %8354 = vmatpush.msra.mxu0 0.0
        %8355 = vmatpush.msra.mxu0 0.0
        %8356 = vmatpush.msra.mxu0 0.0
        %8357 = vmatpush.msra.mxu0 0.0
        %8358 = vmatpush.msra.mxu0 %v8317
        %8359 = vmatpush.msra.mxu0 %v8315
        %8360 = vmatpush.msra.mxu0 %v8313
        %8361 = vmatpush.msra.mxu0 %v8311
        %8362 = vmatpush.msra.mxu0 %v8309
        %8363 = vmatpush.msra.mxu0 %v8307
        %8364 = vmatpush.msra.mxu0 %v8305
        %8365 = vmatpush.msra.mxu0 %v8303
        %8366 = vmatmul.f32.gmra.mxu0 %v8327
        %v8367 = vpop.f32.mrf.mxu0
        %v8368 = vadd.f32 %v8279, %v8367
        %8369 = vmatmul.f32.gmra.mxu0 %v8330
        %v8370 = vpop.f32.mrf.mxu0
        %v8371 = vadd.f32 %v8282, %v8370
        %8372 = vmatmul.f32.gmra.mxu0 %v8333
        %v8373 = vpop.f32.mrf.mxu0
        %v8374 = vadd.f32 %v8285, %v8373
        %8375 = vmatmul.f32.gmra.mxu0 %v8336
        %v8376 = vpop.f32.mrf.mxu0
        %v8377 = vadd.f32 %v8288, %v8376
        %8378 = vmatmul.f32.gmra.mxu0 %v8339
        %v8379 = vpop.f32.mrf.mxu0
        %v8380 = vadd.f32 %v8291, %v8379
        %8381 = vmatmul.f32.gmra.mxu0 %v8342
        %v8382 = vpop.f32.mrf.mxu0
        %v8383 = vadd.f32 %v8294, %v8382
        %8384 = vmatmul.f32.gmra.mxu0 %v8345
        %v8385 = vpop.f32.mrf.mxu0
        %v8386 = vadd.f32 %v8297, %v8385
        %8387 = vmatmul.f32.gmra.mxu0 %v8348
        %v8388 = vpop.f32.mrf.mxu0
        %v8389 = vadd.f32 %v8300, %v8388
        %8390 = vdwg.mxu0
        %v8391 = vmul.f32 %v6407, %v5287
        %v8392 = vmul.f32 %v6408, %v5288
        %v8393 = vmul.f32 %v6409, %v5289
        %v8394 = vmul.f32 %v6410, %v5290
        %v8395 = vmul.f32 %v6411, %v5291
        %v8396 = vmul.f32 %v6412, %v5292
        %v8397 = vmul.f32 %v6413, %v5293
        %v8398 = vmul.f32 %v6414, %v5294
        %8399 = vrot.lane.b32.xlu0 %v5295, 96
        %v8400 = vpop.permute.xlu0 %8399
        %8401 = vrot.lane.b32.xlu0 %v5296, 96
        %v8402 = vpop.permute.xlu0 %8401
        %8403 = vrot.lane.b32.xlu0 %v5297, 96
        %v8404 = vpop.permute.xlu0 %8403
        %8405 = vrot.lane.b32.xlu0 %v5298, 96
        %v8406 = vpop.permute.xlu0 %8405
        %8407 = vrot.lane.b32.xlu0 %v5299, 96
        %v8408 = vpop.permute.xlu0 %8407
        %8409 = vrot.lane.b32.xlu0 %v5300, 96
        %v8410 = vpop.permute.xlu0 %8409
        %8411 = vrot.lane.b32.xlu0 %v5301, 96
        %v8412 = vpop.permute.xlu0 %8411
        %8413 = vrot.lane.b32.xlu0 %v5302, 96
        %v8414 = vpop.permute.xlu0 %8413
        %v8424 = vsel %vm1279, %v8391, 0
        %v8427 = vsel %vm1279, %v8392, 0
        %v8430 = vsel %vm1279, %v8393, 0
        %v8433 = vsel %vm1279, %v8394, 0
        %v8436 = vsel %vm1279, %v8395, 0
        %v8439 = vsel %vm1279, %v8396, 0
        %v8442 = vsel %vm1279, %v8397, 0
        %v8445 = vsel %vm1279, %v8398, 0
        %8447 = vmatpush.msra.mxu0 0.0
        %8448 = vmatpush.msra.mxu0 0.0
        %8449 = vmatpush.msra.mxu0 0.0
        %8450 = vmatpush.msra.mxu0 0.0
        %8451 = vmatpush.msra.mxu0 0.0
        %8452 = vmatpush.msra.mxu0 0.0
        %8453 = vmatpush.msra.mxu0 0.0
        %8454 = vmatpush.msra.mxu0 0.0
        %8455 = vmatpush.msra.mxu0 %v8414
        %8456 = vmatpush.msra.mxu0 %v8412
        %8457 = vmatpush.msra.mxu0 %v8410
        %8458 = vmatpush.msra.mxu0 %v8408
        %8459 = vmatpush.msra.mxu0 %v8406
        %8460 = vmatpush.msra.mxu0 %v8404
        %8461 = vmatpush.msra.mxu0 %v8402
        %8462 = vmatpush.msra.mxu0 %v8400
        %8463 = vmatmul.f32.gmra.mxu0 %v8424
        %v8464 = vpop.f32.mrf.mxu0
        %v8465 = vadd.f32 0.0, %v8464
        %8466 = vmatmul.f32.gmra.mxu0 %v8427
        %v8467 = vpop.f32.mrf.mxu0
        %v8468 = vadd.f32 0.0, %v8467
        %8469 = vmatmul.f32.gmra.mxu0 %v8430
        %v8470 = vpop.f32.mrf.mxu0
        %v8471 = vadd.f32 0.0, %v8470
        %8472 = vmatmul.f32.gmra.mxu0 %v8433
        %v8473 = vpop.f32.mrf.mxu0
        %v8474 = vadd.f32 0.0, %v8473
        %8475 = vmatmul.f32.gmra.mxu0 %v8436
        %v8476 = vpop.f32.mrf.mxu0
        %v8477 = vadd.f32 0.0, %v8476
        %8478 = vmatmul.f32.gmra.mxu0 %v8439
        %v8479 = vpop.f32.mrf.mxu0
        %v8480 = vadd.f32 0.0, %v8479
        %8481 = vmatmul.f32.gmra.mxu0 %v8442
        %v8482 = vpop.f32.mrf.mxu0
        %v8483 = vadd.f32 0.0, %v8482
        %8484 = vmatmul.f32.gmra.mxu0 %v8445
        %v8485 = vpop.f32.mrf.mxu0
        %v8486 = vadd.f32 0.0, %v8485
        %8487 = vdwg.mxu0
        %v8488 = vadd.f32 %v7810, %v8465
        %v8489 = vadd.f32 %v7813, %v8468
        %v8490 = vadd.f32 %v7816, %v8471
        %v8491 = vadd.f32 %v7819, %v8474
        %v8492 = vadd.f32 %v7822, %v8477
        %v8493 = vadd.f32 %v7825, %v8480
        %v8494 = vadd.f32 %v7828, %v8483
        %v8495 = vadd.f32 %v7831, %v8486
        %v8496 = vmul.f32 %v6807, %v5287
        %v8497 = vmul.f32 %v6808, %v5288
        %v8498 = vmul.f32 %v6809, %v5289
        %v8499 = vmul.f32 %v6810, %v5290
        %v8500 = vmul.f32 %v6811, %v5291
        %v8501 = vmul.f32 %v6812, %v5292
        %v8502 = vmul.f32 %v6813, %v5293
        %v8503 = vmul.f32 %v6814, %v5294
        %8504 = vrot.lane.b32.xlu0 %v5295, 88
        %v8505 = vpop.permute.xlu0 %8504
        %8506 = vrot.lane.b32.xlu0 %v5296, 88
        %v8507 = vpop.permute.xlu0 %8506
        %8508 = vrot.lane.b32.xlu0 %v5297, 88
        %v8509 = vpop.permute.xlu0 %8508
        %8510 = vrot.lane.b32.xlu0 %v5298, 88
        %v8511 = vpop.permute.xlu0 %8510
        %8512 = vrot.lane.b32.xlu0 %v5299, 88
        %v8513 = vpop.permute.xlu0 %8512
        %8514 = vrot.lane.b32.xlu0 %v5300, 88
        %v8515 = vpop.permute.xlu0 %8514
        %8516 = vrot.lane.b32.xlu0 %v5301, 88
        %v8517 = vpop.permute.xlu0 %8516
        %8518 = vrot.lane.b32.xlu0 %v5302, 88
        %v8519 = vpop.permute.xlu0 %8518
        %v8529 = vsel %vm1279, %v8496, 0
        %v8532 = vsel %vm1279, %v8497, 0
        %v8535 = vsel %vm1279, %v8498, 0
        %v8538 = vsel %vm1279, %v8499, 0
        %v8541 = vsel %vm1279, %v8500, 0
        %v8544 = vsel %vm1279, %v8501, 0
        %v8547 = vsel %vm1279, %v8502, 0
        %v8550 = vsel %vm1279, %v8503, 0
        %8552 = vmatpush.msra.mxu0 0.0
        %8553 = vmatpush.msra.mxu0 0.0
        %8554 = vmatpush.msra.mxu0 0.0
        %8555 = vmatpush.msra.mxu0 0.0
        %8556 = vmatpush.msra.mxu0 0.0
        %8557 = vmatpush.msra.mxu0 0.0
        %8558 = vmatpush.msra.mxu0 0.0
        %8559 = vmatpush.msra.mxu0 0.0
        %8560 = vmatpush.msra.mxu0 %v8519
        %8561 = vmatpush.msra.mxu0 %v8517
        %8562 = vmatpush.msra.mxu0 %v8515
        %8563 = vmatpush.msra.mxu0 %v8513
        %8564 = vmatpush.msra.mxu0 %v8511
        %8565 = vmatpush.msra.mxu0 %v8509
        %8566 = vmatpush.msra.mxu0 %v8507
        %8567 = vmatpush.msra.mxu0 %v8505
        %8568 = vmatmul.f32.gmra.mxu0 %v8529
        %v8569 = vpop.f32.mrf.mxu0
        %v8570 = vadd.f32 0.0, %v8569
        %8571 = vmatmul.f32.gmra.mxu0 %v8532
        %v8572 = vpop.f32.mrf.mxu0
        %v8573 = vadd.f32 0.0, %v8572
        %8574 = vmatmul.f32.gmra.mxu0 %v8535
        %v8575 = vpop.f32.mrf.mxu0
        %v8576 = vadd.f32 0.0, %v8575
        %8577 = vmatmul.f32.gmra.mxu0 %v8538
        %v8578 = vpop.f32.mrf.mxu0
        %v8579 = vadd.f32 0.0, %v8578
        %8580 = vmatmul.f32.gmra.mxu0 %v8541
        %v8581 = vpop.f32.mrf.mxu0
        %v8582 = vadd.f32 0.0, %v8581
        %8583 = vmatmul.f32.gmra.mxu0 %v8544
        %v8584 = vpop.f32.mrf.mxu0
        %v8585 = vadd.f32 0.0, %v8584
        %8586 = vmatmul.f32.gmra.mxu0 %v8547
        %v8587 = vpop.f32.mrf.mxu0
        %v8588 = vadd.f32 0.0, %v8587
        %8589 = vmatmul.f32.gmra.mxu0 %v8550
        %v8590 = vpop.f32.mrf.mxu0
        %v8591 = vadd.f32 0.0, %v8590
        %8592 = vdwg.mxu0
        %v8593 = vadd.f32 %v7996, %v8570
        %v8594 = vadd.f32 %v7999, %v8573
        %v8595 = vadd.f32 %v8002, %v8576
        %v8596 = vadd.f32 %v8005, %v8579
        %v8597 = vadd.f32 %v8008, %v8582
        %v8598 = vadd.f32 %v8011, %v8585
        %v8599 = vadd.f32 %v8014, %v8588
        %v8600 = vadd.f32 %v8017, %v8591
        %v8601 = vmul.f32 %v7207, %v5287
        %v8602 = vmul.f32 %v7208, %v5288
        %v8603 = vmul.f32 %v7209, %v5289
        %v8604 = vmul.f32 %v7210, %v5290
        %v8605 = vmul.f32 %v7211, %v5291
        %v8606 = vmul.f32 %v7212, %v5292
        %v8607 = vmul.f32 %v7213, %v5293
        %v8608 = vmul.f32 %v7214, %v5294
        %8609 = vrot.lane.b32.xlu0 %v5295, 80
        %v8610 = vpop.permute.xlu0 %8609
        %8611 = vrot.lane.b32.xlu0 %v5296, 80
        %v8612 = vpop.permute.xlu0 %8611
        %8613 = vrot.lane.b32.xlu0 %v5297, 80
        %v8614 = vpop.permute.xlu0 %8613
        %8615 = vrot.lane.b32.xlu0 %v5298, 80
        %v8616 = vpop.permute.xlu0 %8615
        %8617 = vrot.lane.b32.xlu0 %v5299, 80
        %v8618 = vpop.permute.xlu0 %8617
        %8619 = vrot.lane.b32.xlu0 %v5300, 80
        %v8620 = vpop.permute.xlu0 %8619
        %8621 = vrot.lane.b32.xlu0 %v5301, 80
        %v8622 = vpop.permute.xlu0 %8621
        %8623 = vrot.lane.b32.xlu0 %v5302, 80
        %v8624 = vpop.permute.xlu0 %8623
        %v8634 = vsel %vm1279, %v8601, 0
        %v8637 = vsel %vm1279, %v8602, 0
        %v8640 = vsel %vm1279, %v8603, 0
        %v8643 = vsel %vm1279, %v8604, 0
        %v8646 = vsel %vm1279, %v8605, 0
        %v8649 = vsel %vm1279, %v8606, 0
        %v8652 = vsel %vm1279, %v8607, 0
        %v8655 = vsel %vm1279, %v8608, 0
        %8657 = vmatpush.msra.mxu0 0.0
        %8658 = vmatpush.msra.mxu0 0.0
        %8659 = vmatpush.msra.mxu0 0.0
        %8660 = vmatpush.msra.mxu0 0.0
        %8661 = vmatpush.msra.mxu0 0.0
        %8662 = vmatpush.msra.mxu0 0.0
        %8663 = vmatpush.msra.mxu0 0.0
        %8664 = vmatpush.msra.mxu0 0.0
        %8665 = vmatpush.msra.mxu0 %v8624
        %8666 = vmatpush.msra.mxu0 %v8622
        %8667 = vmatpush.msra.mxu0 %v8620
        %8668 = vmatpush.msra.mxu0 %v8618
        %8669 = vmatpush.msra.mxu0 %v8616
        %8670 = vmatpush.msra.mxu0 %v8614
        %8671 = vmatpush.msra.mxu0 %v8612
        %8672 = vmatpush.msra.mxu0 %v8610
        %8673 = vmatmul.f32.gmra.mxu0 %v8634
        %v8674 = vpop.f32.mrf.mxu0
        %v8675 = vadd.f32 0.0, %v8674
        %8676 = vmatmul.f32.gmra.mxu0 %v8637
        %v8677 = vpop.f32.mrf.mxu0
        %v8678 = vadd.f32 0.0, %v8677
        %8679 = vmatmul.f32.gmra.mxu0 %v8640
        %v8680 = vpop.f32.mrf.mxu0
        %v8681 = vadd.f32 0.0, %v8680
        %8682 = vmatmul.f32.gmra.mxu0 %v8643
        %v8683 = vpop.f32.mrf.mxu0
        %v8684 = vadd.f32 0.0, %v8683
        %8685 = vmatmul.f32.gmra.mxu0 %v8646
        %v8686 = vpop.f32.mrf.mxu0
        %v8687 = vadd.f32 0.0, %v8686
        %8688 = vmatmul.f32.gmra.mxu0 %v8649
        %v8689 = vpop.f32.mrf.mxu0
        %v8690 = vadd.f32 0.0, %v8689
        %8691 = vmatmul.f32.gmra.mxu0 %v8652
        %v8692 = vpop.f32.mrf.mxu0
        %v8693 = vadd.f32 0.0, %v8692
        %8694 = vmatmul.f32.gmra.mxu0 %v8655
        %v8695 = vpop.f32.mrf.mxu0
        %v8696 = vadd.f32 0.0, %v8695
        %8697 = vdwg.mxu0
        %v8698 = vadd.f32 %v8182, %v8675
        %v8699 = vadd.f32 %v8185, %v8678
        %v8700 = vadd.f32 %v8188, %v8681
        %v8701 = vadd.f32 %v8191, %v8684
        %v8702 = vadd.f32 %v8194, %v8687
        %v8703 = vadd.f32 %v8197, %v8690
        %v8704 = vadd.f32 %v8200, %v8693
        %v8705 = vadd.f32 %v8203, %v8696
        %v8706 = vmul.f32 %v7607, %v5287
        %v8707 = vmul.f32 %v7608, %v5288
        %v8708 = vmul.f32 %v7609, %v5289
        %v8709 = vmul.f32 %v7610, %v5290
        %v8710 = vmul.f32 %v7611, %v5291
        %v8711 = vmul.f32 %v7612, %v5292
        %v8712 = vmul.f32 %v7613, %v5293
        %v8713 = vmul.f32 %v7614, %v5294
        %8714 = vrot.lane.b32.xlu0 %v5295, 72
        %v8715 = vpop.permute.xlu0 %8714
        %8716 = vrot.lane.b32.xlu0 %v5296, 72
        %v8717 = vpop.permute.xlu0 %8716
        %8718 = vrot.lane.b32.xlu0 %v5297, 72
        %v8719 = vpop.permute.xlu0 %8718
        %8720 = vrot.lane.b32.xlu0 %v5298, 72
        %v8721 = vpop.permute.xlu0 %8720
        %8722 = vrot.lane.b32.xlu0 %v5299, 72
        %v8723 = vpop.permute.xlu0 %8722
        %8724 = vrot.lane.b32.xlu0 %v5300, 72
        %v8725 = vpop.permute.xlu0 %8724
        %8726 = vrot.lane.b32.xlu0 %v5301, 72
        %v8727 = vpop.permute.xlu0 %8726
        %8728 = vrot.lane.b32.xlu0 %v5302, 72
        %v8729 = vpop.permute.xlu0 %8728
        %v8739 = vsel %vm1279, %v8706, 0
        %v8742 = vsel %vm1279, %v8707, 0
        %v8745 = vsel %vm1279, %v8708, 0
        %v8748 = vsel %vm1279, %v8709, 0
        %v8751 = vsel %vm1279, %v8710, 0
        %v8754 = vsel %vm1279, %v8711, 0
        %v8757 = vsel %vm1279, %v8712, 0
        %v8760 = vsel %vm1279, %v8713, 0
        %8762 = vmatpush.msra.mxu0 0.0
        %8763 = vmatpush.msra.mxu0 0.0
        %8764 = vmatpush.msra.mxu0 0.0
        %8765 = vmatpush.msra.mxu0 0.0
        %8766 = vmatpush.msra.mxu0 0.0
        %8767 = vmatpush.msra.mxu0 0.0
        %8768 = vmatpush.msra.mxu0 0.0
        %8769 = vmatpush.msra.mxu0 0.0
        %8770 = vmatpush.msra.mxu0 %v8729
        %8771 = vmatpush.msra.mxu0 %v8727
        %8772 = vmatpush.msra.mxu0 %v8725
        %8773 = vmatpush.msra.mxu0 %v8723
        %8774 = vmatpush.msra.mxu0 %v8721
        %8775 = vmatpush.msra.mxu0 %v8719
        %8776 = vmatpush.msra.mxu0 %v8717
        %8777 = vmatpush.msra.mxu0 %v8715
        %8778 = vmatmul.f32.gmra.mxu0 %v8739
        %v8779 = vpop.f32.mrf.mxu0
        %v8780 = vadd.f32 0.0, %v8779
        %8781 = vmatmul.f32.gmra.mxu0 %v8742
        %v8782 = vpop.f32.mrf.mxu0
        %v8783 = vadd.f32 0.0, %v8782
        %8784 = vmatmul.f32.gmra.mxu0 %v8745
        %v8785 = vpop.f32.mrf.mxu0
        %v8786 = vadd.f32 0.0, %v8785
        %8787 = vmatmul.f32.gmra.mxu0 %v8748
        %v8788 = vpop.f32.mrf.mxu0
        %v8789 = vadd.f32 0.0, %v8788
        %8790 = vmatmul.f32.gmra.mxu0 %v8751
        %v8791 = vpop.f32.mrf.mxu0
        %v8792 = vadd.f32 0.0, %v8791
        %8793 = vmatmul.f32.gmra.mxu0 %v8754
        %v8794 = vpop.f32.mrf.mxu0
        %v8795 = vadd.f32 0.0, %v8794
        %8796 = vmatmul.f32.gmra.mxu0 %v8757
        %v8797 = vpop.f32.mrf.mxu0
        %v8798 = vadd.f32 0.0, %v8797
        %8799 = vmatmul.f32.gmra.mxu0 %v8760
        %v8800 = vpop.f32.mrf.mxu0
        %v8801 = vadd.f32 0.0, %v8800
        %8802 = vdwg.mxu0
        %v8803 = vadd.f32 %v8368, %v8780
        %v8804 = vadd.f32 %v8371, %v8783
        %v8805 = vadd.f32 %v8374, %v8786
        %v8806 = vadd.f32 %v8377, %v8789
        %v8807 = vadd.f32 %v8380, %v8792
        %v8808 = vadd.f32 %v8383, %v8795
        %v8809 = vadd.f32 %v8386, %v8798
        %v8810 = vadd.f32 %v8389, %v8801
        %v8811 = vmul.f32 %v6407, %v5651
        %v8812 = vmul.f32 %v6408, %v5652
        %v8813 = vmul.f32 %v6409, %v5653
        %v8814 = vmul.f32 %v6410, %v5654
        %v8815 = vmul.f32 %v6411, %v5655
        %v8816 = vmul.f32 %v6412, %v5656
        %v8817 = vmul.f32 %v6413, %v5657
        %v8818 = vmul.f32 %v6414, %v5658
        %8819 = vrot.lane.b32.xlu0 %v5659, 96
        %v8820 = vpop.permute.xlu0 %8819
        %8821 = vrot.lane.b32.xlu0 %v5660, 96
        %v8822 = vpop.permute.xlu0 %8821
        %8823 = vrot.lane.b32.xlu0 %v5661, 96
        %v8824 = vpop.permute.xlu0 %8823
        %8825 = vrot.lane.b32.xlu0 %v5662, 96
        %v8826 = vpop.permute.xlu0 %8825
        %8827 = vrot.lane.b32.xlu0 %v5663, 96
        %v8828 = vpop.permute.xlu0 %8827
        %8829 = vrot.lane.b32.xlu0 %v5664, 96
        %v8830 = vpop.permute.xlu0 %8829
        %8831 = vrot.lane.b32.xlu0 %v5665, 96
        %v8832 = vpop.permute.xlu0 %8831
        %8833 = vrot.lane.b32.xlu0 %v5666, 96
        %v8834 = vpop.permute.xlu0 %8833
        %v8844 = vsel %vm1279, %v8811, 0
        %v8847 = vsel %vm1279, %v8812, 0
        %v8850 = vsel %vm1279, %v8813, 0
        %v8853 = vsel %vm1279, %v8814, 0
        %v8856 = vsel %vm1279, %v8815, 0
        %v8859 = vsel %vm1279, %v8816, 0
        %v8862 = vsel %vm1279, %v8817, 0
        %v8865 = vsel %vm1279, %v8818, 0
        %8867 = vmatpush.msra.mxu0 0.0
        %8868 = vmatpush.msra.mxu0 0.0
        %8869 = vmatpush.msra.mxu0 0.0
        %8870 = vmatpush.msra.mxu0 0.0
        %8871 = vmatpush.msra.mxu0 0.0
        %8872 = vmatpush.msra.mxu0 0.0
        %8873 = vmatpush.msra.mxu0 0.0
        %8874 = vmatpush.msra.mxu0 0.0
        %8875 = vmatpush.msra.mxu0 %v8834
        %8876 = vmatpush.msra.mxu0 %v8832
        %8877 = vmatpush.msra.mxu0 %v8830
        %8878 = vmatpush.msra.mxu0 %v8828
        %8879 = vmatpush.msra.mxu0 %v8826
        %8880 = vmatpush.msra.mxu0 %v8824
        %8881 = vmatpush.msra.mxu0 %v8822
        %8882 = vmatpush.msra.mxu0 %v8820
        %8883 = vmatmul.f32.gmra.mxu0 %v8844
        %v8884 = vpop.f32.mrf.mxu0
        %v8885 = vadd.f32 0.0, %v8884
        %8886 = vmatmul.f32.gmra.mxu0 %v8847
        %v8887 = vpop.f32.mrf.mxu0
        %v8888 = vadd.f32 0.0, %v8887
        %8889 = vmatmul.f32.gmra.mxu0 %v8850
        %v8890 = vpop.f32.mrf.mxu0
        %v8891 = vadd.f32 0.0, %v8890
        %8892 = vmatmul.f32.gmra.mxu0 %v8853
        %v8893 = vpop.f32.mrf.mxu0
        %v8894 = vadd.f32 0.0, %v8893
        %8895 = vmatmul.f32.gmra.mxu0 %v8856
        %v8896 = vpop.f32.mrf.mxu0
        %v8897 = vadd.f32 0.0, %v8896
        %8898 = vmatmul.f32.gmra.mxu0 %v8859
        %v8899 = vpop.f32.mrf.mxu0
        %v8900 = vadd.f32 0.0, %v8899
        %8901 = vmatmul.f32.gmra.mxu0 %v8862
        %v8902 = vpop.f32.mrf.mxu0
        %v8903 = vadd.f32 0.0, %v8902
        %8904 = vmatmul.f32.gmra.mxu0 %v8865
        %v8905 = vpop.f32.mrf.mxu0
        %v8906 = vadd.f32 0.0, %v8905
        %8907 = vdwg.mxu0
        %v8908 = vadd.f32 %v8488, %v8885
        %v8909 = vadd.f32 %v8489, %v8888
        %v8910 = vadd.f32 %v8490, %v8891
        %v8911 = vadd.f32 %v8491, %v8894
        %v8912 = vadd.f32 %v8492, %v8897
        %v8913 = vadd.f32 %v8493, %v8900
        %v8914 = vadd.f32 %v8494, %v8903
        %v8915 = vadd.f32 %v8495, %v8906
        %v8916 = vmul.f32 %v6807, %v5651
        %v8917 = vmul.f32 %v6808, %v5652
        %v8918 = vmul.f32 %v6809, %v5653
        %v8919 = vmul.f32 %v6810, %v5654
        %v8920 = vmul.f32 %v6811, %v5655
        %v8921 = vmul.f32 %v6812, %v5656
        %v8922 = vmul.f32 %v6813, %v5657
        %v8923 = vmul.f32 %v6814, %v5658
        %8924 = vrot.lane.b32.xlu0 %v5659, 88
        %v8925 = vpop.permute.xlu0 %8924
        %8926 = vrot.lane.b32.xlu0 %v5660, 88
        %v8927 = vpop.permute.xlu0 %8926
        %8928 = vrot.lane.b32.xlu0 %v5661, 88
        %v8929 = vpop.permute.xlu0 %8928
        %8930 = vrot.lane.b32.xlu0 %v5662, 88
        %v8931 = vpop.permute.xlu0 %8930
        %8932 = vrot.lane.b32.xlu0 %v5663, 88
        %v8933 = vpop.permute.xlu0 %8932
        %8934 = vrot.lane.b32.xlu0 %v5664, 88
        %v8935 = vpop.permute.xlu0 %8934
        %8936 = vrot.lane.b32.xlu0 %v5665, 88
        %v8937 = vpop.permute.xlu0 %8936
        %8938 = vrot.lane.b32.xlu0 %v5666, 88
        %v8939 = vpop.permute.xlu0 %8938
        %v8949 = vsel %vm1279, %v8916, 0
        %v8952 = vsel %vm1279, %v8917, 0
        %v8955 = vsel %vm1279, %v8918, 0
        %v8958 = vsel %vm1279, %v8919, 0
        %v8961 = vsel %vm1279, %v8920, 0
        %v8964 = vsel %vm1279, %v8921, 0
        %v8967 = vsel %vm1279, %v8922, 0
        %v8970 = vsel %vm1279, %v8923, 0
        %8972 = vmatpush.msra.mxu0 0.0
        %8973 = vmatpush.msra.mxu0 0.0
        %8974 = vmatpush.msra.mxu0 0.0
        %8975 = vmatpush.msra.mxu0 0.0
        %8976 = vmatpush.msra.mxu0 0.0
        %8977 = vmatpush.msra.mxu0 0.0
        %8978 = vmatpush.msra.mxu0 0.0
        %8979 = vmatpush.msra.mxu0 0.0
        %8980 = vmatpush.msra.mxu0 %v8939
        %8981 = vmatpush.msra.mxu0 %v8937
        %8982 = vmatpush.msra.mxu0 %v8935
        %8983 = vmatpush.msra.mxu0 %v8933
        %8984 = vmatpush.msra.mxu0 %v8931
        %8985 = vmatpush.msra.mxu0 %v8929
        %8986 = vmatpush.msra.mxu0 %v8927
        %8987 = vmatpush.msra.mxu0 %v8925
        %8988 = vmatmul.f32.gmra.mxu0 %v8949
        %v8989 = vpop.f32.mrf.mxu0
        %v8990 = vadd.f32 0.0, %v8989
        %8991 = vmatmul.f32.gmra.mxu0 %v8952
        %v8992 = vpop.f32.mrf.mxu0
        %v8993 = vadd.f32 0.0, %v8992
        %8994 = vmatmul.f32.gmra.mxu0 %v8955
        %v8995 = vpop.f32.mrf.mxu0
        %v8996 = vadd.f32 0.0, %v8995
        %8997 = vmatmul.f32.gmra.mxu0 %v8958
        %v8998 = vpop.f32.mrf.mxu0
        %v8999 = vadd.f32 0.0, %v8998
        %9000 = vmatmul.f32.gmra.mxu0 %v8961
        %v9001 = vpop.f32.mrf.mxu0
        %v9002 = vadd.f32 0.0, %v9001
        %9003 = vmatmul.f32.gmra.mxu0 %v8964
        %v9004 = vpop.f32.mrf.mxu0
        %v9005 = vadd.f32 0.0, %v9004
        %9006 = vmatmul.f32.gmra.mxu0 %v8967
        %v9007 = vpop.f32.mrf.mxu0
        %v9008 = vadd.f32 0.0, %v9007
        %9009 = vmatmul.f32.gmra.mxu0 %v8970
        %v9010 = vpop.f32.mrf.mxu0
        %v9011 = vadd.f32 0.0, %v9010
        %9012 = vdwg.mxu0
        %v9013 = vadd.f32 %v8593, %v8990
        %v9014 = vadd.f32 %v8594, %v8993
        %v9015 = vadd.f32 %v8595, %v8996
        %v9016 = vadd.f32 %v8596, %v8999
        %v9017 = vadd.f32 %v8597, %v9002
        %v9018 = vadd.f32 %v8598, %v9005
        %v9019 = vadd.f32 %v8599, %v9008
        %v9020 = vadd.f32 %v8600, %v9011
        %v9021 = vmul.f32 %v7207, %v5651
        %v9022 = vmul.f32 %v7208, %v5652
        %v9023 = vmul.f32 %v7209, %v5653
        %v9024 = vmul.f32 %v7210, %v5654
        %v9025 = vmul.f32 %v7211, %v5655
        %v9026 = vmul.f32 %v7212, %v5656
        %v9027 = vmul.f32 %v7213, %v5657
        %v9028 = vmul.f32 %v7214, %v5658
        %9029 = vrot.lane.b32.xlu0 %v5659, 80
        %v9030 = vpop.permute.xlu0 %9029
        %9031 = vrot.lane.b32.xlu0 %v5660, 80
        %v9032 = vpop.permute.xlu0 %9031
        %9033 = vrot.lane.b32.xlu0 %v5661, 80
        %v9034 = vpop.permute.xlu0 %9033
        %9035 = vrot.lane.b32.xlu0 %v5662, 80
        %v9036 = vpop.permute.xlu0 %9035
        %9037 = vrot.lane.b32.xlu0 %v5663, 80
        %v9038 = vpop.permute.xlu0 %9037
        %9039 = vrot.lane.b32.xlu0 %v5664, 80
        %v9040 = vpop.permute.xlu0 %9039
        %9041 = vrot.lane.b32.xlu0 %v5665, 80
        %v9042 = vpop.permute.xlu0 %9041
        %9043 = vrot.lane.b32.xlu0 %v5666, 80
        %v9044 = vpop.permute.xlu0 %9043
        %v9054 = vsel %vm1279, %v9021, 0
        %v9057 = vsel %vm1279, %v9022, 0
        %v9060 = vsel %vm1279, %v9023, 0
        %v9063 = vsel %vm1279, %v9024, 0
        %v9066 = vsel %vm1279, %v9025, 0
        %v9069 = vsel %vm1279, %v9026, 0
        %v9072 = vsel %vm1279, %v9027, 0
        %v9075 = vsel %vm1279, %v9028, 0
        %9077 = vmatpush.msra.mxu0 0.0
        %9078 = vmatpush.msra.mxu0 0.0
        %9079 = vmatpush.msra.mxu0 0.0
        %9080 = vmatpush.msra.mxu0 0.0
        %9081 = vmatpush.msra.mxu0 0.0
        %9082 = vmatpush.msra.mxu0 0.0
        %9083 = vmatpush.msra.mxu0 0.0
        %9084 = vmatpush.msra.mxu0 0.0
        %9085 = vmatpush.msra.mxu0 %v9044
        %9086 = vmatpush.msra.mxu0 %v9042
        %9087 = vmatpush.msra.mxu0 %v9040
        %9088 = vmatpush.msra.mxu0 %v9038
        %9089 = vmatpush.msra.mxu0 %v9036
        %9090 = vmatpush.msra.mxu0 %v9034
        %9091 = vmatpush.msra.mxu0 %v9032
        %9092 = vmatpush.msra.mxu0 %v9030
        %9093 = vmatmul.f32.gmra.mxu0 %v9054
        %v9094 = vpop.f32.mrf.mxu0
        %v9095 = vadd.f32 0.0, %v9094
        %9096 = vmatmul.f32.gmra.mxu0 %v9057
        %v9097 = vpop.f32.mrf.mxu0
        %v9098 = vadd.f32 0.0, %v9097
        %9099 = vmatmul.f32.gmra.mxu0 %v9060
        %v9100 = vpop.f32.mrf.mxu0
        %v9101 = vadd.f32 0.0, %v9100
        %9102 = vmatmul.f32.gmra.mxu0 %v9063
        %v9103 = vpop.f32.mrf.mxu0
        %v9104 = vadd.f32 0.0, %v9103
        %9105 = vmatmul.f32.gmra.mxu0 %v9066
        %v9106 = vpop.f32.mrf.mxu0
        %v9107 = vadd.f32 0.0, %v9106
        %9108 = vmatmul.f32.gmra.mxu0 %v9069
        %v9109 = vpop.f32.mrf.mxu0
        %v9110 = vadd.f32 0.0, %v9109
        %9111 = vmatmul.f32.gmra.mxu0 %v9072
        %v9112 = vpop.f32.mrf.mxu0
        %v9113 = vadd.f32 0.0, %v9112
        %9114 = vmatmul.f32.gmra.mxu0 %v9075
        %v9115 = vpop.f32.mrf.mxu0
        %v9116 = vadd.f32 0.0, %v9115
        %9117 = vdwg.mxu0
        %v9118 = vadd.f32 %v8698, %v9095
        %v9119 = vadd.f32 %v8699, %v9098
        %v9120 = vadd.f32 %v8700, %v9101
        %v9121 = vadd.f32 %v8701, %v9104
        %v9122 = vadd.f32 %v8702, %v9107
        %v9123 = vadd.f32 %v8703, %v9110
        %v9124 = vadd.f32 %v8704, %v9113
        %v9125 = vadd.f32 %v8705, %v9116
        %v9126 = vmul.f32 %v7607, %v5651
        %v9127 = vmul.f32 %v7608, %v5652
        %v9128 = vmul.f32 %v7609, %v5653
        %v9129 = vmul.f32 %v7610, %v5654
        %v9130 = vmul.f32 %v7611, %v5655
        %v9131 = vmul.f32 %v7612, %v5656
        %v9132 = vmul.f32 %v7613, %v5657
        %v9133 = vmul.f32 %v7614, %v5658
        %9134 = vrot.lane.b32.xlu0 %v5659, 72
        %v9135 = vpop.permute.xlu0 %9134
        %9136 = vrot.lane.b32.xlu0 %v5660, 72
        %v9137 = vpop.permute.xlu0 %9136
        %9138 = vrot.lane.b32.xlu0 %v5661, 72
        %v9139 = vpop.permute.xlu0 %9138
        %9140 = vrot.lane.b32.xlu0 %v5662, 72
        %v9141 = vpop.permute.xlu0 %9140
        %9142 = vrot.lane.b32.xlu0 %v5663, 72
        %v9143 = vpop.permute.xlu0 %9142
        %9144 = vrot.lane.b32.xlu0 %v5664, 72
        %v9145 = vpop.permute.xlu0 %9144
        %9146 = vrot.lane.b32.xlu0 %v5665, 72
        %v9147 = vpop.permute.xlu0 %9146
        %9148 = vrot.lane.b32.xlu0 %v5666, 72
        %v9149 = vpop.permute.xlu0 %9148
        %v9159 = vsel %vm1279, %v9126, 0
        %v9162 = vsel %vm1279, %v9127, 0
        %v9165 = vsel %vm1279, %v9128, 0
        %v9168 = vsel %vm1279, %v9129, 0
        %v9171 = vsel %vm1279, %v9130, 0
        %v9174 = vsel %vm1279, %v9131, 0
        %v9177 = vsel %vm1279, %v9132, 0
        %v9180 = vsel %vm1279, %v9133, 0
        %9182 = vmatpush.msra.mxu0 0.0
        %9183 = vmatpush.msra.mxu0 0.0
        %9184 = vmatpush.msra.mxu0 0.0
        %9185 = vmatpush.msra.mxu0 0.0
        %9186 = vmatpush.msra.mxu0 0.0
        %9187 = vmatpush.msra.mxu0 0.0
        %9188 = vmatpush.msra.mxu0 0.0
        %9189 = vmatpush.msra.mxu0 0.0
        %9190 = vmatpush.msra.mxu0 %v9149
        %9191 = vmatpush.msra.mxu0 %v9147
        %9192 = vmatpush.msra.mxu0 %v9145
        %9193 = vmatpush.msra.mxu0 %v9143
        %9194 = vmatpush.msra.mxu0 %v9141
        %9195 = vmatpush.msra.mxu0 %v9139
        %9196 = vmatpush.msra.mxu0 %v9137
        %9197 = vmatpush.msra.mxu0 %v9135
        %9198 = vmatmul.f32.gmra.mxu0 %v9159
        %v9199 = vpop.f32.mrf.mxu0
        %v9200 = vadd.f32 0.0, %v9199
        %9201 = vmatmul.f32.gmra.mxu0 %v9162
        %v9202 = vpop.f32.mrf.mxu0
        %v9203 = vadd.f32 0.0, %v9202
        %9204 = vmatmul.f32.gmra.mxu0 %v9165
        %v9205 = vpop.f32.mrf.mxu0
        %v9206 = vadd.f32 0.0, %v9205
        %9207 = vmatmul.f32.gmra.mxu0 %v9168
        %v9208 = vpop.f32.mrf.mxu0
        %v9209 = vadd.f32 0.0, %v9208
        %9210 = vmatmul.f32.gmra.mxu0 %v9171
        %v9211 = vpop.f32.mrf.mxu0
        %v9212 = vadd.f32 0.0, %v9211
        %9213 = vmatmul.f32.gmra.mxu0 %v9174
        %v9214 = vpop.f32.mrf.mxu0
        %v9215 = vadd.f32 0.0, %v9214
        %9216 = vmatmul.f32.gmra.mxu0 %v9177
        %v9217 = vpop.f32.mrf.mxu0
        %v9218 = vadd.f32 0.0, %v9217
        %9219 = vmatmul.f32.gmra.mxu0 %v9180
        %v9220 = vpop.f32.mrf.mxu0
        %v9221 = vadd.f32 0.0, %v9220
        %9222 = vdwg.mxu0
        %v9223 = vadd.f32 %v8803, %v9200
        %v9224 = vadd.f32 %v8804, %v9203
        %v9225 = vadd.f32 %v8805, %v9206
        %v9226 = vadd.f32 %v8806, %v9209
        %v9227 = vadd.f32 %v8807, %v9212
        %v9228 = vadd.f32 %v8808, %v9215
        %v9229 = vadd.f32 %v8809, %v9218
        %v9230 = vadd.f32 %v8810, %v9221
        %9239 = vrot.lane.b32.xlu0 %v9013, 8
        %v9240 = vpop.permute.xlu0 %9239
        %9241 = vrot.lane.b32.xlu0 %v9014, 8
        %v9242 = vpop.permute.xlu0 %9241
        %9243 = vrot.lane.b32.xlu0 %v9015, 8
        %v9244 = vpop.permute.xlu0 %9243
        %9245 = vrot.lane.b32.xlu0 %v9016, 8
        %v9246 = vpop.permute.xlu0 %9245
        %9247 = vrot.lane.b32.xlu0 %v9017, 8
        %v9248 = vpop.permute.xlu0 %9247
        %9249 = vrot.lane.b32.xlu0 %v9018, 8
        %v9250 = vpop.permute.xlu0 %9249
        %9251 = vrot.lane.b32.xlu0 %v9019, 8
        %v9252 = vpop.permute.xlu0 %9251
        %9253 = vrot.lane.b32.xlu0 %v9020, 8
        %v9254 = vpop.permute.xlu0 %9253
        %9271 = vrot.lane.b32.xlu0 %v9118, 16
        %v9272 = vpop.permute.xlu0 %9271
        %9273 = vrot.lane.b32.xlu0 %v9119, 16
        %v9274 = vpop.permute.xlu0 %9273
        %9275 = vrot.lane.b32.xlu0 %v9120, 16
        %v9276 = vpop.permute.xlu0 %9275
        %9277 = vrot.lane.b32.xlu0 %v9121, 16
        %v9278 = vpop.permute.xlu0 %9277
        %9279 = vrot.lane.b32.xlu0 %v9122, 16
        %v9280 = vpop.permute.xlu0 %9279
        %9281 = vrot.lane.b32.xlu0 %v9123, 16
        %v9282 = vpop.permute.xlu0 %9281
        %9283 = vrot.lane.b32.xlu0 %v9124, 16
        %v9284 = vpop.permute.xlu0 %9283
        %9285 = vrot.lane.b32.xlu0 %v9125, 16
        %v9286 = vpop.permute.xlu0 %9285
        %9303 = vrot.lane.b32.xlu0 %v9223, 24
        %v9304 = vpop.permute.xlu0 %9303
        %9305 = vrot.lane.b32.xlu0 %v9224, 24
        %v9306 = vpop.permute.xlu0 %9305
        %9307 = vrot.lane.b32.xlu0 %v9225, 24
        %v9308 = vpop.permute.xlu0 %9307
        %9309 = vrot.lane.b32.xlu0 %v9226, 24
        %v9310 = vpop.permute.xlu0 %9309
        %9311 = vrot.lane.b32.xlu0 %v9227, 24
        %v9312 = vpop.permute.xlu0 %9311
        %9313 = vrot.lane.b32.xlu0 %v9228, 24
        %v9314 = vpop.permute.xlu0 %9313
        %9315 = vrot.lane.b32.xlu0 %v9229, 24
        %v9316 = vpop.permute.xlu0 %9315
        %9317 = vrot.lane.b32.xlu0 %v9230, 24
        %v9318 = vpop.permute.xlu0 %9317
        %v9327 = vsel %vm539, %v8908, %v9240
        %v9328 = vsel %vm539, %v8909, %v9242
        %v9329 = vsel %vm539, %v8910, %v9244
        %v9330 = vsel %vm539, %v8911, %v9246
        %v9331 = vsel %vm539, %v8912, %v9248
        %v9332 = vsel %vm539, %v8913, %v9250
        %v9333 = vsel %vm539, %v8914, %v9252
        %v9334 = vsel %vm539, %v8915, %v9254
        %v9335 = vsel %vm1253, %v9327, %v9272
        %v9336 = vsel %vm1253, %v9328, %v9274
        %v9337 = vsel %vm1253, %v9329, %v9276
        %v9338 = vsel %vm1253, %v9330, %v9278
        %v9339 = vsel %vm1253, %v9331, %v9280
        %v9340 = vsel %vm1253, %v9332, %v9282
        %v9341 = vsel %vm1253, %v9333, %v9284
        %v9342 = vsel %vm1253, %v9334, %v9286
        %v9343 = vsel %vm4385, %v9335, %v9304
        %v9344 = vsel %vm4385, %v9336, %v9306
        %v9345 = vsel %vm4385, %v9337, %v9308
        %v9346 = vsel %vm4385, %v9338, %v9310
        %v9347 = vsel %vm4385, %v9339, %v9312
        %v9348 = vsel %vm4385, %v9340, %v9314
        %v9349 = vsel %vm4385, %v9341, %v9316
        %v9350 = vsel %vm4385, %v9342, %v9318
        %v9351 = vld [vmem:[%s4] sm:$0xff]
        %v9352 = vld [vmem:[%s4 + $0x8] sm:$0xff]
        %v9353 = vld [vmem:[%s4 + $0x10] sm:$0xff]
        %v9354 = vld [vmem:[%s4 + $0x18] sm:$0xff]
        %v9355 = vld [vmem:[%s5] sm:$0x1]
        %v9357 = vperm.slane %v9355, 0
        %v9360 = vsel %vm302, %v9343, 0
        %v9363 = vsel %vm302, %v9344, 0
        %v9366 = vsel %vm302, %v9345, 0
        %v9369 = vsel %vm302, %v9346, 0
        %v9372 = vsel %vm302, %v9347, 0
        %v9375 = vsel %vm302, %v9348, 0
        %v9378 = vsel %vm302, %v9349, 0
        %v9381 = vsel %vm302, %v9350, 0
        %9383 = vmatpush.msra.mxu0 0.0
        %9384 = vmatpush.msra.mxu0 0.0
        %9385 = vmatpush.msra.mxu0 0.0
        %9386 = vmatpush.msra.mxu0 0.0
        %9387 = vmatpush.msra.mxu0 0.0
        %9388 = vmatpush.msra.mxu0 0.0
        %9389 = vmatpush.msra.mxu0 0.0
        %9390 = vmatpush.msra.mxu0 0.0
        %9391 = vmatpush.msra.mxu0 0.0
        %9392 = vmatpush.msra.mxu0 0.0
        %9393 = vmatpush.msra.mxu0 0.0
        %9394 = vmatpush.msra.mxu0 0.0
        %9395 = vmatpush.msra.mxu0 %v9354
        %9396 = vmatpush.msra.mxu0 %v9353
        %9397 = vmatpush.msra.mxu0 %v9352
        %9398 = vmatpush.msra.mxu0 %v9351
        %9399 = vmatmul.f32.gmra.mxu0 %v9360
        %v9400 = vpop.f32.mrf.mxu0
        %v9401 = vadd.f32 %v9357, %v9400
        %9402 = vmatmul.f32.gmra.mxu0 %v9363
        %v9403 = vpop.f32.mrf.mxu0
        %v9404 = vadd.f32 %v9357, %v9403
        %9405 = vmatmul.f32.gmra.mxu0 %v9366
        %v9406 = vpop.f32.mrf.mxu0
        %v9407 = vadd.f32 %v9357, %v9406
        %9408 = vmatmul.f32.gmra.mxu0 %v9369
        %v9409 = vpop.f32.mrf.mxu0
        %v9410 = vadd.f32 %v9357, %v9409
        %9411 = vmatmul.f32.gmra.mxu0 %v9372
        %v9412 = vpop.f32.mrf.mxu0
        %v9413 = vadd.f32 %v9357, %v9412
        %9414 = vmatmul.f32.gmra.mxu0 %v9375
        %v9415 = vpop.f32.mrf.mxu0
        %v9416 = vadd.f32 %v9357, %v9415
        %9417 = vmatmul.f32.gmra.mxu0 %v9378
        %v9418 = vpop.f32.mrf.mxu0
        %v9419 = vadd.f32 %v9357, %v9418
        %9420 = vmatmul.f32.gmra.mxu0 %v9381
        %v9421 = vpop.f32.mrf.mxu0
        %v9422 = vadd.f32 %v9357, %v9421
        %9423 = vdwg.mxu0
        %9424 = vst.msk [vmem:[%s289] sm:$0xff] %vm302, %v9401
        %9425 = vst.msk [vmem:[%s289 + $0x8] sm:$0xff] %vm302, %v9404
        %9426 = vst.msk [vmem:[%s289 + $0x10] sm:$0xff] %vm302, %v9407
        %9427 = vst.msk [vmem:[%s289 + $0x18] sm:$0xff] %vm302, %v9410
        %9428 = vst.msk [vmem:[%s289 + $0x20] sm:$0xff] %vm302, %v9413
        %9429 = vst.msk [vmem:[%s289 + $0x28] sm:$0xff] %vm302, %v9416
        %9430 = vst.msk [vmem:[%s289 + $0x30] sm:$0xff] %vm302, %v9419
        %9431 = vst.msk [vmem:[%s289 + $0x38] sm:$0xff] %vm302, %v9422
        %v9432 = vsel %vm1253, %v6205, %v6720
        %v9433 = vsel %vm1253, %v6220, %v6722
        %v9434 = vsel %vm1253, %v6235, %v6724
        %v9435 = vsel %vm1253, %v6250, %v6726
        %v9436 = vsel %vm1253, %v6265, %v6728
        %v9437 = vsel %vm1253, %v6280, %v6730
        %v9438 = vsel %vm1253, %v6295, %v6732
        %v9439 = vsel %vm1253, %v6310, %v6734
        %v9440 = vsel %vm302, %v9432, %v7144
        %v9441 = vsel %vm302, %v9433, %v7146
        %v9442 = vsel %vm302, %v9434, %v7148
        %v9443 = vsel %vm302, %v9435, %v7150
        %v9444 = vsel %vm302, %v9436, %v7152
        %v9445 = vsel %vm302, %v9437, %v7154
        %v9446 = vsel %vm302, %v9438, %v7156
        %v9447 = vsel %vm302, %v9439, %v7158
        %v9448 = vsel %vm1270, %v9440, %v7568
        %v9449 = vsel %vm1270, %v9441, %v7570
        %v9450 = vsel %vm1270, %v9442, %v7572
        %v9451 = vsel %vm1270, %v9443, %v7574
        %v9452 = vsel %vm1270, %v9444, %v7576
        %v9453 = vsel %vm1270, %v9445, %v7578
        %v9454 = vsel %vm1270, %v9446, %v7580
        %v9455 = vsel %vm1270, %v9447, %v7582
        %9456 = vst.msk [vmem:[%s279] sm:$0xff] %vm1279, %v9448
        %9457 = vst.msk [vmem:[%s279 + $0x8] sm:$0xff] %vm1279, %v9449
        %9458 = vst.msk [vmem:[%s279 + $0x10] sm:$0xff] %vm1279, %v9450
        %9459 = vst.msk [vmem:[%s279 + $0x18] sm:$0xff] %vm1279, %v9451
        %9460 = vst.msk [vmem:[%s279 + $0x20] sm:$0xff] %vm1279, %v9452
        %9461 = vst.msk [vmem:[%s279 + $0x28] sm:$0xff] %vm1279, %v9453
        %9462 = vst.msk [vmem:[%s279 + $0x30] sm:$0xff] %vm1279, %v9454
        %9463 = vst.msk [vmem:[%s279 + $0x38] sm:$0xff] %vm1279, %v9455
        %p9464 = scmp.lt.s32.totalorder %s22, 1
        %s9465 = scalar_select %p9464, %s22, 1
        %s9466 = smul.addr %s9465, 8
        %s9467 = smul.addr %s9466, 8
        %s9468 = scalar_lea.vmem %s6, %s9467
        %s9469 = sand.u32 %s187, 1
        %s9470 = scalar_lea.sflag [#allocation5], %s9469
        %s9471 = sand.u32 %s187, 1
        %s9472 = smul.addr %s9471, 64
        %s9473 = scalar_lea.vmem [#allocation4], %s9472
        // Predicated region
        $region45: #{tpu_custom_call.1} parent=43 // pred_check
          %p9474 = pneg %p171
        $region46: #{tpu_custom_call.1} parent=43 // pred_check_branch
          %9476 = sbr.rel (%p9474) target = $region48
        $region47: #{tpu_custom_call.1} parent=43 // pred_region
          _
        $region48: #{tpu_custom_call.1} parent=43 // pred_fallthru
          _
        // Predicated region
        $region49: #{tpu_custom_call.1} parent=43 // pred_check
          %p9477 = pneg %p197
        $region50: #{tpu_custom_call.1} parent=43 // pred_check_branch
          %9479 = sbr.rel (%p9477) target = $region52
        $region51: #{tpu_custom_call.1} parent=43 // pred_region
          %9481 = vsyncadd %s9470, 0
          %s9482 = smul.addr %s22, 8
          %s9483 = smul.addr %s9482, 8
          %s9484 = scalar_lea.hbm %s7, %s9483
          %s9485 = sshll.u32 %s9473, 4
          %s9486 = int_to_ptr.vmem [resolvable:$true] %s9485
          %s9487 = sshll.u32 %s9484, 4
          %s9488 = int_to_ptr.hbm [resolvable:$true] %s9487
          %9493 = dma.vmem_to_hbm [thread:$0]  %s9486, 1024, %s9488, %s9470, 128, 128, 8
        $region52: #{tpu_custom_call.1} parent=43 // pred_fallthru
          _
      $region44: #{tpu_custom_call.1} parent=5 // pred_fallthru
        _
      %p9494 = scmp.le.s32.totalorder 2, %s17
      // Predicated region
      $region53: #{tpu_custom_call.1} parent=5 // pred_check
        %p9495 = pneg %p9494
      $region54: #{tpu_custom_call.1} parent=5 // pred_check_branch
        %9497 = sbr.rel (%p9495) target = $region56
      $region55: #{tpu_custom_call.1} parent=5 // pred_region
        %s9498 = ssub.s32 %s17, 2
        // Predicated region
        $region57: #{tpu_custom_call.1} parent=55 // pred_check
          %p9499 = pneg %p177
        $region58: #{tpu_custom_call.1} parent=55 // pred_check_branch
          %9501 = sbr.rel (%p9499) target = $region60
        $region59: #{tpu_custom_call.1} parent=55 // pred_region
          %p9502 = scmp.lt.s32.totalorder %s23, 1
          %s9503 = scalar_select %p9502, %s23, 1
          %s9504 = smul.addr %s9503, 8
          %s9505 = smul.addr %s9504, 8
          %s9506 = scalar_lea.vmem %s6, %s9505
        $region60: #{tpu_custom_call.1} parent=55 // pred_fallthru
          _
        // Predicated region
        $region61: #{tpu_custom_call.1} parent=55 // pred_check
          %p9507 = pneg %p203
        $region62: #{tpu_custom_call.1} parent=55 // pred_check_branch
          %9509 = sbr.rel (%p9507) target = $region64
        $region63: #{tpu_custom_call.1} parent=55 // pred_region
          %s9510 = sand.u32 %s188, 1
          %s9511 = scalar_lea.sflag [#allocation5], %s9510
          %s9512 = sand.u32 %s188, 1
          %s9513 = smul.addr %s9512, 64
          %s9514 = scalar_lea.vmem [#allocation4], %s9513
          %9516 = dma.done %s9511, 1024
        $region64: #{tpu_custom_call.1} parent=55 // pred_fallthru
          _
      $region56: #{tpu_custom_call.1} parent=5 // pred_fallthru
        _
    $region6: #{tpu_custom_call.1} parent=1 // loop_footer
      %s21 = sadd.s32 1, %s17
    $region7: #{tpu_custom_call.1} parent=1 // loop_footer_branch
      %16 = sbr.rel target = $region3
    $region8: #{tpu_custom_call.1} parent=1 // loop_exit
      _
    %9517 = vsyncpa [#allocation5], 1
    %s9518 = scalar_lea.sflag [#allocation5], 1
    %9519 = vsyncpa %s9518, 1

</llo_original>
